<compile_context>
chip_gen: v5e
topology: v5e:2x2
jax: 0.10.0
libtpu: 0.0.40
codegen_flags: <defaults>
</compile_context>

<pallas_src>
import jax
import jax.numpy as jnp
from jax import lax
from jax.experimental import pallas as pl
from jax.experimental.pallas import tpu as pltpu

HIDDEN = 64          # nn.GRU hidden_size
HIDDEN_PAD = 128     # hidden padded to one full lane slab
EMB_DIM = 768
NUM_LAYERS = 6
NUM_CLASSES = 2


# --------------------------------------------------------------------------
# Fused Pallas kernel: 6 GRU layers + Linear/ReLU/Linear head
# --------------------------------------------------------------------------
def fused_gru_head_kernel(x_ref,
                          w_ih0_ref, b_gi0_ref, w_hh0_ref, b_hn0_ref,
                          w_ihr_ref, b_gir_ref, w_hhr_ref, b_hnr_ref,
                          w1_ref, b1_ref, w2_ref, b2_ref,
                          out_ref):
    """x_ref: [T, bt, 768] bf16 time-major embeddings for this batch tile.

    Weights are pre-padded so each gate occupies a full 128-lane slab
    (gate offsets 0, 128, 256) and pre-cast to bf16; biases stay f32.
    """
    T, bt, D = x_ref.shape
    HP = out_ref.shape[-1]          # 128
    G = 3 * HP                      # 384

    def run_layer(gi, w_hh_bf16, b_hn, need_seq):
        # gi: [T*bt, G] f32, time-major rows (row = t*bt + b), b_ih (+ b_hh for the
        # r/z gates) already folded in.  w_hh_bf16: [HP, G] bf16.
        # b_hn: [1, HP] f32 (b_hh_n; must stay inside r*(...) per nn.GRU).
        b_hn_b = jnp.broadcast_to(b_hn, (bt, HP))      # hoisted out of time loop
        h = jnp.zeros((bt, HP), jnp.float32)
        seq = []
        for t in range(T):                             # fully unrolled (static T)
            gi_t = gi[t * bt:(t + 1) * bt, :]          # contiguous sublane slab
            gh = jnp.dot(h.astype(jnp.bfloat16), w_hh_bf16,
                         preferred_element_type=jnp.float32)       # [bt, G]
            r = jax.nn.sigmoid(gi_t[:, 0:HP] + gh[:, 0:HP])
            z = jax.nn.sigmoid(gi_t[:, HP:2 * HP] + gh[:, HP:2 * HP])
            n = jnp.tanh(gi_t[:, 2 * HP:3 * HP] + r * (gh[:, 2 * HP:3 * HP] + b_hn_b))
            h = (1.0 - z) * n + z * h
            if need_seq:
                seq.append(h)
        if need_seq:
            # [T*bt, HP] f32 (f32 chunks are whole-vreg aligned -> free concat);
            # cast to bf16 once at the consuming matmul.
            return h, jnp.concatenate(seq, axis=0)
        return h, None

    # ---- Layer 0: hoisted input projection over the whole sequence ----------
    x = x_ref[...].reshape(T * bt, D)                  # already bf16, time-major
    gi = jnp.dot(x, w_ih0_ref[...],
                 preferred_element_type=jnp.float32) + b_gi0_ref[...]
    h, seq = run_layer(gi, w_hh0_ref[...], b_hn0_ref[...], need_seq=True)

    # ---- Layers 1..5 (stacked weights) ---------------------------------------
    n_rest = w_ihr_ref.shape[0]
    for l in range(n_rest):
        gi = jnp.dot(seq.astype(jnp.bfloat16), w_ihr_ref[l],
                     preferred_element_type=jnp.float32) + b_gir_ref[l]
        h, seq = run_layer(gi, w_hhr_ref[l], b_hnr_ref[l],
                           need_seq=(l < n_rest - 1))  # last layer: h only

    # ---- Head: Linear(64,64) -> ReLU -> Linear(64,2) on last-timestep hidden --
    y = jnp.dot(h.astype(jnp.bfloat16), w1_ref[...],
                preferred_element_type=jnp.float32) + b1_ref[...]
    y = jnp.maximum(y, 0.0)
    logits = jnp.dot(y.astype(jnp.bfloat16), w2_ref[...],
                     preferred_element_type=jnp.float32) + b2_ref[...]
    out_ref[...] = logits                              # [bt, 128]; cols 2..127 zero


# --------------------------------------------------------------------------
# Wrapper
# --------------------------------------------------------------------------
def roberta_gru_forward(embs, params, batch_tile=None):
    """embs: [B, T, 768] float32 (output of the frozen XLM-R encoder)."""
    B, T, D = embs.shape

    # Pad batch to a multiple of 8 so all tiles are full-sublane (no masked stores).
    B_pad = max(8, ((B + 7) // 8) * 8)
    if B_pad != B:
        embs = jnp.pad(embs, ((0, B_pad - B), (0, 0), (0, 0)))
    # Time-major, bf16: halves the HBM->VMEM DMA and gives contiguous per-t gi rows.
    embs_tm = jnp.transpose(embs, (1, 0, 2)).astype(jnp.bfloat16)   # [T, B_pad, D]

    if batch_tile is None:
        if B_pad >= 16 and B_pad % 16 == 0:
            batch_tile = B_pad // 2     # two grid steps -> both TensorCores on v7x
        else:
            batch_tile = B_pad          # single tile (demo size)
    assert B_pad % batch_tile == 0 and batch_tile % 8 == 0
    grid = (B_pad // batch_tile,)

    def full_spec(arr):
        nd = arr.ndim
        # NOTE: constant index map -> re-fetch never happens; pl.Buffered(1) would
        # also drop the second VMEM copy of the weights (minor; left at default).
        return pl.BlockSpec(arr.shape, lambda i, _nd=nd: (0,) * _nd)

    operands = (embs_tm,
                params["w_ih0"], params["b_gi0"], params["w_hh0"], params["b_hn0"],
                params["w_ih_r"], params["b_gi_r"], params["w_hh_r"], params["b_hn_r"],
                params["w1"], params["b1"], params["w2"], params["b2"])

    in_specs = [pl.BlockSpec((T, batch_tile, D), lambda i: (0, i, 0))]
    in_specs += [full_spec(a) for a in operands[1:]]

    out = pl.pallas_call(
        fused_gru_head_kernel,
        out_shape=jax.ShapeDtypeStruct((B_pad, HIDDEN_PAD), jnp.float32),
        grid=grid,
        in_specs=in_specs,
        out_specs=pl.BlockSpec((batch_tile, HIDDEN_PAD), lambda i: (i, 0)),
        compiler_params=pltpu.CompilerParams(
            dimension_semantics=("parallel",),
            vmem_limit_bytes=32 * 1024 * 1024),
    )(*operands)
    return out[:B, :NUM_CLASSES]


# --------------------------------------------------------------------------
# Parameter preparation: pad gates to 128-lane slabs, fold biases, cast to bf16
# --------------------------------------------------------------------------
def prepare_params(raw):
    f32 = jnp.float32
    H, HP = HIDDEN, HIDDEN_PAD

    def pad_gate_cols(w):                       # [D, 3H] -> [D, 3*HP]
        out = jnp.zeros((w.shape[0], 3 * HP), f32)
        for g in range(3):
            out = out.at[:, g * HP:g * HP + H].set(w[:, g * H:(g + 1) * H])
        return out

    def pad_rows(w):                            # [H, X] -> [HP, X]
        out = jnp.zeros((HP, w.shape[1]), w.dtype)
        return out.at[:w.shape[0], :].set(w)

    layers = []
    for idx, (w_ih, w_hh, b_ih, b_hh) in enumerate(raw["gru"]):
        w_ih_p = pad_gate_cols(w_ih)
        if idx > 0:
            w_ih_p = pad_rows(w_ih_p)           # [HP, 3*HP]
        w_hh_p = pad_rows(pad_gate_cols(w_hh))  # [HP, 3*HP]
        # Fold b_ih (all gates) + b_hh (r,z gates) into the hoisted gi bias.
        b_gi = jnp.zeros((1, 3 * HP), f32)
        b_gi = b_gi.at[0, 0:H].set(b_ih[0:H] + b_hh[0:H])
        b_gi = b_gi.at[0, HP:HP + H].set(b_ih[H:2 * H] + b_hh[H:2 * H])
        b_gi = b_gi.at[0, 2 * HP:2 * HP + H].set(b_ih[2 * H:3 * H])
        # b_hh_n must stay inside r*(...) to match PyTorch nn.GRU.
        b_hn = jnp.zeros((1, HP), f32).at[0, :H].set(b_hh[2 * H:3 * H])
        layers.append((w_ih_p.astype(jnp.bfloat16), b_gi,
                       w_hh_p.astype(jnp.bfloat16), b_hn))

    w1p = jnp.zeros((HP, HP), f32).at[:H, :H].set(raw["w1"])
    b1p = jnp.zeros((1, HP), f32).at[0, :H].set(raw["b1"])
    w2p = jnp.zeros((HP, HP), f32).at[:H, :NUM_CLASSES].set(raw["w2"])
    b2p = jnp.zeros((1, HP), f32).at[0, :NUM_CLASSES].set(raw["b2"])

    return {
        "w_ih0": layers[0][0], "b_gi0": layers[0][1],
        "w_hh0": layers[0][2], "b_hn0": layers[0][3],
        "w_ih_r": jnp.stack([l[0] for l in layers[1:]]),   # [5, 128, 384] bf16
        "b_gi_r": jnp.stack([l[1] for l in layers[1:]]),   # [5, 1, 384]   f32
        "w_hh_r": jnp.stack([l[2] for l in layers[1:]]),   # [5, 128, 384] bf16
        "b_hn_r": jnp.stack([l[3] for l in layers[1:]]),   # [5, 1, 128]   f32
        "w1": w1p.astype(jnp.bfloat16), "b1": b1p,
        "w2": w2p.astype(jnp.bfloat16), "b2": b2p,
    }


# --------------------------------------------------------------------------
# Deterministic raw-parameter init (PyTorch-style uniform(-1/sqrt(H), 1/sqrt(H)))
# --------------------------------------------------------------------------
def init_params(key):
    bound = 1.0 / jnp.sqrt(jnp.float32(HIDDEN))
    gru_params = []
    for layer in range(NUM_LAYERS):
        d_in = EMB_DIM if layer == 0 else HIDDEN
        key, k1, k2, k3, k4 = jax.random.split(key, 5)
        w_ih_T = jax.random.uniform(k1, (d_in, 3 * HIDDEN), jnp.float32, -bound, bound)
        w_hh_T = jax.random.uniform(k2, (HIDDEN, 3 * HIDDEN), jnp.float32, -bound, bound)
        b_ih = jax.random.uniform(k3, (3 * HIDDEN,), jnp.float32, -bound, bound)
        b_hh = jax.random.uniform(k4, (3 * HIDDEN,), jnp.float32, -bound, bound)
        gru_params.append((w_ih_T, w_hh_T, b_ih, b_hh))

    key, k1, k2, k3, k4 = jax.random.split(key, 5)
    w1 = jax.random.uniform(k1, (HIDDEN, HIDDEN), jnp.float32, -bound, bound)
    b1 = jax.random.uniform(k2, (HIDDEN,), jnp.float32, -bound, bound)
    w2 = jax.random.uniform(k3, (HIDDEN, NUM_CLASSES), jnp.float32, -bound, bound)
    b2 = jax.random.uniform(k4, (NUM_CLASSES,), jnp.float32, -bound, bound)
    return {"gru": gru_params, "w1": w1, "b1": b1, "w2": w2, "b2": b2}


# --------------------------------------------------------------------------
# Pure-JAX reference (original module math). mxu_dtype=bf16 mirrors kernel matmuls.
# --------------------------------------------------------------------------
def reference_forward(embs, raw, mxu_dtype=jnp.float32):
    H = HIDDEN

    def mm(a, b):
        return jnp.dot(a.astype(mxu_dtype), b.astype(mxu_dtype),
                       preferred_element_type=jnp.float32)

    x = jnp.transpose(embs, (1, 0, 2)).astype(jnp.float32)   # [T, B, D]
    for (w_ih, w_hh, b_ih, b_hh) in raw["gru"]:
        B = x.shape[1]
        h0 = jnp.zeros((B, H), jnp.float32)

        def step(h, x_t, w_ih=w_ih, w_hh=w_hh, b_ih=b_ih, b_hh=b_hh):
            gi = mm(x_t, w_ih) + b_ih
            gh = mm(h, w_hh) + b_hh
            r = jax.nn.sigmoid(gi[:, 0:H] + gh[:, 0:H])
            z = jax.nn.sigmoid(gi[:, H:2 * H] + gh[:, H:2 * H])
            n = jnp.tanh(gi[:, 2 * H:] + r * gh[:, 2 * H:])
            h_new = (1.0 - z) * n + z * h
            return h_new, h_new

        _, x = lax.scan(step, h0, x)
    h_last = x[-1]
    y = jnp.maximum(mm(h_last, raw["w1"]) + raw["b1"], 0.0)
    return mm(y, raw["w2"]) + raw["b2"]


# --------------------------------------------------------------------------
if __name__ == "__main__":
    key = jax.random.PRNGKey(0)
    key, pkey, xkey = jax.random.split(key, 3)

    raw = init_params(pkey)
    params = prepare_params(raw)

    B, T = 2, 8
    # Synthetic stand-in for the XLM-R encoder output (frozen / external model).
    embs = jax.random.normal(xkey, (B, T, EMB_DIM), dtype=jnp.float32)

    out = jax.block_until_ready(roberta_gru_forward(embs, params))
    assert out.shape == (B, NUM_CLASSES)

    # Tight check against a reference that mirrors the kernel math (bf16 matmuls).
    ref_bf16 = jax.block_until_ready(reference_forward(embs, raw, jnp.bfloat16))
    assert jnp.allclose(out, ref_bf16, atol=5e-3, rtol=5e-3), (out, ref_bf16)

    # Loose check against the original full-f32 module semantics.
    ref_f32 = jax.block_until_ready(reference_forward(embs, raw, jnp.float32))
    assert jnp.allclose(out, ref_f32, atol=1e-1, rtol=1e-1), (out, ref_f32)

    print("KERNEL_OK")
</pallas_src>

<mosaic_0001>
module attributes {stable_mosaic.version = 11 : i64} {
  func.func @fused_gru_head_kernel(%arg0: i32, %arg1: memref<8x8x768xbf16, #tpu.memory_space<vmem>>, %arg2: memref<768x384xbf16, #tpu.memory_space<vmem>>, %arg3: memref<1x384xf32, #tpu.memory_space<vmem>>, %arg4: memref<128x384xbf16, #tpu.memory_space<vmem>>, %arg5: memref<1x128xf32, #tpu.memory_space<vmem>>, %arg6: memref<5x128x384xbf16, #tpu.memory_space<vmem>>, %arg7: memref<5x1x384xf32, #tpu.memory_space<vmem>>, %arg8: memref<5x128x384xbf16, #tpu.memory_space<vmem>>, %arg9: memref<5x1x128xf32, #tpu.memory_space<vmem>>, %arg10: memref<128x128xbf16, #tpu.memory_space<vmem>>, %arg11: memref<1x128xf32, #tpu.memory_space<vmem>>, %arg12: memref<128x128xbf16, #tpu.memory_space<vmem>>, %arg13: memref<1x128xf32, #tpu.memory_space<vmem>>, %arg14: memref<8x128xf32, #tpu.memory_space<vmem>>) attributes {dimension_semantics = [#tpu.dimension_semantics<parallel>], iteration_bounds = array<i64: 1>, scalar_prefetch = 0 : i64, scratch_operands = 0 : i64, tpu.core_type = #tpu.core_type<tc>, window_params = [{transform_indices = @transform_0, window_bounds = array<i64: 8, 8, 768>}, {pipeline_mode = #tpu.pipeline_mode<synchronous>, transform_indices = @transform_1, window_bounds = array<i64: 768, 384>}, {pipeline_mode = #tpu.pipeline_mode<synchronous>, transform_indices = @transform_2, window_bounds = array<i64: 1, 384>}, {pipeline_mode = #tpu.pipeline_mode<synchronous>, transform_indices = @transform_3, window_bounds = array<i64: 128, 384>}, {pipeline_mode = #tpu.pipeline_mode<synchronous>, transform_indices = @transform_4, window_bounds = array<i64: 1, 128>}, {pipeline_mode = #tpu.pipeline_mode<synchronous>, transform_indices = @transform_5, window_bounds = array<i64: 5, 128, 384>}, {pipeline_mode = #tpu.pipeline_mode<synchronous>, transform_indices = @transform_6, window_bounds = array<i64: 5, 1, 384>}, {pipeline_mode = #tpu.pipeline_mode<synchronous>, transform_indices = @transform_7, window_bounds = array<i64: 5, 128, 384>}, {pipeline_mode = #tpu.pipeline_mode<synchronous>, transform_indices = @transform_8, window_bounds = array<i64: 5, 1, 128>}, {pipeline_mode = #tpu.pipeline_mode<synchronous>, transform_indices = @transform_9, window_bounds = array<i64: 128, 128>}, {pipeline_mode = #tpu.pipeline_mode<synchronous>, transform_indices = @transform_10, window_bounds = array<i64: 1, 128>}, {pipeline_mode = #tpu.pipeline_mode<synchronous>, transform_indices = @transform_11, window_bounds = array<i64: 128, 128>}, {pipeline_mode = #tpu.pipeline_mode<synchronous>, transform_indices = @transform_12, window_bounds = array<i64: 1, 128>}, {transform_indices = @transform_13, window_bounds = array<i64: 8, 128>}]} {
    %c0 = arith.constant 0 : index
    %c0_0 = arith.constant 0 : index
    %c0_1 = arith.constant 0 : index
    %0 = vector.load %arg1[%c0, %c0_0, %c0_1] : memref<8x8x768xbf16, #tpu.memory_space<vmem>>, vector<8x8x768xbf16>
    %1 = vector.shape_cast %0 : vector<8x8x768xbf16> to vector<64x768xbf16>
    %c0_2 = arith.constant 0 : index
    %c0_3 = arith.constant 0 : index
    %2 = vector.load %arg2[%c0_2, %c0_3] : memref<768x384xbf16, #tpu.memory_space<vmem>>, vector<768x384xbf16>
    %cst = arith.constant dense<0.000000e+00> : vector<64x384xf32>
    %3 = tpu.matmul %1, %2, %cst {dimension_numbers = #tpu.dot_dimension_numbers<[1], [0], [0], [1], [0, 0, 1, 1], [], []>} : vector<64x768xbf16>, vector<768x384xbf16>, vector<64x384xf32> -> vector<64x384xf32>
    %c0_4 = arith.constant 0 : index
    %c0_5 = arith.constant 0 : index
    %4 = vector.load %arg3[%c0_4, %c0_5] : memref<1x384xf32, #tpu.memory_space<vmem>>, vector<1x384xf32>
    %5 = vector.broadcast %4 : vector<1x384xf32> to vector<64x384xf32>
    %6 = arith.addf %3, %5 : vector<64x384xf32>
    %c0_6 = arith.constant 0 : index
    %c0_7 = arith.constant 0 : index
    %7 = vector.load %arg4[%c0_6, %c0_7] : memref<128x384xbf16, #tpu.memory_space<vmem>>, vector<128x384xbf16>
    %c0_8 = arith.constant 0 : index
    %c0_9 = arith.constant 0 : index
    %8 = vector.load %arg5[%c0_8, %c0_9] : memref<1x128xf32, #tpu.memory_space<vmem>>, vector<1x128xf32>
    %9 = vector.shape_cast %8 : vector<1x128xf32> to vector<1x128xf32>
    %10 = vector.broadcast %9 : vector<1x128xf32> to vector<8x128xf32>
    %cst_10 = arith.constant 0.000000e+00 : f32
    %11 = vector.broadcast %cst_10 : f32 to vector<8x128xf32>
    %12 = vector.extract_strided_slice %6 {offsets = [0, 0], sizes = [8, 384], strides = [1, 1]} : vector<64x384xf32> to vector<8x384xf32>
    %13 = arith.truncf %11 : vector<8x128xf32> to vector<8x128xbf16>
    %cst_11 = arith.constant dense<0.000000e+00> : vector<8x384xf32>
    %14 = tpu.matmul %13, %7, %cst_11 {dimension_numbers = #tpu.dot_dimension_numbers<[1], [0], [0], [1], [0, 0, 1, 1], [], []>} : vector<8x128xbf16>, vector<128x384xbf16>, vector<8x384xf32> -> vector<8x384xf32>
    %15 = vector.extract_strided_slice %12 {offsets = [0, 0], sizes = [8, 128], strides = [1, 1]} : vector<8x384xf32> to vector<8x128xf32>
    %16 = vector.extract_strided_slice %14 {offsets = [0, 0], sizes = [8, 128], strides = [1, 1]} : vector<8x384xf32> to vector<8x128xf32>
    %17 = arith.addf %15, %16 : vector<8x128xf32>
    %18 = arith.negf %17 : vector<8x128xf32>
    %19 = math.exp %18 : vector<8x128xf32>
    %cst_12 = arith.constant 1.000000e+00 : f32
    %20 = vector.broadcast %cst_12 : f32 to vector<8x128xf32>
    %21 = arith.addf %20, %19 : vector<8x128xf32>
    %22 = arith.divf %20, %21 : vector<8x128xf32>
    %23 = vector.extract_strided_slice %12 {offsets = [0, 128], sizes = [8, 128], strides = [1, 1]} : vector<8x384xf32> to vector<8x128xf32>
    %24 = vector.extract_strided_slice %14 {offsets = [0, 128], sizes = [8, 128], strides = [1, 1]} : vector<8x384xf32> to vector<8x128xf32>
    %25 = arith.addf %23, %24 : vector<8x128xf32>
    %26 = arith.negf %25 : vector<8x128xf32>
    %27 = math.exp %26 : vector<8x128xf32>
    %cst_13 = arith.constant 1.000000e+00 : f32
    %28 = vector.broadcast %cst_13 : f32 to vector<8x128xf32>
    %29 = arith.addf %28, %27 : vector<8x128xf32>
    %30 = arith.divf %28, %29 : vector<8x128xf32>
    %31 = vector.extract_strided_slice %12 {offsets = [0, 256], sizes = [8, 128], strides = [1, 1]} : vector<8x384xf32> to vector<8x128xf32>
    %32 = vector.extract_strided_slice %14 {offsets = [0, 256], sizes = [8, 128], strides = [1, 1]} : vector<8x384xf32> to vector<8x128xf32>
    %33 = arith.addf %32, %10 : vector<8x128xf32>
    %34 = arith.mulf %22, %33 : vector<8x128xf32>
    %35 = arith.addf %31, %34 : vector<8x128xf32>
    %36 = math.tanh %35 : vector<8x128xf32>
    %cst_14 = arith.constant 1.000000e+00 : f32
    %37 = vector.broadcast %cst_14 : f32 to vector<8x128xf32>
    %38 = arith.subf %37, %30 : vector<8x128xf32>
    %39 = arith.mulf %38, %36 : vector<8x128xf32>
    %40 = arith.mulf %30, %11 : vector<8x128xf32>
    %41 = arith.addf %39, %40 : vector<8x128xf32>
    %42 = vector.extract_strided_slice %6 {offsets = [8, 0], sizes = [8, 384], strides = [1, 1]} : vector<64x384xf32> to vector<8x384xf32>
    %43 = arith.truncf %41 : vector<8x128xf32> to vector<8x128xbf16>
    %cst_15 = arith.constant dense<0.000000e+00> : vector<8x384xf32>
    %44 = tpu.matmul %43, %7, %cst_15 {dimension_numbers = #tpu.dot_dimension_numbers<[1], [0], [0], [1], [0, 0, 1, 1], [], []>} : vector<8x128xbf16>, vector<128x384xbf16>, vector<8x384xf32> -> vector<8x384xf32>
    %45 = vector.extract_strided_slice %42 {offsets = [0, 0], sizes = [8, 128], strides = [1, 1]} : vector<8x384xf32> to vector<8x128xf32>
    %46 = vector.extract_strided_slice %44 {offsets = [0, 0], sizes = [8, 128], strides = [1, 1]} : vector<8x384xf32> to vector<8x128xf32>
    %47 = arith.addf %45, %46 : vector<8x128xf32>
    %48 = arith.negf %47 : vector<8x128xf32>
    %49 = math.exp %48 : vector<8x128xf32>
    %cst_16 = arith.constant 1.000000e+00 : f32
    %50 = vector.broadcast %cst_16 : f32 to vector<8x128xf32>
    %51 = arith.addf %50, %49 : vector<8x128xf32>
    %52 = arith.divf %50, %51 : vector<8x128xf32>
    %53 = vector.extract_strided_slice %42 {offsets = [0, 128], sizes = [8, 128], strides = [1, 1]} : vector<8x384xf32> to vector<8x128xf32>
    %54 = vector.extract_strided_slice %44 {offsets = [0, 128], sizes = [8, 128], strides = [1, 1]} : vector<8x384xf32> to vector<8x128xf32>
    %55 = arith.addf %53, %54 : vector<8x128xf32>
    %56 = arith.negf %55 : vector<8x128xf32>
    %57 = math.exp %56 : vector<8x128xf32>
    %cst_17 = arith.constant 1.000000e+00 : f32
    %58 = vector.broadcast %cst_17 : f32 to vector<8x128xf32>
    %59 = arith.addf %58, %57 : vector<8x128xf32>
    %60 = arith.divf %58, %59 : vector<8x128xf32>
    %61 = vector.extract_strided_slice %42 {offsets = [0, 256], sizes = [8, 128], strides = [1, 1]} : vector<8x384xf32> to vector<8x128xf32>
    %62 = vector.extract_strided_slice %44 {offsets = [0, 256], sizes = [8, 128], strides = [1, 1]} : vector<8x384xf32> to vector<8x128xf32>
    %63 = arith.addf %62, %10 : vector<8x128xf32>
    %64 = arith.mulf %52, %63 : vector<8x128xf32>
    %65 = arith.addf %61, %64 : vector<8x128xf32>
    %66 = math.tanh %65 : vector<8x128xf32>
    %cst_18 = arith.constant 1.000000e+00 : f32
    %67 = vector.broadcast %cst_18 : f32 to vector<8x128xf32>
    %68 = arith.subf %67, %60 : vector<8x128xf32>
    %69 = arith.mulf %68, %66 : vector<8x128xf32>
    %70 = arith.mulf %60, %41 : vector<8x128xf32>
    %71 = arith.addf %69, %70 : vector<8x128xf32>
    %72 = vector.extract_strided_slice %6 {offsets = [16, 0], sizes = [8, 384], strides = [1, 1]} : vector<64x384xf32> to vector<8x384xf32>
    %73 = arith.truncf %71 : vector<8x128xf32> to vector<8x128xbf16>
    %cst_19 = arith.constant dense<0.000000e+00> : vector<8x384xf32>
    %74 = tpu.matmul %73, %7, %cst_19 {dimension_numbers = #tpu.dot_dimension_numbers<[1], [0], [0], [1], [0, 0, 1, 1], [], []>} : vector<8x128xbf16>, vector<128x384xbf16>, vector<8x384xf32> -> vector<8x384xf32>
    %75 = vector.extract_strided_slice %72 {offsets = [0, 0], sizes = [8, 128], strides = [1, 1]} : vector<8x384xf32> to vector<8x128xf32>
    %76 = vector.extract_strided_slice %74 {offsets = [0, 0], sizes = [8, 128], strides = [1, 1]} : vector<8x384xf32> to vector<8x128xf32>
    %77 = arith.addf %75, %76 : vector<8x128xf32>
    %78 = arith.negf %77 : vector<8x128xf32>
    %79 = math.exp %78 : vector<8x128xf32>
    %cst_20 = arith.constant 1.000000e+00 : f32
    %80 = vector.broadcast %cst_20 : f32 to vector<8x128xf32>
    %81 = arith.addf %80, %79 : vector<8x128xf32>
    %82 = arith.divf %80, %81 : vector<8x128xf32>
    %83 = vector.extract_strided_slice %72 {offsets = [0, 128], sizes = [8, 128], strides = [1, 1]} : vector<8x384xf32> to vector<8x128xf32>
    %84 = vector.extract_strided_slice %74 {offsets = [0, 128], sizes = [8, 128], strides = [1, 1]} : vector<8x384xf32> to vector<8x128xf32>
    %85 = arith.addf %83, %84 : vector<8x128xf32>
    %86 = arith.negf %85 : vector<8x128xf32>
    %87 = math.exp %86 : vector<8x128xf32>
    %cst_21 = arith.constant 1.000000e+00 : f32
    %88 = vector.broadcast %cst_21 : f32 to vector<8x128xf32>
    %89 = arith.addf %88, %87 : vector<8x128xf32>
    %90 = arith.divf %88, %89 : vector<8x128xf32>
    %91 = vector.extract_strided_slice %72 {offsets = [0, 256], sizes = [8, 128], strides = [1, 1]} : vector<8x384xf32> to vector<8x128xf32>
    %92 = vector.extract_strided_slice %74 {offsets = [0, 256], sizes = [8, 128], strides = [1, 1]} : vector<8x384xf32> to vector<8x128xf32>
    %93 = arith.addf %92, %10 : vector<8x128xf32>
    %94 = arith.mulf %82, %93 : vector<8x128xf32>
    %95 = arith.addf %91, %94 : vector<8x128xf32>
    %96 = math.tanh %95 : vector<8x128xf32>
    %cst_22 = arith.constant 1.000000e+00 : f32
    %97 = vector.broadcast %cst_22 : f32 to vector<8x128xf32>
    %98 = arith.subf %97, %90 : vector<8x128xf32>
    %99 = arith.mulf %98, %96 : vector<8x128xf32>
    %100 = arith.mulf %90, %71 : vector<8x128xf32>
    %101 = arith.addf %99, %100 : vector<8x128xf32>
    %102 = vector.extract_strided_slice %6 {offsets = [24, 0], sizes = [8, 384], strides = [1, 1]} : vector<64x384xf32> to vector<8x384xf32>
    %103 = arith.truncf %101 : vector<8x128xf32> to vector<8x128xbf16>
    %cst_23 = arith.constant dense<0.000000e+00> : vector<8x384xf32>
    %104 = tpu.matmul %103, %7, %cst_23 {dimension_numbers = #tpu.dot_dimension_numbers<[1], [0], [0], [1], [0, 0, 1, 1], [], []>} : vector<8x128xbf16>, vector<128x384xbf16>, vector<8x384xf32> -> vector<8x384xf32>
    %105 = vector.extract_strided_slice %102 {offsets = [0, 0], sizes = [8, 128], strides = [1, 1]} : vector<8x384xf32> to vector<8x128xf32>
    %106 = vector.extract_strided_slice %104 {offsets = [0, 0], sizes = [8, 128], strides = [1, 1]} : vector<8x384xf32> to vector<8x128xf32>
    %107 = arith.addf %105, %106 : vector<8x128xf32>
    %108 = arith.negf %107 : vector<8x128xf32>
    %109 = math.exp %108 : vector<8x128xf32>
    %cst_24 = arith.constant 1.000000e+00 : f32
    %110 = vector.broadcast %cst_24 : f32 to vector<8x128xf32>
    %111 = arith.addf %110, %109 : vector<8x128xf32>
    %112 = arith.divf %110, %111 : vector<8x128xf32>
    %113 = vector.extract_strided_slice %102 {offsets = [0, 128], sizes = [8, 128], strides = [1, 1]} : vector<8x384xf32> to vector<8x128xf32>
    %114 = vector.extract_strided_slice %104 {offsets = [0, 128], sizes = [8, 128], strides = [1, 1]} : vector<8x384xf32> to vector<8x128xf32>
    %115 = arith.addf %113, %114 : vector<8x128xf32>
    %116 = arith.negf %115 : vector<8x128xf32>
    %117 = math.exp %116 : vector<8x128xf32>
    %cst_25 = arith.constant 1.000000e+00 : f32
    %118 = vector.broadcast %cst_25 : f32 to vector<8x128xf32>
    %119 = arith.addf %118, %117 : vector<8x128xf32>
    %120 = arith.divf %118, %119 : vector<8x128xf32>
    %121 = vector.extract_strided_slice %102 {offsets = [0, 256], sizes = [8, 128], strides = [1, 1]} : vector<8x384xf32> to vector<8x128xf32>
    %122 = vector.extract_strided_slice %104 {offsets = [0, 256], sizes = [8, 128], strides = [1, 1]} : vector<8x384xf32> to vector<8x128xf32>
    %123 = arith.addf %122, %10 : vector<8x128xf32>
    %124 = arith.mulf %112, %123 : vector<8x128xf32>
    %125 = arith.addf %121, %124 : vector<8x128xf32>
    %126 = math.tanh %125 : vector<8x128xf32>
    %cst_26 = arith.constant 1.000000e+00 : f32
    %127 = vector.broadcast %cst_26 : f32 to vector<8x128xf32>
    %128 = arith.subf %127, %120 : vector<8x128xf32>
    %129 = arith.mulf %128, %126 : vector<8x128xf32>
    %130 = arith.mulf %120, %101 : vector<8x128xf32>
    %131 = arith.addf %129, %130 : vector<8x128xf32>
    %132 = vector.extract_strided_slice %6 {offsets = [32, 0], sizes = [8, 384], strides = [1, 1]} : vector<64x384xf32> to vector<8x384xf32>
    %133 = arith.truncf %131 : vector<8x128xf32> to vector<8x128xbf16>
    %cst_27 = arith.constant dense<0.000000e+00> : vector<8x384xf32>
    %134 = tpu.matmul %133, %7, %cst_27 {dimension_numbers = #tpu.dot_dimension_numbers<[1], [0], [0], [1], [0, 0, 1, 1], [], []>} : vector<8x128xbf16>, vector<128x384xbf16>, vector<8x384xf32> -> vector<8x384xf32>
    %135 = vector.extract_strided_slice %132 {offsets = [0, 0], sizes = [8, 128], strides = [1, 1]} : vector<8x384xf32> to vector<8x128xf32>
    %136 = vector.extract_strided_slice %134 {offsets = [0, 0], sizes = [8, 128], strides = [1, 1]} : vector<8x384xf32> to vector<8x128xf32>
    %137 = arith.addf %135, %136 : vector<8x128xf32>
    %138 = arith.negf %137 : vector<8x128xf32>
    %139 = math.exp %138 : vector<8x128xf32>
    %cst_28 = arith.constant 1.000000e+00 : f32
    %140 = vector.broadcast %cst_28 : f32 to vector<8x128xf32>
    %141 = arith.addf %140, %139 : vector<8x128xf32>
    %142 = arith.divf %140, %141 : vector<8x128xf32>
    %143 = vector.extract_strided_slice %132 {offsets = [0, 128], sizes = [8, 128], strides = [1, 1]} : vector<8x384xf32> to vector<8x128xf32>
    %144 = vector.extract_strided_slice %134 {offsets = [0, 128], sizes = [8, 128], strides = [1, 1]} : vector<8x384xf32> to vector<8x128xf32>
    %145 = arith.addf %143, %144 : vector<8x128xf32>
    %146 = arith.negf %145 : vector<8x128xf32>
    %147 = math.exp %146 : vector<8x128xf32>
    %cst_29 = arith.constant 1.000000e+00 : f32
    %148 = vector.broadcast %cst_29 : f32 to vector<8x128xf32>
    %149 = arith.addf %148, %147 : vector<8x128xf32>
    %150 = arith.divf %148, %149 : vector<8x128xf32>
    %151 = vector.extract_strided_slice %132 {offsets = [0, 256], sizes = [8, 128], strides = [1, 1]} : vector<8x384xf32> to vector<8x128xf32>
    %152 = vector.extract_strided_slice %134 {offsets = [0, 256], sizes = [8, 128], strides = [1, 1]} : vector<8x384xf32> to vector<8x128xf32>
    %153 = arith.addf %152, %10 : vector<8x128xf32>
    %154 = arith.mulf %142, %153 : vector<8x128xf32>
    %155 = arith.addf %151, %154 : vector<8x128xf32>
    %156 = math.tanh %155 : vector<8x128xf32>
    %cst_30 = arith.constant 1.000000e+00 : f32
    %157 = vector.broadcast %cst_30 : f32 to vector<8x128xf32>
    %158 = arith.subf %157, %150 : vector<8x128xf32>
    %159 = arith.mulf %158, %156 : vector<8x128xf32>
    %160 = arith.mulf %150, %131 : vector<8x128xf32>
    %161 = arith.addf %159, %160 : vector<8x128xf32>
    %162 = vector.extract_strided_slice %6 {offsets = [40, 0], sizes = [8, 384], strides = [1, 1]} : vector<64x384xf32> to vector<8x384xf32>
    %163 = arith.truncf %161 : vector<8x128xf32> to vector<8x128xbf16>
    %cst_31 = arith.constant dense<0.000000e+00> : vector<8x384xf32>
    %164 = tpu.matmul %163, %7, %cst_31 {dimension_numbers = #tpu.dot_dimension_numbers<[1], [0], [0], [1], [0, 0, 1, 1], [], []>} : vector<8x128xbf16>, vector<128x384xbf16>, vector<8x384xf32> -> vector<8x384xf32>
    %165 = vector.extract_strided_slice %162 {offsets = [0, 0], sizes = [8, 128], strides = [1, 1]} : vector<8x384xf32> to vector<8x128xf32>
    %166 = vector.extract_strided_slice %164 {offsets = [0, 0], sizes = [8, 128], strides = [1, 1]} : vector<8x384xf32> to vector<8x128xf32>
    %167 = arith.addf %165, %166 : vector<8x128xf32>
    %168 = arith.negf %167 : vector<8x128xf32>
    %169 = math.exp %168 : vector<8x128xf32>
    %cst_32 = arith.constant 1.000000e+00 : f32
    %170 = vector.broadcast %cst_32 : f32 to vector<8x128xf32>
    %171 = arith.addf %170, %169 : vector<8x128xf32>
    %172 = arith.divf %170, %171 : vector<8x128xf32>
    %173 = vector.extract_strided_slice %162 {offsets = [0, 128], sizes = [8, 128], strides = [1, 1]} : vector<8x384xf32> to vector<8x128xf32>
    %174 = vector.extract_strided_slice %164 {offsets = [0, 128], sizes = [8, 128], strides = [1, 1]} : vector<8x384xf32> to vector<8x128xf32>
    %175 = arith.addf %173, %174 : vector<8x128xf32>
    %176 = arith.negf %175 : vector<8x128xf32>
    %177 = math.exp %176 : vector<8x128xf32>
    %cst_33 = arith.constant 1.000000e+00 : f32
    %178 = vector.broadcast %cst_33 : f32 to vector<8x128xf32>
    %179 = arith.addf %178, %177 : vector<8x128xf32>
    %180 = arith.divf %178, %179 : vector<8x128xf32>
    %181 = vector.extract_strided_slice %162 {offsets = [0, 256], sizes = [8, 128], strides = [1, 1]} : vector<8x384xf32> to vector<8x128xf32>
    %182 = vector.extract_strided_slice %164 {offsets = [0, 256], sizes = [8, 128], strides = [1, 1]} : vector<8x384xf32> to vector<8x128xf32>
    %183 = arith.addf %182, %10 : vector<8x128xf32>
    %184 = arith.mulf %172, %183 : vector<8x128xf32>
    %185 = arith.addf %181, %184 : vector<8x128xf32>
    %186 = math.tanh %185 : vector<8x128xf32>
    %cst_34 = arith.constant 1.000000e+00 : f32
    %187 = vector.broadcast %cst_34 : f32 to vector<8x128xf32>
    %188 = arith.subf %187, %180 : vector<8x128xf32>
    %189 = arith.mulf %188, %186 : vector<8x128xf32>
    %190 = arith.mulf %180, %161 : vector<8x128xf32>
    %191 = arith.addf %189, %190 : vector<8x128xf32>
    %192 = vector.extract_strided_slice %6 {offsets = [48, 0], sizes = [8, 384], strides = [1, 1]} : vector<64x384xf32> to vector<8x384xf32>
    %193 = arith.truncf %191 : vector<8x128xf32> to vector<8x128xbf16>
    %cst_35 = arith.constant dense<0.000000e+00> : vector<8x384xf32>
    %194 = tpu.matmul %193, %7, %cst_35 {dimension_numbers = #tpu.dot_dimension_numbers<[1], [0], [0], [1], [0, 0, 1, 1], [], []>} : vector<8x128xbf16>, vector<128x384xbf16>, vector<8x384xf32> -> vector<8x384xf32>
    %195 = vector.extract_strided_slice %192 {offsets = [0, 0], sizes = [8, 128], strides = [1, 1]} : vector<8x384xf32> to vector<8x128xf32>
    %196 = vector.extract_strided_slice %194 {offsets = [0, 0], sizes = [8, 128], strides = [1, 1]} : vector<8x384xf32> to vector<8x128xf32>
    %197 = arith.addf %195, %196 : vector<8x128xf32>
    %198 = arith.negf %197 : vector<8x128xf32>
    %199 = math.exp %198 : vector<8x128xf32>
    %cst_36 = arith.constant 1.000000e+00 : f32
    %200 = vector.broadcast %cst_36 : f32 to vector<8x128xf32>
    %201 = arith.addf %200, %199 : vector<8x128xf32>
    %202 = arith.divf %200, %201 : vector<8x128xf32>
    %203 = vector.extract_strided_slice %192 {offsets = [0, 128], sizes = [8, 128], strides = [1, 1]} : vector<8x384xf32> to vector<8x128xf32>
    %204 = vector.extract_strided_slice %194 {offsets = [0, 128], sizes = [8, 128], strides = [1, 1]} : vector<8x384xf32> to vector<8x128xf32>
    %205 = arith.addf %203, %204 : vector<8x128xf32>
    %206 = arith.negf %205 : vector<8x128xf32>
    %207 = math.exp %206 : vector<8x128xf32>
    %cst_37 = arith.constant 1.000000e+00 : f32
    %208 = vector.broadcast %cst_37 : f32 to vector<8x128xf32>
    %209 = arith.addf %208, %207 : vector<8x128xf32>
    %210 = arith.divf %208, %209 : vector<8x128xf32>
    %211 = vector.extract_strided_slice %192 {offsets = [0, 256], sizes = [8, 128], strides = [1, 1]} : vector<8x384xf32> to vector<8x128xf32>
    %212 = vector.extract_strided_slice %194 {offsets = [0, 256], sizes = [8, 128], strides = [1, 1]} : vector<8x384xf32> to vector<8x128xf32>
    %213 = arith.addf %212, %10 : vector<8x128xf32>
    %214 = arith.mulf %202, %213 : vector<8x128xf32>
    %215 = arith.addf %211, %214 : vector<8x128xf32>
    %216 = math.tanh %215 : vector<8x128xf32>
    %cst_38 = arith.constant 1.000000e+00 : f32
    %217 = vector.broadcast %cst_38 : f32 to vector<8x128xf32>
    %218 = arith.subf %217, %210 : vector<8x128xf32>
    %219 = arith.mulf %218, %216 : vector<8x128xf32>
    %220 = arith.mulf %210, %191 : vector<8x128xf32>
    %221 = arith.addf %219, %220 : vector<8x128xf32>
    %222 = vector.extract_strided_slice %6 {offsets = [56, 0], sizes = [8, 384], strides = [1, 1]} : vector<64x384xf32> to vector<8x384xf32>
    %223 = arith.truncf %221 : vector<8x128xf32> to vector<8x128xbf16>
    %cst_39 = arith.constant dense<0.000000e+00> : vector<8x384xf32>
    %224 = tpu.matmul %223, %7, %cst_39 {dimension_numbers = #tpu.dot_dimension_numbers<[1], [0], [0], [1], [0, 0, 1, 1], [], []>} : vector<8x128xbf16>, vector<128x384xbf16>, vector<8x384xf32> -> vector<8x384xf32>
    %225 = vector.extract_strided_slice %222 {offsets = [0, 0], sizes = [8, 128], strides = [1, 1]} : vector<8x384xf32> to vector<8x128xf32>
    %226 = vector.extract_strided_slice %224 {offsets = [0, 0], sizes = [8, 128], strides = [1, 1]} : vector<8x384xf32> to vector<8x128xf32>
    %227 = arith.addf %225, %226 : vector<8x128xf32>
    %228 = arith.negf %227 : vector<8x128xf32>
    %229 = math.exp %228 : vector<8x128xf32>
    %cst_40 = arith.constant 1.000000e+00 : f32
    %230 = vector.broadcast %cst_40 : f32 to vector<8x128xf32>
    %231 = arith.addf %230, %229 : vector<8x128xf32>
    %232 = arith.divf %230, %231 : vector<8x128xf32>
    %233 = vector.extract_strided_slice %222 {offsets = [0, 128], sizes = [8, 128], strides = [1, 1]} : vector<8x384xf32> to vector<8x128xf32>
    %234 = vector.extract_strided_slice %224 {offsets = [0, 128], sizes = [8, 128], strides = [1, 1]} : vector<8x384xf32> to vector<8x128xf32>
    %235 = arith.addf %233, %234 : vector<8x128xf32>
    %236 = arith.negf %235 : vector<8x128xf32>
    %237 = math.exp %236 : vector<8x128xf32>
    %cst_41 = arith.constant 1.000000e+00 : f32
    %238 = vector.broadcast %cst_41 : f32 to vector<8x128xf32>
    %239 = arith.addf %238, %237 : vector<8x128xf32>
    %240 = arith.divf %238, %239 : vector<8x128xf32>
    %241 = vector.extract_strided_slice %222 {offsets = [0, 256], sizes = [8, 128], strides = [1, 1]} : vector<8x384xf32> to vector<8x128xf32>
    %242 = vector.extract_strided_slice %224 {offsets = [0, 256], sizes = [8, 128], strides = [1, 1]} : vector<8x384xf32> to vector<8x128xf32>
    %243 = arith.addf %242, %10 : vector<8x128xf32>
    %244 = arith.mulf %232, %243 : vector<8x128xf32>
    %245 = arith.addf %241, %244 : vector<8x128xf32>
    %246 = math.tanh %245 : vector<8x128xf32>
    %cst_42 = arith.constant 1.000000e+00 : f32
    %247 = vector.broadcast %cst_42 : f32 to vector<8x128xf32>
    %248 = arith.subf %247, %240 : vector<8x128xf32>
    %249 = arith.mulf %248, %246 : vector<8x128xf32>
    %250 = arith.mulf %240, %221 : vector<8x128xf32>
    %251 = arith.addf %249, %250 : vector<8x128xf32>
    %252 = tpu.concatenate %41, %71, %101, %131, %161, %191, %221, %251 in 0 : vector<8x128xf32>, vector<8x128xf32>, vector<8x128xf32>, vector<8x128xf32>, vector<8x128xf32>, vector<8x128xf32>, vector<8x128xf32>, vector<8x128xf32> -> vector<64x128xf32>
    %253 = arith.truncf %252 : vector<64x128xf32> to vector<64x128xbf16>
    %c0_43 = arith.constant 0 : index
    %c0_44 = arith.constant 0 : index
    %c0_45 = arith.constant 0 : index
    %254 = vector.load %arg6[%c0_43, %c0_44, %c0_45] : memref<5x128x384xbf16, #tpu.memory_space<vmem>>, vector<1x128x384xbf16>
    %255 = vector.shape_cast %254 : vector<1x128x384xbf16> to vector<128x384xbf16>
    %cst_46 = arith.constant dense<0.000000e+00> : vector<64x384xf32>
    %256 = tpu.matmul %253, %255, %cst_46 {dimension_numbers = #tpu.dot_dimension_numbers<[1], [0], [0], [1], [0, 0, 1, 1], [], []>} : vector<64x128xbf16>, vector<128x384xbf16>, vector<64x384xf32> -> vector<64x384xf32>
    %c0_47 = arith.constant 0 : index
    %c0_48 = arith.constant 0 : index
    %c0_49 = arith.constant 0 : index
    %257 = vector.load %arg7[%c0_47, %c0_48, %c0_49] : memref<5x1x384xf32, #tpu.memory_space<vmem>>, vector<1x1x384xf32>
    %258 = vector.shape_cast %257 : vector<1x1x384xf32> to vector<1x384xf32>
    %259 = vector.broadcast %258 : vector<1x384xf32> to vector<64x384xf32>
    %260 = arith.addf %256, %259 : vector<64x384xf32>
    %c0_50 = arith.constant 0 : index
    %c0_51 = arith.constant 0 : index
    %c0_52 = arith.constant 0 : index
    %261 = vector.load %arg8[%c0_50, %c0_51, %c0_52] : memref<5x128x384xbf16, #tpu.memory_space<vmem>>, vector<1x128x384xbf16>
    %262 = vector.shape_cast %261 : vector<1x128x384xbf16> to vector<128x384xbf16>
    %c0_53 = arith.constant 0 : index
    %c0_54 = arith.constant 0 : index
    %c0_55 = arith.constant 0 : index
    %263 = vector.load %arg9[%c0_53, %c0_54, %c0_55] : memref<5x1x128xf32, #tpu.memory_space<vmem>>, vector<1x1x128xf32>
    %264 = vector.shape_cast %263 : vector<1x1x128xf32> to vector<1x128xf32>
    %265 = vector.shape_cast %264 : vector<1x128xf32> to vector<1x128xf32>
    %266 = vector.broadcast %265 : vector<1x128xf32> to vector<8x128xf32>
    %cst_56 = arith.constant 0.000000e+00 : f32
    %267 = vector.broadcast %cst_56 : f32 to vector<8x128xf32>
    %268 = vector.extract_strided_slice %260 {offsets = [0, 0], sizes = [8, 384], strides = [1, 1]} : vector<64x384xf32> to vector<8x384xf32>
    %269 = arith.truncf %267 : vector<8x128xf32> to vector<8x128xbf16>
    %cst_57 = arith.constant dense<0.000000e+00> : vector<8x384xf32>
    %270 = tpu.matmul %269, %262, %cst_57 {dimension_numbers = #tpu.dot_dimension_numbers<[1], [0], [0], [1], [0, 0, 1, 1], [], []>} : vector<8x128xbf16>, vector<128x384xbf16>, vector<8x384xf32> -> vector<8x384xf32>
    %271 = vector.extract_strided_slice %268 {offsets = [0, 0], sizes = [8, 128], strides = [1, 1]} : vector<8x384xf32> to vector<8x128xf32>
    %272 = vector.extract_strided_slice %270 {offsets = [0, 0], sizes = [8, 128], strides = [1, 1]} : vector<8x384xf32> to vector<8x128xf32>
    %273 = arith.addf %271, %272 : vector<8x128xf32>
    %274 = arith.negf %273 : vector<8x128xf32>
    %275 = math.exp %274 : vector<8x128xf32>
    %cst_58 = arith.constant 1.000000e+00 : f32
    %276 = vector.broadcast %cst_58 : f32 to vector<8x128xf32>
    %277 = arith.addf %276, %275 : vector<8x128xf32>
    %278 = arith.divf %276, %277 : vector<8x128xf32>
    %279 = vector.extract_strided_slice %268 {offsets = [0, 128], sizes = [8, 128], strides = [1, 1]} : vector<8x384xf32> to vector<8x128xf32>
    %280 = vector.extract_strided_slice %270 {offsets = [0, 128], sizes = [8, 128], strides = [1, 1]} : vector<8x384xf32> to vector<8x128xf32>
    %281 = arith.addf %279, %280 : vector<8x128xf32>
    %282 = arith.negf %281 : vector<8x128xf32>
    %283 = math.exp %282 : vector<8x128xf32>
    %cst_59 = arith.constant 1.000000e+00 : f32
    %284 = vector.broadcast %cst_59 : f32 to vector<8x128xf32>
    %285 = arith.addf %284, %283 : vector<8x128xf32>
    %286 = arith.divf %284, %285 : vector<8x128xf32>
    %287 = vector.extract_strided_slice %268 {offsets = [0, 256], sizes = [8, 128], strides = [1, 1]} : vector<8x384xf32> to vector<8x128xf32>
    %288 = vector.extract_strided_slice %270 {offsets = [0, 256], sizes = [8, 128], strides = [1, 1]} : vector<8x384xf32> to vector<8x128xf32>
    %289 = arith.addf %288, %266 : vector<8x128xf32>
    %290 = arith.mulf %278, %289 : vector<8x128xf32>
    %291 = arith.addf %287, %290 : vector<8x128xf32>
    %292 = math.tanh %291 : vector<8x128xf32>
    %cst_60 = arith.constant 1.000000e+00 : f32
    %293 = vector.broadcast %cst_60 : f32 to vector<8x128xf32>
    %294 = arith.subf %293, %286 : vector<8x128xf32>
    %295 = arith.mulf %294, %292 : vector<8x128xf32>
    %296 = arith.mulf %286, %267 : vector<8x128xf32>
    %297 = arith.addf %295, %296 : vector<8x128xf32>
    %298 = vector.extract_strided_slice %260 {offsets = [8, 0], sizes = [8, 384], strides = [1, 1]} : vector<64x384xf32> to vector<8x384xf32>
    %299 = arith.truncf %297 : vector<8x128xf32> to vector<8x128xbf16>
    %cst_61 = arith.constant dense<0.000000e+00> : vector<8x384xf32>
    %300 = tpu.matmul %299, %262, %cst_61 {dimension_numbers = #tpu.dot_dimension_numbers<[1], [0], [0], [1], [0, 0, 1, 1], [], []>} : vector<8x128xbf16>, vector<128x384xbf16>, vector<8x384xf32> -> vector<8x384xf32>
    %301 = vector.extract_strided_slice %298 {offsets = [0, 0], sizes = [8, 128], strides = [1, 1]} : vector<8x384xf32> to vector<8x128xf32>
    %302 = vector.extract_strided_slice %300 {offsets = [0, 0], sizes = [8, 128], strides = [1, 1]} : vector<8x384xf32> to vector<8x128xf32>
    %303 = arith.addf %301, %302 : vector<8x128xf32>
    %304 = arith.negf %303 : vector<8x128xf32>
    %305 = math.exp %304 : vector<8x128xf32>
    %cst_62 = arith.constant 1.000000e+00 : f32
    %306 = vector.broadcast %cst_62 : f32 to vector<8x128xf32>
    %307 = arith.addf %306, %305 : vector<8x128xf32>
    %308 = arith.divf %306, %307 : vector<8x128xf32>
    %309 = vector.extract_strided_slice %298 {offsets = [0, 128], sizes = [8, 128], strides = [1, 1]} : vector<8x384xf32> to vector<8x128xf32>
    %310 = vector.extract_strided_slice %300 {offsets = [0, 128], sizes = [8, 128], strides = [1, 1]} : vector<8x384xf32> to vector<8x128xf32>
    %311 = arith.addf %309, %310 : vector<8x128xf32>
    %312 = arith.negf %311 : vector<8x128xf32>
    %313 = math.exp %312 : vector<8x128xf32>
    %cst_63 = arith.constant 1.000000e+00 : f32
    %314 = vector.broadcast %cst_63 : f32 to vector<8x128xf32>
    %315 = arith.addf %314, %313 : vector<8x128xf32>
    %316 = arith.divf %314, %315 : vector<8x128xf32>
    %317 = vector.extract_strided_slice %298 {offsets = [0, 256], sizes = [8, 128], strides = [1, 1]} : vector<8x384xf32> to vector<8x128xf32>
    %318 = vector.extract_strided_slice %300 {offsets = [0, 256], sizes = [8, 128], strides = [1, 1]} : vector<8x384xf32> to vector<8x128xf32>
    %319 = arith.addf %318, %266 : vector<8x128xf32>
    %320 = arith.mulf %308, %319 : vector<8x128xf32>
    %321 = arith.addf %317, %320 : vector<8x128xf32>
    %322 = math.tanh %321 : vector<8x128xf32>
    %cst_64 = arith.constant 1.000000e+00 : f32
    %323 = vector.broadcast %cst_64 : f32 to vector<8x128xf32>
    %324 = arith.subf %323, %316 : vector<8x128xf32>
    %325 = arith.mulf %324, %322 : vector<8x128xf32>
    %326 = arith.mulf %316, %297 : vector<8x128xf32>
    %327 = arith.addf %325, %326 : vector<8x128xf32>
    %328 = vector.extract_strided_slice %260 {offsets = [16, 0], sizes = [8, 384], strides = [1, 1]} : vector<64x384xf32> to vector<8x384xf32>
    %329 = arith.truncf %327 : vector<8x128xf32> to vector<8x128xbf16>
    %cst_65 = arith.constant dense<0.000000e+00> : vector<8x384xf32>
    %330 = tpu.matmul %329, %262, %cst_65 {dimension_numbers = #tpu.dot_dimension_numbers<[1], [0], [0], [1], [0, 0, 1, 1], [], []>} : vector<8x128xbf16>, vector<128x384xbf16>, vector<8x384xf32> -> vector<8x384xf32>
    %331 = vector.extract_strided_slice %328 {offsets = [0, 0], sizes = [8, 128], strides = [1, 1]} : vector<8x384xf32> to vector<8x128xf32>
    %332 = vector.extract_strided_slice %330 {offsets = [0, 0], sizes = [8, 128], strides = [1, 1]} : vector<8x384xf32> to vector<8x128xf32>
    %333 = arith.addf %331, %332 : vector<8x128xf32>
    %334 = arith.negf %333 : vector<8x128xf32>
    %335 = math.exp %334 : vector<8x128xf32>
    %cst_66 = arith.constant 1.000000e+00 : f32
    %336 = vector.broadcast %cst_66 : f32 to vector<8x128xf32>
    %337 = arith.addf %336, %335 : vector<8x128xf32>
    %338 = arith.divf %336, %337 : vector<8x128xf32>
    %339 = vector.extract_strided_slice %328 {offsets = [0, 128], sizes = [8, 128], strides = [1, 1]} : vector<8x384xf32> to vector<8x128xf32>
    %340 = vector.extract_strided_slice %330 {offsets = [0, 128], sizes = [8, 128], strides = [1, 1]} : vector<8x384xf32> to vector<8x128xf32>
    %341 = arith.addf %339, %340 : vector<8x128xf32>
    %342 = arith.negf %341 : vector<8x128xf32>
    %343 = math.exp %342 : vector<8x128xf32>
    %cst_67 = arith.constant 1.000000e+00 : f32
    %344 = vector.broadcast %cst_67 : f32 to vector<8x128xf32>
    %345 = arith.addf %344, %343 : vector<8x128xf32>
    %346 = arith.divf %344, %345 : vector<8x128xf32>
    %347 = vector.extract_strided_slice %328 {offsets = [0, 256], sizes = [8, 128], strides = [1, 1]} : vector<8x384xf32> to vector<8x128xf32>
    %348 = vector.extract_strided_slice %330 {offsets = [0, 256], sizes = [8, 128], strides = [1, 1]} : vector<8x384xf32> to vector<8x128xf32>
    %349 = arith.addf %348, %266 : vector<8x128xf32>
    %350 = arith.mulf %338, %349 : vector<8x128xf32>
    %351 = arith.addf %347, %350 : vector<8x128xf32>
    %352 = math.tanh %351 : vector<8x128xf32>
    %cst_68 = arith.constant 1.000000e+00 : f32
    %353 = vector.broadcast %cst_68 : f32 to vector<8x128xf32>
    %354 = arith.subf %353, %346 : vector<8x128xf32>
    %355 = arith.mulf %354, %352 : vector<8x128xf32>
    %356 = arith.mulf %346, %327 : vector<8x128xf32>
    %357 = arith.addf %355, %356 : vector<8x128xf32>
    %358 = vector.extract_strided_slice %260 {offsets = [24, 0], sizes = [8, 384], strides = [1, 1]} : vector<64x384xf32> to vector<8x384xf32>
    %359 = arith.truncf %357 : vector<8x128xf32> to vector<8x128xbf16>
    %cst_69 = arith.constant dense<0.000000e+00> : vector<8x384xf32>
    %360 = tpu.matmul %359, %262, %cst_69 {dimension_numbers = #tpu.dot_dimension_numbers<[1], [0], [0], [1], [0, 0, 1, 1], [], []>} : vector<8x128xbf16>, vector<128x384xbf16>, vector<8x384xf32> -> vector<8x384xf32>
    %361 = vector.extract_strided_slice %358 {offsets = [0, 0], sizes = [8, 128], strides = [1, 1]} : vector<8x384xf32> to vector<8x128xf32>
    %362 = vector.extract_strided_slice %360 {offsets = [0, 0], sizes = [8, 128], strides = [1, 1]} : vector<8x384xf32> to vector<8x128xf32>
    %363 = arith.addf %361, %362 : vector<8x128xf32>
    %364 = arith.negf %363 : vector<8x128xf32>
    %365 = math.exp %364 : vector<8x128xf32>
    %cst_70 = arith.constant 1.000000e+00 : f32
    %366 = vector.broadcast %cst_70 : f32 to vector<8x128xf32>
    %367 = arith.addf %366, %365 : vector<8x128xf32>
    %368 = arith.divf %366, %367 : vector<8x128xf32>
    %369 = vector.extract_strided_slice %358 {offsets = [0, 128], sizes = [8, 128], strides = [1, 1]} : vector<8x384xf32> to vector<8x128xf32>
    %370 = vector.extract_strided_slice %360 {offsets = [0, 128], sizes = [8, 128], strides = [1, 1]} : vector<8x384xf32> to vector<8x128xf32>
    %371 = arith.addf %369, %370 : vector<8x128xf32>
    %372 = arith.negf %371 : vector<8x128xf32>
    %373 = math.exp %372 : vector<8x128xf32>
    %cst_71 = arith.constant 1.000000e+00 : f32
    %374 = vector.broadcast %cst_71 : f32 to vector<8x128xf32>
    %375 = arith.addf %374, %373 : vector<8x128xf32>
    %376 = arith.divf %374, %375 : vector<8x128xf32>
    %377 = vector.extract_strided_slice %358 {offsets = [0, 256], sizes = [8, 128], strides = [1, 1]} : vector<8x384xf32> to vector<8x128xf32>
    %378 = vector.extract_strided_slice %360 {offsets = [0, 256], sizes = [8, 128], strides = [1, 1]} : vector<8x384xf32> to vector<8x128xf32>
    %379 = arith.addf %378, %266 : vector<8x128xf32>
    %380 = arith.mulf %368, %379 : vector<8x128xf32>
    %381 = arith.addf %377, %380 : vector<8x128xf32>
    %382 = math.tanh %381 : vector<8x128xf32>
    %cst_72 = arith.constant 1.000000e+00 : f32
    %383 = vector.broadcast %cst_72 : f32 to vector<8x128xf32>
    %384 = arith.subf %383, %376 : vector<8x128xf32>
    %385 = arith.mulf %384, %382 : vector<8x128xf32>
    %386 = arith.mulf %376, %357 : vector<8x128xf32>
    %387 = arith.addf %385, %386 : vector<8x128xf32>
    %388 = vector.extract_strided_slice %260 {offsets = [32, 0], sizes = [8, 384], strides = [1, 1]} : vector<64x384xf32> to vector<8x384xf32>
    %389 = arith.truncf %387 : vector<8x128xf32> to vector<8x128xbf16>
    %cst_73 = arith.constant dense<0.000000e+00> : vector<8x384xf32>
    %390 = tpu.matmul %389, %262, %cst_73 {dimension_numbers = #tpu.dot_dimension_numbers<[1], [0], [0], [1], [0, 0, 1, 1], [], []>} : vector<8x128xbf16>, vector<128x384xbf16>, vector<8x384xf32> -> vector<8x384xf32>
    %391 = vector.extract_strided_slice %388 {offsets = [0, 0], sizes = [8, 128], strides = [1, 1]} : vector<8x384xf32> to vector<8x128xf32>
    %392 = vector.extract_strided_slice %390 {offsets = [0, 0], sizes = [8, 128], strides = [1, 1]} : vector<8x384xf32> to vector<8x128xf32>
    %393 = arith.addf %391, %392 : vector<8x128xf32>
    %394 = arith.negf %393 : vector<8x128xf32>
    %395 = math.exp %394 : vector<8x128xf32>
    %cst_74 = arith.constant 1.000000e+00 : f32
    %396 = vector.broadcast %cst_74 : f32 to vector<8x128xf32>
    %397 = arith.addf %396, %395 : vector<8x128xf32>
    %398 = arith.divf %396, %397 : vector<8x128xf32>
    %399 = vector.extract_strided_slice %388 {offsets = [0, 128], sizes = [8, 128], strides = [1, 1]} : vector<8x384xf32> to vector<8x128xf32>
    %400 = vector.extract_strided_slice %390 {offsets = [0, 128], sizes = [8, 128], strides = [1, 1]} : vector<8x384xf32> to vector<8x128xf32>
    %401 = arith.addf %399, %400 : vector<8x128xf32>
    %402 = arith.negf %401 : vector<8x128xf32>
    %403 = math.exp %402 : vector<8x128xf32>
    %cst_75 = arith.constant 1.000000e+00 : f32
    %404 = vector.broadcast %cst_75 : f32 to vector<8x128xf32>
    %405 = arith.addf %404, %403 : vector<8x128xf32>
    %406 = arith.divf %404, %405 : vector<8x128xf32>
    %407 = vector.extract_strided_slice %388 {offsets = [0, 256], sizes = [8, 128], strides = [1, 1]} : vector<8x384xf32> to vector<8x128xf32>
    %408 = vector.extract_strided_slice %390 {offsets = [0, 256], sizes = [8, 128], strides = [1, 1]} : vector<8x384xf32> to vector<8x128xf32>
    %409 = arith.addf %408, %266 : vector<8x128xf32>
    %410 = arith.mulf %398, %409 : vector<8x128xf32>
    %411 = arith.addf %407, %410 : vector<8x128xf32>
    %412 = math.tanh %411 : vector<8x128xf32>
    %cst_76 = arith.constant 1.000000e+00 : f32
    %413 = vector.broadcast %cst_76 : f32 to vector<8x128xf32>
    %414 = arith.subf %413, %406 : vector<8x128xf32>
    %415 = arith.mulf %414, %412 : vector<8x128xf32>
    %416 = arith.mulf %406, %387 : vector<8x128xf32>
    %417 = arith.addf %415, %416 : vector<8x128xf32>
    %418 = vector.extract_strided_slice %260 {offsets = [40, 0], sizes = [8, 384], strides = [1, 1]} : vector<64x384xf32> to vector<8x384xf32>
    %419 = arith.truncf %417 : vector<8x128xf32> to vector<8x128xbf16>
    %cst_77 = arith.constant dense<0.000000e+00> : vector<8x384xf32>
    %420 = tpu.matmul %419, %262, %cst_77 {dimension_numbers = #tpu.dot_dimension_numbers<[1], [0], [0], [1], [0, 0, 1, 1], [], []>} : vector<8x128xbf16>, vector<128x384xbf16>, vector<8x384xf32> -> vector<8x384xf32>
    %421 = vector.extract_strided_slice %418 {offsets = [0, 0], sizes = [8, 128], strides = [1, 1]} : vector<8x384xf32> to vector<8x128xf32>
    %422 = vector.extract_strided_slice %420 {offsets = [0, 0], sizes = [8, 128], strides = [1, 1]} : vector<8x384xf32> to vector<8x128xf32>
    %423 = arith.addf %421, %422 : vector<8x128xf32>
    %424 = arith.negf %423 : vector<8x128xf32>
    %425 = math.exp %424 : vector<8x128xf32>
    %cst_78 = arith.constant 1.000000e+00 : f32
    %426 = vector.broadcast %cst_78 : f32 to vector<8x128xf32>
    %427 = arith.addf %426, %425 : vector<8x128xf32>
    %428 = arith.divf %426, %427 : vector<8x128xf32>
    %429 = vector.extract_strided_slice %418 {offsets = [0, 128], sizes = [8, 128], strides = [1, 1]} : vector<8x384xf32> to vector<8x128xf32>
    %430 = vector.extract_strided_slice %420 {offsets = [0, 128], sizes = [8, 128], strides = [1, 1]} : vector<8x384xf32> to vector<8x128xf32>
    %431 = arith.addf %429, %430 : vector<8x128xf32>
    %432 = arith.negf %431 : vector<8x128xf32>
    %433 = math.exp %432 : vector<8x128xf32>
    %cst_79 = arith.constant 1.000000e+00 : f32
    %434 = vector.broadcast %cst_79 : f32 to vector<8x128xf32>
    %435 = arith.addf %434, %433 : vector<8x128xf32>
    %436 = arith.divf %434, %435 : vector<8x128xf32>
    %437 = vector.extract_strided_slice %418 {offsets = [0, 256], sizes = [8, 128], strides = [1, 1]} : vector<8x384xf32> to vector<8x128xf32>
    %438 = vector.extract_strided_slice %420 {offsets = [0, 256], sizes = [8, 128], strides = [1, 1]} : vector<8x384xf32> to vector<8x128xf32>
    %439 = arith.addf %438, %266 : vector<8x128xf32>
    %440 = arith.mulf %428, %439 : vector<8x128xf32>
    %441 = arith.addf %437, %440 : vector<8x128xf32>
    %442 = math.tanh %441 : vector<8x128xf32>
    %cst_80 = arith.constant 1.000000e+00 : f32
    %443 = vector.broadcast %cst_80 : f32 to vector<8x128xf32>
    %444 = arith.subf %443, %436 : vector<8x128xf32>
    %445 = arith.mulf %444, %442 : vector<8x128xf32>
    %446 = arith.mulf %436, %417 : vector<8x128xf32>
    %447 = arith.addf %445, %446 : vector<8x128xf32>
    %448 = vector.extract_strided_slice %260 {offsets = [48, 0], sizes = [8, 384], strides = [1, 1]} : vector<64x384xf32> to vector<8x384xf32>
    %449 = arith.truncf %447 : vector<8x128xf32> to vector<8x128xbf16>
    %cst_81 = arith.constant dense<0.000000e+00> : vector<8x384xf32>
    %450 = tpu.matmul %449, %262, %cst_81 {dimension_numbers = #tpu.dot_dimension_numbers<[1], [0], [0], [1], [0, 0, 1, 1], [], []>} : vector<8x128xbf16>, vector<128x384xbf16>, vector<8x384xf32> -> vector<8x384xf32>
    %451 = vector.extract_strided_slice %448 {offsets = [0, 0], sizes = [8, 128], strides = [1, 1]} : vector<8x384xf32> to vector<8x128xf32>
    %452 = vector.extract_strided_slice %450 {offsets = [0, 0], sizes = [8, 128], strides = [1, 1]} : vector<8x384xf32> to vector<8x128xf32>
    %453 = arith.addf %451, %452 : vector<8x128xf32>
    %454 = arith.negf %453 : vector<8x128xf32>
    %455 = math.exp %454 : vector<8x128xf32>
    %cst_82 = arith.constant 1.000000e+00 : f32
    %456 = vector.broadcast %cst_82 : f32 to vector<8x128xf32>
    %457 = arith.addf %456, %455 : vector<8x128xf32>
    %458 = arith.divf %456, %457 : vector<8x128xf32>
    %459 = vector.extract_strided_slice %448 {offsets = [0, 128], sizes = [8, 128], strides = [1, 1]} : vector<8x384xf32> to vector<8x128xf32>
    %460 = vector.extract_strided_slice %450 {offsets = [0, 128], sizes = [8, 128], strides = [1, 1]} : vector<8x384xf32> to vector<8x128xf32>
    %461 = arith.addf %459, %460 : vector<8x128xf32>
    %462 = arith.negf %461 : vector<8x128xf32>
    %463 = math.exp %462 : vector<8x128xf32>
    %cst_83 = arith.constant 1.000000e+00 : f32
    %464 = vector.broadcast %cst_83 : f32 to vector<8x128xf32>
    %465 = arith.addf %464, %463 : vector<8x128xf32>
    %466 = arith.divf %464, %465 : vector<8x128xf32>
    %467 = vector.extract_strided_slice %448 {offsets = [0, 256], sizes = [8, 128], strides = [1, 1]} : vector<8x384xf32> to vector<8x128xf32>
    %468 = vector.extract_strided_slice %450 {offsets = [0, 256], sizes = [8, 128], strides = [1, 1]} : vector<8x384xf32> to vector<8x128xf32>
    %469 = arith.addf %468, %266 : vector<8x128xf32>
    %470 = arith.mulf %458, %469 : vector<8x128xf32>
    %471 = arith.addf %467, %470 : vector<8x128xf32>
    %472 = math.tanh %471 : vector<8x128xf32>
    %cst_84 = arith.constant 1.000000e+00 : f32
    %473 = vector.broadcast %cst_84 : f32 to vector<8x128xf32>
    %474 = arith.subf %473, %466 : vector<8x128xf32>
    %475 = arith.mulf %474, %472 : vector<8x128xf32>
    %476 = arith.mulf %466, %447 : vector<8x128xf32>
    %477 = arith.addf %475, %476 : vector<8x128xf32>
    %478 = vector.extract_strided_slice %260 {offsets = [56, 0], sizes = [8, 384], strides = [1, 1]} : vector<64x384xf32> to vector<8x384xf32>
    %479 = arith.truncf %477 : vector<8x128xf32> to vector<8x128xbf16>
    %cst_85 = arith.constant dense<0.000000e+00> : vector<8x384xf32>
    %480 = tpu.matmul %479, %262, %cst_85 {dimension_numbers = #tpu.dot_dimension_numbers<[1], [0], [0], [1], [0, 0, 1, 1], [], []>} : vector<8x128xbf16>, vector<128x384xbf16>, vector<8x384xf32> -> vector<8x384xf32>
    %481 = vector.extract_strided_slice %478 {offsets = [0, 0], sizes = [8, 128], strides = [1, 1]} : vector<8x384xf32> to vector<8x128xf32>
    %482 = vector.extract_strided_slice %480 {offsets = [0, 0], sizes = [8, 128], strides = [1, 1]} : vector<8x384xf32> to vector<8x128xf32>
    %483 = arith.addf %481, %482 : vector<8x128xf32>
    %484 = arith.negf %483 : vector<8x128xf32>
    %485 = math.exp %484 : vector<8x128xf32>
    %cst_86 = arith.constant 1.000000e+00 : f32
    %486 = vector.broadcast %cst_86 : f32 to vector<8x128xf32>
    %487 = arith.addf %486, %485 : vector<8x128xf32>
    %488 = arith.divf %486, %487 : vector<8x128xf32>
    %489 = vector.extract_strided_slice %478 {offsets = [0, 128], sizes = [8, 128], strides = [1, 1]} : vector<8x384xf32> to vector<8x128xf32>
    %490 = vector.extract_strided_slice %480 {offsets = [0, 128], sizes = [8, 128], strides = [1, 1]} : vector<8x384xf32> to vector<8x128xf32>
    %491 = arith.addf %489, %490 : vector<8x128xf32>
    %492 = arith.negf %491 : vector<8x128xf32>
    %493 = math.exp %492 : vector<8x128xf32>
    %cst_87 = arith.constant 1.000000e+00 : f32
    %494 = vector.broadcast %cst_87 : f32 to vector<8x128xf32>
    %495 = arith.addf %494, %493 : vector<8x128xf32>
    %496 = arith.divf %494, %495 : vector<8x128xf32>
    %497 = vector.extract_strided_slice %478 {offsets = [0, 256], sizes = [8, 128], strides = [1, 1]} : vector<8x384xf32> to vector<8x128xf32>
    %498 = vector.extract_strided_slice %480 {offsets = [0, 256], sizes = [8, 128], strides = [1, 1]} : vector<8x384xf32> to vector<8x128xf32>
    %499 = arith.addf %498, %266 : vector<8x128xf32>
    %500 = arith.mulf %488, %499 : vector<8x128xf32>
    %501 = arith.addf %497, %500 : vector<8x128xf32>
    %502 = math.tanh %501 : vector<8x128xf32>
    %cst_88 = arith.constant 1.000000e+00 : f32
    %503 = vector.broadcast %cst_88 : f32 to vector<8x128xf32>
    %504 = arith.subf %503, %496 : vector<8x128xf32>
    %505 = arith.mulf %504, %502 : vector<8x128xf32>
    %506 = arith.mulf %496, %477 : vector<8x128xf32>
    %507 = arith.addf %505, %506 : vector<8x128xf32>
    %508 = tpu.concatenate %297, %327, %357, %387, %417, %447, %477, %507 in 0 : vector<8x128xf32>, vector<8x128xf32>, vector<8x128xf32>, vector<8x128xf32>, vector<8x128xf32>, vector<8x128xf32>, vector<8x128xf32>, vector<8x128xf32> -> vector<64x128xf32>
    %509 = arith.truncf %508 : vector<64x128xf32> to vector<64x128xbf16>
    %c1 = arith.constant 1 : index
    %c0_89 = arith.constant 0 : index
    %c0_90 = arith.constant 0 : index
    %510 = vector.load %arg6[%c1, %c0_89, %c0_90] : memref<5x128x384xbf16, #tpu.memory_space<vmem>>, vector<1x128x384xbf16>
    %511 = vector.shape_cast %510 : vector<1x128x384xbf16> to vector<128x384xbf16>
    %cst_91 = arith.constant dense<0.000000e+00> : vector<64x384xf32>
    %512 = tpu.matmul %509, %511, %cst_91 {dimension_numbers = #tpu.dot_dimension_numbers<[1], [0], [0], [1], [0, 0, 1, 1], [], []>} : vector<64x128xbf16>, vector<128x384xbf16>, vector<64x384xf32> -> vector<64x384xf32>
    %c1_92 = arith.constant 1 : index
    %c0_93 = arith.constant 0 : index
    %c0_94 = arith.constant 0 : index
    %513 = vector.load %arg7[%c1_92, %c0_93, %c0_94] : memref<5x1x384xf32, #tpu.memory_space<vmem>>, vector<1x1x384xf32>
    %514 = vector.shape_cast %513 : vector<1x1x384xf32> to vector<1x384xf32>
    %515 = vector.broadcast %514 : vector<1x384xf32> to vector<64x384xf32>
    %516 = arith.addf %512, %515 : vector<64x384xf32>
    %c1_95 = arith.constant 1 : index
    %c0_96 = arith.constant 0 : index
    %c0_97 = arith.constant 0 : index
    %517 = vector.load %arg8[%c1_95, %c0_96, %c0_97] : memref<5x128x384xbf16, #tpu.memory_space<vmem>>, vector<1x128x384xbf16>
    %518 = vector.shape_cast %517 : vector<1x128x384xbf16> to vector<128x384xbf16>
    %c1_98 = arith.constant 1 : index
    %c0_99 = arith.constant 0 : index
    %c0_100 = arith.constant 0 : index
    %519 = vector.load %arg9[%c1_98, %c0_99, %c0_100] : memref<5x1x128xf32, #tpu.memory_space<vmem>>, vector<1x1x128xf32>
    %520 = vector.shape_cast %519 : vector<1x1x128xf32> to vector<1x128xf32>
    %521 = vector.shape_cast %520 : vector<1x128xf32> to vector<1x128xf32>
    %522 = vector.broadcast %521 : vector<1x128xf32> to vector<8x128xf32>
    %cst_101 = arith.constant 0.000000e+00 : f32
    %523 = vector.broadcast %cst_101 : f32 to vector<8x128xf32>
    %524 = vector.extract_strided_slice %516 {offsets = [0, 0], sizes = [8, 384], strides = [1, 1]} : vector<64x384xf32> to vector<8x384xf32>
    %525 = arith.truncf %523 : vector<8x128xf32> to vector<8x128xbf16>
    %cst_102 = arith.constant dense<0.000000e+00> : vector<8x384xf32>
    %526 = tpu.matmul %525, %518, %cst_102 {dimension_numbers = #tpu.dot_dimension_numbers<[1], [0], [0], [1], [0, 0, 1, 1], [], []>} : vector<8x128xbf16>, vector<128x384xbf16>, vector<8x384xf32> -> vector<8x384xf32>
    %527 = vector.extract_strided_slice %524 {offsets = [0, 0], sizes = [8, 128], strides = [1, 1]} : vector<8x384xf32> to vector<8x128xf32>
    %528 = vector.extract_strided_slice %526 {offsets = [0, 0], sizes = [8, 128], strides = [1, 1]} : vector<8x384xf32> to vector<8x128xf32>
    %529 = arith.addf %527, %528 : vector<8x128xf32>
    %530 = arith.negf %529 : vector<8x128xf32>
    %531 = math.exp %530 : vector<8x128xf32>
    %cst_103 = arith.constant 1.000000e+00 : f32
    %532 = vector.broadcast %cst_103 : f32 to vector<8x128xf32>
    %533 = arith.addf %532, %531 : vector<8x128xf32>
    %534 = arith.divf %532, %533 : vector<8x128xf32>
    %535 = vector.extract_strided_slice %524 {offsets = [0, 128], sizes = [8, 128], strides = [1, 1]} : vector<8x384xf32> to vector<8x128xf32>
    %536 = vector.extract_strided_slice %526 {offsets = [0, 128], sizes = [8, 128], strides = [1, 1]} : vector<8x384xf32> to vector<8x128xf32>
    %537 = arith.addf %535, %536 : vector<8x128xf32>
    %538 = arith.negf %537 : vector<8x128xf32>
    %539 = math.exp %538 : vector<8x128xf32>
    %cst_104 = arith.constant 1.000000e+00 : f32
    %540 = vector.broadcast %cst_104 : f32 to vector<8x128xf32>
    %541 = arith.addf %540, %539 : vector<8x128xf32>
    %542 = arith.divf %540, %541 : vector<8x128xf32>
    %543 = vector.extract_strided_slice %524 {offsets = [0, 256], sizes = [8, 128], strides = [1, 1]} : vector<8x384xf32> to vector<8x128xf32>
    %544 = vector.extract_strided_slice %526 {offsets = [0, 256], sizes = [8, 128], strides = [1, 1]} : vector<8x384xf32> to vector<8x128xf32>
    %545 = arith.addf %544, %522 : vector<8x128xf32>
    %546 = arith.mulf %534, %545 : vector<8x128xf32>
    %547 = arith.addf %543, %546 : vector<8x128xf32>
    %548 = math.tanh %547 : vector<8x128xf32>
    %cst_105 = arith.constant 1.000000e+00 : f32
    %549 = vector.broadcast %cst_105 : f32 to vector<8x128xf32>
    %550 = arith.subf %549, %542 : vector<8x128xf32>
    %551 = arith.mulf %550, %548 : vector<8x128xf32>
    %552 = arith.mulf %542, %523 : vector<8x128xf32>
    %553 = arith.addf %551, %552 : vector<8x128xf32>
    %554 = vector.extract_strided_slice %516 {offsets = [8, 0], sizes = [8, 384], strides = [1, 1]} : vector<64x384xf32> to vector<8x384xf32>
    %555 = arith.truncf %553 : vector<8x128xf32> to vector<8x128xbf16>
    %cst_106 = arith.constant dense<0.000000e+00> : vector<8x384xf32>
    %556 = tpu.matmul %555, %518, %cst_106 {dimension_numbers = #tpu.dot_dimension_numbers<[1], [0], [0], [1], [0, 0, 1, 1], [], []>} : vector<8x128xbf16>, vector<128x384xbf16>, vector<8x384xf32> -> vector<8x384xf32>
    %557 = vector.extract_strided_slice %554 {offsets = [0, 0], sizes = [8, 128], strides = [1, 1]} : vector<8x384xf32> to vector<8x128xf32>
    %558 = vector.extract_strided_slice %556 {offsets = [0, 0], sizes = [8, 128], strides = [1, 1]} : vector<8x384xf32> to vector<8x128xf32>
    %559 = arith.addf %557, %558 : vector<8x128xf32>
    %560 = arith.negf %559 : vector<8x128xf32>
    %561 = math.exp %560 : vector<8x128xf32>
    %cst_107 = arith.constant 1.000000e+00 : f32
    %562 = vector.broadcast %cst_107 : f32 to vector<8x128xf32>
    %563 = arith.addf %562, %561 : vector<8x128xf32>
    %564 = arith.divf %562, %563 : vector<8x128xf32>
    %565 = vector.extract_strided_slice %554 {offsets = [0, 128], sizes = [8, 128], strides = [1, 1]} : vector<8x384xf32> to vector<8x128xf32>
    %566 = vector.extract_strided_slice %556 {offsets = [0, 128], sizes = [8, 128], strides = [1, 1]} : vector<8x384xf32> to vector<8x128xf32>
    %567 = arith.addf %565, %566 : vector<8x128xf32>
    %568 = arith.negf %567 : vector<8x128xf32>
    %569 = math.exp %568 : vector<8x128xf32>
    %cst_108 = arith.constant 1.000000e+00 : f32
    %570 = vector.broadcast %cst_108 : f32 to vector<8x128xf32>
    %571 = arith.addf %570, %569 : vector<8x128xf32>
    %572 = arith.divf %570, %571 : vector<8x128xf32>
    %573 = vector.extract_strided_slice %554 {offsets = [0, 256], sizes = [8, 128], strides = [1, 1]} : vector<8x384xf32> to vector<8x128xf32>
    %574 = vector.extract_strided_slice %556 {offsets = [0, 256], sizes = [8, 128], strides = [1, 1]} : vector<8x384xf32> to vector<8x128xf32>
    %575 = arith.addf %574, %522 : vector<8x128xf32>
    %576 = arith.mulf %564, %575 : vector<8x128xf32>
    %577 = arith.addf %573, %576 : vector<8x128xf32>
    %578 = math.tanh %577 : vector<8x128xf32>
    %cst_109 = arith.constant 1.000000e+00 : f32
    %579 = vector.broadcast %cst_109 : f32 to vector<8x128xf32>
    %580 = arith.subf %579, %572 : vector<8x128xf32>
    %581 = arith.mulf %580, %578 : vector<8x128xf32>
    %582 = arith.mulf %572, %553 : vector<8x128xf32>
    %583 = arith.addf %581, %582 : vector<8x128xf32>
    %584 = vector.extract_strided_slice %516 {offsets = [16, 0], sizes = [8, 384], strides = [1, 1]} : vector<64x384xf32> to vector<8x384xf32>
    %585 = arith.truncf %583 : vector<8x128xf32> to vector<8x128xbf16>
    %cst_110 = arith.constant dense<0.000000e+00> : vector<8x384xf32>
    %586 = tpu.matmul %585, %518, %cst_110 {dimension_numbers = #tpu.dot_dimension_numbers<[1], [0], [0], [1], [0, 0, 1, 1], [], []>} : vector<8x128xbf16>, vector<128x384xbf16>, vector<8x384xf32> -> vector<8x384xf32>
    %587 = vector.extract_strided_slice %584 {offsets = [0, 0], sizes = [8, 128], strides = [1, 1]} : vector<8x384xf32> to vector<8x128xf32>
    %588 = vector.extract_strided_slice %586 {offsets = [0, 0], sizes = [8, 128], strides = [1, 1]} : vector<8x384xf32> to vector<8x128xf32>
    %589 = arith.addf %587, %588 : vector<8x128xf32>
    %590 = arith.negf %589 : vector<8x128xf32>
    %591 = math.exp %590 : vector<8x128xf32>
    %cst_111 = arith.constant 1.000000e+00 : f32
    %592 = vector.broadcast %cst_111 : f32 to vector<8x128xf32>
    %593 = arith.addf %592, %591 : vector<8x128xf32>
    %594 = arith.divf %592, %593 : vector<8x128xf32>
    %595 = vector.extract_strided_slice %584 {offsets = [0, 128], sizes = [8, 128], strides = [1, 1]} : vector<8x384xf32> to vector<8x128xf32>
    %596 = vector.extract_strided_slice %586 {offsets = [0, 128], sizes = [8, 128], strides = [1, 1]} : vector<8x384xf32> to vector<8x128xf32>
    %597 = arith.addf %595, %596 : vector<8x128xf32>
    %598 = arith.negf %597 : vector<8x128xf32>
    %599 = math.exp %598 : vector<8x128xf32>
    %cst_112 = arith.constant 1.000000e+00 : f32
    %600 = vector.broadcast %cst_112 : f32 to vector<8x128xf32>
    %601 = arith.addf %600, %599 : vector<8x128xf32>
    %602 = arith.divf %600, %601 : vector<8x128xf32>
    %603 = vector.extract_strided_slice %584 {offsets = [0, 256], sizes = [8, 128], strides = [1, 1]} : vector<8x384xf32> to vector<8x128xf32>
    %604 = vector.extract_strided_slice %586 {offsets = [0, 256], sizes = [8, 128], strides = [1, 1]} : vector<8x384xf32> to vector<8x128xf32>
    %605 = arith.addf %604, %522 : vector<8x128xf32>
    %606 = arith.mulf %594, %605 : vector<8x128xf32>
    %607 = arith.addf %603, %606 : vector<8x128xf32>
    %608 = math.tanh %607 : vector<8x128xf32>
    %cst_113 = arith.constant 1.000000e+00 : f32
    %609 = vector.broadcast %cst_113 : f32 to vector<8x128xf32>
    %610 = arith.subf %609, %602 : vector<8x128xf32>
    %611 = arith.mulf %610, %608 : vector<8x128xf32>
    %612 = arith.mulf %602, %583 : vector<8x128xf32>
    %613 = arith.addf %611, %612 : vector<8x128xf32>
    %614 = vector.extract_strided_slice %516 {offsets = [24, 0], sizes = [8, 384], strides = [1, 1]} : vector<64x384xf32> to vector<8x384xf32>
    %615 = arith.truncf %613 : vector<8x128xf32> to vector<8x128xbf16>
    %cst_114 = arith.constant dense<0.000000e+00> : vector<8x384xf32>
    %616 = tpu.matmul %615, %518, %cst_114 {dimension_numbers = #tpu.dot_dimension_numbers<[1], [0], [0], [1], [0, 0, 1, 1], [], []>} : vector<8x128xbf16>, vector<128x384xbf16>, vector<8x384xf32> -> vector<8x384xf32>
    %617 = vector.extract_strided_slice %614 {offsets = [0, 0], sizes = [8, 128], strides = [1, 1]} : vector<8x384xf32> to vector<8x128xf32>
    %618 = vector.extract_strided_slice %616 {offsets = [0, 0], sizes = [8, 128], strides = [1, 1]} : vector<8x384xf32> to vector<8x128xf32>
    %619 = arith.addf %617, %618 : vector<8x128xf32>
    %620 = arith.negf %619 : vector<8x128xf32>
    %621 = math.exp %620 : vector<8x128xf32>
    %cst_115 = arith.constant 1.000000e+00 : f32
    %622 = vector.broadcast %cst_115 : f32 to vector<8x128xf32>
    %623 = arith.addf %622, %621 : vector<8x128xf32>
    %624 = arith.divf %622, %623 : vector<8x128xf32>
    %625 = vector.extract_strided_slice %614 {offsets = [0, 128], sizes = [8, 128], strides = [1, 1]} : vector<8x384xf32> to vector<8x128xf32>
    %626 = vector.extract_strided_slice %616 {offsets = [0, 128], sizes = [8, 128], strides = [1, 1]} : vector<8x384xf32> to vector<8x128xf32>
    %627 = arith.addf %625, %626 : vector<8x128xf32>
    %628 = arith.negf %627 : vector<8x128xf32>
    %629 = math.exp %628 : vector<8x128xf32>
    %cst_116 = arith.constant 1.000000e+00 : f32
    %630 = vector.broadcast %cst_116 : f32 to vector<8x128xf32>
    %631 = arith.addf %630, %629 : vector<8x128xf32>
    %632 = arith.divf %630, %631 : vector<8x128xf32>
    %633 = vector.extract_strided_slice %614 {offsets = [0, 256], sizes = [8, 128], strides = [1, 1]} : vector<8x384xf32> to vector<8x128xf32>
    %634 = vector.extract_strided_slice %616 {offsets = [0, 256], sizes = [8, 128], strides = [1, 1]} : vector<8x384xf32> to vector<8x128xf32>
    %635 = arith.addf %634, %522 : vector<8x128xf32>
    %636 = arith.mulf %624, %635 : vector<8x128xf32>
    %637 = arith.addf %633, %636 : vector<8x128xf32>
    %638 = math.tanh %637 : vector<8x128xf32>
    %cst_117 = arith.constant 1.000000e+00 : f32
    %639 = vector.broadcast %cst_117 : f32 to vector<8x128xf32>
    %640 = arith.subf %639, %632 : vector<8x128xf32>
    %641 = arith.mulf %640, %638 : vector<8x128xf32>
    %642 = arith.mulf %632, %613 : vector<8x128xf32>
    %643 = arith.addf %641, %642 : vector<8x128xf32>
    %644 = vector.extract_strided_slice %516 {offsets = [32, 0], sizes = [8, 384], strides = [1, 1]} : vector<64x384xf32> to vector<8x384xf32>
    %645 = arith.truncf %643 : vector<8x128xf32> to vector<8x128xbf16>
    %cst_118 = arith.constant dense<0.000000e+00> : vector<8x384xf32>
    %646 = tpu.matmul %645, %518, %cst_118 {dimension_numbers = #tpu.dot_dimension_numbers<[1], [0], [0], [1], [0, 0, 1, 1], [], []>} : vector<8x128xbf16>, vector<128x384xbf16>, vector<8x384xf32> -> vector<8x384xf32>
    %647 = vector.extract_strided_slice %644 {offsets = [0, 0], sizes = [8, 128], strides = [1, 1]} : vector<8x384xf32> to vector<8x128xf32>
    %648 = vector.extract_strided_slice %646 {offsets = [0, 0], sizes = [8, 128], strides = [1, 1]} : vector<8x384xf32> to vector<8x128xf32>
    %649 = arith.addf %647, %648 : vector<8x128xf32>
    %650 = arith.negf %649 : vector<8x128xf32>
    %651 = math.exp %650 : vector<8x128xf32>
    %cst_119 = arith.constant 1.000000e+00 : f32
    %652 = vector.broadcast %cst_119 : f32 to vector<8x128xf32>
    %653 = arith.addf %652, %651 : vector<8x128xf32>
    %654 = arith.divf %652, %653 : vector<8x128xf32>
    %655 = vector.extract_strided_slice %644 {offsets = [0, 128], sizes = [8, 128], strides = [1, 1]} : vector<8x384xf32> to vector<8x128xf32>
    %656 = vector.extract_strided_slice %646 {offsets = [0, 128], sizes = [8, 128], strides = [1, 1]} : vector<8x384xf32> to vector<8x128xf32>
    %657 = arith.addf %655, %656 : vector<8x128xf32>
    %658 = arith.negf %657 : vector<8x128xf32>
    %659 = math.exp %658 : vector<8x128xf32>
    %cst_120 = arith.constant 1.000000e+00 : f32
    %660 = vector.broadcast %cst_120 : f32 to vector<8x128xf32>
    %661 = arith.addf %660, %659 : vector<8x128xf32>
    %662 = arith.divf %660, %661 : vector<8x128xf32>
    %663 = vector.extract_strided_slice %644 {offsets = [0, 256], sizes = [8, 128], strides = [1, 1]} : vector<8x384xf32> to vector<8x128xf32>
    %664 = vector.extract_strided_slice %646 {offsets = [0, 256], sizes = [8, 128], strides = [1, 1]} : vector<8x384xf32> to vector<8x128xf32>
    %665 = arith.addf %664, %522 : vector<8x128xf32>
    %666 = arith.mulf %654, %665 : vector<8x128xf32>
    %667 = arith.addf %663, %666 : vector<8x128xf32>
    %668 = math.tanh %667 : vector<8x128xf32>
    %cst_121 = arith.constant 1.000000e+00 : f32
    %669 = vector.broadcast %cst_121 : f32 to vector<8x128xf32>
    %670 = arith.subf %669, %662 : vector<8x128xf32>
    %671 = arith.mulf %670, %668 : vector<8x128xf32>
    %672 = arith.mulf %662, %643 : vector<8x128xf32>
    %673 = arith.addf %671, %672 : vector<8x128xf32>
    %674 = vector.extract_strided_slice %516 {offsets = [40, 0], sizes = [8, 384], strides = [1, 1]} : vector<64x384xf32> to vector<8x384xf32>
    %675 = arith.truncf %673 : vector<8x128xf32> to vector<8x128xbf16>
    %cst_122 = arith.constant dense<0.000000e+00> : vector<8x384xf32>
    %676 = tpu.matmul %675, %518, %cst_122 {dimension_numbers = #tpu.dot_dimension_numbers<[1], [0], [0], [1], [0, 0, 1, 1], [], []>} : vector<8x128xbf16>, vector<128x384xbf16>, vector<8x384xf32> -> vector<8x384xf32>
    %677 = vector.extract_strided_slice %674 {offsets = [0, 0], sizes = [8, 128], strides = [1, 1]} : vector<8x384xf32> to vector<8x128xf32>
    %678 = vector.extract_strided_slice %676 {offsets = [0, 0], sizes = [8, 128], strides = [1, 1]} : vector<8x384xf32> to vector<8x128xf32>
    %679 = arith.addf %677, %678 : vector<8x128xf32>
    %680 = arith.negf %679 : vector<8x128xf32>
    %681 = math.exp %680 : vector<8x128xf32>
    %cst_123 = arith.constant 1.000000e+00 : f32
    %682 = vector.broadcast %cst_123 : f32 to vector<8x128xf32>
    %683 = arith.addf %682, %681 : vector<8x128xf32>
    %684 = arith.divf %682, %683 : vector<8x128xf32>
    %685 = vector.extract_strided_slice %674 {offsets = [0, 128], sizes = [8, 128], strides = [1, 1]} : vector<8x384xf32> to vector<8x128xf32>
    %686 = vector.extract_strided_slice %676 {offsets = [0, 128], sizes = [8, 128], strides = [1, 1]} : vector<8x384xf32> to vector<8x128xf32>
    %687 = arith.addf %685, %686 : vector<8x128xf32>
    %688 = arith.negf %687 : vector<8x128xf32>
    %689 = math.exp %688 : vector<8x128xf32>
    %cst_124 = arith.constant 1.000000e+00 : f32
    %690 = vector.broadcast %cst_124 : f32 to vector<8x128xf32>
    %691 = arith.addf %690, %689 : vector<8x128xf32>
    %692 = arith.divf %690, %691 : vector<8x128xf32>
    %693 = vector.extract_strided_slice %674 {offsets = [0, 256], sizes = [8, 128], strides = [1, 1]} : vector<8x384xf32> to vector<8x128xf32>
    %694 = vector.extract_strided_slice %676 {offsets = [0, 256], sizes = [8, 128], strides = [1, 1]} : vector<8x384xf32> to vector<8x128xf32>
    %695 = arith.addf %694, %522 : vector<8x128xf32>
    %696 = arith.mulf %684, %695 : vector<8x128xf32>
    %697 = arith.addf %693, %696 : vector<8x128xf32>
    %698 = math.tanh %697 : vector<8x128xf32>
    %cst_125 = arith.constant 1.000000e+00 : f32
    %699 = vector.broadcast %cst_125 : f32 to vector<8x128xf32>
    %700 = arith.subf %699, %692 : vector<8x128xf32>
    %701 = arith.mulf %700, %698 : vector<8x128xf32>
    %702 = arith.mulf %692, %673 : vector<8x128xf32>
    %703 = arith.addf %701, %702 : vector<8x128xf32>
    %704 = vector.extract_strided_slice %516 {offsets = [48, 0], sizes = [8, 384], strides = [1, 1]} : vector<64x384xf32> to vector<8x384xf32>
    %705 = arith.truncf %703 : vector<8x128xf32> to vector<8x128xbf16>
    %cst_126 = arith.constant dense<0.000000e+00> : vector<8x384xf32>
    %706 = tpu.matmul %705, %518, %cst_126 {dimension_numbers = #tpu.dot_dimension_numbers<[1], [0], [0], [1], [0, 0, 1, 1], [], []>} : vector<8x128xbf16>, vector<128x384xbf16>, vector<8x384xf32> -> vector<8x384xf32>
    %707 = vector.extract_strided_slice %704 {offsets = [0, 0], sizes = [8, 128], strides = [1, 1]} : vector<8x384xf32> to vector<8x128xf32>
    %708 = vector.extract_strided_slice %706 {offsets = [0, 0], sizes = [8, 128], strides = [1, 1]} : vector<8x384xf32> to vector<8x128xf32>
    %709 = arith.addf %707, %708 : vector<8x128xf32>
    %710 = arith.negf %709 : vector<8x128xf32>
    %711 = math.exp %710 : vector<8x128xf32>
    %cst_127 = arith.constant 1.000000e+00 : f32
    %712 = vector.broadcast %cst_127 : f32 to vector<8x128xf32>
    %713 = arith.addf %712, %711 : vector<8x128xf32>
    %714 = arith.divf %712, %713 : vector<8x128xf32>
    %715 = vector.extract_strided_slice %704 {offsets = [0, 128], sizes = [8, 128], strides = [1, 1]} : vector<8x384xf32> to vector<8x128xf32>
    %716 = vector.extract_strided_slice %706 {offsets = [0, 128], sizes = [8, 128], strides = [1, 1]} : vector<8x384xf32> to vector<8x128xf32>
    %717 = arith.addf %715, %716 : vector<8x128xf32>
    %718 = arith.negf %717 : vector<8x128xf32>
    %719 = math.exp %718 : vector<8x128xf32>
    %cst_128 = arith.constant 1.000000e+00 : f32
    %720 = vector.broadcast %cst_128 : f32 to vector<8x128xf32>
    %721 = arith.addf %720, %719 : vector<8x128xf32>
    %722 = arith.divf %720, %721 : vector<8x128xf32>
    %723 = vector.extract_strided_slice %704 {offsets = [0, 256], sizes = [8, 128], strides = [1, 1]} : vector<8x384xf32> to vector<8x128xf32>
    %724 = vector.extract_strided_slice %706 {offsets = [0, 256], sizes = [8, 128], strides = [1, 1]} : vector<8x384xf32> to vector<8x128xf32>
    %725 = arith.addf %724, %522 : vector<8x128xf32>
    %726 = arith.mulf %714, %725 : vector<8x128xf32>
    %727 = arith.addf %723, %726 : vector<8x128xf32>
    %728 = math.tanh %727 : vector<8x128xf32>
    %cst_129 = arith.constant 1.000000e+00 : f32
    %729 = vector.broadcast %cst_129 : f32 to vector<8x128xf32>
    %730 = arith.subf %729, %722 : vector<8x128xf32>
    %731 = arith.mulf %730, %728 : vector<8x128xf32>
    %732 = arith.mulf %722, %703 : vector<8x128xf32>
    %733 = arith.addf %731, %732 : vector<8x128xf32>
    %734 = vector.extract_strided_slice %516 {offsets = [56, 0], sizes = [8, 384], strides = [1, 1]} : vector<64x384xf32> to vector<8x384xf32>
    %735 = arith.truncf %733 : vector<8x128xf32> to vector<8x128xbf16>
    %cst_130 = arith.constant dense<0.000000e+00> : vector<8x384xf32>
    %736 = tpu.matmul %735, %518, %cst_130 {dimension_numbers = #tpu.dot_dimension_numbers<[1], [0], [0], [1], [0, 0, 1, 1], [], []>} : vector<8x128xbf16>, vector<128x384xbf16>, vector<8x384xf32> -> vector<8x384xf32>
    %737 = vector.extract_strided_slice %734 {offsets = [0, 0], sizes = [8, 128], strides = [1, 1]} : vector<8x384xf32> to vector<8x128xf32>
    %738 = vector.extract_strided_slice %736 {offsets = [0, 0], sizes = [8, 128], strides = [1, 1]} : vector<8x384xf32> to vector<8x128xf32>
    %739 = arith.addf %737, %738 : vector<8x128xf32>
    %740 = arith.negf %739 : vector<8x128xf32>
    %741 = math.exp %740 : vector<8x128xf32>
    %cst_131 = arith.constant 1.000000e+00 : f32
    %742 = vector.broadcast %cst_131 : f32 to vector<8x128xf32>
    %743 = arith.addf %742, %741 : vector<8x128xf32>
    %744 = arith.divf %742, %743 : vector<8x128xf32>
    %745 = vector.extract_strided_slice %734 {offsets = [0, 128], sizes = [8, 128], strides = [1, 1]} : vector<8x384xf32> to vector<8x128xf32>
    %746 = vector.extract_strided_slice %736 {offsets = [0, 128], sizes = [8, 128], strides = [1, 1]} : vector<8x384xf32> to vector<8x128xf32>
    %747 = arith.addf %745, %746 : vector<8x128xf32>
    %748 = arith.negf %747 : vector<8x128xf32>
    %749 = math.exp %748 : vector<8x128xf32>
    %cst_132 = arith.constant 1.000000e+00 : f32
    %750 = vector.broadcast %cst_132 : f32 to vector<8x128xf32>
    %751 = arith.addf %750, %749 : vector<8x128xf32>
    %752 = arith.divf %750, %751 : vector<8x128xf32>
    %753 = vector.extract_strided_slice %734 {offsets = [0, 256], sizes = [8, 128], strides = [1, 1]} : vector<8x384xf32> to vector<8x128xf32>
    %754 = vector.extract_strided_slice %736 {offsets = [0, 256], sizes = [8, 128], strides = [1, 1]} : vector<8x384xf32> to vector<8x128xf32>
    %755 = arith.addf %754, %522 : vector<8x128xf32>
    %756 = arith.mulf %744, %755 : vector<8x128xf32>
    %757 = arith.addf %753, %756 : vector<8x128xf32>
    %758 = math.tanh %757 : vector<8x128xf32>
    %cst_133 = arith.constant 1.000000e+00 : f32
    %759 = vector.broadcast %cst_133 : f32 to vector<8x128xf32>
    %760 = arith.subf %759, %752 : vector<8x128xf32>
    %761 = arith.mulf %760, %758 : vector<8x128xf32>
    %762 = arith.mulf %752, %733 : vector<8x128xf32>
    %763 = arith.addf %761, %762 : vector<8x128xf32>
    %764 = tpu.concatenate %553, %583, %613, %643, %673, %703, %733, %763 in 0 : vector<8x128xf32>, vector<8x128xf32>, vector<8x128xf32>, vector<8x128xf32>, vector<8x128xf32>, vector<8x128xf32>, vector<8x128xf32>, vector<8x128xf32> -> vector<64x128xf32>
    %765 = arith.truncf %764 : vector<64x128xf32> to vector<64x128xbf16>
    %c2 = arith.constant 2 : index
    %c0_134 = arith.constant 0 : index
    %c0_135 = arith.constant 0 : index
    %766 = vector.load %arg6[%c2, %c0_134, %c0_135] : memref<5x128x384xbf16, #tpu.memory_space<vmem>>, vector<1x128x384xbf16>
    %767 = vector.shape_cast %766 : vector<1x128x384xbf16> to vector<128x384xbf16>
    %cst_136 = arith.constant dense<0.000000e+00> : vector<64x384xf32>
    %768 = tpu.matmul %765, %767, %cst_136 {dimension_numbers = #tpu.dot_dimension_numbers<[1], [0], [0], [1], [0, 0, 1, 1], [], []>} : vector<64x128xbf16>, vector<128x384xbf16>, vector<64x384xf32> -> vector<64x384xf32>
    %c2_137 = arith.constant 2 : index
    %c0_138 = arith.constant 0 : index
    %c0_139 = arith.constant 0 : index
    %769 = vector.load %arg7[%c2_137, %c0_138, %c0_139] : memref<5x1x384xf32, #tpu.memory_space<vmem>>, vector<1x1x384xf32>
    %770 = vector.shape_cast %769 : vector<1x1x384xf32> to vector<1x384xf32>
    %771 = vector.broadcast %770 : vector<1x384xf32> to vector<64x384xf32>
    %772 = arith.addf %768, %771 : vector<64x384xf32>
    %c2_140 = arith.constant 2 : index
    %c0_141 = arith.constant 0 : index
    %c0_142 = arith.constant 0 : index
    %773 = vector.load %arg8[%c2_140, %c0_141, %c0_142] : memref<5x128x384xbf16, #tpu.memory_space<vmem>>, vector<1x128x384xbf16>
    %774 = vector.shape_cast %773 : vector<1x128x384xbf16> to vector<128x384xbf16>
    %c2_143 = arith.constant 2 : index
    %c0_144 = arith.constant 0 : index
    %c0_145 = arith.constant 0 : index
    %775 = vector.load %arg9[%c2_143, %c0_144, %c0_145] : memref<5x1x128xf32, #tpu.memory_space<vmem>>, vector<1x1x128xf32>
    %776 = vector.shape_cast %775 : vector<1x1x128xf32> to vector<1x128xf32>
    %777 = vector.shape_cast %776 : vector<1x128xf32> to vector<1x128xf32>
    %778 = vector.broadcast %777 : vector<1x128xf32> to vector<8x128xf32>
    %cst_146 = arith.constant 0.000000e+00 : f32
    %779 = vector.broadcast %cst_146 : f32 to vector<8x128xf32>
    %780 = vector.extract_strided_slice %772 {offsets = [0, 0], sizes = [8, 384], strides = [1, 1]} : vector<64x384xf32> to vector<8x384xf32>
    %781 = arith.truncf %779 : vector<8x128xf32> to vector<8x128xbf16>
    %cst_147 = arith.constant dense<0.000000e+00> : vector<8x384xf32>
    %782 = tpu.matmul %781, %774, %cst_147 {dimension_numbers = #tpu.dot_dimension_numbers<[1], [0], [0], [1], [0, 0, 1, 1], [], []>} : vector<8x128xbf16>, vector<128x384xbf16>, vector<8x384xf32> -> vector<8x384xf32>
    %783 = vector.extract_strided_slice %780 {offsets = [0, 0], sizes = [8, 128], strides = [1, 1]} : vector<8x384xf32> to vector<8x128xf32>
    %784 = vector.extract_strided_slice %782 {offsets = [0, 0], sizes = [8, 128], strides = [1, 1]} : vector<8x384xf32> to vector<8x128xf32>
    %785 = arith.addf %783, %784 : vector<8x128xf32>
    %786 = arith.negf %785 : vector<8x128xf32>
    %787 = math.exp %786 : vector<8x128xf32>
    %cst_148 = arith.constant 1.000000e+00 : f32
    %788 = vector.broadcast %cst_148 : f32 to vector<8x128xf32>
    %789 = arith.addf %788, %787 : vector<8x128xf32>
    %790 = arith.divf %788, %789 : vector<8x128xf32>
    %791 = vector.extract_strided_slice %780 {offsets = [0, 128], sizes = [8, 128], strides = [1, 1]} : vector<8x384xf32> to vector<8x128xf32>
    %792 = vector.extract_strided_slice %782 {offsets = [0, 128], sizes = [8, 128], strides = [1, 1]} : vector<8x384xf32> to vector<8x128xf32>
    %793 = arith.addf %791, %792 : vector<8x128xf32>
    %794 = arith.negf %793 : vector<8x128xf32>
    %795 = math.exp %794 : vector<8x128xf32>
    %cst_149 = arith.constant 1.000000e+00 : f32
    %796 = vector.broadcast %cst_149 : f32 to vector<8x128xf32>
    %797 = arith.addf %796, %795 : vector<8x128xf32>
    %798 = arith.divf %796, %797 : vector<8x128xf32>
    %799 = vector.extract_strided_slice %780 {offsets = [0, 256], sizes = [8, 128], strides = [1, 1]} : vector<8x384xf32> to vector<8x128xf32>
    %800 = vector.extract_strided_slice %782 {offsets = [0, 256], sizes = [8, 128], strides = [1, 1]} : vector<8x384xf32> to vector<8x128xf32>
    %801 = arith.addf %800, %778 : vector<8x128xf32>
    %802 = arith.mulf %790, %801 : vector<8x128xf32>
    %803 = arith.addf %799, %802 : vector<8x128xf32>
    %804 = math.tanh %803 : vector<8x128xf32>
    %cst_150 = arith.constant 1.000000e+00 : f32
    %805 = vector.broadcast %cst_150 : f32 to vector<8x128xf32>
    %806 = arith.subf %805, %798 : vector<8x128xf32>
    %807 = arith.mulf %806, %804 : vector<8x128xf32>
    %808 = arith.mulf %798, %779 : vector<8x128xf32>
    %809 = arith.addf %807, %808 : vector<8x128xf32>
    %810 = vector.extract_strided_slice %772 {offsets = [8, 0], sizes = [8, 384], strides = [1, 1]} : vector<64x384xf32> to vector<8x384xf32>
    %811 = arith.truncf %809 : vector<8x128xf32> to vector<8x128xbf16>
    %cst_151 = arith.constant dense<0.000000e+00> : vector<8x384xf32>
    %812 = tpu.matmul %811, %774, %cst_151 {dimension_numbers = #tpu.dot_dimension_numbers<[1], [0], [0], [1], [0, 0, 1, 1], [], []>} : vector<8x128xbf16>, vector<128x384xbf16>, vector<8x384xf32> -> vector<8x384xf32>
    %813 = vector.extract_strided_slice %810 {offsets = [0, 0], sizes = [8, 128], strides = [1, 1]} : vector<8x384xf32> to vector<8x128xf32>
    %814 = vector.extract_strided_slice %812 {offsets = [0, 0], sizes = [8, 128], strides = [1, 1]} : vector<8x384xf32> to vector<8x128xf32>
    %815 = arith.addf %813, %814 : vector<8x128xf32>
    %816 = arith.negf %815 : vector<8x128xf32>
    %817 = math.exp %816 : vector<8x128xf32>
    %cst_152 = arith.constant 1.000000e+00 : f32
    %818 = vector.broadcast %cst_152 : f32 to vector<8x128xf32>
    %819 = arith.addf %818, %817 : vector<8x128xf32>
    %820 = arith.divf %818, %819 : vector<8x128xf32>
    %821 = vector.extract_strided_slice %810 {offsets = [0, 128], sizes = [8, 128], strides = [1, 1]} : vector<8x384xf32> to vector<8x128xf32>
    %822 = vector.extract_strided_slice %812 {offsets = [0, 128], sizes = [8, 128], strides = [1, 1]} : vector<8x384xf32> to vector<8x128xf32>
    %823 = arith.addf %821, %822 : vector<8x128xf32>
    %824 = arith.negf %823 : vector<8x128xf32>
    %825 = math.exp %824 : vector<8x128xf32>
    %cst_153 = arith.constant 1.000000e+00 : f32
    %826 = vector.broadcast %cst_153 : f32 to vector<8x128xf32>
    %827 = arith.addf %826, %825 : vector<8x128xf32>
    %828 = arith.divf %826, %827 : vector<8x128xf32>
    %829 = vector.extract_strided_slice %810 {offsets = [0, 256], sizes = [8, 128], strides = [1, 1]} : vector<8x384xf32> to vector<8x128xf32>
    %830 = vector.extract_strided_slice %812 {offsets = [0, 256], sizes = [8, 128], strides = [1, 1]} : vector<8x384xf32> to vector<8x128xf32>
    %831 = arith.addf %830, %778 : vector<8x128xf32>
    %832 = arith.mulf %820, %831 : vector<8x128xf32>
    %833 = arith.addf %829, %832 : vector<8x128xf32>
    %834 = math.tanh %833 : vector<8x128xf32>
    %cst_154 = arith.constant 1.000000e+00 : f32
    %835 = vector.broadcast %cst_154 : f32 to vector<8x128xf32>
    %836 = arith.subf %835, %828 : vector<8x128xf32>
    %837 = arith.mulf %836, %834 : vector<8x128xf32>
    %838 = arith.mulf %828, %809 : vector<8x128xf32>
    %839 = arith.addf %837, %838 : vector<8x128xf32>
    %840 = vector.extract_strided_slice %772 {offsets = [16, 0], sizes = [8, 384], strides = [1, 1]} : vector<64x384xf32> to vector<8x384xf32>
    %841 = arith.truncf %839 : vector<8x128xf32> to vector<8x128xbf16>
    %cst_155 = arith.constant dense<0.000000e+00> : vector<8x384xf32>
    %842 = tpu.matmul %841, %774, %cst_155 {dimension_numbers = #tpu.dot_dimension_numbers<[1], [0], [0], [1], [0, 0, 1, 1], [], []>} : vector<8x128xbf16>, vector<128x384xbf16>, vector<8x384xf32> -> vector<8x384xf32>
    %843 = vector.extract_strided_slice %840 {offsets = [0, 0], sizes = [8, 128], strides = [1, 1]} : vector<8x384xf32> to vector<8x128xf32>
    %844 = vector.extract_strided_slice %842 {offsets = [0, 0], sizes = [8, 128], strides = [1, 1]} : vector<8x384xf32> to vector<8x128xf32>
    %845 = arith.addf %843, %844 : vector<8x128xf32>
    %846 = arith.negf %845 : vector<8x128xf32>
    %847 = math.exp %846 : vector<8x128xf32>
    %cst_156 = arith.constant 1.000000e+00 : f32
    %848 = vector.broadcast %cst_156 : f32 to vector<8x128xf32>
    %849 = arith.addf %848, %847 : vector<8x128xf32>
    %850 = arith.divf %848, %849 : vector<8x128xf32>
    %851 = vector.extract_strided_slice %840 {offsets = [0, 128], sizes = [8, 128], strides = [1, 1]} : vector<8x384xf32> to vector<8x128xf32>
    %852 = vector.extract_strided_slice %842 {offsets = [0, 128], sizes = [8, 128], strides = [1, 1]} : vector<8x384xf32> to vector<8x128xf32>
    %853 = arith.addf %851, %852 : vector<8x128xf32>
    %854 = arith.negf %853 : vector<8x128xf32>
    %855 = math.exp %854 : vector<8x128xf32>
    %cst_157 = arith.constant 1.000000e+00 : f32
    %856 = vector.broadcast %cst_157 : f32 to vector<8x128xf32>
    %857 = arith.addf %856, %855 : vector<8x128xf32>
    %858 = arith.divf %856, %857 : vector<8x128xf32>
    %859 = vector.extract_strided_slice %840 {offsets = [0, 256], sizes = [8, 128], strides = [1, 1]} : vector<8x384xf32> to vector<8x128xf32>
    %860 = vector.extract_strided_slice %842 {offsets = [0, 256], sizes = [8, 128], strides = [1, 1]} : vector<8x384xf32> to vector<8x128xf32>
    %861 = arith.addf %860, %778 : vector<8x128xf32>
    %862 = arith.mulf %850, %861 : vector<8x128xf32>
    %863 = arith.addf %859, %862 : vector<8x128xf32>
    %864 = math.tanh %863 : vector<8x128xf32>
    %cst_158 = arith.constant 1.000000e+00 : f32
    %865 = vector.broadcast %cst_158 : f32 to vector<8x128xf32>
    %866 = arith.subf %865, %858 : vector<8x128xf32>
    %867 = arith.mulf %866, %864 : vector<8x128xf32>
    %868 = arith.mulf %858, %839 : vector<8x128xf32>
    %869 = arith.addf %867, %868 : vector<8x128xf32>
    %870 = vector.extract_strided_slice %772 {offsets = [24, 0], sizes = [8, 384], strides = [1, 1]} : vector<64x384xf32> to vector<8x384xf32>
    %871 = arith.truncf %869 : vector<8x128xf32> to vector<8x128xbf16>
    %cst_159 = arith.constant dense<0.000000e+00> : vector<8x384xf32>
    %872 = tpu.matmul %871, %774, %cst_159 {dimension_numbers = #tpu.dot_dimension_numbers<[1], [0], [0], [1], [0, 0, 1, 1], [], []>} : vector<8x128xbf16>, vector<128x384xbf16>, vector<8x384xf32> -> vector<8x384xf32>
    %873 = vector.extract_strided_slice %870 {offsets = [0, 0], sizes = [8, 128], strides = [1, 1]} : vector<8x384xf32> to vector<8x128xf32>
    %874 = vector.extract_strided_slice %872 {offsets = [0, 0], sizes = [8, 128], strides = [1, 1]} : vector<8x384xf32> to vector<8x128xf32>
    %875 = arith.addf %873, %874 : vector<8x128xf32>
    %876 = arith.negf %875 : vector<8x128xf32>
    %877 = math.exp %876 : vector<8x128xf32>
    %cst_160 = arith.constant 1.000000e+00 : f32
    %878 = vector.broadcast %cst_160 : f32 to vector<8x128xf32>
    %879 = arith.addf %878, %877 : vector<8x128xf32>
    %880 = arith.divf %878, %879 : vector<8x128xf32>
    %881 = vector.extract_strided_slice %870 {offsets = [0, 128], sizes = [8, 128], strides = [1, 1]} : vector<8x384xf32> to vector<8x128xf32>
    %882 = vector.extract_strided_slice %872 {offsets = [0, 128], sizes = [8, 128], strides = [1, 1]} : vector<8x384xf32> to vector<8x128xf32>
    %883 = arith.addf %881, %882 : vector<8x128xf32>
    %884 = arith.negf %883 : vector<8x128xf32>
    %885 = math.exp %884 : vector<8x128xf32>
    %cst_161 = arith.constant 1.000000e+00 : f32
    %886 = vector.broadcast %cst_161 : f32 to vector<8x128xf32>
    %887 = arith.addf %886, %885 : vector<8x128xf32>
    %888 = arith.divf %886, %887 : vector<8x128xf32>
    %889 = vector.extract_strided_slice %870 {offsets = [0, 256], sizes = [8, 128], strides = [1, 1]} : vector<8x384xf32> to vector<8x128xf32>
    %890 = vector.extract_strided_slice %872 {offsets = [0, 256], sizes = [8, 128], strides = [1, 1]} : vector<8x384xf32> to vector<8x128xf32>
    %891 = arith.addf %890, %778 : vector<8x128xf32>
    %892 = arith.mulf %880, %891 : vector<8x128xf32>
    %893 = arith.addf %889, %892 : vector<8x128xf32>
    %894 = math.tanh %893 : vector<8x128xf32>
    %cst_162 = arith.constant 1.000000e+00 : f32
    %895 = vector.broadcast %cst_162 : f32 to vector<8x128xf32>
    %896 = arith.subf %895, %888 : vector<8x128xf32>
    %897 = arith.mulf %896, %894 : vector<8x128xf32>
    %898 = arith.mulf %888, %869 : vector<8x128xf32>
    %899 = arith.addf %897, %898 : vector<8x128xf32>
    %900 = vector.extract_strided_slice %772 {offsets = [32, 0], sizes = [8, 384], strides = [1, 1]} : vector<64x384xf32> to vector<8x384xf32>
    %901 = arith.truncf %899 : vector<8x128xf32> to vector<8x128xbf16>
    %cst_163 = arith.constant dense<0.000000e+00> : vector<8x384xf32>
    %902 = tpu.matmul %901, %774, %cst_163 {dimension_numbers = #tpu.dot_dimension_numbers<[1], [0], [0], [1], [0, 0, 1, 1], [], []>} : vector<8x128xbf16>, vector<128x384xbf16>, vector<8x384xf32> -> vector<8x384xf32>
    %903 = vector.extract_strided_slice %900 {offsets = [0, 0], sizes = [8, 128], strides = [1, 1]} : vector<8x384xf32> to vector<8x128xf32>
    %904 = vector.extract_strided_slice %902 {offsets = [0, 0], sizes = [8, 128], strides = [1, 1]} : vector<8x384xf32> to vector<8x128xf32>
    %905 = arith.addf %903, %904 : vector<8x128xf32>
    %906 = arith.negf %905 : vector<8x128xf32>
    %907 = math.exp %906 : vector<8x128xf32>
    %cst_164 = arith.constant 1.000000e+00 : f32
    %908 = vector.broadcast %cst_164 : f32 to vector<8x128xf32>
    %909 = arith.addf %908, %907 : vector<8x128xf32>
    %910 = arith.divf %908, %909 : vector<8x128xf32>
    %911 = vector.extract_strided_slice %900 {offsets = [0, 128], sizes = [8, 128], strides = [1, 1]} : vector<8x384xf32> to vector<8x128xf32>
    %912 = vector.extract_strided_slice %902 {offsets = [0, 128], sizes = [8, 128], strides = [1, 1]} : vector<8x384xf32> to vector<8x128xf32>
    %913 = arith.addf %911, %912 : vector<8x128xf32>
    %914 = arith.negf %913 : vector<8x128xf32>
    %915 = math.exp %914 : vector<8x128xf32>
    %cst_165 = arith.constant 1.000000e+00 : f32
    %916 = vector.broadcast %cst_165 : f32 to vector<8x128xf32>
    %917 = arith.addf %916, %915 : vector<8x128xf32>
    %918 = arith.divf %916, %917 : vector<8x128xf32>
    %919 = vector.extract_strided_slice %900 {offsets = [0, 256], sizes = [8, 128], strides = [1, 1]} : vector<8x384xf32> to vector<8x128xf32>
    %920 = vector.extract_strided_slice %902 {offsets = [0, 256], sizes = [8, 128], strides = [1, 1]} : vector<8x384xf32> to vector<8x128xf32>
    %921 = arith.addf %920, %778 : vector<8x128xf32>
    %922 = arith.mulf %910, %921 : vector<8x128xf32>
    %923 = arith.addf %919, %922 : vector<8x128xf32>
    %924 = math.tanh %923 : vector<8x128xf32>
    %cst_166 = arith.constant 1.000000e+00 : f32
    %925 = vector.broadcast %cst_166 : f32 to vector<8x128xf32>
    %926 = arith.subf %925, %918 : vector<8x128xf32>
    %927 = arith.mulf %926, %924 : vector<8x128xf32>
    %928 = arith.mulf %918, %899 : vector<8x128xf32>
    %929 = arith.addf %927, %928 : vector<8x128xf32>
    %930 = vector.extract_strided_slice %772 {offsets = [40, 0], sizes = [8, 384], strides = [1, 1]} : vector<64x384xf32> to vector<8x384xf32>
    %931 = arith.truncf %929 : vector<8x128xf32> to vector<8x128xbf16>
    %cst_167 = arith.constant dense<0.000000e+00> : vector<8x384xf32>
    %932 = tpu.matmul %931, %774, %cst_167 {dimension_numbers = #tpu.dot_dimension_numbers<[1], [0], [0], [1], [0, 0, 1, 1], [], []>} : vector<8x128xbf16>, vector<128x384xbf16>, vector<8x384xf32> -> vector<8x384xf32>
    %933 = vector.extract_strided_slice %930 {offsets = [0, 0], sizes = [8, 128], strides = [1, 1]} : vector<8x384xf32> to vector<8x128xf32>
    %934 = vector.extract_strided_slice %932 {offsets = [0, 0], sizes = [8, 128], strides = [1, 1]} : vector<8x384xf32> to vector<8x128xf32>
    %935 = arith.addf %933, %934 : vector<8x128xf32>
    %936 = arith.negf %935 : vector<8x128xf32>
    %937 = math.exp %936 : vector<8x128xf32>
    %cst_168 = arith.constant 1.000000e+00 : f32
    %938 = vector.broadcast %cst_168 : f32 to vector<8x128xf32>
    %939 = arith.addf %938, %937 : vector<8x128xf32>
    %940 = arith.divf %938, %939 : vector<8x128xf32>
    %941 = vector.extract_strided_slice %930 {offsets = [0, 128], sizes = [8, 128], strides = [1, 1]} : vector<8x384xf32> to vector<8x128xf32>
    %942 = vector.extract_strided_slice %932 {offsets = [0, 128], sizes = [8, 128], strides = [1, 1]} : vector<8x384xf32> to vector<8x128xf32>
    %943 = arith.addf %941, %942 : vector<8x128xf32>
    %944 = arith.negf %943 : vector<8x128xf32>
    %945 = math.exp %944 : vector<8x128xf32>
    %cst_169 = arith.constant 1.000000e+00 : f32
    %946 = vector.broadcast %cst_169 : f32 to vector<8x128xf32>
    %947 = arith.addf %946, %945 : vector<8x128xf32>
    %948 = arith.divf %946, %947 : vector<8x128xf32>
    %949 = vector.extract_strided_slice %930 {offsets = [0, 256], sizes = [8, 128], strides = [1, 1]} : vector<8x384xf32> to vector<8x128xf32>
    %950 = vector.extract_strided_slice %932 {offsets = [0, 256], sizes = [8, 128], strides = [1, 1]} : vector<8x384xf32> to vector<8x128xf32>
    %951 = arith.addf %950, %778 : vector<8x128xf32>
    %952 = arith.mulf %940, %951 : vector<8x128xf32>
    %953 = arith.addf %949, %952 : vector<8x128xf32>
    %954 = math.tanh %953 : vector<8x128xf32>
    %cst_170 = arith.constant 1.000000e+00 : f32
    %955 = vector.broadcast %cst_170 : f32 to vector<8x128xf32>
    %956 = arith.subf %955, %948 : vector<8x128xf32>
    %957 = arith.mulf %956, %954 : vector<8x128xf32>
    %958 = arith.mulf %948, %929 : vector<8x128xf32>
    %959 = arith.addf %957, %958 : vector<8x128xf32>
    %960 = vector.extract_strided_slice %772 {offsets = [48, 0], sizes = [8, 384], strides = [1, 1]} : vector<64x384xf32> to vector<8x384xf32>
    %961 = arith.truncf %959 : vector<8x128xf32> to vector<8x128xbf16>
    %cst_171 = arith.constant dense<0.000000e+00> : vector<8x384xf32>
    %962 = tpu.matmul %961, %774, %cst_171 {dimension_numbers = #tpu.dot_dimension_numbers<[1], [0], [0], [1], [0, 0, 1, 1], [], []>} : vector<8x128xbf16>, vector<128x384xbf16>, vector<8x384xf32> -> vector<8x384xf32>
    %963 = vector.extract_strided_slice %960 {offsets = [0, 0], sizes = [8, 128], strides = [1, 1]} : vector<8x384xf32> to vector<8x128xf32>
    %964 = vector.extract_strided_slice %962 {offsets = [0, 0], sizes = [8, 128], strides = [1, 1]} : vector<8x384xf32> to vector<8x128xf32>
    %965 = arith.addf %963, %964 : vector<8x128xf32>
    %966 = arith.negf %965 : vector<8x128xf32>
    %967 = math.exp %966 : vector<8x128xf32>
    %cst_172 = arith.constant 1.000000e+00 : f32
    %968 = vector.broadcast %cst_172 : f32 to vector<8x128xf32>
    %969 = arith.addf %968, %967 : vector<8x128xf32>
    %970 = arith.divf %968, %969 : vector<8x128xf32>
    %971 = vector.extract_strided_slice %960 {offsets = [0, 128], sizes = [8, 128], strides = [1, 1]} : vector<8x384xf32> to vector<8x128xf32>
    %972 = vector.extract_strided_slice %962 {offsets = [0, 128], sizes = [8, 128], strides = [1, 1]} : vector<8x384xf32> to vector<8x128xf32>
    %973 = arith.addf %971, %972 : vector<8x128xf32>
    %974 = arith.negf %973 : vector<8x128xf32>
    %975 = math.exp %974 : vector<8x128xf32>
    %cst_173 = arith.constant 1.000000e+00 : f32
    %976 = vector.broadcast %cst_173 : f32 to vector<8x128xf32>
    %977 = arith.addf %976, %975 : vector<8x128xf32>
    %978 = arith.divf %976, %977 : vector<8x128xf32>
    %979 = vector.extract_strided_slice %960 {offsets = [0, 256], sizes = [8, 128], strides = [1, 1]} : vector<8x384xf32> to vector<8x128xf32>
    %980 = vector.extract_strided_slice %962 {offsets = [0, 256], sizes = [8, 128], strides = [1, 1]} : vector<8x384xf32> to vector<8x128xf32>
    %981 = arith.addf %980, %778 : vector<8x128xf32>
    %982 = arith.mulf %970, %981 : vector<8x128xf32>
    %983 = arith.addf %979, %982 : vector<8x128xf32>
    %984 = math.tanh %983 : vector<8x128xf32>
    %cst_174 = arith.constant 1.000000e+00 : f32
    %985 = vector.broadcast %cst_174 : f32 to vector<8x128xf32>
    %986 = arith.subf %985, %978 : vector<8x128xf32>
    %987 = arith.mulf %986, %984 : vector<8x128xf32>
    %988 = arith.mulf %978, %959 : vector<8x128xf32>
    %989 = arith.addf %987, %988 : vector<8x128xf32>
    %990 = vector.extract_strided_slice %772 {offsets = [56, 0], sizes = [8, 384], strides = [1, 1]} : vector<64x384xf32> to vector<8x384xf32>
    %991 = arith.truncf %989 : vector<8x128xf32> to vector<8x128xbf16>
    %cst_175 = arith.constant dense<0.000000e+00> : vector<8x384xf32>
    %992 = tpu.matmul %991, %774, %cst_175 {dimension_numbers = #tpu.dot_dimension_numbers<[1], [0], [0], [1], [0, 0, 1, 1], [], []>} : vector<8x128xbf16>, vector<128x384xbf16>, vector<8x384xf32> -> vector<8x384xf32>
    %993 = vector.extract_strided_slice %990 {offsets = [0, 0], sizes = [8, 128], strides = [1, 1]} : vector<8x384xf32> to vector<8x128xf32>
    %994 = vector.extract_strided_slice %992 {offsets = [0, 0], sizes = [8, 128], strides = [1, 1]} : vector<8x384xf32> to vector<8x128xf32>
    %995 = arith.addf %993, %994 : vector<8x128xf32>
    %996 = arith.negf %995 : vector<8x128xf32>
    %997 = math.exp %996 : vector<8x128xf32>
    %cst_176 = arith.constant 1.000000e+00 : f32
    %998 = vector.broadcast %cst_176 : f32 to vector<8x128xf32>
    %999 = arith.addf %998, %997 : vector<8x128xf32>
    %1000 = arith.divf %998, %999 : vector<8x128xf32>
    %1001 = vector.extract_strided_slice %990 {offsets = [0, 128], sizes = [8, 128], strides = [1, 1]} : vector<8x384xf32> to vector<8x128xf32>
    %1002 = vector.extract_strided_slice %992 {offsets = [0, 128], sizes = [8, 128], strides = [1, 1]} : vector<8x384xf32> to vector<8x128xf32>
    %1003 = arith.addf %1001, %1002 : vector<8x128xf32>
    %1004 = arith.negf %1003 : vector<8x128xf32>
    %1005 = math.exp %1004 : vector<8x128xf32>
    %cst_177 = arith.constant 1.000000e+00 : f32
    %1006 = vector.broadcast %cst_177 : f32 to vector<8x128xf32>
    %1007 = arith.addf %1006, %1005 : vector<8x128xf32>
    %1008 = arith.divf %1006, %1007 : vector<8x128xf32>
    %1009 = vector.extract_strided_slice %990 {offsets = [0, 256], sizes = [8, 128], strides = [1, 1]} : vector<8x384xf32> to vector<8x128xf32>
    %1010 = vector.extract_strided_slice %992 {offsets = [0, 256], sizes = [8, 128], strides = [1, 1]} : vector<8x384xf32> to vector<8x128xf32>
    %1011 = arith.addf %1010, %778 : vector<8x128xf32>
    %1012 = arith.mulf %1000, %1011 : vector<8x128xf32>
    %1013 = arith.addf %1009, %1012 : vector<8x128xf32>
    %1014 = math.tanh %1013 : vector<8x128xf32>
    %cst_178 = arith.constant 1.000000e+00 : f32
    %1015 = vector.broadcast %cst_178 : f32 to vector<8x128xf32>
    %1016 = arith.subf %1015, %1008 : vector<8x128xf32>
    %1017 = arith.mulf %1016, %1014 : vector<8x128xf32>
    %1018 = arith.mulf %1008, %989 : vector<8x128xf32>
    %1019 = arith.addf %1017, %1018 : vector<8x128xf32>
    %1020 = tpu.concatenate %809, %839, %869, %899, %929, %959, %989, %1019 in 0 : vector<8x128xf32>, vector<8x128xf32>, vector<8x128xf32>, vector<8x128xf32>, vector<8x128xf32>, vector<8x128xf32>, vector<8x128xf32>, vector<8x128xf32> -> vector<64x128xf32>
    %1021 = arith.truncf %1020 : vector<64x128xf32> to vector<64x128xbf16>
    %c3 = arith.constant 3 : index
    %c0_179 = arith.constant 0 : index
    %c0_180 = arith.constant 0 : index
    %1022 = vector.load %arg6[%c3, %c0_179, %c0_180] : memref<5x128x384xbf16, #tpu.memory_space<vmem>>, vector<1x128x384xbf16>
    %1023 = vector.shape_cast %1022 : vector<1x128x384xbf16> to vector<128x384xbf16>
    %cst_181 = arith.constant dense<0.000000e+00> : vector<64x384xf32>
    %1024 = tpu.matmul %1021, %1023, %cst_181 {dimension_numbers = #tpu.dot_dimension_numbers<[1], [0], [0], [1], [0, 0, 1, 1], [], []>} : vector<64x128xbf16>, vector<128x384xbf16>, vector<64x384xf32> -> vector<64x384xf32>
    %c3_182 = arith.constant 3 : index
    %c0_183 = arith.constant 0 : index
    %c0_184 = arith.constant 0 : index
    %1025 = vector.load %arg7[%c3_182, %c0_183, %c0_184] : memref<5x1x384xf32, #tpu.memory_space<vmem>>, vector<1x1x384xf32>
    %1026 = vector.shape_cast %1025 : vector<1x1x384xf32> to vector<1x384xf32>
    %1027 = vector.broadcast %1026 : vector<1x384xf32> to vector<64x384xf32>
    %1028 = arith.addf %1024, %1027 : vector<64x384xf32>
    %c3_185 = arith.constant 3 : index
    %c0_186 = arith.constant 0 : index
    %c0_187 = arith.constant 0 : index
    %1029 = vector.load %arg8[%c3_185, %c0_186, %c0_187] : memref<5x128x384xbf16, #tpu.memory_space<vmem>>, vector<1x128x384xbf16>
    %1030 = vector.shape_cast %1029 : vector<1x128x384xbf16> to vector<128x384xbf16>
    %c3_188 = arith.constant 3 : index
    %c0_189 = arith.constant 0 : index
    %c0_190 = arith.constant 0 : index
    %1031 = vector.load %arg9[%c3_188, %c0_189, %c0_190] : memref<5x1x128xf32, #tpu.memory_space<vmem>>, vector<1x1x128xf32>
    %1032 = vector.shape_cast %1031 : vector<1x1x128xf32> to vector<1x128xf32>
    %1033 = vector.shape_cast %1032 : vector<1x128xf32> to vector<1x128xf32>
    %1034 = vector.broadcast %1033 : vector<1x128xf32> to vector<8x128xf32>
    %cst_191 = arith.constant 0.000000e+00 : f32
    %1035 = vector.broadcast %cst_191 : f32 to vector<8x128xf32>
    %1036 = vector.extract_strided_slice %1028 {offsets = [0, 0], sizes = [8, 384], strides = [1, 1]} : vector<64x384xf32> to vector<8x384xf32>
    %1037 = arith.truncf %1035 : vector<8x128xf32> to vector<8x128xbf16>
    %cst_192 = arith.constant dense<0.000000e+00> : vector<8x384xf32>
    %1038 = tpu.matmul %1037, %1030, %cst_192 {dimension_numbers = #tpu.dot_dimension_numbers<[1], [0], [0], [1], [0, 0, 1, 1], [], []>} : vector<8x128xbf16>, vector<128x384xbf16>, vector<8x384xf32> -> vector<8x384xf32>
    %1039 = vector.extract_strided_slice %1036 {offsets = [0, 0], sizes = [8, 128], strides = [1, 1]} : vector<8x384xf32> to vector<8x128xf32>
    %1040 = vector.extract_strided_slice %1038 {offsets = [0, 0], sizes = [8, 128], strides = [1, 1]} : vector<8x384xf32> to vector<8x128xf32>
    %1041 = arith.addf %1039, %1040 : vector<8x128xf32>
    %1042 = arith.negf %1041 : vector<8x128xf32>
    %1043 = math.exp %1042 : vector<8x128xf32>
    %cst_193 = arith.constant 1.000000e+00 : f32
    %1044 = vector.broadcast %cst_193 : f32 to vector<8x128xf32>
    %1045 = arith.addf %1044, %1043 : vector<8x128xf32>
    %1046 = arith.divf %1044, %1045 : vector<8x128xf32>
    %1047 = vector.extract_strided_slice %1036 {offsets = [0, 128], sizes = [8, 128], strides = [1, 1]} : vector<8x384xf32> to vector<8x128xf32>
    %1048 = vector.extract_strided_slice %1038 {offsets = [0, 128], sizes = [8, 128], strides = [1, 1]} : vector<8x384xf32> to vector<8x128xf32>
    %1049 = arith.addf %1047, %1048 : vector<8x128xf32>
    %1050 = arith.negf %1049 : vector<8x128xf32>
    %1051 = math.exp %1050 : vector<8x128xf32>
    %cst_194 = arith.constant 1.000000e+00 : f32
    %1052 = vector.broadcast %cst_194 : f32 to vector<8x128xf32>
    %1053 = arith.addf %1052, %1051 : vector<8x128xf32>
    %1054 = arith.divf %1052, %1053 : vector<8x128xf32>
    %1055 = vector.extract_strided_slice %1036 {offsets = [0, 256], sizes = [8, 128], strides = [1, 1]} : vector<8x384xf32> to vector<8x128xf32>
    %1056 = vector.extract_strided_slice %1038 {offsets = [0, 256], sizes = [8, 128], strides = [1, 1]} : vector<8x384xf32> to vector<8x128xf32>
    %1057 = arith.addf %1056, %1034 : vector<8x128xf32>
    %1058 = arith.mulf %1046, %1057 : vector<8x128xf32>
    %1059 = arith.addf %1055, %1058 : vector<8x128xf32>
    %1060 = math.tanh %1059 : vector<8x128xf32>
    %cst_195 = arith.constant 1.000000e+00 : f32
    %1061 = vector.broadcast %cst_195 : f32 to vector<8x128xf32>
    %1062 = arith.subf %1061, %1054 : vector<8x128xf32>
    %1063 = arith.mulf %1062, %1060 : vector<8x128xf32>
    %1064 = arith.mulf %1054, %1035 : vector<8x128xf32>
    %1065 = arith.addf %1063, %1064 : vector<8x128xf32>
    %1066 = vector.extract_strided_slice %1028 {offsets = [8, 0], sizes = [8, 384], strides = [1, 1]} : vector<64x384xf32> to vector<8x384xf32>
    %1067 = arith.truncf %1065 : vector<8x128xf32> to vector<8x128xbf16>
    %cst_196 = arith.constant dense<0.000000e+00> : vector<8x384xf32>
    %1068 = tpu.matmul %1067, %1030, %cst_196 {dimension_numbers = #tpu.dot_dimension_numbers<[1], [0], [0], [1], [0, 0, 1, 1], [], []>} : vector<8x128xbf16>, vector<128x384xbf16>, vector<8x384xf32> -> vector<8x384xf32>
    %1069 = vector.extract_strided_slice %1066 {offsets = [0, 0], sizes = [8, 128], strides = [1, 1]} : vector<8x384xf32> to vector<8x128xf32>
    %1070 = vector.extract_strided_slice %1068 {offsets = [0, 0], sizes = [8, 128], strides = [1, 1]} : vector<8x384xf32> to vector<8x128xf32>
    %1071 = arith.addf %1069, %1070 : vector<8x128xf32>
    %1072 = arith.negf %1071 : vector<8x128xf32>
    %1073 = math.exp %1072 : vector<8x128xf32>
    %cst_197 = arith.constant 1.000000e+00 : f32
    %1074 = vector.broadcast %cst_197 : f32 to vector<8x128xf32>
    %1075 = arith.addf %1074, %1073 : vector<8x128xf32>
    %1076 = arith.divf %1074, %1075 : vector<8x128xf32>
    %1077 = vector.extract_strided_slice %1066 {offsets = [0, 128], sizes = [8, 128], strides = [1, 1]} : vector<8x384xf32> to vector<8x128xf32>
    %1078 = vector.extract_strided_slice %1068 {offsets = [0, 128], sizes = [8, 128], strides = [1, 1]} : vector<8x384xf32> to vector<8x128xf32>
    %1079 = arith.addf %1077, %1078 : vector<8x128xf32>
    %1080 = arith.negf %1079 : vector<8x128xf32>
    %1081 = math.exp %1080 : vector<8x128xf32>
    %cst_198 = arith.constant 1.000000e+00 : f32
    %1082 = vector.broadcast %cst_198 : f32 to vector<8x128xf32>
    %1083 = arith.addf %1082, %1081 : vector<8x128xf32>
    %1084 = arith.divf %1082, %1083 : vector<8x128xf32>
    %1085 = vector.extract_strided_slice %1066 {offsets = [0, 256], sizes = [8, 128], strides = [1, 1]} : vector<8x384xf32> to vector<8x128xf32>
    %1086 = vector.extract_strided_slice %1068 {offsets = [0, 256], sizes = [8, 128], strides = [1, 1]} : vector<8x384xf32> to vector<8x128xf32>
    %1087 = arith.addf %1086, %1034 : vector<8x128xf32>
    %1088 = arith.mulf %1076, %1087 : vector<8x128xf32>
    %1089 = arith.addf %1085, %1088 : vector<8x128xf32>
    %1090 = math.tanh %1089 : vector<8x128xf32>
    %cst_199 = arith.constant 1.000000e+00 : f32
    %1091 = vector.broadcast %cst_199 : f32 to vector<8x128xf32>
    %1092 = arith.subf %1091, %1084 : vector<8x128xf32>
    %1093 = arith.mulf %1092, %1090 : vector<8x128xf32>
    %1094 = arith.mulf %1084, %1065 : vector<8x128xf32>
    %1095 = arith.addf %1093, %1094 : vector<8x128xf32>
    %1096 = vector.extract_strided_slice %1028 {offsets = [16, 0], sizes = [8, 384], strides = [1, 1]} : vector<64x384xf32> to vector<8x384xf32>
    %1097 = arith.truncf %1095 : vector<8x128xf32> to vector<8x128xbf16>
    %cst_200 = arith.constant dense<0.000000e+00> : vector<8x384xf32>
    %1098 = tpu.matmul %1097, %1030, %cst_200 {dimension_numbers = #tpu.dot_dimension_numbers<[1], [0], [0], [1], [0, 0, 1, 1], [], []>} : vector<8x128xbf16>, vector<128x384xbf16>, vector<8x384xf32> -> vector<8x384xf32>
    %1099 = vector.extract_strided_slice %1096 {offsets = [0, 0], sizes = [8, 128], strides = [1, 1]} : vector<8x384xf32> to vector<8x128xf32>
    %1100 = vector.extract_strided_slice %1098 {offsets = [0, 0], sizes = [8, 128], strides = [1, 1]} : vector<8x384xf32> to vector<8x128xf32>
    %1101 = arith.addf %1099, %1100 : vector<8x128xf32>
    %1102 = arith.negf %1101 : vector<8x128xf32>
    %1103 = math.exp %1102 : vector<8x128xf32>
    %cst_201 = arith.constant 1.000000e+00 : f32
    %1104 = vector.broadcast %cst_201 : f32 to vector<8x128xf32>
    %1105 = arith.addf %1104, %1103 : vector<8x128xf32>
    %1106 = arith.divf %1104, %1105 : vector<8x128xf32>
    %1107 = vector.extract_strided_slice %1096 {offsets = [0, 128], sizes = [8, 128], strides = [1, 1]} : vector<8x384xf32> to vector<8x128xf32>
    %1108 = vector.extract_strided_slice %1098 {offsets = [0, 128], sizes = [8, 128], strides = [1, 1]} : vector<8x384xf32> to vector<8x128xf32>
    %1109 = arith.addf %1107, %1108 : vector<8x128xf32>
    %1110 = arith.negf %1109 : vector<8x128xf32>
    %1111 = math.exp %1110 : vector<8x128xf32>
    %cst_202 = arith.constant 1.000000e+00 : f32
    %1112 = vector.broadcast %cst_202 : f32 to vector<8x128xf32>
    %1113 = arith.addf %1112, %1111 : vector<8x128xf32>
    %1114 = arith.divf %1112, %1113 : vector<8x128xf32>
    %1115 = vector.extract_strided_slice %1096 {offsets = [0, 256], sizes = [8, 128], strides = [1, 1]} : vector<8x384xf32> to vector<8x128xf32>
    %1116 = vector.extract_strided_slice %1098 {offsets = [0, 256], sizes = [8, 128], strides = [1, 1]} : vector<8x384xf32> to vector<8x128xf32>
    %1117 = arith.addf %1116, %1034 : vector<8x128xf32>
    %1118 = arith.mulf %1106, %1117 : vector<8x128xf32>
    %1119 = arith.addf %1115, %1118 : vector<8x128xf32>
    %1120 = math.tanh %1119 : vector<8x128xf32>
    %cst_203 = arith.constant 1.000000e+00 : f32
    %1121 = vector.broadcast %cst_203 : f32 to vector<8x128xf32>
    %1122 = arith.subf %1121, %1114 : vector<8x128xf32>
    %1123 = arith.mulf %1122, %1120 : vector<8x128xf32>
    %1124 = arith.mulf %1114, %1095 : vector<8x128xf32>
    %1125 = arith.addf %1123, %1124 : vector<8x128xf32>
    %1126 = vector.extract_strided_slice %1028 {offsets = [24, 0], sizes = [8, 384], strides = [1, 1]} : vector<64x384xf32> to vector<8x384xf32>
    %1127 = arith.truncf %1125 : vector<8x128xf32> to vector<8x128xbf16>
    %cst_204 = arith.constant dense<0.000000e+00> : vector<8x384xf32>
    %1128 = tpu.matmul %1127, %1030, %cst_204 {dimension_numbers = #tpu.dot_dimension_numbers<[1], [0], [0], [1], [0, 0, 1, 1], [], []>} : vector<8x128xbf16>, vector<128x384xbf16>, vector<8x384xf32> -> vector<8x384xf32>
    %1129 = vector.extract_strided_slice %1126 {offsets = [0, 0], sizes = [8, 128], strides = [1, 1]} : vector<8x384xf32> to vector<8x128xf32>
    %1130 = vector.extract_strided_slice %1128 {offsets = [0, 0], sizes = [8, 128], strides = [1, 1]} : vector<8x384xf32> to vector<8x128xf32>
    %1131 = arith.addf %1129, %1130 : vector<8x128xf32>
    %1132 = arith.negf %1131 : vector<8x128xf32>
    %1133 = math.exp %1132 : vector<8x128xf32>
    %cst_205 = arith.constant 1.000000e+00 : f32
    %1134 = vector.broadcast %cst_205 : f32 to vector<8x128xf32>
    %1135 = arith.addf %1134, %1133 : vector<8x128xf32>
    %1136 = arith.divf %1134, %1135 : vector<8x128xf32>
    %1137 = vector.extract_strided_slice %1126 {offsets = [0, 128], sizes = [8, 128], strides = [1, 1]} : vector<8x384xf32> to vector<8x128xf32>
    %1138 = vector.extract_strided_slice %1128 {offsets = [0, 128], sizes = [8, 128], strides = [1, 1]} : vector<8x384xf32> to vector<8x128xf32>
    %1139 = arith.addf %1137, %1138 : vector<8x128xf32>
    %1140 = arith.negf %1139 : vector<8x128xf32>
    %1141 = math.exp %1140 : vector<8x128xf32>
    %cst_206 = arith.constant 1.000000e+00 : f32
    %1142 = vector.broadcast %cst_206 : f32 to vector<8x128xf32>
    %1143 = arith.addf %1142, %1141 : vector<8x128xf32>
    %1144 = arith.divf %1142, %1143 : vector<8x128xf32>
    %1145 = vector.extract_strided_slice %1126 {offsets = [0, 256], sizes = [8, 128], strides = [1, 1]} : vector<8x384xf32> to vector<8x128xf32>
    %1146 = vector.extract_strided_slice %1128 {offsets = [0, 256], sizes = [8, 128], strides = [1, 1]} : vector<8x384xf32> to vector<8x128xf32>
    %1147 = arith.addf %1146, %1034 : vector<8x128xf32>
    %1148 = arith.mulf %1136, %1147 : vector<8x128xf32>
    %1149 = arith.addf %1145, %1148 : vector<8x128xf32>
    %1150 = math.tanh %1149 : vector<8x128xf32>
    %cst_207 = arith.constant 1.000000e+00 : f32
    %1151 = vector.broadcast %cst_207 : f32 to vector<8x128xf32>
    %1152 = arith.subf %1151, %1144 : vector<8x128xf32>
    %1153 = arith.mulf %1152, %1150 : vector<8x128xf32>
    %1154 = arith.mulf %1144, %1125 : vector<8x128xf32>
    %1155 = arith.addf %1153, %1154 : vector<8x128xf32>
    %1156 = vector.extract_strided_slice %1028 {offsets = [32, 0], sizes = [8, 384], strides = [1, 1]} : vector<64x384xf32> to vector<8x384xf32>
    %1157 = arith.truncf %1155 : vector<8x128xf32> to vector<8x128xbf16>
    %cst_208 = arith.constant dense<0.000000e+00> : vector<8x384xf32>
    %1158 = tpu.matmul %1157, %1030, %cst_208 {dimension_numbers = #tpu.dot_dimension_numbers<[1], [0], [0], [1], [0, 0, 1, 1], [], []>} : vector<8x128xbf16>, vector<128x384xbf16>, vector<8x384xf32> -> vector<8x384xf32>
    %1159 = vector.extract_strided_slice %1156 {offsets = [0, 0], sizes = [8, 128], strides = [1, 1]} : vector<8x384xf32> to vector<8x128xf32>
    %1160 = vector.extract_strided_slice %1158 {offsets = [0, 0], sizes = [8, 128], strides = [1, 1]} : vector<8x384xf32> to vector<8x128xf32>
    %1161 = arith.addf %1159, %1160 : vector<8x128xf32>
    %1162 = arith.negf %1161 : vector<8x128xf32>
    %1163 = math.exp %1162 : vector<8x128xf32>
    %cst_209 = arith.constant 1.000000e+00 : f32
    %1164 = vector.broadcast %cst_209 : f32 to vector<8x128xf32>
    %1165 = arith.addf %1164, %1163 : vector<8x128xf32>
    %1166 = arith.divf %1164, %1165 : vector<8x128xf32>
    %1167 = vector.extract_strided_slice %1156 {offsets = [0, 128], sizes = [8, 128], strides = [1, 1]} : vector<8x384xf32> to vector<8x128xf32>
    %1168 = vector.extract_strided_slice %1158 {offsets = [0, 128], sizes = [8, 128], strides = [1, 1]} : vector<8x384xf32> to vector<8x128xf32>
    %1169 = arith.addf %1167, %1168 : vector<8x128xf32>
    %1170 = arith.negf %1169 : vector<8x128xf32>
    %1171 = math.exp %1170 : vector<8x128xf32>
    %cst_210 = arith.constant 1.000000e+00 : f32
    %1172 = vector.broadcast %cst_210 : f32 to vector<8x128xf32>
    %1173 = arith.addf %1172, %1171 : vector<8x128xf32>
    %1174 = arith.divf %1172, %1173 : vector<8x128xf32>
    %1175 = vector.extract_strided_slice %1156 {offsets = [0, 256], sizes = [8, 128], strides = [1, 1]} : vector<8x384xf32> to vector<8x128xf32>
    %1176 = vector.extract_strided_slice %1158 {offsets = [0, 256], sizes = [8, 128], strides = [1, 1]} : vector<8x384xf32> to vector<8x128xf32>
    %1177 = arith.addf %1176, %1034 : vector<8x128xf32>
    %1178 = arith.mulf %1166, %1177 : vector<8x128xf32>
    %1179 = arith.addf %1175, %1178 : vector<8x128xf32>
    %1180 = math.tanh %1179 : vector<8x128xf32>
    %cst_211 = arith.constant 1.000000e+00 : f32
    %1181 = vector.broadcast %cst_211 : f32 to vector<8x128xf32>
    %1182 = arith.subf %1181, %1174 : vector<8x128xf32>
    %1183 = arith.mulf %1182, %1180 : vector<8x128xf32>
    %1184 = arith.mulf %1174, %1155 : vector<8x128xf32>
    %1185 = arith.addf %1183, %1184 : vector<8x128xf32>
    %1186 = vector.extract_strided_slice %1028 {offsets = [40, 0], sizes = [8, 384], strides = [1, 1]} : vector<64x384xf32> to vector<8x384xf32>
    %1187 = arith.truncf %1185 : vector<8x128xf32> to vector<8x128xbf16>
    %cst_212 = arith.constant dense<0.000000e+00> : vector<8x384xf32>
    %1188 = tpu.matmul %1187, %1030, %cst_212 {dimension_numbers = #tpu.dot_dimension_numbers<[1], [0], [0], [1], [0, 0, 1, 1], [], []>} : vector<8x128xbf16>, vector<128x384xbf16>, vector<8x384xf32> -> vector<8x384xf32>
    %1189 = vector.extract_strided_slice %1186 {offsets = [0, 0], sizes = [8, 128], strides = [1, 1]} : vector<8x384xf32> to vector<8x128xf32>
    %1190 = vector.extract_strided_slice %1188 {offsets = [0, 0], sizes = [8, 128], strides = [1, 1]} : vector<8x384xf32> to vector<8x128xf32>
    %1191 = arith.addf %1189, %1190 : vector<8x128xf32>
    %1192 = arith.negf %1191 : vector<8x128xf32>
    %1193 = math.exp %1192 : vector<8x128xf32>
    %cst_213 = arith.constant 1.000000e+00 : f32
    %1194 = vector.broadcast %cst_213 : f32 to vector<8x128xf32>
    %1195 = arith.addf %1194, %1193 : vector<8x128xf32>
    %1196 = arith.divf %1194, %1195 : vector<8x128xf32>
    %1197 = vector.extract_strided_slice %1186 {offsets = [0, 128], sizes = [8, 128], strides = [1, 1]} : vector<8x384xf32> to vector<8x128xf32>
    %1198 = vector.extract_strided_slice %1188 {offsets = [0, 128], sizes = [8, 128], strides = [1, 1]} : vector<8x384xf32> to vector<8x128xf32>
    %1199 = arith.addf %1197, %1198 : vector<8x128xf32>
    %1200 = arith.negf %1199 : vector<8x128xf32>
    %1201 = math.exp %1200 : vector<8x128xf32>
    %cst_214 = arith.constant 1.000000e+00 : f32
    %1202 = vector.broadcast %cst_214 : f32 to vector<8x128xf32>
    %1203 = arith.addf %1202, %1201 : vector<8x128xf32>
    %1204 = arith.divf %1202, %1203 : vector<8x128xf32>
    %1205 = vector.extract_strided_slice %1186 {offsets = [0, 256], sizes = [8, 128], strides = [1, 1]} : vector<8x384xf32> to vector<8x128xf32>
    %1206 = vector.extract_strided_slice %1188 {offsets = [0, 256], sizes = [8, 128], strides = [1, 1]} : vector<8x384xf32> to vector<8x128xf32>
    %1207 = arith.addf %1206, %1034 : vector<8x128xf32>
    %1208 = arith.mulf %1196, %1207 : vector<8x128xf32>
    %1209 = arith.addf %1205, %1208 : vector<8x128xf32>
    %1210 = math.tanh %1209 : vector<8x128xf32>
    %cst_215 = arith.constant 1.000000e+00 : f32
    %1211 = vector.broadcast %cst_215 : f32 to vector<8x128xf32>
    %1212 = arith.subf %1211, %1204 : vector<8x128xf32>
    %1213 = arith.mulf %1212, %1210 : vector<8x128xf32>
    %1214 = arith.mulf %1204, %1185 : vector<8x128xf32>
    %1215 = arith.addf %1213, %1214 : vector<8x128xf32>
    %1216 = vector.extract_strided_slice %1028 {offsets = [48, 0], sizes = [8, 384], strides = [1, 1]} : vector<64x384xf32> to vector<8x384xf32>
    %1217 = arith.truncf %1215 : vector<8x128xf32> to vector<8x128xbf16>
    %cst_216 = arith.constant dense<0.000000e+00> : vector<8x384xf32>
    %1218 = tpu.matmul %1217, %1030, %cst_216 {dimension_numbers = #tpu.dot_dimension_numbers<[1], [0], [0], [1], [0, 0, 1, 1], [], []>} : vector<8x128xbf16>, vector<128x384xbf16>, vector<8x384xf32> -> vector<8x384xf32>
    %1219 = vector.extract_strided_slice %1216 {offsets = [0, 0], sizes = [8, 128], strides = [1, 1]} : vector<8x384xf32> to vector<8x128xf32>
    %1220 = vector.extract_strided_slice %1218 {offsets = [0, 0], sizes = [8, 128], strides = [1, 1]} : vector<8x384xf32> to vector<8x128xf32>
    %1221 = arith.addf %1219, %1220 : vector<8x128xf32>
    %1222 = arith.negf %1221 : vector<8x128xf32>
    %1223 = math.exp %1222 : vector<8x128xf32>
    %cst_217 = arith.constant 1.000000e+00 : f32
    %1224 = vector.broadcast %cst_217 : f32 to vector<8x128xf32>
    %1225 = arith.addf %1224, %1223 : vector<8x128xf32>
    %1226 = arith.divf %1224, %1225 : vector<8x128xf32>
    %1227 = vector.extract_strided_slice %1216 {offsets = [0, 128], sizes = [8, 128], strides = [1, 1]} : vector<8x384xf32> to vector<8x128xf32>
    %1228 = vector.extract_strided_slice %1218 {offsets = [0, 128], sizes = [8, 128], strides = [1, 1]} : vector<8x384xf32> to vector<8x128xf32>
    %1229 = arith.addf %1227, %1228 : vector<8x128xf32>
    %1230 = arith.negf %1229 : vector<8x128xf32>
    %1231 = math.exp %1230 : vector<8x128xf32>
    %cst_218 = arith.constant 1.000000e+00 : f32
    %1232 = vector.broadcast %cst_218 : f32 to vector<8x128xf32>
    %1233 = arith.addf %1232, %1231 : vector<8x128xf32>
    %1234 = arith.divf %1232, %1233 : vector<8x128xf32>
    %1235 = vector.extract_strided_slice %1216 {offsets = [0, 256], sizes = [8, 128], strides = [1, 1]} : vector<8x384xf32> to vector<8x128xf32>
    %1236 = vector.extract_strided_slice %1218 {offsets = [0, 256], sizes = [8, 128], strides = [1, 1]} : vector<8x384xf32> to vector<8x128xf32>
    %1237 = arith.addf %1236, %1034 : vector<8x128xf32>
    %1238 = arith.mulf %1226, %1237 : vector<8x128xf32>
    %1239 = arith.addf %1235, %1238 : vector<8x128xf32>
    %1240 = math.tanh %1239 : vector<8x128xf32>
    %cst_219 = arith.constant 1.000000e+00 : f32
    %1241 = vector.broadcast %cst_219 : f32 to vector<8x128xf32>
    %1242 = arith.subf %1241, %1234 : vector<8x128xf32>
    %1243 = arith.mulf %1242, %1240 : vector<8x128xf32>
    %1244 = arith.mulf %1234, %1215 : vector<8x128xf32>
    %1245 = arith.addf %1243, %1244 : vector<8x128xf32>
    %1246 = vector.extract_strided_slice %1028 {offsets = [56, 0], sizes = [8, 384], strides = [1, 1]} : vector<64x384xf32> to vector<8x384xf32>
    %1247 = arith.truncf %1245 : vector<8x128xf32> to vector<8x128xbf16>
    %cst_220 = arith.constant dense<0.000000e+00> : vector<8x384xf32>
    %1248 = tpu.matmul %1247, %1030, %cst_220 {dimension_numbers = #tpu.dot_dimension_numbers<[1], [0], [0], [1], [0, 0, 1, 1], [], []>} : vector<8x128xbf16>, vector<128x384xbf16>, vector<8x384xf32> -> vector<8x384xf32>
    %1249 = vector.extract_strided_slice %1246 {offsets = [0, 0], sizes = [8, 128], strides = [1, 1]} : vector<8x384xf32> to vector<8x128xf32>
    %1250 = vector.extract_strided_slice %1248 {offsets = [0, 0], sizes = [8, 128], strides = [1, 1]} : vector<8x384xf32> to vector<8x128xf32>
    %1251 = arith.addf %1249, %1250 : vector<8x128xf32>
    %1252 = arith.negf %1251 : vector<8x128xf32>
    %1253 = math.exp %1252 : vector<8x128xf32>
    %cst_221 = arith.constant 1.000000e+00 : f32
    %1254 = vector.broadcast %cst_221 : f32 to vector<8x128xf32>
    %1255 = arith.addf %1254, %1253 : vector<8x128xf32>
    %1256 = arith.divf %1254, %1255 : vector<8x128xf32>
    %1257 = vector.extract_strided_slice %1246 {offsets = [0, 128], sizes = [8, 128], strides = [1, 1]} : vector<8x384xf32> to vector<8x128xf32>
    %1258 = vector.extract_strided_slice %1248 {offsets = [0, 128], sizes = [8, 128], strides = [1, 1]} : vector<8x384xf32> to vector<8x128xf32>
    %1259 = arith.addf %1257, %1258 : vector<8x128xf32>
    %1260 = arith.negf %1259 : vector<8x128xf32>
    %1261 = math.exp %1260 : vector<8x128xf32>
    %cst_222 = arith.constant 1.000000e+00 : f32
    %1262 = vector.broadcast %cst_222 : f32 to vector<8x128xf32>
    %1263 = arith.addf %1262, %1261 : vector<8x128xf32>
    %1264 = arith.divf %1262, %1263 : vector<8x128xf32>
    %1265 = vector.extract_strided_slice %1246 {offsets = [0, 256], sizes = [8, 128], strides = [1, 1]} : vector<8x384xf32> to vector<8x128xf32>
    %1266 = vector.extract_strided_slice %1248 {offsets = [0, 256], sizes = [8, 128], strides = [1, 1]} : vector<8x384xf32> to vector<8x128xf32>
    %1267 = arith.addf %1266, %1034 : vector<8x128xf32>
    %1268 = arith.mulf %1256, %1267 : vector<8x128xf32>
    %1269 = arith.addf %1265, %1268 : vector<8x128xf32>
    %1270 = math.tanh %1269 : vector<8x128xf32>
    %cst_223 = arith.constant 1.000000e+00 : f32
    %1271 = vector.broadcast %cst_223 : f32 to vector<8x128xf32>
    %1272 = arith.subf %1271, %1264 : vector<8x128xf32>
    %1273 = arith.mulf %1272, %1270 : vector<8x128xf32>
    %1274 = arith.mulf %1264, %1245 : vector<8x128xf32>
    %1275 = arith.addf %1273, %1274 : vector<8x128xf32>
    %1276 = tpu.concatenate %1065, %1095, %1125, %1155, %1185, %1215, %1245, %1275 in 0 : vector<8x128xf32>, vector<8x128xf32>, vector<8x128xf32>, vector<8x128xf32>, vector<8x128xf32>, vector<8x128xf32>, vector<8x128xf32>, vector<8x128xf32> -> vector<64x128xf32>
    %1277 = arith.truncf %1276 : vector<64x128xf32> to vector<64x128xbf16>
    %c4 = arith.constant 4 : index
    %c0_224 = arith.constant 0 : index
    %c0_225 = arith.constant 0 : index
    %1278 = vector.load %arg6[%c4, %c0_224, %c0_225] : memref<5x128x384xbf16, #tpu.memory_space<vmem>>, vector<1x128x384xbf16>
    %1279 = vector.shape_cast %1278 : vector<1x128x384xbf16> to vector<128x384xbf16>
    %cst_226 = arith.constant dense<0.000000e+00> : vector<64x384xf32>
    %1280 = tpu.matmul %1277, %1279, %cst_226 {dimension_numbers = #tpu.dot_dimension_numbers<[1], [0], [0], [1], [0, 0, 1, 1], [], []>} : vector<64x128xbf16>, vector<128x384xbf16>, vector<64x384xf32> -> vector<64x384xf32>
    %c4_227 = arith.constant 4 : index
    %c0_228 = arith.constant 0 : index
    %c0_229 = arith.constant 0 : index
    %1281 = vector.load %arg7[%c4_227, %c0_228, %c0_229] : memref<5x1x384xf32, #tpu.memory_space<vmem>>, vector<1x1x384xf32>
    %1282 = vector.shape_cast %1281 : vector<1x1x384xf32> to vector<1x384xf32>
    %1283 = vector.broadcast %1282 : vector<1x384xf32> to vector<64x384xf32>
    %1284 = arith.addf %1280, %1283 : vector<64x384xf32>
    %c4_230 = arith.constant 4 : index
    %c0_231 = arith.constant 0 : index
    %c0_232 = arith.constant 0 : index
    %1285 = vector.load %arg8[%c4_230, %c0_231, %c0_232] : memref<5x128x384xbf16, #tpu.memory_space<vmem>>, vector<1x128x384xbf16>
    %1286 = vector.shape_cast %1285 : vector<1x128x384xbf16> to vector<128x384xbf16>
    %c4_233 = arith.constant 4 : index
    %c0_234 = arith.constant 0 : index
    %c0_235 = arith.constant 0 : index
    %1287 = vector.load %arg9[%c4_233, %c0_234, %c0_235] : memref<5x1x128xf32, #tpu.memory_space<vmem>>, vector<1x1x128xf32>
    %1288 = vector.shape_cast %1287 : vector<1x1x128xf32> to vector<1x128xf32>
    %1289 = vector.shape_cast %1288 : vector<1x128xf32> to vector<1x128xf32>
    %1290 = vector.broadcast %1289 : vector<1x128xf32> to vector<8x128xf32>
    %cst_236 = arith.constant 0.000000e+00 : f32
    %1291 = vector.broadcast %cst_236 : f32 to vector<8x128xf32>
    %1292 = vector.extract_strided_slice %1284 {offsets = [0, 0], sizes = [8, 384], strides = [1, 1]} : vector<64x384xf32> to vector<8x384xf32>
    %1293 = arith.truncf %1291 : vector<8x128xf32> to vector<8x128xbf16>
    %cst_237 = arith.constant dense<0.000000e+00> : vector<8x384xf32>
    %1294 = tpu.matmul %1293, %1286, %cst_237 {dimension_numbers = #tpu.dot_dimension_numbers<[1], [0], [0], [1], [0, 0, 1, 1], [], []>} : vector<8x128xbf16>, vector<128x384xbf16>, vector<8x384xf32> -> vector<8x384xf32>
    %1295 = vector.extract_strided_slice %1292 {offsets = [0, 0], sizes = [8, 128], strides = [1, 1]} : vector<8x384xf32> to vector<8x128xf32>
    %1296 = vector.extract_strided_slice %1294 {offsets = [0, 0], sizes = [8, 128], strides = [1, 1]} : vector<8x384xf32> to vector<8x128xf32>
    %1297 = arith.addf %1295, %1296 : vector<8x128xf32>
    %1298 = arith.negf %1297 : vector<8x128xf32>
    %1299 = math.exp %1298 : vector<8x128xf32>
    %cst_238 = arith.constant 1.000000e+00 : f32
    %1300 = vector.broadcast %cst_238 : f32 to vector<8x128xf32>
    %1301 = arith.addf %1300, %1299 : vector<8x128xf32>
    %1302 = arith.divf %1300, %1301 : vector<8x128xf32>
    %1303 = vector.extract_strided_slice %1292 {offsets = [0, 128], sizes = [8, 128], strides = [1, 1]} : vector<8x384xf32> to vector<8x128xf32>
    %1304 = vector.extract_strided_slice %1294 {offsets = [0, 128], sizes = [8, 128], strides = [1, 1]} : vector<8x384xf32> to vector<8x128xf32>
    %1305 = arith.addf %1303, %1304 : vector<8x128xf32>
    %1306 = arith.negf %1305 : vector<8x128xf32>
    %1307 = math.exp %1306 : vector<8x128xf32>
    %cst_239 = arith.constant 1.000000e+00 : f32
    %1308 = vector.broadcast %cst_239 : f32 to vector<8x128xf32>
    %1309 = arith.addf %1308, %1307 : vector<8x128xf32>
    %1310 = arith.divf %1308, %1309 : vector<8x128xf32>
    %1311 = vector.extract_strided_slice %1292 {offsets = [0, 256], sizes = [8, 128], strides = [1, 1]} : vector<8x384xf32> to vector<8x128xf32>
    %1312 = vector.extract_strided_slice %1294 {offsets = [0, 256], sizes = [8, 128], strides = [1, 1]} : vector<8x384xf32> to vector<8x128xf32>
    %1313 = arith.addf %1312, %1290 : vector<8x128xf32>
    %1314 = arith.mulf %1302, %1313 : vector<8x128xf32>
    %1315 = arith.addf %1311, %1314 : vector<8x128xf32>
    %1316 = math.tanh %1315 : vector<8x128xf32>
    %cst_240 = arith.constant 1.000000e+00 : f32
    %1317 = vector.broadcast %cst_240 : f32 to vector<8x128xf32>
    %1318 = arith.subf %1317, %1310 : vector<8x128xf32>
    %1319 = arith.mulf %1318, %1316 : vector<8x128xf32>
    %1320 = arith.mulf %1310, %1291 : vector<8x128xf32>
    %1321 = arith.addf %1319, %1320 : vector<8x128xf32>
    %1322 = vector.extract_strided_slice %1284 {offsets = [8, 0], sizes = [8, 384], strides = [1, 1]} : vector<64x384xf32> to vector<8x384xf32>
    %1323 = arith.truncf %1321 : vector<8x128xf32> to vector<8x128xbf16>
    %cst_241 = arith.constant dense<0.000000e+00> : vector<8x384xf32>
    %1324 = tpu.matmul %1323, %1286, %cst_241 {dimension_numbers = #tpu.dot_dimension_numbers<[1], [0], [0], [1], [0, 0, 1, 1], [], []>} : vector<8x128xbf16>, vector<128x384xbf16>, vector<8x384xf32> -> vector<8x384xf32>
    %1325 = vector.extract_strided_slice %1322 {offsets = [0, 0], sizes = [8, 128], strides = [1, 1]} : vector<8x384xf32> to vector<8x128xf32>
    %1326 = vector.extract_strided_slice %1324 {offsets = [0, 0], sizes = [8, 128], strides = [1, 1]} : vector<8x384xf32> to vector<8x128xf32>
    %1327 = arith.addf %1325, %1326 : vector<8x128xf32>
    %1328 = arith.negf %1327 : vector<8x128xf32>
    %1329 = math.exp %1328 : vector<8x128xf32>
    %cst_242 = arith.constant 1.000000e+00 : f32
    %1330 = vector.broadcast %cst_242 : f32 to vector<8x128xf32>
    %1331 = arith.addf %1330, %1329 : vector<8x128xf32>
    %1332 = arith.divf %1330, %1331 : vector<8x128xf32>
    %1333 = vector.extract_strided_slice %1322 {offsets = [0, 128], sizes = [8, 128], strides = [1, 1]} : vector<8x384xf32> to vector<8x128xf32>
    %1334 = vector.extract_strided_slice %1324 {offsets = [0, 128], sizes = [8, 128], strides = [1, 1]} : vector<8x384xf32> to vector<8x128xf32>
    %1335 = arith.addf %1333, %1334 : vector<8x128xf32>
    %1336 = arith.negf %1335 : vector<8x128xf32>
    %1337 = math.exp %1336 : vector<8x128xf32>
    %cst_243 = arith.constant 1.000000e+00 : f32
    %1338 = vector.broadcast %cst_243 : f32 to vector<8x128xf32>
    %1339 = arith.addf %1338, %1337 : vector<8x128xf32>
    %1340 = arith.divf %1338, %1339 : vector<8x128xf32>
    %1341 = vector.extract_strided_slice %1322 {offsets = [0, 256], sizes = [8, 128], strides = [1, 1]} : vector<8x384xf32> to vector<8x128xf32>
    %1342 = vector.extract_strided_slice %1324 {offsets = [0, 256], sizes = [8, 128], strides = [1, 1]} : vector<8x384xf32> to vector<8x128xf32>
    %1343 = arith.addf %1342, %1290 : vector<8x128xf32>
    %1344 = arith.mulf %1332, %1343 : vector<8x128xf32>
    %1345 = arith.addf %1341, %1344 : vector<8x128xf32>
    %1346 = math.tanh %1345 : vector<8x128xf32>
    %cst_244 = arith.constant 1.000000e+00 : f32
    %1347 = vector.broadcast %cst_244 : f32 to vector<8x128xf32>
    %1348 = arith.subf %1347, %1340 : vector<8x128xf32>
    %1349 = arith.mulf %1348, %1346 : vector<8x128xf32>
    %1350 = arith.mulf %1340, %1321 : vector<8x128xf32>
    %1351 = arith.addf %1349, %1350 : vector<8x128xf32>
    %1352 = vector.extract_strided_slice %1284 {offsets = [16, 0], sizes = [8, 384], strides = [1, 1]} : vector<64x384xf32> to vector<8x384xf32>
    %1353 = arith.truncf %1351 : vector<8x128xf32> to vector<8x128xbf16>
    %cst_245 = arith.constant dense<0.000000e+00> : vector<8x384xf32>
    %1354 = tpu.matmul %1353, %1286, %cst_245 {dimension_numbers = #tpu.dot_dimension_numbers<[1], [0], [0], [1], [0, 0, 1, 1], [], []>} : vector<8x128xbf16>, vector<128x384xbf16>, vector<8x384xf32> -> vector<8x384xf32>
    %1355 = vector.extract_strided_slice %1352 {offsets = [0, 0], sizes = [8, 128], strides = [1, 1]} : vector<8x384xf32> to vector<8x128xf32>
    %1356 = vector.extract_strided_slice %1354 {offsets = [0, 0], sizes = [8, 128], strides = [1, 1]} : vector<8x384xf32> to vector<8x128xf32>
    %1357 = arith.addf %1355, %1356 : vector<8x128xf32>
    %1358 = arith.negf %1357 : vector<8x128xf32>
    %1359 = math.exp %1358 : vector<8x128xf32>
    %cst_246 = arith.constant 1.000000e+00 : f32
    %1360 = vector.broadcast %cst_246 : f32 to vector<8x128xf32>
    %1361 = arith.addf %1360, %1359 : vector<8x128xf32>
    %1362 = arith.divf %1360, %1361 : vector<8x128xf32>
    %1363 = vector.extract_strided_slice %1352 {offsets = [0, 128], sizes = [8, 128], strides = [1, 1]} : vector<8x384xf32> to vector<8x128xf32>
    %1364 = vector.extract_strided_slice %1354 {offsets = [0, 128], sizes = [8, 128], strides = [1, 1]} : vector<8x384xf32> to vector<8x128xf32>
    %1365 = arith.addf %1363, %1364 : vector<8x128xf32>
    %1366 = arith.negf %1365 : vector<8x128xf32>
    %1367 = math.exp %1366 : vector<8x128xf32>
    %cst_247 = arith.constant 1.000000e+00 : f32
    %1368 = vector.broadcast %cst_247 : f32 to vector<8x128xf32>
    %1369 = arith.addf %1368, %1367 : vector<8x128xf32>
    %1370 = arith.divf %1368, %1369 : vector<8x128xf32>
    %1371 = vector.extract_strided_slice %1352 {offsets = [0, 256], sizes = [8, 128], strides = [1, 1]} : vector<8x384xf32> to vector<8x128xf32>
    %1372 = vector.extract_strided_slice %1354 {offsets = [0, 256], sizes = [8, 128], strides = [1, 1]} : vector<8x384xf32> to vector<8x128xf32>
    %1373 = arith.addf %1372, %1290 : vector<8x128xf32>
    %1374 = arith.mulf %1362, %1373 : vector<8x128xf32>
    %1375 = arith.addf %1371, %1374 : vector<8x128xf32>
    %1376 = math.tanh %1375 : vector<8x128xf32>
    %cst_248 = arith.constant 1.000000e+00 : f32
    %1377 = vector.broadcast %cst_248 : f32 to vector<8x128xf32>
    %1378 = arith.subf %1377, %1370 : vector<8x128xf32>
    %1379 = arith.mulf %1378, %1376 : vector<8x128xf32>
    %1380 = arith.mulf %1370, %1351 : vector<8x128xf32>
    %1381 = arith.addf %1379, %1380 : vector<8x128xf32>
    %1382 = vector.extract_strided_slice %1284 {offsets = [24, 0], sizes = [8, 384], strides = [1, 1]} : vector<64x384xf32> to vector<8x384xf32>
    %1383 = arith.truncf %1381 : vector<8x128xf32> to vector<8x128xbf16>
    %cst_249 = arith.constant dense<0.000000e+00> : vector<8x384xf32>
    %1384 = tpu.matmul %1383, %1286, %cst_249 {dimension_numbers = #tpu.dot_dimension_numbers<[1], [0], [0], [1], [0, 0, 1, 1], [], []>} : vector<8x128xbf16>, vector<128x384xbf16>, vector<8x384xf32> -> vector<8x384xf32>
    %1385 = vector.extract_strided_slice %1382 {offsets = [0, 0], sizes = [8, 128], strides = [1, 1]} : vector<8x384xf32> to vector<8x128xf32>
    %1386 = vector.extract_strided_slice %1384 {offsets = [0, 0], sizes = [8, 128], strides = [1, 1]} : vector<8x384xf32> to vector<8x128xf32>
    %1387 = arith.addf %1385, %1386 : vector<8x128xf32>
    %1388 = arith.negf %1387 : vector<8x128xf32>
    %1389 = math.exp %1388 : vector<8x128xf32>
    %cst_250 = arith.constant 1.000000e+00 : f32
    %1390 = vector.broadcast %cst_250 : f32 to vector<8x128xf32>
    %1391 = arith.addf %1390, %1389 : vector<8x128xf32>
    %1392 = arith.divf %1390, %1391 : vector<8x128xf32>
    %1393 = vector.extract_strided_slice %1382 {offsets = [0, 128], sizes = [8, 128], strides = [1, 1]} : vector<8x384xf32> to vector<8x128xf32>
    %1394 = vector.extract_strided_slice %1384 {offsets = [0, 128], sizes = [8, 128], strides = [1, 1]} : vector<8x384xf32> to vector<8x128xf32>
    %1395 = arith.addf %1393, %1394 : vector<8x128xf32>
    %1396 = arith.negf %1395 : vector<8x128xf32>
    %1397 = math.exp %1396 : vector<8x128xf32>
    %cst_251 = arith.constant 1.000000e+00 : f32
    %1398 = vector.broadcast %cst_251 : f32 to vector<8x128xf32>
    %1399 = arith.addf %1398, %1397 : vector<8x128xf32>
    %1400 = arith.divf %1398, %1399 : vector<8x128xf32>
    %1401 = vector.extract_strided_slice %1382 {offsets = [0, 256], sizes = [8, 128], strides = [1, 1]} : vector<8x384xf32> to vector<8x128xf32>
    %1402 = vector.extract_strided_slice %1384 {offsets = [0, 256], sizes = [8, 128], strides = [1, 1]} : vector<8x384xf32> to vector<8x128xf32>
    %1403 = arith.addf %1402, %1290 : vector<8x128xf32>
    %1404 = arith.mulf %1392, %1403 : vector<8x128xf32>
    %1405 = arith.addf %1401, %1404 : vector<8x128xf32>
    %1406 = math.tanh %1405 : vector<8x128xf32>
    %cst_252 = arith.constant 1.000000e+00 : f32
    %1407 = vector.broadcast %cst_252 : f32 to vector<8x128xf32>
    %1408 = arith.subf %1407, %1400 : vector<8x128xf32>
    %1409 = arith.mulf %1408, %1406 : vector<8x128xf32>
    %1410 = arith.mulf %1400, %1381 : vector<8x128xf32>
    %1411 = arith.addf %1409, %1410 : vector<8x128xf32>
    %1412 = vector.extract_strided_slice %1284 {offsets = [32, 0], sizes = [8, 384], strides = [1, 1]} : vector<64x384xf32> to vector<8x384xf32>
    %1413 = arith.truncf %1411 : vector<8x128xf32> to vector<8x128xbf16>
    %cst_253 = arith.constant dense<0.000000e+00> : vector<8x384xf32>
    %1414 = tpu.matmul %1413, %1286, %cst_253 {dimension_numbers = #tpu.dot_dimension_numbers<[1], [0], [0], [1], [0, 0, 1, 1], [], []>} : vector<8x128xbf16>, vector<128x384xbf16>, vector<8x384xf32> -> vector<8x384xf32>
    %1415 = vector.extract_strided_slice %1412 {offsets = [0, 0], sizes = [8, 128], strides = [1, 1]} : vector<8x384xf32> to vector<8x128xf32>
    %1416 = vector.extract_strided_slice %1414 {offsets = [0, 0], sizes = [8, 128], strides = [1, 1]} : vector<8x384xf32> to vector<8x128xf32>
    %1417 = arith.addf %1415, %1416 : vector<8x128xf32>
    %1418 = arith.negf %1417 : vector<8x128xf32>
    %1419 = math.exp %1418 : vector<8x128xf32>
    %cst_254 = arith.constant 1.000000e+00 : f32
    %1420 = vector.broadcast %cst_254 : f32 to vector<8x128xf32>
    %1421 = arith.addf %1420, %1419 : vector<8x128xf32>
    %1422 = arith.divf %1420, %1421 : vector<8x128xf32>
    %1423 = vector.extract_strided_slice %1412 {offsets = [0, 128], sizes = [8, 128], strides = [1, 1]} : vector<8x384xf32> to vector<8x128xf32>
    %1424 = vector.extract_strided_slice %1414 {offsets = [0, 128], sizes = [8, 128], strides = [1, 1]} : vector<8x384xf32> to vector<8x128xf32>
    %1425 = arith.addf %1423, %1424 : vector<8x128xf32>
    %1426 = arith.negf %1425 : vector<8x128xf32>
    %1427 = math.exp %1426 : vector<8x128xf32>
    %cst_255 = arith.constant 1.000000e+00 : f32
    %1428 = vector.broadcast %cst_255 : f32 to vector<8x128xf32>
    %1429 = arith.addf %1428, %1427 : vector<8x128xf32>
    %1430 = arith.divf %1428, %1429 : vector<8x128xf32>
    %1431 = vector.extract_strided_slice %1412 {offsets = [0, 256], sizes = [8, 128], strides = [1, 1]} : vector<8x384xf32> to vector<8x128xf32>
    %1432 = vector.extract_strided_slice %1414 {offsets = [0, 256], sizes = [8, 128], strides = [1, 1]} : vector<8x384xf32> to vector<8x128xf32>
    %1433 = arith.addf %1432, %1290 : vector<8x128xf32>
    %1434 = arith.mulf %1422, %1433 : vector<8x128xf32>
    %1435 = arith.addf %1431, %1434 : vector<8x128xf32>
    %1436 = math.tanh %1435 : vector<8x128xf32>
    %cst_256 = arith.constant 1.000000e+00 : f32
    %1437 = vector.broadcast %cst_256 : f32 to vector<8x128xf32>
    %1438 = arith.subf %1437, %1430 : vector<8x128xf32>
    %1439 = arith.mulf %1438, %1436 : vector<8x128xf32>
    %1440 = arith.mulf %1430, %1411 : vector<8x128xf32>
    %1441 = arith.addf %1439, %1440 : vector<8x128xf32>
    %1442 = vector.extract_strided_slice %1284 {offsets = [40, 0], sizes = [8, 384], strides = [1, 1]} : vector<64x384xf32> to vector<8x384xf32>
    %1443 = arith.truncf %1441 : vector<8x128xf32> to vector<8x128xbf16>
    %cst_257 = arith.constant dense<0.000000e+00> : vector<8x384xf32>
    %1444 = tpu.matmul %1443, %1286, %cst_257 {dimension_numbers = #tpu.dot_dimension_numbers<[1], [0], [0], [1], [0, 0, 1, 1], [], []>} : vector<8x128xbf16>, vector<128x384xbf16>, vector<8x384xf32> -> vector<8x384xf32>
    %1445 = vector.extract_strided_slice %1442 {offsets = [0, 0], sizes = [8, 128], strides = [1, 1]} : vector<8x384xf32> to vector<8x128xf32>
    %1446 = vector.extract_strided_slice %1444 {offsets = [0, 0], sizes = [8, 128], strides = [1, 1]} : vector<8x384xf32> to vector<8x128xf32>
    %1447 = arith.addf %1445, %1446 : vector<8x128xf32>
    %1448 = arith.negf %1447 : vector<8x128xf32>
    %1449 = math.exp %1448 : vector<8x128xf32>
    %cst_258 = arith.constant 1.000000e+00 : f32
    %1450 = vector.broadcast %cst_258 : f32 to vector<8x128xf32>
    %1451 = arith.addf %1450, %1449 : vector<8x128xf32>
    %1452 = arith.divf %1450, %1451 : vector<8x128xf32>
    %1453 = vector.extract_strided_slice %1442 {offsets = [0, 128], sizes = [8, 128], strides = [1, 1]} : vector<8x384xf32> to vector<8x128xf32>
    %1454 = vector.extract_strided_slice %1444 {offsets = [0, 128], sizes = [8, 128], strides = [1, 1]} : vector<8x384xf32> to vector<8x128xf32>
    %1455 = arith.addf %1453, %1454 : vector<8x128xf32>
    %1456 = arith.negf %1455 : vector<8x128xf32>
    %1457 = math.exp %1456 : vector<8x128xf32>
    %cst_259 = arith.constant 1.000000e+00 : f32
    %1458 = vector.broadcast %cst_259 : f32 to vector<8x128xf32>
    %1459 = arith.addf %1458, %1457 : vector<8x128xf32>
    %1460 = arith.divf %1458, %1459 : vector<8x128xf32>
    %1461 = vector.extract_strided_slice %1442 {offsets = [0, 256], sizes = [8, 128], strides = [1, 1]} : vector<8x384xf32> to vector<8x128xf32>
    %1462 = vector.extract_strided_slice %1444 {offsets = [0, 256], sizes = [8, 128], strides = [1, 1]} : vector<8x384xf32> to vector<8x128xf32>
    %1463 = arith.addf %1462, %1290 : vector<8x128xf32>
    %1464 = arith.mulf %1452, %1463 : vector<8x128xf32>
    %1465 = arith.addf %1461, %1464 : vector<8x128xf32>
    %1466 = math.tanh %1465 : vector<8x128xf32>
    %cst_260 = arith.constant 1.000000e+00 : f32
    %1467 = vector.broadcast %cst_260 : f32 to vector<8x128xf32>
    %1468 = arith.subf %1467, %1460 : vector<8x128xf32>
    %1469 = arith.mulf %1468, %1466 : vector<8x128xf32>
    %1470 = arith.mulf %1460, %1441 : vector<8x128xf32>
    %1471 = arith.addf %1469, %1470 : vector<8x128xf32>
    %1472 = vector.extract_strided_slice %1284 {offsets = [48, 0], sizes = [8, 384], strides = [1, 1]} : vector<64x384xf32> to vector<8x384xf32>
    %1473 = arith.truncf %1471 : vector<8x128xf32> to vector<8x128xbf16>
    %cst_261 = arith.constant dense<0.000000e+00> : vector<8x384xf32>
    %1474 = tpu.matmul %1473, %1286, %cst_261 {dimension_numbers = #tpu.dot_dimension_numbers<[1], [0], [0], [1], [0, 0, 1, 1], [], []>} : vector<8x128xbf16>, vector<128x384xbf16>, vector<8x384xf32> -> vector<8x384xf32>
    %1475 = vector.extract_strided_slice %1472 {offsets = [0, 0], sizes = [8, 128], strides = [1, 1]} : vector<8x384xf32> to vector<8x128xf32>
    %1476 = vector.extract_strided_slice %1474 {offsets = [0, 0], sizes = [8, 128], strides = [1, 1]} : vector<8x384xf32> to vector<8x128xf32>
    %1477 = arith.addf %1475, %1476 : vector<8x128xf32>
    %1478 = arith.negf %1477 : vector<8x128xf32>
    %1479 = math.exp %1478 : vector<8x128xf32>
    %cst_262 = arith.constant 1.000000e+00 : f32
    %1480 = vector.broadcast %cst_262 : f32 to vector<8x128xf32>
    %1481 = arith.addf %1480, %1479 : vector<8x128xf32>
    %1482 = arith.divf %1480, %1481 : vector<8x128xf32>
    %1483 = vector.extract_strided_slice %1472 {offsets = [0, 128], sizes = [8, 128], strides = [1, 1]} : vector<8x384xf32> to vector<8x128xf32>
    %1484 = vector.extract_strided_slice %1474 {offsets = [0, 128], sizes = [8, 128], strides = [1, 1]} : vector<8x384xf32> to vector<8x128xf32>
    %1485 = arith.addf %1483, %1484 : vector<8x128xf32>
    %1486 = arith.negf %1485 : vector<8x128xf32>
    %1487 = math.exp %1486 : vector<8x128xf32>
    %cst_263 = arith.constant 1.000000e+00 : f32
    %1488 = vector.broadcast %cst_263 : f32 to vector<8x128xf32>
    %1489 = arith.addf %1488, %1487 : vector<8x128xf32>
    %1490 = arith.divf %1488, %1489 : vector<8x128xf32>
    %1491 = vector.extract_strided_slice %1472 {offsets = [0, 256], sizes = [8, 128], strides = [1, 1]} : vector<8x384xf32> to vector<8x128xf32>
    %1492 = vector.extract_strided_slice %1474 {offsets = [0, 256], sizes = [8, 128], strides = [1, 1]} : vector<8x384xf32> to vector<8x128xf32>
    %1493 = arith.addf %1492, %1290 : vector<8x128xf32>
    %1494 = arith.mulf %1482, %1493 : vector<8x128xf32>
    %1495 = arith.addf %1491, %1494 : vector<8x128xf32>
    %1496 = math.tanh %1495 : vector<8x128xf32>
    %cst_264 = arith.constant 1.000000e+00 : f32
    %1497 = vector.broadcast %cst_264 : f32 to vector<8x128xf32>
    %1498 = arith.subf %1497, %1490 : vector<8x128xf32>
    %1499 = arith.mulf %1498, %1496 : vector<8x128xf32>
    %1500 = arith.mulf %1490, %1471 : vector<8x128xf32>
    %1501 = arith.addf %1499, %1500 : vector<8x128xf32>
    %1502 = vector.extract_strided_slice %1284 {offsets = [56, 0], sizes = [8, 384], strides = [1, 1]} : vector<64x384xf32> to vector<8x384xf32>
    %1503 = arith.truncf %1501 : vector<8x128xf32> to vector<8x128xbf16>
    %cst_265 = arith.constant dense<0.000000e+00> : vector<8x384xf32>
    %1504 = tpu.matmul %1503, %1286, %cst_265 {dimension_numbers = #tpu.dot_dimension_numbers<[1], [0], [0], [1], [0, 0, 1, 1], [], []>} : vector<8x128xbf16>, vector<128x384xbf16>, vector<8x384xf32> -> vector<8x384xf32>
    %1505 = vector.extract_strided_slice %1502 {offsets = [0, 0], sizes = [8, 128], strides = [1, 1]} : vector<8x384xf32> to vector<8x128xf32>
    %1506 = vector.extract_strided_slice %1504 {offsets = [0, 0], sizes = [8, 128], strides = [1, 1]} : vector<8x384xf32> to vector<8x128xf32>
    %1507 = arith.addf %1505, %1506 : vector<8x128xf32>
    %1508 = arith.negf %1507 : vector<8x128xf32>
    %1509 = math.exp %1508 : vector<8x128xf32>
    %cst_266 = arith.constant 1.000000e+00 : f32
    %1510 = vector.broadcast %cst_266 : f32 to vector<8x128xf32>
    %1511 = arith.addf %1510, %1509 : vector<8x128xf32>
    %1512 = arith.divf %1510, %1511 : vector<8x128xf32>
    %1513 = vector.extract_strided_slice %1502 {offsets = [0, 128], sizes = [8, 128], strides = [1, 1]} : vector<8x384xf32> to vector<8x128xf32>
    %1514 = vector.extract_strided_slice %1504 {offsets = [0, 128], sizes = [8, 128], strides = [1, 1]} : vector<8x384xf32> to vector<8x128xf32>
    %1515 = arith.addf %1513, %1514 : vector<8x128xf32>
    %1516 = arith.negf %1515 : vector<8x128xf32>
    %1517 = math.exp %1516 : vector<8x128xf32>
    %cst_267 = arith.constant 1.000000e+00 : f32
    %1518 = vector.broadcast %cst_267 : f32 to vector<8x128xf32>
    %1519 = arith.addf %1518, %1517 : vector<8x128xf32>
    %1520 = arith.divf %1518, %1519 : vector<8x128xf32>
    %1521 = vector.extract_strided_slice %1502 {offsets = [0, 256], sizes = [8, 128], strides = [1, 1]} : vector<8x384xf32> to vector<8x128xf32>
    %1522 = vector.extract_strided_slice %1504 {offsets = [0, 256], sizes = [8, 128], strides = [1, 1]} : vector<8x384xf32> to vector<8x128xf32>
    %1523 = arith.addf %1522, %1290 : vector<8x128xf32>
    %1524 = arith.mulf %1512, %1523 : vector<8x128xf32>
    %1525 = arith.addf %1521, %1524 : vector<8x128xf32>
    %1526 = math.tanh %1525 : vector<8x128xf32>
    %cst_268 = arith.constant 1.000000e+00 : f32
    %1527 = vector.broadcast %cst_268 : f32 to vector<8x128xf32>
    %1528 = arith.subf %1527, %1520 : vector<8x128xf32>
    %1529 = arith.mulf %1528, %1526 : vector<8x128xf32>
    %1530 = arith.mulf %1520, %1501 : vector<8x128xf32>
    %1531 = arith.addf %1529, %1530 : vector<8x128xf32>
    %1532 = arith.truncf %1531 : vector<8x128xf32> to vector<8x128xbf16>
    %c0_269 = arith.constant 0 : index
    %c0_270 = arith.constant 0 : index
    %1533 = vector.load %arg10[%c0_269, %c0_270] : memref<128x128xbf16, #tpu.memory_space<vmem>>, vector<128x128xbf16>
    %cst_271 = arith.constant dense<0.000000e+00> : vector<8x128xf32>
    %1534 = tpu.matmul %1532, %1533, %cst_271 {dimension_numbers = #tpu.dot_dimension_numbers<[1], [0], [0], [1], [0, 0, 1, 1], [], []>} : vector<8x128xbf16>, vector<128x128xbf16>, vector<8x128xf32> -> vector<8x128xf32>
    %c0_272 = arith.constant 0 : index
    %c0_273 = arith.constant 0 : index
    %1535 = vector.load %arg11[%c0_272, %c0_273] : memref<1x128xf32, #tpu.memory_space<vmem>>, vector<1x128xf32>
    %1536 = vector.broadcast %1535 : vector<1x128xf32> to vector<8x128xf32>
    %1537 = arith.addf %1534, %1536 : vector<8x128xf32>
    %cst_274 = arith.constant 0.000000e+00 : f32
    %1538 = vector.broadcast %cst_274 : f32 to vector<8x128xf32>
    %1539 = arith.maximumf %1537, %1538 : vector<8x128xf32>
    %1540 = arith.truncf %1539 : vector<8x128xf32> to vector<8x128xbf16>
    %c0_275 = arith.constant 0 : index
    %c0_276 = arith.constant 0 : index
    %1541 = vector.load %arg12[%c0_275, %c0_276] : memref<128x128xbf16, #tpu.memory_space<vmem>>, vector<128x128xbf16>
    %cst_277 = arith.constant dense<0.000000e+00> : vector<8x128xf32>
    %1542 = tpu.matmul %1540, %1541, %cst_277 {dimension_numbers = #tpu.dot_dimension_numbers<[1], [0], [0], [1], [0, 0, 1, 1], [], []>} : vector<8x128xbf16>, vector<128x128xbf16>, vector<8x128xf32> -> vector<8x128xf32>
    %c0_278 = arith.constant 0 : index
    %c0_279 = arith.constant 0 : index
    %1543 = vector.load %arg13[%c0_278, %c0_279] : memref<1x128xf32, #tpu.memory_space<vmem>>, vector<1x128xf32>
    %1544 = vector.broadcast %1543 : vector<1x128xf32> to vector<8x128xf32>
    %1545 = arith.addf %1542, %1544 : vector<8x128xf32>
    %c0_280 = arith.constant 0 : index
    %c0_281 = arith.constant 0 : index
    %1546 = vector.load %arg14[%c0_280, %c0_281] : memref<8x128xf32, #tpu.memory_space<vmem>>, vector<8x128xf32>
    tpu.vector_store %arg14[%c0_280, %c0_281], %1545 {strides = array<i32>} : memref<8x128xf32, #tpu.memory_space<vmem>>, vector<8x128xf32>,
    return
  }
  func.func @transform_0(%arg0: i32) -> (i32, i32, i32) {
    %c0_i32 = arith.constant 0 : i32
    %c0_i32_0 = arith.constant 0 : i32
    %c0_i32_1 = arith.constant 0 : i32
    return %c0_i32, %arg0, %c0_i32_0 : i32, i32, i32
  }
  func.func @transform_1(%arg0: i32) -> (i32, i32) {
    %c0_i32 = arith.constant 0 : i32
    %c0_i32_0 = arith.constant 0 : i32
    %c0_i32_1 = arith.constant 0 : i32
    return %c0_i32, %c0_i32_0 : i32, i32
  }
  func.func @transform_2(%arg0: i32) -> (i32, i32) {
    %c0_i32 = arith.constant 0 : i32
    %c0_i32_0 = arith.constant 0 : i32
    %c0_i32_1 = arith.constant 0 : i32
    return %c0_i32, %c0_i32_0 : i32, i32
  }
  func.func @transform_3(%arg0: i32) -> (i32, i32) {
    %c0_i32 = arith.constant 0 : i32
    %c0_i32_0 = arith.constant 0 : i32
    %c0_i32_1 = arith.constant 0 : i32
    return %c0_i32, %c0_i32_0 : i32, i32
  }
  func.func @transform_4(%arg0: i32) -> (i32, i32) {
    %c0_i32 = arith.constant 0 : i32
    %c0_i32_0 = arith.constant 0 : i32
    %c0_i32_1 = arith.constant 0 : i32
    return %c0_i32, %c0_i32_0 : i32, i32
  }
  func.func @transform_5(%arg0: i32) -> (i32, i32, i32) {
    %c0_i32 = arith.constant 0 : i32
    %c0_i32_0 = arith.constant 0 : i32
    %c0_i32_1 = arith.constant 0 : i32
    %c0_i32_2 = arith.constant 0 : i32
    return %c0_i32, %c0_i32_0, %c0_i32_1 : i32, i32, i32
  }
  func.func @transform_6(%arg0: i32) -> (i32, i32, i32) {
    %c0_i32 = arith.constant 0 : i32
    %c0_i32_0 = arith.constant 0 : i32
    %c0_i32_1 = arith.constant 0 : i32
    %c0_i32_2 = arith.constant 0 : i32
    return %c0_i32, %c0_i32_0, %c0_i32_1 : i32, i32, i32
  }
  func.func @transform_7(%arg0: i32) -> (i32, i32, i32) {
    %c0_i32 = arith.constant 0 : i32
    %c0_i32_0 = arith.constant 0 : i32
    %c0_i32_1 = arith.constant 0 : i32
    %c0_i32_2 = arith.constant 0 : i32
    return %c0_i32, %c0_i32_0, %c0_i32_1 : i32, i32, i32
  }
  func.func @transform_8(%arg0: i32) -> (i32, i32, i32) {
    %c0_i32 = arith.constant 0 : i32
    %c0_i32_0 = arith.constant 0 : i32
    %c0_i32_1 = arith.constant 0 : i32
    %c0_i32_2 = arith.constant 0 : i32
    return %c0_i32, %c0_i32_0, %c0_i32_1 : i32, i32, i32
  }
  func.func @transform_9(%arg0: i32) -> (i32, i32) {
    %c0_i32 = arith.constant 0 : i32
    %c0_i32_0 = arith.constant 0 : i32
    %c0_i32_1 = arith.constant 0 : i32
    return %c0_i32, %c0_i32_0 : i32, i32
  }
  func.func @transform_10(%arg0: i32) -> (i32, i32) {
    %c0_i32 = arith.constant 0 : i32
    %c0_i32_0 = arith.constant 0 : i32
    %c0_i32_1 = arith.constant 0 : i32
    return %c0_i32, %c0_i32_0 : i32, i32
  }
  func.func @transform_11(%arg0: i32) -> (i32, i32) {
    %c0_i32 = arith.constant 0 : i32
    %c0_i32_0 = arith.constant 0 : i32
    %c0_i32_1 = arith.constant 0 : i32
    return %c0_i32, %c0_i32_0 : i32, i32
  }
  func.func @transform_12(%arg0: i32) -> (i32, i32) {
    %c0_i32 = arith.constant 0 : i32
    %c0_i32_0 = arith.constant 0 : i32
    %c0_i32_1 = arith.constant 0 : i32
    return %c0_i32, %c0_i32_0 : i32, i32
  }
  func.func @transform_13(%arg0: i32) -> (i32, i32) {
    %c0_i32 = arith.constant 0 : i32
    %c0_i32_0 = arith.constant 0 : i32
    return %arg0, %c0_i32 : i32, i32
  }
}

</mosaic_0001>

<llo_original>
// kernel: tpu_custom_call.1
$region0: #{tpu_custom_call.1}
  #allocation0 [shape = 'u32[]', space=smem, size = 0x4, offset = 0x4, fixed_abs, tag = 'smem constant byte address 0x4 - core index']
  #allocation1 [shape = 'u32[72,128]{1,0:T(1,128)}', space=vmem, size = 0x9000, scoped, tag = 'internal scratch']
  %s0 = inlined_call_operand.hbm [shape: bf16[8,8,768], index: 0, kind: input, shape index: {}]
  %s1 = inlined_call_operand.hbm [shape: bf16[768,384], index: 1, kind: input, shape index: {}]
  %s2 = inlined_call_operand.hbm [shape: f32[1,384], index: 2, kind: input, shape index: {}]
  %s3 = inlined_call_operand.hbm [shape: bf16[128,384], index: 3, kind: input, shape index: {}]
  %s4 = inlined_call_operand.vmem [shape: f32[1,128], index: 4, kind: input, shape index: {}]
  %s5 = inlined_call_operand.hbm [shape: bf16[5,128,384], index: 5, kind: input, shape index: {}]
  %s6 = inlined_call_operand.hbm [shape: f32[5,1,384], index: 6, kind: input, shape index: {}]
  %s7 = inlined_call_operand.hbm [shape: bf16[5,128,384], index: 7, kind: input, shape index: {}]
  %s8 = inlined_call_operand.vmem [shape: f32[5,1,128], index: 8, kind: input, shape index: {}]
  %s9 = inlined_call_operand.hbm [shape: bf16[128,128], index: 9, kind: input, shape index: {}]
  %s10 = inlined_call_operand.vmem [shape: f32[1,128], index: 10, kind: input, shape index: {}]
  %s11 = inlined_call_operand.hbm [shape: bf16[128,128], index: 11, kind: input, shape index: {}]
  %s12 = inlined_call_operand.vmem [shape: f32[1,128], index: 12, kind: input, shape index: {}]
  %s13 = inlined_call_operand.hbm [shape: f32[8,128], index: 13, kind: output, shape index: {}]
  %s14 = sld [smem:[#allocation0]]
  $region98: #{tpu_custom_call.1} parent=0
    _
  %s16 = ssub.s32 1, %s14
  %s17 = scalar_select 0, %s16, %s14
  $region1: #{tpu_custom_call.1} parent=0
    #allocation2 [shape = 'u8[98304]{0}', space=vmem, size = 0x18000, scoped, tag = 'input window, operand 0, single buffered']
    #allocation3 [shape = 's32[1]{0}', space=sflag, size = 0x4, scoped, tag = 'scoped memory for tpu_custom_call.1']
    #allocation4 [shape = 's32[1]{0}', space=sflag, size = 0x4, scoped, tag = 'scoped memory for tpu_custom_call.1']
    #allocation5 [shape = 'u8[589824]{0}', space=vmem, size = 0x90000, scoped, tag = 'input window, operand 1, single buffered']
    #allocation6 [shape = 's32[1]{0}', space=sflag, size = 0x4, scoped, tag = 'scoped memory for tpu_custom_call.1']
    #allocation7 [shape = 'u8[1536]{0}', space=vmem, size = 0x800, scoped, tag = 'input window, operand 2, single buffered']
    #allocation8 [shape = 'u8[98304]{0}', space=vmem, size = 0x18000, scoped, tag = 'input window, operand 3, single buffered']
    #allocation9 [shape = 's32[1]{0}', space=sflag, size = 0x4, scoped, tag = 'scoped memory for tpu_custom_call.1']
    #allocation10 [shape = 'u8[491520]{0}', space=vmem, size = 0x78000, scoped, tag = 'input window, operand 5, single buffered']
    #allocation11 [shape = 'u8[7680]{0}', space=vmem, size = 0x2000, scoped, tag = 'input window, operand 6, single buffered']
    #allocation12 [shape = 's32[1]{0}', space=sflag, size = 0x4, scoped, tag = 'scoped memory for tpu_custom_call.1']
    #allocation13 [shape = 'u8[491520]{0}', space=vmem, size = 0x78000, scoped, tag = 'input window, operand 7, single buffered']
    #allocation14 [shape = 'u8[32768]{0}', space=vmem, size = 0x8000, scoped, tag = 'input window, operand 9, single buffered']
    #allocation15 [shape = 's32[1]{0}', space=sflag, size = 0x4, scoped, tag = 'scoped memory for tpu_custom_call.1']
    #allocation16 [shape = 'u8[32768]{0}', space=vmem, size = 0x8000, scoped, tag = 'input window, operand 11, single buffered']
    #allocation17 [shape = 'u8[4096]{0}', space=vmem, size = 0x1000, scoped, tag = 'output window, operand 0, single buffered']
    %18 = vsyncpa [#allocation3], 0
    %19 = vsyncpa [#allocation6], 0
    %20 = vsyncpa [#allocation9], 0
    %21 = vsyncpa [#allocation12], 0
    %22 = vsyncpa [#allocation15], 0
    %23 = vsyncpa [#allocation4], 0
    // Predicated region
    $region2: #{tpu_custom_call.1} parent=1 // pred_check
      _
    $region3: #{tpu_custom_call.1} parent=1 // pred_check_branch
      %25 = sbr.rel (0) target = $region5
    $region4: #{tpu_custom_call.1} parent=1 // pred_region
      %27 = vsyncadd [#allocation3], 0
      %s28 = sshll.u32 %s0, 4
      %s29 = int_to_ptr.hbm [resolvable:$true] %s28
      %s30 = sshll.u32 [#allocation2], 4
      %s31 = int_to_ptr.vmem [resolvable:$true] %s30
      %36 = dma.hbm_to_vmem [thread:$0]  %s29, 3072, %s31, [#allocation3], 384, 384, 24
    $region5: #{tpu_custom_call.1} parent=1 // pred_fallthru
      _
    // Predicated region
    $region6: #{tpu_custom_call.1} parent=1 // pred_check
      _
    $region7: #{tpu_custom_call.1} parent=1 // pred_check_branch
      %38 = sbr.rel (0) target = $region9
    $region8: #{tpu_custom_call.1} parent=1 // pred_region
      %40 = vsyncadd [#allocation6], 0
      %s41 = sshll.u32 %s1, 4
      %s42 = int_to_ptr.hbm [resolvable:$true] %s41
      %s43 = sshll.u32 [#allocation5], 4
      %s44 = int_to_ptr.vmem [resolvable:$true] %s43
      %49 = dma.hbm_to_vmem [thread:$0]  %s42, 18432, %s44, [#allocation6], 192, 192, 12
    $region9: #{tpu_custom_call.1} parent=1 // pred_fallthru
      _
    // Predicated region
    $region10: #{tpu_custom_call.1} parent=1 // pred_check
      _
    $region11: #{tpu_custom_call.1} parent=1 // pred_check_branch
      %51 = sbr.rel (0) target = $region13
    $region12: #{tpu_custom_call.1} parent=1 // pred_region
      %53 = vsyncadd [#allocation6], 0
      %s55 = sshll.u32 %s2, 4
      %s56 = int_to_ptr.hbm [resolvable:$true] %s55
      %s57 = sshll.u32 [#allocation7], 4
      %s58 = int_to_ptr.vmem [resolvable:$true] %s57
      %60 = dma.hbm_to_vmem [thread:$0]  %s56, 48, %s58, [#allocation6]
    $region13: #{tpu_custom_call.1} parent=1 // pred_fallthru
      _
    // Predicated region
    $region14: #{tpu_custom_call.1} parent=1 // pred_check
      _
    $region15: #{tpu_custom_call.1} parent=1 // pred_check_branch
      %62 = sbr.rel (0) target = $region17
    $region16: #{tpu_custom_call.1} parent=1 // pred_region
      %64 = vsyncadd [#allocation9], 0
      %s65 = sshll.u32 %s3, 4
      %s66 = int_to_ptr.hbm [resolvable:$true] %s65
      %s67 = sshll.u32 [#allocation8], 4
      %s68 = int_to_ptr.vmem [resolvable:$true] %s67
      %73 = dma.hbm_to_vmem [thread:$0]  %s66, 3072, %s68, [#allocation9], 192, 192, 12
    $region17: #{tpu_custom_call.1} parent=1 // pred_fallthru
      _
    // Predicated region
    $region18: #{tpu_custom_call.1} parent=1 // pred_check
      _
    $region19: #{tpu_custom_call.1} parent=1 // pred_check_branch
      %75 = sbr.rel (0) target = $region21
    $region20: #{tpu_custom_call.1} parent=1 // pred_region
      _
    $region21: #{tpu_custom_call.1} parent=1 // pred_fallthru
      _
    // Predicated region
    $region22: #{tpu_custom_call.1} parent=1 // pred_check
      _
    $region23: #{tpu_custom_call.1} parent=1 // pred_check_branch
      %77 = sbr.rel (0) target = $region25
    $region24: #{tpu_custom_call.1} parent=1 // pred_region
      %79 = vsyncadd [#allocation9], 0
      %s80 = sshll.u32 %s5, 4
      %s81 = int_to_ptr.hbm [resolvable:$true] %s80
      %s82 = sshll.u32 [#allocation10], 4
      %s83 = int_to_ptr.vmem [resolvable:$true] %s82
      %88 = dma.hbm_to_vmem [thread:$0]  %s81, 15360, %s83, [#allocation9], 192, 192, 12
    $region25: #{tpu_custom_call.1} parent=1 // pred_fallthru
      _
    // Predicated region
    $region26: #{tpu_custom_call.1} parent=1 // pred_check
      _
    $region27: #{tpu_custom_call.1} parent=1 // pred_check_branch
      %90 = sbr.rel (0) target = $region29
    $region28: #{tpu_custom_call.1} parent=1 // pred_region
      %92 = vsyncadd [#allocation12], 0
      %s93 = sshll.u32 %s6, 4
      %s94 = int_to_ptr.hbm [resolvable:$true] %s93
      %s95 = sshll.u32 [#allocation11], 4
      %s96 = int_to_ptr.vmem [resolvable:$true] %s95
      %101 = dma.hbm_to_vmem [thread:$0]  %s94, 240, %s96, [#allocation12], 48, 48, 3
    $region29: #{tpu_custom_call.1} parent=1 // pred_fallthru
      _
    // Predicated region
    $region30: #{tpu_custom_call.1} parent=1 // pred_check
      _
    $region31: #{tpu_custom_call.1} parent=1 // pred_check_branch
      %103 = sbr.rel (0) target = $region33
    $region32: #{tpu_custom_call.1} parent=1 // pred_region
      %105 = vsyncadd [#allocation12], 0
      %s106 = sshll.u32 %s7, 4
      %s107 = int_to_ptr.hbm [resolvable:$true] %s106
      %s108 = sshll.u32 [#allocation13], 4
      %s109 = int_to_ptr.vmem [resolvable:$true] %s108
      %114 = dma.hbm_to_vmem [thread:$0]  %s107, 15360, %s109, [#allocation12], 192, 192, 12
    $region33: #{tpu_custom_call.1} parent=1 // pred_fallthru
      _
    // Predicated region
    $region34: #{tpu_custom_call.1} parent=1 // pred_check
      _
    $region35: #{tpu_custom_call.1} parent=1 // pred_check_branch
      %116 = sbr.rel (0) target = $region37
    $region36: #{tpu_custom_call.1} parent=1 // pred_region
      _
    $region37: #{tpu_custom_call.1} parent=1 // pred_fallthru
      _
    // Predicated region
    $region38: #{tpu_custom_call.1} parent=1 // pred_check
      _
    $region39: #{tpu_custom_call.1} parent=1 // pred_check_branch
      %118 = sbr.rel (0) target = $region41
    $region40: #{tpu_custom_call.1} parent=1 // pred_region
      %120 = vsyncadd [#allocation15], 0
      %s121 = sshll.u32 %s9, 4
      %s122 = int_to_ptr.hbm [resolvable:$true] %s121
      %s123 = sshll.u32 [#allocation14], 4
      %s124 = int_to_ptr.vmem [resolvable:$true] %s123
      %129 = dma.hbm_to_vmem [thread:$0]  %s122, 1024, %s124, [#allocation15], 64, 64, 4
    $region41: #{tpu_custom_call.1} parent=1 // pred_fallthru
      _
    // Predicated region
    $region42: #{tpu_custom_call.1} parent=1 // pred_check
      _
    $region43: #{tpu_custom_call.1} parent=1 // pred_check_branch
      %131 = sbr.rel (0) target = $region45
    $region44: #{tpu_custom_call.1} parent=1 // pred_region
      _
    $region45: #{tpu_custom_call.1} parent=1 // pred_fallthru
      _
    // Predicated region
    $region46: #{tpu_custom_call.1} parent=1 // pred_check
      _
    $region47: #{tpu_custom_call.1} parent=1 // pred_check_branch
      %133 = sbr.rel (0) target = $region49
    $region48: #{tpu_custom_call.1} parent=1 // pred_region
      %135 = vsyncadd [#allocation15], 0
      %s136 = sshll.u32 %s11, 4
      %s137 = int_to_ptr.hbm [resolvable:$true] %s136
      %s138 = sshll.u32 [#allocation16], 4
      %s139 = int_to_ptr.vmem [resolvable:$true] %s138
      %144 = dma.hbm_to_vmem [thread:$0]  %s137, 1024, %s139, [#allocation15], 64, 64, 4
    $region49: #{tpu_custom_call.1} parent=1 // pred_fallthru
      _
    // Predicated region
    $region50: #{tpu_custom_call.1} parent=1 // pred_check
      _
    $region51: #{tpu_custom_call.1} parent=1 // pred_check_branch
      %146 = sbr.rel (0) target = $region53
    $region52: #{tpu_custom_call.1} parent=1 // pred_region
      _
    $region53: #{tpu_custom_call.1} parent=1 // pred_fallthru
      _
    // Predicated region
    $region54: #{tpu_custom_call.1} parent=1 // pred_check
      _
    $region55: #{tpu_custom_call.1} parent=1 // pred_check_branch
      %148 = sbr.rel (0) target = $region57
    $region56: #{tpu_custom_call.1} parent=1 // pred_region
      %150 = dma.done [#allocation3], 3072
    $region57: #{tpu_custom_call.1} parent=1 // pred_fallthru
      _
    // Predicated region
    $region58: #{tpu_custom_call.1} parent=1 // pred_check
      _
    $region59: #{tpu_custom_call.1} parent=1 // pred_check_branch
      %152 = sbr.rel (0) target = $region61
    $region60: #{tpu_custom_call.1} parent=1 // pred_region
      %154 = dma.done [#allocation6], 18432
    $region61: #{tpu_custom_call.1} parent=1 // pred_fallthru
      _
    // Predicated region
    $region62: #{tpu_custom_call.1} parent=1 // pred_check
      _
    $region63: #{tpu_custom_call.1} parent=1 // pred_check_branch
      %156 = sbr.rel (0) target = $region65
    $region64: #{tpu_custom_call.1} parent=1 // pred_region
      %158 = dma.done [#allocation6], 48
    $region65: #{tpu_custom_call.1} parent=1 // pred_fallthru
      _
    // Predicated region
    $region66: #{tpu_custom_call.1} parent=1 // pred_check
      _
    $region67: #{tpu_custom_call.1} parent=1 // pred_check_branch
      %160 = sbr.rel (0) target = $region69
    $region68: #{tpu_custom_call.1} parent=1 // pred_region
      %162 = dma.done [#allocation9], 3072
    $region69: #{tpu_custom_call.1} parent=1 // pred_fallthru
      _
    // Predicated region
    $region70: #{tpu_custom_call.1} parent=1 // pred_check
      _
    $region71: #{tpu_custom_call.1} parent=1 // pred_check_branch
      %164 = sbr.rel (0) target = $region73
    $region72: #{tpu_custom_call.1} parent=1 // pred_region
      %166 = dma.done [#allocation9], 15360
    $region73: #{tpu_custom_call.1} parent=1 // pred_fallthru
      _
    // Predicated region
    $region74: #{tpu_custom_call.1} parent=1 // pred_check
      _
    $region75: #{tpu_custom_call.1} parent=1 // pred_check_branch
      %168 = sbr.rel (0) target = $region77
    $region76: #{tpu_custom_call.1} parent=1 // pred_region
      %170 = dma.done [#allocation12], 240
    $region77: #{tpu_custom_call.1} parent=1 // pred_fallthru
      _
    // Predicated region
    $region78: #{tpu_custom_call.1} parent=1 // pred_check
      _
    $region79: #{tpu_custom_call.1} parent=1 // pred_check_branch
      %172 = sbr.rel (0) target = $region81
    $region80: #{tpu_custom_call.1} parent=1 // pred_region
      %174 = dma.done [#allocation12], 15360
    $region81: #{tpu_custom_call.1} parent=1 // pred_fallthru
      _
    // Predicated region
    $region82: #{tpu_custom_call.1} parent=1 // pred_check
      _
    $region83: #{tpu_custom_call.1} parent=1 // pred_check_branch
      %176 = sbr.rel (0) target = $region85
    $region84: #{tpu_custom_call.1} parent=1 // pred_region
      %178 = dma.done [#allocation15], 1024
    $region85: #{tpu_custom_call.1} parent=1 // pred_fallthru
      _
    // Predicated region
    $region86: #{tpu_custom_call.1} parent=1 // pred_check
      _
    $region87: #{tpu_custom_call.1} parent=1 // pred_check_branch
      %180 = sbr.rel (0) target = $region89
    $region88: #{tpu_custom_call.1} parent=1 // pred_region
      %182 = dma.done [#allocation15], 1024
    $region89: #{tpu_custom_call.1} parent=1 // pred_fallthru
      _
    %v184 = vld [vmem:[#allocation2] sm:$0xff]
    %v185 = vld [vmem:[#allocation2 + $0x8] sm:$0xff]
    %v186 = vld [vmem:[#allocation2 + $0x10] sm:$0xff]
    %v187 = vld [vmem:[#allocation2 + $0x18] sm:$0xff]
    %v188 = vld [vmem:[#allocation2 + $0x20] sm:$0xff]
    %v189 = vld [vmem:[#allocation2 + $0x28] sm:$0xff]
    %v190 = vld [vmem:[#allocation2 + $0x30] sm:$0xff]
    %v191 = vld [vmem:[#allocation2 + $0x38] sm:$0xff]
    %v192 = vld [vmem:[#allocation2 + $0x40] sm:$0xff]
    %v193 = vld [vmem:[#allocation2 + $0x48] sm:$0xff]
    %v194 = vld [vmem:[#allocation2 + $0x50] sm:$0xff]
    %v195 = vld [vmem:[#allocation2 + $0x58] sm:$0xff]
    %v196 = vld [vmem:[#allocation2 + $0x60] sm:$0xff]
    %v197 = vld [vmem:[#allocation2 + $0x68] sm:$0xff]
    %v198 = vld [vmem:[#allocation2 + $0x70] sm:$0xff]
    %v199 = vld [vmem:[#allocation2 + $0x78] sm:$0xff]
    %v200 = vld [vmem:[#allocation2 + $0x80] sm:$0xff]
    %v201 = vld [vmem:[#allocation2 + $0x88] sm:$0xff]
    %v202 = vld [vmem:[#allocation2 + $0x90] sm:$0xff]
    %v203 = vld [vmem:[#allocation2 + $0x98] sm:$0xff]
    %v204 = vld [vmem:[#allocation2 + $0xa0] sm:$0xff]
    %v205 = vld [vmem:[#allocation2 + $0xa8] sm:$0xff]
    %v206 = vld [vmem:[#allocation2 + $0xb0] sm:$0xff]
    %v207 = vld [vmem:[#allocation2 + $0xb8] sm:$0xff]
    %v208 = vld [vmem:[#allocation5] sm:$0xff]
    %v209 = vld [vmem:[#allocation5 + $0x8] sm:$0xf]
    %v210 = vld [vmem:[#allocation5 + $0xc] sm:$0xff]
    %v211 = vld [vmem:[#allocation5 + $0x14] sm:$0xf]
    %v212 = vld [vmem:[#allocation5 + $0x18] sm:$0xff]
    %v213 = vld [vmem:[#allocation5 + $0x20] sm:$0xf]
    %v214 = vld [vmem:[#allocation5 + $0x24] sm:$0xff]
    %v215 = vld [vmem:[#allocation5 + $0x2c] sm:$0xf]
    %v216 = vld [vmem:[#allocation5 + $0x30] sm:$0xff]
    %v217 = vld [vmem:[#allocation5 + $0x38] sm:$0xf]
    %v218 = vld [vmem:[#allocation5 + $0x3c] sm:$0xff]
    %v219 = vld [vmem:[#allocation5 + $0x44] sm:$0xf]
    %v220 = vld [vmem:[#allocation5 + $0x48] sm:$0xff]
    %v221 = vld [vmem:[#allocation5 + $0x50] sm:$0xf]
    %v222 = vld [vmem:[#allocation5 + $0x54] sm:$0xff]
    %v223 = vld [vmem:[#allocation5 + $0x5c] sm:$0xf]
    %v224 = vld [vmem:[#allocation5 + $0x60] sm:$0xff]
    %v225 = vld [vmem:[#allocation5 + $0x68] sm:$0xf]
    %v226 = vld [vmem:[#allocation5 + $0x6c] sm:$0xff]
    %v227 = vld [vmem:[#allocation5 + $0x74] sm:$0xf]
    %v228 = vld [vmem:[#allocation5 + $0x78] sm:$0xff]
    %v229 = vld [vmem:[#allocation5 + $0x80] sm:$0xf]
    %v230 = vld [vmem:[#allocation5 + $0x84] sm:$0xff]
    %v231 = vld [vmem:[#allocation5 + $0x8c] sm:$0xf]
    %v232 = vld [vmem:[#allocation5 + $0x90] sm:$0xff]
    %v233 = vld [vmem:[#allocation5 + $0x98] sm:$0xf]
    %v234 = vld [vmem:[#allocation5 + $0x9c] sm:$0xff]
    %v235 = vld [vmem:[#allocation5 + $0xa4] sm:$0xf]
    %v236 = vld [vmem:[#allocation5 + $0xa8] sm:$0xff]
    %v237 = vld [vmem:[#allocation5 + $0xb0] sm:$0xf]
    %v238 = vld [vmem:[#allocation5 + $0xb4] sm:$0xff]
    %v239 = vld [vmem:[#allocation5 + $0xbc] sm:$0xf]
    %v240 = vld [vmem:[#allocation5 + $0xc0] sm:$0xff]
    %v241 = vld [vmem:[#allocation5 + $0xc8] sm:$0xf]
    %v242 = vld [vmem:[#allocation5 + $0xcc] sm:$0xff]
    %v243 = vld [vmem:[#allocation5 + $0xd4] sm:$0xf]
    %v244 = vld [vmem:[#allocation5 + $0xd8] sm:$0xff]
    %v245 = vld [vmem:[#allocation5 + $0xe0] sm:$0xf]
    %v246 = vld [vmem:[#allocation5 + $0xe4] sm:$0xff]
    %v247 = vld [vmem:[#allocation5 + $0xec] sm:$0xf]
    %v248 = vld [vmem:[#allocation5 + $0xf0] sm:$0xff]
    %v249 = vld [vmem:[#allocation5 + $0xf8] sm:$0xf]
    %v250 = vld [vmem:[#allocation5 + $0xfc] sm:$0xff]
    %v251 = vld [vmem:[#allocation5 + $0x104] sm:$0xf]
    %v252 = vld [vmem:[#allocation5 + $0x108] sm:$0xff]
    %v253 = vld [vmem:[#allocation5 + $0x110] sm:$0xf]
    %v254 = vld [vmem:[#allocation5 + $0x114] sm:$0xff]
    %v255 = vld [vmem:[#allocation5 + $0x11c] sm:$0xf]
    %v256 = vld [vmem:[#allocation5 + $0x120] sm:$0xff]
    %v257 = vld [vmem:[#allocation5 + $0x128] sm:$0xf]
    %v258 = vld [vmem:[#allocation5 + $0x12c] sm:$0xff]
    %v259 = vld [vmem:[#allocation5 + $0x134] sm:$0xf]
    %v260 = vld [vmem:[#allocation5 + $0x138] sm:$0xff]
    %v261 = vld [vmem:[#allocation5 + $0x140] sm:$0xf]
    %v262 = vld [vmem:[#allocation5 + $0x144] sm:$0xff]
    %v263 = vld [vmem:[#allocation5 + $0x14c] sm:$0xf]
    %v264 = vld [vmem:[#allocation5 + $0x150] sm:$0xff]
    %v265 = vld [vmem:[#allocation5 + $0x158] sm:$0xf]
    %v266 = vld [vmem:[#allocation5 + $0x15c] sm:$0xff]
    %v267 = vld [vmem:[#allocation5 + $0x164] sm:$0xf]
    %v268 = vld [vmem:[#allocation5 + $0x168] sm:$0xff]
    %v269 = vld [vmem:[#allocation5 + $0x170] sm:$0xf]
    %v270 = vld [vmem:[#allocation5 + $0x174] sm:$0xff]
    %v271 = vld [vmem:[#allocation5 + $0x17c] sm:$0xf]
    %v272 = vld [vmem:[#allocation5 + $0x180] sm:$0xff]
    %v273 = vld [vmem:[#allocation5 + $0x188] sm:$0xf]
    %v274 = vld [vmem:[#allocation5 + $0x18c] sm:$0xff]
    %v275 = vld [vmem:[#allocation5 + $0x194] sm:$0xf]
    %v276 = vld [vmem:[#allocation5 + $0x198] sm:$0xff]
    %v277 = vld [vmem:[#allocation5 + $0x1a0] sm:$0xf]
    %v278 = vld [vmem:[#allocation5 + $0x1a4] sm:$0xff]
    %v279 = vld [vmem:[#allocation5 + $0x1ac] sm:$0xf]
    %v280 = vld [vmem:[#allocation5 + $0x1b0] sm:$0xff]
    %v281 = vld [vmem:[#allocation5 + $0x1b8] sm:$0xf]
    %v282 = vld [vmem:[#allocation5 + $0x1bc] sm:$0xff]
    %v283 = vld [vmem:[#allocation5 + $0x1c4] sm:$0xf]
    %v284 = vld [vmem:[#allocation5 + $0x1c8] sm:$0xff]
    %v285 = vld [vmem:[#allocation5 + $0x1d0] sm:$0xf]
    %v286 = vld [vmem:[#allocation5 + $0x1d4] sm:$0xff]
    %v287 = vld [vmem:[#allocation5 + $0x1dc] sm:$0xf]
    %v288 = vld [vmem:[#allocation5 + $0x1e0] sm:$0xff]
    %v289 = vld [vmem:[#allocation5 + $0x1e8] sm:$0xf]
    %v290 = vld [vmem:[#allocation5 + $0x1ec] sm:$0xff]
    %v291 = vld [vmem:[#allocation5 + $0x1f4] sm:$0xf]
    %v292 = vld [vmem:[#allocation5 + $0x1f8] sm:$0xff]
    %v293 = vld [vmem:[#allocation5 + $0x200] sm:$0xf]
    %v294 = vld [vmem:[#allocation5 + $0x204] sm:$0xff]
    %v295 = vld [vmem:[#allocation5 + $0x20c] sm:$0xf]
    %v296 = vld [vmem:[#allocation5 + $0x210] sm:$0xff]
    %v297 = vld [vmem:[#allocation5 + $0x218] sm:$0xf]
    %v298 = vld [vmem:[#allocation5 + $0x21c] sm:$0xff]
    %v299 = vld [vmem:[#allocation5 + $0x224] sm:$0xf]
    %v300 = vld [vmem:[#allocation5 + $0x228] sm:$0xff]
    %v301 = vld [vmem:[#allocation5 + $0x230] sm:$0xf]
    %v302 = vld [vmem:[#allocation5 + $0x234] sm:$0xff]
    %v303 = vld [vmem:[#allocation5 + $0x23c] sm:$0xf]
    %v304 = vld [vmem:[#allocation5 + $0x240] sm:$0xff]
    %v305 = vld [vmem:[#allocation5 + $0x248] sm:$0xf]
    %v306 = vld [vmem:[#allocation5 + $0x24c] sm:$0xff]
    %v307 = vld [vmem:[#allocation5 + $0x254] sm:$0xf]
    %v308 = vld [vmem:[#allocation5 + $0x258] sm:$0xff]
    %v309 = vld [vmem:[#allocation5 + $0x260] sm:$0xf]
    %v310 = vld [vmem:[#allocation5 + $0x264] sm:$0xff]
    %v311 = vld [vmem:[#allocation5 + $0x26c] sm:$0xf]
    %v312 = vld [vmem:[#allocation5 + $0x270] sm:$0xff]
    %v313 = vld [vmem:[#allocation5 + $0x278] sm:$0xf]
    %v314 = vld [vmem:[#allocation5 + $0x27c] sm:$0xff]
    %v315 = vld [vmem:[#allocation5 + $0x284] sm:$0xf]
    %v316 = vld [vmem:[#allocation5 + $0x288] sm:$0xff]
    %v317 = vld [vmem:[#allocation5 + $0x290] sm:$0xf]
    %v318 = vld [vmem:[#allocation5 + $0x294] sm:$0xff]
    %v319 = vld [vmem:[#allocation5 + $0x29c] sm:$0xf]
    %v320 = vld [vmem:[#allocation5 + $0x2a0] sm:$0xff]
    %v321 = vld [vmem:[#allocation5 + $0x2a8] sm:$0xf]
    %v322 = vld [vmem:[#allocation5 + $0x2ac] sm:$0xff]
    %v323 = vld [vmem:[#allocation5 + $0x2b4] sm:$0xf]
    %v324 = vld [vmem:[#allocation5 + $0x2b8] sm:$0xff]
    %v325 = vld [vmem:[#allocation5 + $0x2c0] sm:$0xf]
    %v326 = vld [vmem:[#allocation5 + $0x2c4] sm:$0xff]
    %v327 = vld [vmem:[#allocation5 + $0x2cc] sm:$0xf]
    %v328 = vld [vmem:[#allocation5 + $0x2d0] sm:$0xff]
    %v329 = vld [vmem:[#allocation5 + $0x2d8] sm:$0xf]
    %v330 = vld [vmem:[#allocation5 + $0x2dc] sm:$0xff]
    %v331 = vld [vmem:[#allocation5 + $0x2e4] sm:$0xf]
    %v332 = vld [vmem:[#allocation5 + $0x2e8] sm:$0xff]
    %v333 = vld [vmem:[#allocation5 + $0x2f0] sm:$0xf]
    %v334 = vld [vmem:[#allocation5 + $0x2f4] sm:$0xff]
    %v335 = vld [vmem:[#allocation5 + $0x2fc] sm:$0xf]
    %v336 = vld [vmem:[#allocation5 + $0x300] sm:$0xff]
    %v337 = vld [vmem:[#allocation5 + $0x308] sm:$0xf]
    %v338 = vld [vmem:[#allocation5 + $0x30c] sm:$0xff]
    %v339 = vld [vmem:[#allocation5 + $0x314] sm:$0xf]
    %v340 = vld [vmem:[#allocation5 + $0x318] sm:$0xff]
    %v341 = vld [vmem:[#allocation5 + $0x320] sm:$0xf]
    %v342 = vld [vmem:[#allocation5 + $0x324] sm:$0xff]
    %v343 = vld [vmem:[#allocation5 + $0x32c] sm:$0xf]
    %v344 = vld [vmem:[#allocation5 + $0x330] sm:$0xff]
    %v345 = vld [vmem:[#allocation5 + $0x338] sm:$0xf]
    %v346 = vld [vmem:[#allocation5 + $0x33c] sm:$0xff]
    %v347 = vld [vmem:[#allocation5 + $0x344] sm:$0xf]
    %v348 = vld [vmem:[#allocation5 + $0x348] sm:$0xff]
    %v349 = vld [vmem:[#allocation5 + $0x350] sm:$0xf]
    %v350 = vld [vmem:[#allocation5 + $0x354] sm:$0xff]
    %v351 = vld [vmem:[#allocation5 + $0x35c] sm:$0xf]
    %v352 = vld [vmem:[#allocation5 + $0x360] sm:$0xff]
    %v353 = vld [vmem:[#allocation5 + $0x368] sm:$0xf]
    %v354 = vld [vmem:[#allocation5 + $0x36c] sm:$0xff]
    %v355 = vld [vmem:[#allocation5 + $0x374] sm:$0xf]
    %v356 = vld [vmem:[#allocation5 + $0x378] sm:$0xff]
    %v357 = vld [vmem:[#allocation5 + $0x380] sm:$0xf]
    %v358 = vld [vmem:[#allocation5 + $0x384] sm:$0xff]
    %v359 = vld [vmem:[#allocation5 + $0x38c] sm:$0xf]
    %v360 = vld [vmem:[#allocation5 + $0x390] sm:$0xff]
    %v361 = vld [vmem:[#allocation5 + $0x398] sm:$0xf]
    %v362 = vld [vmem:[#allocation5 + $0x39c] sm:$0xff]
    %v363 = vld [vmem:[#allocation5 + $0x3a4] sm:$0xf]
    %v364 = vld [vmem:[#allocation5 + $0x3a8] sm:$0xff]
    %v365 = vld [vmem:[#allocation5 + $0x3b0] sm:$0xf]
    %v366 = vld [vmem:[#allocation5 + $0x3b4] sm:$0xff]
    %v367 = vld [vmem:[#allocation5 + $0x3bc] sm:$0xf]
    %v368 = vld [vmem:[#allocation5 + $0x3c0] sm:$0xff]
    %v369 = vld [vmem:[#allocation5 + $0x3c8] sm:$0xf]
    %v370 = vld [vmem:[#allocation5 + $0x3cc] sm:$0xff]
    %v371 = vld [vmem:[#allocation5 + $0x3d4] sm:$0xf]
    %v372 = vld [vmem:[#allocation5 + $0x3d8] sm:$0xff]
    %v373 = vld [vmem:[#allocation5 + $0x3e0] sm:$0xf]
    %v374 = vld [vmem:[#allocation5 + $0x3e4] sm:$0xff]
    %v375 = vld [vmem:[#allocation5 + $0x3ec] sm:$0xf]
    %v376 = vld [vmem:[#allocation5 + $0x3f0] sm:$0xff]
    %v377 = vld [vmem:[#allocation5 + $0x3f8] sm:$0xf]
    %v378 = vld [vmem:[#allocation5 + $0x3fc] sm:$0xff]
    %v379 = vld [vmem:[#allocation5 + $0x404] sm:$0xf]
    %v380 = vld [vmem:[#allocation5 + $0x408] sm:$0xff]
    %v381 = vld [vmem:[#allocation5 + $0x410] sm:$0xf]
    %v382 = vld [vmem:[#allocation5 + $0x414] sm:$0xff]
    %v383 = vld [vmem:[#allocation5 + $0x41c] sm:$0xf]
    %v384 = vld [vmem:[#allocation5 + $0x420] sm:$0xff]
    %v385 = vld [vmem:[#allocation5 + $0x428] sm:$0xf]
    %v386 = vld [vmem:[#allocation5 + $0x42c] sm:$0xff]
    %v387 = vld [vmem:[#allocation5 + $0x434] sm:$0xf]
    %v388 = vld [vmem:[#allocation5 + $0x438] sm:$0xff]
    %v389 = vld [vmem:[#allocation5 + $0x440] sm:$0xf]
    %v390 = vld [vmem:[#allocation5 + $0x444] sm:$0xff]
    %v391 = vld [vmem:[#allocation5 + $0x44c] sm:$0xf]
    %v392 = vld [vmem:[#allocation5 + $0x450] sm:$0xff]
    %v393 = vld [vmem:[#allocation5 + $0x458] sm:$0xf]
    %v394 = vld [vmem:[#allocation5 + $0x45c] sm:$0xff]
    %v395 = vld [vmem:[#allocation5 + $0x464] sm:$0xf]
    %v396 = vld [vmem:[#allocation5 + $0x468] sm:$0xff]
    %v397 = vld [vmem:[#allocation5 + $0x470] sm:$0xf]
    %v398 = vld [vmem:[#allocation5 + $0x474] sm:$0xff]
    %v399 = vld [vmem:[#allocation5 + $0x47c] sm:$0xf]
    %v400 = vld [vmem:[#allocation7] sm:$0x7]
    %v402 = vperm.slane %v400, 0
    %v403 = vperm.slane %v400, 1
    %v404 = vperm.slane %v400, 2
    %v432 = vunpack.c.l.b16 %v184
    %v433 = vunpack.c.h.b16 %v184
    %v434 = vunpack.c.l.b16 %v185
    %v435 = vunpack.c.h.b16 %v185
    %v436 = vunpack.c.l.b16 %v186
    %v437 = vunpack.c.h.b16 %v186
    %v438 = vunpack.c.l.b16 %v187
    %v439 = vunpack.c.h.b16 %v187
    %v440 = vunpack.c.l.b16 %v188
    %v441 = vunpack.c.h.b16 %v188
    %v442 = vunpack.c.l.b16 %v189
    %v443 = vunpack.c.h.b16 %v189
    %v444 = vunpack.c.l.b16 %v190
    %v445 = vunpack.c.h.b16 %v190
    %v446 = vunpack.c.l.b16 %v191
    %v447 = vunpack.c.h.b16 %v191
    %v448 = vunpack.c.l.b16 %v192
    %v449 = vunpack.c.h.b16 %v192
    %v450 = vunpack.c.l.b16 %v193
    %v451 = vunpack.c.h.b16 %v193
    %v452 = vunpack.c.l.b16 %v194
    %v453 = vunpack.c.h.b16 %v194
    %v454 = vunpack.c.l.b16 %v195
    %v455 = vunpack.c.h.b16 %v195
    %v456 = vunpack.c.l.b16 %v196
    %v457 = vunpack.c.h.b16 %v196
    %v458 = vunpack.c.l.b16 %v197
    %v459 = vunpack.c.h.b16 %v197
    %v460 = vunpack.c.l.b16 %v198
    %v461 = vunpack.c.h.b16 %v198
    %v462 = vunpack.c.l.b16 %v199
    %v463 = vunpack.c.h.b16 %v199
    %v464 = vunpack.c.l.b16 %v200
    %v465 = vunpack.c.h.b16 %v200
    %v466 = vunpack.c.l.b16 %v201
    %v467 = vunpack.c.h.b16 %v201
    %v468 = vunpack.c.l.b16 %v202
    %v469 = vunpack.c.h.b16 %v202
    %v470 = vunpack.c.l.b16 %v203
    %v471 = vunpack.c.h.b16 %v203
    %v472 = vunpack.c.l.b16 %v204
    %v473 = vunpack.c.h.b16 %v204
    %v474 = vunpack.c.l.b16 %v205
    %v475 = vunpack.c.h.b16 %v205
    %v476 = vunpack.c.l.b16 %v206
    %v477 = vunpack.c.h.b16 %v206
    %v478 = vunpack.c.l.b16 %v207
    %v479 = vunpack.c.h.b16 %v207
    %v480 = vpack.c.b16 %v438, %v432
    %v481 = vpack.c.b16 %v439, %v433
    %v482 = vpack.c.b16 %v440, %v434
    %v483 = vpack.c.b16 %v441, %v435
    %v484 = vpack.c.b16 %v442, %v436
    %v485 = vpack.c.b16 %v443, %v437
    %v486 = vpack.c.b16 %v450, %v444
    %v487 = vpack.c.b16 %v451, %v445
    %v488 = vpack.c.b16 %v452, %v446
    %v489 = vpack.c.b16 %v453, %v447
    %v490 = vpack.c.b16 %v454, %v448
    %v491 = vpack.c.b16 %v455, %v449
    %v492 = vpack.c.b16 %v462, %v456
    %v493 = vpack.c.b16 %v463, %v457
    %v494 = vpack.c.b16 %v464, %v458
    %v495 = vpack.c.b16 %v465, %v459
    %v496 = vpack.c.b16 %v466, %v460
    %v497 = vpack.c.b16 %v467, %v461
    %v498 = vpack.c.b16 %v474, %v468
    %v499 = vpack.c.b16 %v475, %v469
    %v500 = vpack.c.b16 %v476, %v470
    %v501 = vpack.c.b16 %v477, %v471
    %v502 = vpack.c.b16 %v478, %v472
    %v503 = vpack.c.b16 %v479, %v473
    %v720 = vunpack.c.l.b16 %v208
    %v721 = vunpack.c.h.b16 %v208
    %v722 = vunpack.c.l.b16 %v209
    %v723 = vunpack.c.l.b16 %v210
    %v724 = vunpack.c.h.b16 %v210
    %v725 = vunpack.c.l.b16 %v211
    %v726 = vunpack.c.l.b16 %v212
    %v727 = vunpack.c.h.b16 %v212
    %v728 = vunpack.c.l.b16 %v213
    %v729 = vunpack.c.l.b16 %v214
    %v730 = vunpack.c.h.b16 %v214
    %v731 = vunpack.c.l.b16 %v215
    %v732 = vunpack.c.l.b16 %v216
    %v733 = vunpack.c.h.b16 %v216
    %v734 = vunpack.c.l.b16 %v217
    %v735 = vunpack.c.l.b16 %v218
    %v736 = vunpack.c.h.b16 %v218
    %v737 = vunpack.c.l.b16 %v219
    %v738 = vunpack.c.l.b16 %v220
    %v739 = vunpack.c.h.b16 %v220
    %v740 = vunpack.c.l.b16 %v221
    %v741 = vunpack.c.l.b16 %v222
    %v742 = vunpack.c.h.b16 %v222
    %v743 = vunpack.c.l.b16 %v223
    %v744 = vunpack.c.l.b16 %v224
    %v745 = vunpack.c.h.b16 %v224
    %v746 = vunpack.c.l.b16 %v225
    %v747 = vunpack.c.l.b16 %v226
    %v748 = vunpack.c.h.b16 %v226
    %v749 = vunpack.c.l.b16 %v227
    %v750 = vunpack.c.l.b16 %v228
    %v751 = vunpack.c.h.b16 %v228
    %v752 = vunpack.c.l.b16 %v229
    %v753 = vunpack.c.l.b16 %v230
    %v754 = vunpack.c.h.b16 %v230
    %v755 = vunpack.c.l.b16 %v231
    %v756 = vunpack.c.l.b16 %v232
    %v757 = vunpack.c.h.b16 %v232
    %v758 = vunpack.c.l.b16 %v233
    %v759 = vunpack.c.l.b16 %v234
    %v760 = vunpack.c.h.b16 %v234
    %v761 = vunpack.c.l.b16 %v235
    %v762 = vunpack.c.l.b16 %v236
    %v763 = vunpack.c.h.b16 %v236
    %v764 = vunpack.c.l.b16 %v237
    %v765 = vunpack.c.l.b16 %v238
    %v766 = vunpack.c.h.b16 %v238
    %v767 = vunpack.c.l.b16 %v239
    %v768 = vunpack.c.l.b16 %v240
    %v769 = vunpack.c.h.b16 %v240
    %v770 = vunpack.c.l.b16 %v241
    %v771 = vunpack.c.l.b16 %v242
    %v772 = vunpack.c.h.b16 %v242
    %v773 = vunpack.c.l.b16 %v243
    %v774 = vunpack.c.l.b16 %v244
    %v775 = vunpack.c.h.b16 %v244
    %v776 = vunpack.c.l.b16 %v245
    %v777 = vunpack.c.l.b16 %v246
    %v778 = vunpack.c.h.b16 %v246
    %v779 = vunpack.c.l.b16 %v247
    %v780 = vunpack.c.l.b16 %v248
    %v781 = vunpack.c.h.b16 %v248
    %v782 = vunpack.c.l.b16 %v249
    %v783 = vunpack.c.l.b16 %v250
    %v784 = vunpack.c.h.b16 %v250
    %v785 = vunpack.c.l.b16 %v251
    %v786 = vunpack.c.l.b16 %v252
    %v787 = vunpack.c.h.b16 %v252
    %v788 = vunpack.c.l.b16 %v253
    %v789 = vunpack.c.l.b16 %v254
    %v790 = vunpack.c.h.b16 %v254
    %v791 = vunpack.c.l.b16 %v255
    %v792 = vunpack.c.l.b16 %v256
    %v793 = vunpack.c.h.b16 %v256
    %v794 = vunpack.c.l.b16 %v257
    %v795 = vunpack.c.l.b16 %v258
    %v796 = vunpack.c.h.b16 %v258
    %v797 = vunpack.c.l.b16 %v259
    %v798 = vunpack.c.l.b16 %v260
    %v799 = vunpack.c.h.b16 %v260
    %v800 = vunpack.c.l.b16 %v261
    %v801 = vunpack.c.l.b16 %v262
    %v802 = vunpack.c.h.b16 %v262
    %v803 = vunpack.c.l.b16 %v263
    %v804 = vunpack.c.l.b16 %v264
    %v805 = vunpack.c.h.b16 %v264
    %v806 = vunpack.c.l.b16 %v265
    %v807 = vunpack.c.l.b16 %v266
    %v808 = vunpack.c.h.b16 %v266
    %v809 = vunpack.c.l.b16 %v267
    %v810 = vunpack.c.l.b16 %v268
    %v811 = vunpack.c.h.b16 %v268
    %v812 = vunpack.c.l.b16 %v269
    %v813 = vunpack.c.l.b16 %v270
    %v814 = vunpack.c.h.b16 %v270
    %v815 = vunpack.c.l.b16 %v271
    %v816 = vunpack.c.l.b16 %v272
    %v817 = vunpack.c.h.b16 %v272
    %v818 = vunpack.c.l.b16 %v273
    %v819 = vunpack.c.l.b16 %v274
    %v820 = vunpack.c.h.b16 %v274
    %v821 = vunpack.c.l.b16 %v275
    %v822 = vunpack.c.l.b16 %v276
    %v823 = vunpack.c.h.b16 %v276
    %v824 = vunpack.c.l.b16 %v277
    %v825 = vunpack.c.l.b16 %v278
    %v826 = vunpack.c.h.b16 %v278
    %v827 = vunpack.c.l.b16 %v279
    %v828 = vunpack.c.l.b16 %v280
    %v829 = vunpack.c.h.b16 %v280
    %v830 = vunpack.c.l.b16 %v281
    %v831 = vunpack.c.l.b16 %v282
    %v832 = vunpack.c.h.b16 %v282
    %v833 = vunpack.c.l.b16 %v283
    %v834 = vunpack.c.l.b16 %v284
    %v835 = vunpack.c.h.b16 %v284
    %v836 = vunpack.c.l.b16 %v285
    %v837 = vunpack.c.l.b16 %v286
    %v838 = vunpack.c.h.b16 %v286
    %v839 = vunpack.c.l.b16 %v287
    %v840 = vunpack.c.l.b16 %v288
    %v841 = vunpack.c.h.b16 %v288
    %v842 = vunpack.c.l.b16 %v289
    %v843 = vunpack.c.l.b16 %v290
    %v844 = vunpack.c.h.b16 %v290
    %v845 = vunpack.c.l.b16 %v291
    %v846 = vunpack.c.l.b16 %v292
    %v847 = vunpack.c.h.b16 %v292
    %v848 = vunpack.c.l.b16 %v293
    %v849 = vunpack.c.l.b16 %v294
    %v850 = vunpack.c.h.b16 %v294
    %v851 = vunpack.c.l.b16 %v295
    %v852 = vunpack.c.l.b16 %v296
    %v853 = vunpack.c.h.b16 %v296
    %v854 = vunpack.c.l.b16 %v297
    %v855 = vunpack.c.l.b16 %v298
    %v856 = vunpack.c.h.b16 %v298
    %v857 = vunpack.c.l.b16 %v299
    %v858 = vunpack.c.l.b16 %v300
    %v859 = vunpack.c.h.b16 %v300
    %v860 = vunpack.c.l.b16 %v301
    %v861 = vunpack.c.l.b16 %v302
    %v862 = vunpack.c.h.b16 %v302
    %v863 = vunpack.c.l.b16 %v303
    %v864 = vunpack.c.l.b16 %v304
    %v865 = vunpack.c.h.b16 %v304
    %v866 = vunpack.c.l.b16 %v305
    %v867 = vunpack.c.l.b16 %v306
    %v868 = vunpack.c.h.b16 %v306
    %v869 = vunpack.c.l.b16 %v307
    %v870 = vunpack.c.l.b16 %v308
    %v871 = vunpack.c.h.b16 %v308
    %v872 = vunpack.c.l.b16 %v309
    %v873 = vunpack.c.l.b16 %v310
    %v874 = vunpack.c.h.b16 %v310
    %v875 = vunpack.c.l.b16 %v311
    %v876 = vunpack.c.l.b16 %v312
    %v877 = vunpack.c.h.b16 %v312
    %v878 = vunpack.c.l.b16 %v313
    %v879 = vunpack.c.l.b16 %v314
    %v880 = vunpack.c.h.b16 %v314
    %v881 = vunpack.c.l.b16 %v315
    %v882 = vunpack.c.l.b16 %v316
    %v883 = vunpack.c.h.b16 %v316
    %v884 = vunpack.c.l.b16 %v317
    %v885 = vunpack.c.l.b16 %v318
    %v886 = vunpack.c.h.b16 %v318
    %v887 = vunpack.c.l.b16 %v319
    %v888 = vunpack.c.l.b16 %v320
    %v889 = vunpack.c.h.b16 %v320
    %v890 = vunpack.c.l.b16 %v321
    %v891 = vunpack.c.l.b16 %v322
    %v892 = vunpack.c.h.b16 %v322
    %v893 = vunpack.c.l.b16 %v323
    %v894 = vunpack.c.l.b16 %v324
    %v895 = vunpack.c.h.b16 %v324
    %v896 = vunpack.c.l.b16 %v325
    %v897 = vunpack.c.l.b16 %v326
    %v898 = vunpack.c.h.b16 %v326
    %v899 = vunpack.c.l.b16 %v327
    %v900 = vunpack.c.l.b16 %v328
    %v901 = vunpack.c.h.b16 %v328
    %v902 = vunpack.c.l.b16 %v329
    %v903 = vunpack.c.l.b16 %v330
    %v904 = vunpack.c.h.b16 %v330
    %v905 = vunpack.c.l.b16 %v331
    %v906 = vunpack.c.l.b16 %v332
    %v907 = vunpack.c.h.b16 %v332
    %v908 = vunpack.c.l.b16 %v333
    %v909 = vunpack.c.l.b16 %v334
    %v910 = vunpack.c.h.b16 %v334
    %v911 = vunpack.c.l.b16 %v335
    %v912 = vunpack.c.l.b16 %v336
    %v913 = vunpack.c.h.b16 %v336
    %v914 = vunpack.c.l.b16 %v337
    %v915 = vunpack.c.l.b16 %v338
    %v916 = vunpack.c.h.b16 %v338
    %v917 = vunpack.c.l.b16 %v339
    %v918 = vunpack.c.l.b16 %v340
    %v919 = vunpack.c.h.b16 %v340
    %v920 = vunpack.c.l.b16 %v341
    %v921 = vunpack.c.l.b16 %v342
    %v922 = vunpack.c.h.b16 %v342
    %v923 = vunpack.c.l.b16 %v343
    %v924 = vunpack.c.l.b16 %v344
    %v925 = vunpack.c.h.b16 %v344
    %v926 = vunpack.c.l.b16 %v345
    %v927 = vunpack.c.l.b16 %v346
    %v928 = vunpack.c.h.b16 %v346
    %v929 = vunpack.c.l.b16 %v347
    %v930 = vunpack.c.l.b16 %v348
    %v931 = vunpack.c.h.b16 %v348
    %v932 = vunpack.c.l.b16 %v349
    %v933 = vunpack.c.l.b16 %v350
    %v934 = vunpack.c.h.b16 %v350
    %v935 = vunpack.c.l.b16 %v351
    %v936 = vunpack.c.l.b16 %v352
    %v937 = vunpack.c.h.b16 %v352
    %v938 = vunpack.c.l.b16 %v353
    %v939 = vunpack.c.l.b16 %v354
    %v940 = vunpack.c.h.b16 %v354
    %v941 = vunpack.c.l.b16 %v355
    %v942 = vunpack.c.l.b16 %v356
    %v943 = vunpack.c.h.b16 %v356
    %v944 = vunpack.c.l.b16 %v357
    %v945 = vunpack.c.l.b16 %v358
    %v946 = vunpack.c.h.b16 %v358
    %v947 = vunpack.c.l.b16 %v359
    %v948 = vunpack.c.l.b16 %v360
    %v949 = vunpack.c.h.b16 %v360
    %v950 = vunpack.c.l.b16 %v361
    %v951 = vunpack.c.l.b16 %v362
    %v952 = vunpack.c.h.b16 %v362
    %v953 = vunpack.c.l.b16 %v363
    %v954 = vunpack.c.l.b16 %v364
    %v955 = vunpack.c.h.b16 %v364
    %v956 = vunpack.c.l.b16 %v365
    %v957 = vunpack.c.l.b16 %v366
    %v958 = vunpack.c.h.b16 %v366
    %v959 = vunpack.c.l.b16 %v367
    %v960 = vunpack.c.l.b16 %v368
    %v961 = vunpack.c.h.b16 %v368
    %v962 = vunpack.c.l.b16 %v369
    %v963 = vunpack.c.l.b16 %v370
    %v964 = vunpack.c.h.b16 %v370
    %v965 = vunpack.c.l.b16 %v371
    %v966 = vunpack.c.l.b16 %v372
    %v967 = vunpack.c.h.b16 %v372
    %v968 = vunpack.c.l.b16 %v373
    %v969 = vunpack.c.l.b16 %v374
    %v970 = vunpack.c.h.b16 %v374
    %v971 = vunpack.c.l.b16 %v375
    %v972 = vunpack.c.l.b16 %v376
    %v973 = vunpack.c.h.b16 %v376
    %v974 = vunpack.c.l.b16 %v377
    %v975 = vunpack.c.l.b16 %v378
    %v976 = vunpack.c.h.b16 %v378
    %v977 = vunpack.c.l.b16 %v379
    %v978 = vunpack.c.l.b16 %v380
    %v979 = vunpack.c.h.b16 %v380
    %v980 = vunpack.c.l.b16 %v381
    %v981 = vunpack.c.l.b16 %v382
    %v982 = vunpack.c.h.b16 %v382
    %v983 = vunpack.c.l.b16 %v383
    %v984 = vunpack.c.l.b16 %v384
    %v985 = vunpack.c.h.b16 %v384
    %v986 = vunpack.c.l.b16 %v385
    %v987 = vunpack.c.l.b16 %v386
    %v988 = vunpack.c.h.b16 %v386
    %v989 = vunpack.c.l.b16 %v387
    %v990 = vunpack.c.l.b16 %v388
    %v991 = vunpack.c.h.b16 %v388
    %v992 = vunpack.c.l.b16 %v389
    %v993 = vunpack.c.l.b16 %v390
    %v994 = vunpack.c.h.b16 %v390
    %v995 = vunpack.c.l.b16 %v391
    %v996 = vunpack.c.l.b16 %v392
    %v997 = vunpack.c.h.b16 %v392
    %v998 = vunpack.c.l.b16 %v393
    %v999 = vunpack.c.l.b16 %v394
    %v1000 = vunpack.c.h.b16 %v394
    %v1001 = vunpack.c.l.b16 %v395
    %v1002 = vunpack.c.l.b16 %v396
    %v1003 = vunpack.c.h.b16 %v396
    %v1004 = vunpack.c.l.b16 %v397
    %v1005 = vunpack.c.l.b16 %v398
    %v1006 = vunpack.c.h.b16 %v398
    %v1007 = vunpack.c.l.b16 %v399
    %v1008 = vpack.c.b16 %v723, %v720
    %v1009 = vpack.c.b16 %v724, %v721
    %v1010 = vpack.c.b16 %v725, %v722
    %v1011 = vpack.c.b16 %v729, %v726
    %v1012 = vpack.c.b16 %v730, %v727
    %v1013 = vpack.c.b16 %v731, %v728
    %v1014 = vpack.c.b16 %v735, %v732
    %v1015 = vpack.c.b16 %v736, %v733
    %v1016 = vpack.c.b16 %v737, %v734
    %v1017 = vpack.c.b16 %v741, %v738
    %v1018 = vpack.c.b16 %v742, %v739
    %v1019 = vpack.c.b16 %v743, %v740
    %v1020 = vpack.c.b16 %v747, %v744
    %v1021 = vpack.c.b16 %v748, %v745
    %v1022 = vpack.c.b16 %v749, %v746
    %v1023 = vpack.c.b16 %v753, %v750
    %v1024 = vpack.c.b16 %v754, %v751
    %v1025 = vpack.c.b16 %v755, %v752
    %v1026 = vpack.c.b16 %v759, %v756
    %v1027 = vpack.c.b16 %v760, %v757
    %v1028 = vpack.c.b16 %v761, %v758
    %v1029 = vpack.c.b16 %v765, %v762
    %v1030 = vpack.c.b16 %v766, %v763
    %v1031 = vpack.c.b16 %v767, %v764
    %v1032 = vpack.c.b16 %v771, %v768
    %v1033 = vpack.c.b16 %v772, %v769
    %v1034 = vpack.c.b16 %v773, %v770
    %v1035 = vpack.c.b16 %v777, %v774
    %v1036 = vpack.c.b16 %v778, %v775
    %v1037 = vpack.c.b16 %v779, %v776
    %v1038 = vpack.c.b16 %v783, %v780
    %v1039 = vpack.c.b16 %v784, %v781
    %v1040 = vpack.c.b16 %v785, %v782
    %v1041 = vpack.c.b16 %v789, %v786
    %v1042 = vpack.c.b16 %v790, %v787
    %v1043 = vpack.c.b16 %v791, %v788
    %v1044 = vpack.c.b16 %v795, %v792
    %v1045 = vpack.c.b16 %v796, %v793
    %v1046 = vpack.c.b16 %v797, %v794
    %v1047 = vpack.c.b16 %v801, %v798
    %v1048 = vpack.c.b16 %v802, %v799
    %v1049 = vpack.c.b16 %v803, %v800
    %v1050 = vpack.c.b16 %v807, %v804
    %v1051 = vpack.c.b16 %v808, %v805
    %v1052 = vpack.c.b16 %v809, %v806
    %v1053 = vpack.c.b16 %v813, %v810
    %v1054 = vpack.c.b16 %v814, %v811
    %v1055 = vpack.c.b16 %v815, %v812
    %v1056 = vpack.c.b16 %v819, %v816
    %v1057 = vpack.c.b16 %v820, %v817
    %v1058 = vpack.c.b16 %v821, %v818
    %v1059 = vpack.c.b16 %v825, %v822
    %v1060 = vpack.c.b16 %v826, %v823
    %v1061 = vpack.c.b16 %v827, %v824
    %v1062 = vpack.c.b16 %v831, %v828
    %v1063 = vpack.c.b16 %v832, %v829
    %v1064 = vpack.c.b16 %v833, %v830
    %v1065 = vpack.c.b16 %v837, %v834
    %v1066 = vpack.c.b16 %v838, %v835
    %v1067 = vpack.c.b16 %v839, %v836
    %v1068 = vpack.c.b16 %v843, %v840
    %v1069 = vpack.c.b16 %v844, %v841
    %v1070 = vpack.c.b16 %v845, %v842
    %v1071 = vpack.c.b16 %v849, %v846
    %v1072 = vpack.c.b16 %v850, %v847
    %v1073 = vpack.c.b16 %v851, %v848
    %v1074 = vpack.c.b16 %v855, %v852
    %v1075 = vpack.c.b16 %v856, %v853
    %v1076 = vpack.c.b16 %v857, %v854
    %v1077 = vpack.c.b16 %v861, %v858
    %v1078 = vpack.c.b16 %v862, %v859
    %v1079 = vpack.c.b16 %v863, %v860
    %v1080 = vpack.c.b16 %v867, %v864
    %v1081 = vpack.c.b16 %v868, %v865
    %v1082 = vpack.c.b16 %v869, %v866
    %v1083 = vpack.c.b16 %v873, %v870
    %v1084 = vpack.c.b16 %v874, %v871
    %v1085 = vpack.c.b16 %v875, %v872
    %v1086 = vpack.c.b16 %v879, %v876
    %v1087 = vpack.c.b16 %v880, %v877
    %v1088 = vpack.c.b16 %v881, %v878
    %v1089 = vpack.c.b16 %v885, %v882
    %v1090 = vpack.c.b16 %v886, %v883
    %v1091 = vpack.c.b16 %v887, %v884
    %v1092 = vpack.c.b16 %v891, %v888
    %v1093 = vpack.c.b16 %v892, %v889
    %v1094 = vpack.c.b16 %v893, %v890
    %v1095 = vpack.c.b16 %v897, %v894
    %v1096 = vpack.c.b16 %v898, %v895
    %v1097 = vpack.c.b16 %v899, %v896
    %v1098 = vpack.c.b16 %v903, %v900
    %v1099 = vpack.c.b16 %v904, %v901
    %v1100 = vpack.c.b16 %v905, %v902
    %v1101 = vpack.c.b16 %v909, %v906
    %v1102 = vpack.c.b16 %v910, %v907
    %v1103 = vpack.c.b16 %v911, %v908
    %v1104 = vpack.c.b16 %v915, %v912
    %v1105 = vpack.c.b16 %v916, %v913
    %v1106 = vpack.c.b16 %v917, %v914
    %v1107 = vpack.c.b16 %v921, %v918
    %v1108 = vpack.c.b16 %v922, %v919
    %v1109 = vpack.c.b16 %v923, %v920
    %v1110 = vpack.c.b16 %v927, %v924
    %v1111 = vpack.c.b16 %v928, %v925
    %v1112 = vpack.c.b16 %v929, %v926
    %v1113 = vpack.c.b16 %v933, %v930
    %v1114 = vpack.c.b16 %v934, %v931
    %v1115 = vpack.c.b16 %v935, %v932
    %v1116 = vpack.c.b16 %v939, %v936
    %v1117 = vpack.c.b16 %v940, %v937
    %v1118 = vpack.c.b16 %v941, %v938
    %v1119 = vpack.c.b16 %v945, %v942
    %v1120 = vpack.c.b16 %v946, %v943
    %v1121 = vpack.c.b16 %v947, %v944
    %v1122 = vpack.c.b16 %v951, %v948
    %v1123 = vpack.c.b16 %v952, %v949
    %v1124 = vpack.c.b16 %v953, %v950
    %v1125 = vpack.c.b16 %v957, %v954
    %v1126 = vpack.c.b16 %v958, %v955
    %v1127 = vpack.c.b16 %v959, %v956
    %v1128 = vpack.c.b16 %v963, %v960
    %v1129 = vpack.c.b16 %v964, %v961
    %v1130 = vpack.c.b16 %v965, %v962
    %v1131 = vpack.c.b16 %v969, %v966
    %v1132 = vpack.c.b16 %v970, %v967
    %v1133 = vpack.c.b16 %v971, %v968
    %v1134 = vpack.c.b16 %v975, %v972
    %v1135 = vpack.c.b16 %v976, %v973
    %v1136 = vpack.c.b16 %v977, %v974
    %v1137 = vpack.c.b16 %v981, %v978
    %v1138 = vpack.c.b16 %v982, %v979
    %v1139 = vpack.c.b16 %v983, %v980
    %v1140 = vpack.c.b16 %v987, %v984
    %v1141 = vpack.c.b16 %v988, %v985
    %v1142 = vpack.c.b16 %v989, %v986
    %v1143 = vpack.c.b16 %v993, %v990
    %v1144 = vpack.c.b16 %v994, %v991
    %v1145 = vpack.c.b16 %v995, %v992
    %v1146 = vpack.c.b16 %v999, %v996
    %v1147 = vpack.c.b16 %v1000, %v997
    %v1148 = vpack.c.b16 %v1001, %v998
    %v1149 = vpack.c.b16 %v1005, %v1002
    %v1150 = vpack.c.b16 %v1006, %v1003
    %v1151 = vpack.c.b16 %v1007, %v1004
    %1296 = vmatpush.bf16.msra.mxu0 %v1029
    %1297 = vmatpush.bf16.msra.mxu0 %v1026
    %1298 = vmatpush.bf16.msra.mxu0 %v1023
    %1299 = vmatpush.bf16.msra.mxu0 %v1020
    %1300 = vmatpush.bf16.msra.mxu0 %v1017
    %1301 = vmatpush.bf16.msra.mxu0 %v1014
    %1302 = vmatpush.bf16.msra.mxu0 %v1011
    %1303 = vmatpush.bf16.msra.mxu0 %v1008
    %1304 = vmatmul.bf16.gmra.mxu0 %v480
    %v1305 = vpop.f32.mrf.mxu0
    %v1306 = vadd.f32 %v402, %v1305
    %v1307 = vpop.f32.mrf.mxu0
    %v1308 = vadd.f32 %v402, %v1307
    %1309 = vmatmul.bf16.gmra.mxu0 %v486
    %v1310 = vpop.f32.mrf.mxu0
    %v1311 = vadd.f32 %v402, %v1310
    %v1312 = vpop.f32.mrf.mxu0
    %v1313 = vadd.f32 %v402, %v1312
    %1314 = vmatmul.bf16.gmra.mxu0 %v492
    %v1315 = vpop.f32.mrf.mxu0
    %v1316 = vadd.f32 %v402, %v1315
    %v1317 = vpop.f32.mrf.mxu0
    %v1318 = vadd.f32 %v402, %v1317
    %1319 = vmatmul.bf16.gmra.mxu0 %v498
    %v1320 = vpop.f32.mrf.mxu0
    %v1321 = vadd.f32 %v402, %v1320
    %v1322 = vpop.f32.mrf.mxu0
    %v1323 = vadd.f32 %v402, %v1322
    %1324 = vdwg.mxu0
    %1325 = vmatpush.bf16.msra.mxu0 %v1053
    %1326 = vmatpush.bf16.msra.mxu0 %v1050
    %1327 = vmatpush.bf16.msra.mxu0 %v1047
    %1328 = vmatpush.bf16.msra.mxu0 %v1044
    %1329 = vmatpush.bf16.msra.mxu0 %v1041
    %1330 = vmatpush.bf16.msra.mxu0 %v1038
    %1331 = vmatpush.bf16.msra.mxu0 %v1035
    %1332 = vmatpush.bf16.msra.mxu0 %v1032
    %1333 = vmatmul.bf16.gmra.mxu0 %v481
    %v1334 = vpop.f32.mrf.mxu0
    %v1335 = vadd.f32 %v1306, %v1334
    %v1336 = vpop.f32.mrf.mxu0
    %v1337 = vadd.f32 %v1308, %v1336
    %1338 = vmatmul.bf16.gmra.mxu0 %v487
    %v1339 = vpop.f32.mrf.mxu0
    %v1340 = vadd.f32 %v1311, %v1339
    %v1341 = vpop.f32.mrf.mxu0
    %v1342 = vadd.f32 %v1313, %v1341
    %1343 = vmatmul.bf16.gmra.mxu0 %v493
    %v1344 = vpop.f32.mrf.mxu0
    %v1345 = vadd.f32 %v1316, %v1344
    %v1346 = vpop.f32.mrf.mxu0
    %v1347 = vadd.f32 %v1318, %v1346
    %1348 = vmatmul.bf16.gmra.mxu0 %v499
    %v1349 = vpop.f32.mrf.mxu0
    %v1350 = vadd.f32 %v1321, %v1349
    %v1351 = vpop.f32.mrf.mxu0
    %v1352 = vadd.f32 %v1323, %v1351
    %1353 = vdwg.mxu0
    %1354 = vmatpush.bf16.msra.mxu0 %v1077
    %1355 = vmatpush.bf16.msra.mxu0 %v1074
    %1356 = vmatpush.bf16.msra.mxu0 %v1071
    %1357 = vmatpush.bf16.msra.mxu0 %v1068
    %1358 = vmatpush.bf16.msra.mxu0 %v1065
    %1359 = vmatpush.bf16.msra.mxu0 %v1062
    %1360 = vmatpush.bf16.msra.mxu0 %v1059
    %1361 = vmatpush.bf16.msra.mxu0 %v1056
    %1362 = vmatmul.bf16.gmra.mxu0 %v482
    %v1363 = vpop.f32.mrf.mxu0
    %v1364 = vadd.f32 %v1335, %v1363
    %v1365 = vpop.f32.mrf.mxu0
    %v1366 = vadd.f32 %v1337, %v1365
    %1367 = vmatmul.bf16.gmra.mxu0 %v488
    %v1368 = vpop.f32.mrf.mxu0
    %v1369 = vadd.f32 %v1340, %v1368
    %v1370 = vpop.f32.mrf.mxu0
    %v1371 = vadd.f32 %v1342, %v1370
    %1372 = vmatmul.bf16.gmra.mxu0 %v494
    %v1373 = vpop.f32.mrf.mxu0
    %v1374 = vadd.f32 %v1345, %v1373
    %v1375 = vpop.f32.mrf.mxu0
    %v1376 = vadd.f32 %v1347, %v1375
    %1377 = vmatmul.bf16.gmra.mxu0 %v500
    %v1378 = vpop.f32.mrf.mxu0
    %v1379 = vadd.f32 %v1350, %v1378
    %v1380 = vpop.f32.mrf.mxu0
    %v1381 = vadd.f32 %v1352, %v1380
    %1382 = vdwg.mxu0
    %1383 = vmatpush.bf16.msra.mxu0 %v1101
    %1384 = vmatpush.bf16.msra.mxu0 %v1098
    %1385 = vmatpush.bf16.msra.mxu0 %v1095
    %1386 = vmatpush.bf16.msra.mxu0 %v1092
    %1387 = vmatpush.bf16.msra.mxu0 %v1089
    %1388 = vmatpush.bf16.msra.mxu0 %v1086
    %1389 = vmatpush.bf16.msra.mxu0 %v1083
    %1390 = vmatpush.bf16.msra.mxu0 %v1080
    %1391 = vmatmul.bf16.gmra.mxu0 %v483
    %v1392 = vpop.f32.mrf.mxu0
    %v1393 = vadd.f32 %v1364, %v1392
    %v1394 = vpop.f32.mrf.mxu0
    %v1395 = vadd.f32 %v1366, %v1394
    %1396 = vmatmul.bf16.gmra.mxu0 %v489
    %v1397 = vpop.f32.mrf.mxu0
    %v1398 = vadd.f32 %v1369, %v1397
    %v1399 = vpop.f32.mrf.mxu0
    %v1400 = vadd.f32 %v1371, %v1399
    %1401 = vmatmul.bf16.gmra.mxu0 %v495
    %v1402 = vpop.f32.mrf.mxu0
    %v1403 = vadd.f32 %v1374, %v1402
    %v1404 = vpop.f32.mrf.mxu0
    %v1405 = vadd.f32 %v1376, %v1404
    %1406 = vmatmul.bf16.gmra.mxu0 %v501
    %v1407 = vpop.f32.mrf.mxu0
    %v1408 = vadd.f32 %v1379, %v1407
    %v1409 = vpop.f32.mrf.mxu0
    %v1410 = vadd.f32 %v1381, %v1409
    %1411 = vdwg.mxu0
    %1412 = vmatpush.bf16.msra.mxu0 %v1125
    %1413 = vmatpush.bf16.msra.mxu0 %v1122
    %1414 = vmatpush.bf16.msra.mxu0 %v1119
    %1415 = vmatpush.bf16.msra.mxu0 %v1116
    %1416 = vmatpush.bf16.msra.mxu0 %v1113
    %1417 = vmatpush.bf16.msra.mxu0 %v1110
    %1418 = vmatpush.bf16.msra.mxu0 %v1107
    %1419 = vmatpush.bf16.msra.mxu0 %v1104
    %1420 = vmatmul.bf16.gmra.mxu0 %v484
    %v1421 = vpop.f32.mrf.mxu0
    %v1422 = vadd.f32 %v1393, %v1421
    %v1423 = vpop.f32.mrf.mxu0
    %v1424 = vadd.f32 %v1395, %v1423
    %1425 = vmatmul.bf16.gmra.mxu0 %v490
    %v1426 = vpop.f32.mrf.mxu0
    %v1427 = vadd.f32 %v1398, %v1426
    %v1428 = vpop.f32.mrf.mxu0
    %v1429 = vadd.f32 %v1400, %v1428
    %1430 = vmatmul.bf16.gmra.mxu0 %v496
    %v1431 = vpop.f32.mrf.mxu0
    %v1432 = vadd.f32 %v1403, %v1431
    %v1433 = vpop.f32.mrf.mxu0
    %v1434 = vadd.f32 %v1405, %v1433
    %1435 = vmatmul.bf16.gmra.mxu0 %v502
    %v1436 = vpop.f32.mrf.mxu0
    %v1437 = vadd.f32 %v1408, %v1436
    %v1438 = vpop.f32.mrf.mxu0
    %v1439 = vadd.f32 %v1410, %v1438
    %1440 = vdwg.mxu0
    %1441 = vmatpush.bf16.msra.mxu0 %v1149
    %1442 = vmatpush.bf16.msra.mxu0 %v1146
    %1443 = vmatpush.bf16.msra.mxu0 %v1143
    %1444 = vmatpush.bf16.msra.mxu0 %v1140
    %1445 = vmatpush.bf16.msra.mxu0 %v1137
    %1446 = vmatpush.bf16.msra.mxu0 %v1134
    %1447 = vmatpush.bf16.msra.mxu0 %v1131
    %1448 = vmatpush.bf16.msra.mxu0 %v1128
    %1449 = vmatmul.bf16.gmra.mxu0 %v485
    %v1450 = vpop.f32.mrf.mxu0
    %v1451 = vadd.f32 %v1422, %v1450
    %v1452 = vpop.f32.mrf.mxu0
    %v1453 = vadd.f32 %v1424, %v1452
    %1454 = vmatmul.bf16.gmra.mxu0 %v491
    %v1455 = vpop.f32.mrf.mxu0
    %v1456 = vadd.f32 %v1427, %v1455
    %v1457 = vpop.f32.mrf.mxu0
    %v1458 = vadd.f32 %v1429, %v1457
    %1459 = vmatmul.bf16.gmra.mxu0 %v497
    %v1460 = vpop.f32.mrf.mxu0
    %v1461 = vadd.f32 %v1432, %v1460
    %v1462 = vpop.f32.mrf.mxu0
    %v1463 = vadd.f32 %v1434, %v1462
    %1464 = vmatmul.bf16.gmra.mxu0 %v503
    %v1465 = vpop.f32.mrf.mxu0
    %v1466 = vadd.f32 %v1437, %v1465
    %v1467 = vpop.f32.mrf.mxu0
    %v1468 = vadd.f32 %v1439, %v1467
    %1469 = vdwg.mxu0
    %1470 = vmatpush.bf16.msra.mxu0 %v1030
    %1471 = vmatpush.bf16.msra.mxu0 %v1027
    %1472 = vmatpush.bf16.msra.mxu0 %v1024
    %1473 = vmatpush.bf16.msra.mxu0 %v1021
    %1474 = vmatpush.bf16.msra.mxu0 %v1018
    %1475 = vmatpush.bf16.msra.mxu0 %v1015
    %1476 = vmatpush.bf16.msra.mxu0 %v1012
    %1477 = vmatpush.bf16.msra.mxu0 %v1009
    %1478 = vmatmul.bf16.gmra.mxu0 %v480
    %v1479 = vpop.f32.mrf.mxu0
    %v1480 = vadd.f32 %v403, %v1479
    %v1481 = vpop.f32.mrf.mxu0
    %v1482 = vadd.f32 %v403, %v1481
    %1483 = vmatmul.bf16.gmra.mxu0 %v486
    %v1484 = vpop.f32.mrf.mxu0
    %v1485 = vadd.f32 %v403, %v1484
    %v1486 = vpop.f32.mrf.mxu0
    %v1487 = vadd.f32 %v403, %v1486
    %1488 = vmatmul.bf16.gmra.mxu0 %v492
    %v1489 = vpop.f32.mrf.mxu0
    %v1490 = vadd.f32 %v403, %v1489
    %v1491 = vpop.f32.mrf.mxu0
    %v1492 = vadd.f32 %v403, %v1491
    %1493 = vmatmul.bf16.gmra.mxu0 %v498
    %v1494 = vpop.f32.mrf.mxu0
    %v1495 = vadd.f32 %v403, %v1494
    %v1496 = vpop.f32.mrf.mxu0
    %v1497 = vadd.f32 %v403, %v1496
    %1498 = vdwg.mxu0
    %1499 = vmatpush.bf16.msra.mxu0 %v1054
    %1500 = vmatpush.bf16.msra.mxu0 %v1051
    %1501 = vmatpush.bf16.msra.mxu0 %v1048
    %1502 = vmatpush.bf16.msra.mxu0 %v1045
    %1503 = vmatpush.bf16.msra.mxu0 %v1042
    %1504 = vmatpush.bf16.msra.mxu0 %v1039
    %1505 = vmatpush.bf16.msra.mxu0 %v1036
    %1506 = vmatpush.bf16.msra.mxu0 %v1033
    %1507 = vmatmul.bf16.gmra.mxu0 %v481
    %v1508 = vpop.f32.mrf.mxu0
    %v1509 = vadd.f32 %v1480, %v1508
    %v1510 = vpop.f32.mrf.mxu0
    %v1511 = vadd.f32 %v1482, %v1510
    %1512 = vmatmul.bf16.gmra.mxu0 %v487
    %v1513 = vpop.f32.mrf.mxu0
    %v1514 = vadd.f32 %v1485, %v1513
    %v1515 = vpop.f32.mrf.mxu0
    %v1516 = vadd.f32 %v1487, %v1515
    %1517 = vmatmul.bf16.gmra.mxu0 %v493
    %v1518 = vpop.f32.mrf.mxu0
    %v1519 = vadd.f32 %v1490, %v1518
    %v1520 = vpop.f32.mrf.mxu0
    %v1521 = vadd.f32 %v1492, %v1520
    %1522 = vmatmul.bf16.gmra.mxu0 %v499
    %v1523 = vpop.f32.mrf.mxu0
    %v1524 = vadd.f32 %v1495, %v1523
    %v1525 = vpop.f32.mrf.mxu0
    %v1526 = vadd.f32 %v1497, %v1525
    %1527 = vdwg.mxu0
    %1528 = vmatpush.bf16.msra.mxu0 %v1078
    %1529 = vmatpush.bf16.msra.mxu0 %v1075
    %1530 = vmatpush.bf16.msra.mxu0 %v1072
    %1531 = vmatpush.bf16.msra.mxu0 %v1069
    %1532 = vmatpush.bf16.msra.mxu0 %v1066
    %1533 = vmatpush.bf16.msra.mxu0 %v1063
    %1534 = vmatpush.bf16.msra.mxu0 %v1060
    %1535 = vmatpush.bf16.msra.mxu0 %v1057
    %1536 = vmatmul.bf16.gmra.mxu0 %v482
    %v1537 = vpop.f32.mrf.mxu0
    %v1538 = vadd.f32 %v1509, %v1537
    %v1539 = vpop.f32.mrf.mxu0
    %v1540 = vadd.f32 %v1511, %v1539
    %1541 = vmatmul.bf16.gmra.mxu0 %v488
    %v1542 = vpop.f32.mrf.mxu0
    %v1543 = vadd.f32 %v1514, %v1542
    %v1544 = vpop.f32.mrf.mxu0
    %v1545 = vadd.f32 %v1516, %v1544
    %1546 = vmatmul.bf16.gmra.mxu0 %v494
    %v1547 = vpop.f32.mrf.mxu0
    %v1548 = vadd.f32 %v1519, %v1547
    %v1549 = vpop.f32.mrf.mxu0
    %v1550 = vadd.f32 %v1521, %v1549
    %1551 = vmatmul.bf16.gmra.mxu0 %v500
    %v1552 = vpop.f32.mrf.mxu0
    %v1553 = vadd.f32 %v1524, %v1552
    %v1554 = vpop.f32.mrf.mxu0
    %v1555 = vadd.f32 %v1526, %v1554
    %1556 = vdwg.mxu0
    %1557 = vmatpush.bf16.msra.mxu0 %v1102
    %1558 = vmatpush.bf16.msra.mxu0 %v1099
    %1559 = vmatpush.bf16.msra.mxu0 %v1096
    %1560 = vmatpush.bf16.msra.mxu0 %v1093
    %1561 = vmatpush.bf16.msra.mxu0 %v1090
    %1562 = vmatpush.bf16.msra.mxu0 %v1087
    %1563 = vmatpush.bf16.msra.mxu0 %v1084
    %1564 = vmatpush.bf16.msra.mxu0 %v1081
    %1565 = vmatmul.bf16.gmra.mxu0 %v483
    %v1566 = vpop.f32.mrf.mxu0
    %v1567 = vadd.f32 %v1538, %v1566
    %v1568 = vpop.f32.mrf.mxu0
    %v1569 = vadd.f32 %v1540, %v1568
    %1570 = vmatmul.bf16.gmra.mxu0 %v489
    %v1571 = vpop.f32.mrf.mxu0
    %v1572 = vadd.f32 %v1543, %v1571
    %v1573 = vpop.f32.mrf.mxu0
    %v1574 = vadd.f32 %v1545, %v1573
    %1575 = vmatmul.bf16.gmra.mxu0 %v495
    %v1576 = vpop.f32.mrf.mxu0
    %v1577 = vadd.f32 %v1548, %v1576
    %v1578 = vpop.f32.mrf.mxu0
    %v1579 = vadd.f32 %v1550, %v1578
    %1580 = vmatmul.bf16.gmra.mxu0 %v501
    %v1581 = vpop.f32.mrf.mxu0
    %v1582 = vadd.f32 %v1553, %v1581
    %v1583 = vpop.f32.mrf.mxu0
    %v1584 = vadd.f32 %v1555, %v1583
    %1585 = vdwg.mxu0
    %1586 = vmatpush.bf16.msra.mxu0 %v1126
    %1587 = vmatpush.bf16.msra.mxu0 %v1123
    %1588 = vmatpush.bf16.msra.mxu0 %v1120
    %1589 = vmatpush.bf16.msra.mxu0 %v1117
    %1590 = vmatpush.bf16.msra.mxu0 %v1114
    %1591 = vmatpush.bf16.msra.mxu0 %v1111
    %1592 = vmatpush.bf16.msra.mxu0 %v1108
    %1593 = vmatpush.bf16.msra.mxu0 %v1105
    %1594 = vmatmul.bf16.gmra.mxu0 %v484
    %v1595 = vpop.f32.mrf.mxu0
    %v1596 = vadd.f32 %v1567, %v1595
    %v1597 = vpop.f32.mrf.mxu0
    %v1598 = vadd.f32 %v1569, %v1597
    %1599 = vmatmul.bf16.gmra.mxu0 %v490
    %v1600 = vpop.f32.mrf.mxu0
    %v1601 = vadd.f32 %v1572, %v1600
    %v1602 = vpop.f32.mrf.mxu0
    %v1603 = vadd.f32 %v1574, %v1602
    %1604 = vmatmul.bf16.gmra.mxu0 %v496
    %v1605 = vpop.f32.mrf.mxu0
    %v1606 = vadd.f32 %v1577, %v1605
    %v1607 = vpop.f32.mrf.mxu0
    %v1608 = vadd.f32 %v1579, %v1607
    %1609 = vmatmul.bf16.gmra.mxu0 %v502
    %v1610 = vpop.f32.mrf.mxu0
    %v1611 = vadd.f32 %v1582, %v1610
    %v1612 = vpop.f32.mrf.mxu0
    %v1613 = vadd.f32 %v1584, %v1612
    %1614 = vdwg.mxu0
    %1615 = vmatpush.bf16.msra.mxu0 %v1150
    %1616 = vmatpush.bf16.msra.mxu0 %v1147
    %1617 = vmatpush.bf16.msra.mxu0 %v1144
    %1618 = vmatpush.bf16.msra.mxu0 %v1141
    %1619 = vmatpush.bf16.msra.mxu0 %v1138
    %1620 = vmatpush.bf16.msra.mxu0 %v1135
    %1621 = vmatpush.bf16.msra.mxu0 %v1132
    %1622 = vmatpush.bf16.msra.mxu0 %v1129
    %1623 = vmatmul.bf16.gmra.mxu0 %v485
    %v1624 = vpop.f32.mrf.mxu0
    %v1625 = vadd.f32 %v1596, %v1624
    %v1626 = vpop.f32.mrf.mxu0
    %v1627 = vadd.f32 %v1598, %v1626
    %1628 = vmatmul.bf16.gmra.mxu0 %v491
    %v1629 = vpop.f32.mrf.mxu0
    %v1630 = vadd.f32 %v1601, %v1629
    %v1631 = vpop.f32.mrf.mxu0
    %v1632 = vadd.f32 %v1603, %v1631
    %1633 = vmatmul.bf16.gmra.mxu0 %v497
    %v1634 = vpop.f32.mrf.mxu0
    %v1635 = vadd.f32 %v1606, %v1634
    %v1636 = vpop.f32.mrf.mxu0
    %v1637 = vadd.f32 %v1608, %v1636
    %1638 = vmatmul.bf16.gmra.mxu0 %v503
    %v1639 = vpop.f32.mrf.mxu0
    %v1640 = vadd.f32 %v1611, %v1639
    %v1641 = vpop.f32.mrf.mxu0
    %v1642 = vadd.f32 %v1613, %v1641
    %1643 = vdwg.mxu0
    %1644 = vmatpush.bf16.msra.mxu0 %v1031
    %1645 = vmatpush.bf16.msra.mxu0 %v1028
    %1646 = vmatpush.bf16.msra.mxu0 %v1025
    %1647 = vmatpush.bf16.msra.mxu0 %v1022
    %1648 = vmatpush.bf16.msra.mxu0 %v1019
    %1649 = vmatpush.bf16.msra.mxu0 %v1016
    %1650 = vmatpush.bf16.msra.mxu0 %v1013
    %1651 = vmatpush.bf16.msra.mxu0 %v1010
    %1652 = vmatmul.bf16.gmra.mxu0 %v480
    %v1653 = vpop.f32.mrf.mxu0
    %v1654 = vadd.f32 %v404, %v1653
    %v1655 = vpop.f32.mrf.mxu0
    %v1656 = vadd.f32 %v404, %v1655
    %1657 = vmatmul.bf16.gmra.mxu0 %v486
    %v1658 = vpop.f32.mrf.mxu0
    %v1659 = vadd.f32 %v404, %v1658
    %v1660 = vpop.f32.mrf.mxu0
    %v1661 = vadd.f32 %v404, %v1660
    %1662 = vmatmul.bf16.gmra.mxu0 %v492
    %v1663 = vpop.f32.mrf.mxu0
    %v1664 = vadd.f32 %v404, %v1663
    %v1665 = vpop.f32.mrf.mxu0
    %v1666 = vadd.f32 %v404, %v1665
    %1667 = vmatmul.bf16.gmra.mxu0 %v498
    %v1668 = vpop.f32.mrf.mxu0
    %v1669 = vadd.f32 %v404, %v1668
    %v1670 = vpop.f32.mrf.mxu0
    %v1671 = vadd.f32 %v404, %v1670
    %1672 = vdwg.mxu0
    %1673 = vmatpush.bf16.msra.mxu0 %v1055
    %1674 = vmatpush.bf16.msra.mxu0 %v1052
    %1675 = vmatpush.bf16.msra.mxu0 %v1049
    %1676 = vmatpush.bf16.msra.mxu0 %v1046
    %1677 = vmatpush.bf16.msra.mxu0 %v1043
    %1678 = vmatpush.bf16.msra.mxu0 %v1040
    %1679 = vmatpush.bf16.msra.mxu0 %v1037
    %1680 = vmatpush.bf16.msra.mxu0 %v1034
    %1681 = vmatmul.bf16.gmra.mxu0 %v481
    %v1682 = vpop.f32.mrf.mxu0
    %v1683 = vadd.f32 %v1654, %v1682
    %v1684 = vpop.f32.mrf.mxu0
    %v1685 = vadd.f32 %v1656, %v1684
    %1686 = vmatmul.bf16.gmra.mxu0 %v487
    %v1687 = vpop.f32.mrf.mxu0
    %v1688 = vadd.f32 %v1659, %v1687
    %v1689 = vpop.f32.mrf.mxu0
    %v1690 = vadd.f32 %v1661, %v1689
    %1691 = vmatmul.bf16.gmra.mxu0 %v493
    %v1692 = vpop.f32.mrf.mxu0
    %v1693 = vadd.f32 %v1664, %v1692
    %v1694 = vpop.f32.mrf.mxu0
    %v1695 = vadd.f32 %v1666, %v1694
    %1696 = vmatmul.bf16.gmra.mxu0 %v499
    %v1697 = vpop.f32.mrf.mxu0
    %v1698 = vadd.f32 %v1669, %v1697
    %v1699 = vpop.f32.mrf.mxu0
    %v1700 = vadd.f32 %v1671, %v1699
    %1701 = vdwg.mxu0
    %1702 = vmatpush.bf16.msra.mxu0 %v1079
    %1703 = vmatpush.bf16.msra.mxu0 %v1076
    %1704 = vmatpush.bf16.msra.mxu0 %v1073
    %1705 = vmatpush.bf16.msra.mxu0 %v1070
    %1706 = vmatpush.bf16.msra.mxu0 %v1067
    %1707 = vmatpush.bf16.msra.mxu0 %v1064
    %1708 = vmatpush.bf16.msra.mxu0 %v1061
    %1709 = vmatpush.bf16.msra.mxu0 %v1058
    %1710 = vmatmul.bf16.gmra.mxu0 %v482
    %v1711 = vpop.f32.mrf.mxu0
    %v1712 = vadd.f32 %v1683, %v1711
    %v1713 = vpop.f32.mrf.mxu0
    %v1714 = vadd.f32 %v1685, %v1713
    %1715 = vmatmul.bf16.gmra.mxu0 %v488
    %v1716 = vpop.f32.mrf.mxu0
    %v1717 = vadd.f32 %v1688, %v1716
    %v1718 = vpop.f32.mrf.mxu0
    %v1719 = vadd.f32 %v1690, %v1718
    %1720 = vmatmul.bf16.gmra.mxu0 %v494
    %v1721 = vpop.f32.mrf.mxu0
    %v1722 = vadd.f32 %v1693, %v1721
    %v1723 = vpop.f32.mrf.mxu0
    %v1724 = vadd.f32 %v1695, %v1723
    %1725 = vmatmul.bf16.gmra.mxu0 %v500
    %v1726 = vpop.f32.mrf.mxu0
    %v1727 = vadd.f32 %v1698, %v1726
    %v1728 = vpop.f32.mrf.mxu0
    %v1729 = vadd.f32 %v1700, %v1728
    %1730 = vdwg.mxu0
    %1731 = vmatpush.bf16.msra.mxu0 %v1103
    %1732 = vmatpush.bf16.msra.mxu0 %v1100
    %1733 = vmatpush.bf16.msra.mxu0 %v1097
    %1734 = vmatpush.bf16.msra.mxu0 %v1094
    %1735 = vmatpush.bf16.msra.mxu0 %v1091
    %1736 = vmatpush.bf16.msra.mxu0 %v1088
    %1737 = vmatpush.bf16.msra.mxu0 %v1085
    %1738 = vmatpush.bf16.msra.mxu0 %v1082
    %1739 = vmatmul.bf16.gmra.mxu0 %v483
    %v1740 = vpop.f32.mrf.mxu0
    %v1741 = vadd.f32 %v1712, %v1740
    %v1742 = vpop.f32.mrf.mxu0
    %v1743 = vadd.f32 %v1714, %v1742
    %1744 = vmatmul.bf16.gmra.mxu0 %v489
    %v1745 = vpop.f32.mrf.mxu0
    %v1746 = vadd.f32 %v1717, %v1745
    %v1747 = vpop.f32.mrf.mxu0
    %v1748 = vadd.f32 %v1719, %v1747
    %1749 = vmatmul.bf16.gmra.mxu0 %v495
    %v1750 = vpop.f32.mrf.mxu0
    %v1751 = vadd.f32 %v1722, %v1750
    %v1752 = vpop.f32.mrf.mxu0
    %v1753 = vadd.f32 %v1724, %v1752
    %1754 = vmatmul.bf16.gmra.mxu0 %v501
    %v1755 = vpop.f32.mrf.mxu0
    %v1756 = vadd.f32 %v1727, %v1755
    %v1757 = vpop.f32.mrf.mxu0
    %v1758 = vadd.f32 %v1729, %v1757
    %1759 = vdwg.mxu0
    %1760 = vmatpush.bf16.msra.mxu0 %v1127
    %1761 = vmatpush.bf16.msra.mxu0 %v1124
    %1762 = vmatpush.bf16.msra.mxu0 %v1121
    %1763 = vmatpush.bf16.msra.mxu0 %v1118
    %1764 = vmatpush.bf16.msra.mxu0 %v1115
    %1765 = vmatpush.bf16.msra.mxu0 %v1112
    %1766 = vmatpush.bf16.msra.mxu0 %v1109
    %1767 = vmatpush.bf16.msra.mxu0 %v1106
    %1768 = vmatmul.bf16.gmra.mxu0 %v484
    %v1769 = vpop.f32.mrf.mxu0
    %v1770 = vadd.f32 %v1741, %v1769
    %v1771 = vpop.f32.mrf.mxu0
    %v1772 = vadd.f32 %v1743, %v1771
    %1773 = vmatmul.bf16.gmra.mxu0 %v490
    %v1774 = vpop.f32.mrf.mxu0
    %v1775 = vadd.f32 %v1746, %v1774
    %v1776 = vpop.f32.mrf.mxu0
    %v1777 = vadd.f32 %v1748, %v1776
    %1778 = vmatmul.bf16.gmra.mxu0 %v496
    %v1779 = vpop.f32.mrf.mxu0
    %v1780 = vadd.f32 %v1751, %v1779
    %v1781 = vpop.f32.mrf.mxu0
    %v1782 = vadd.f32 %v1753, %v1781
    %1783 = vmatmul.bf16.gmra.mxu0 %v502
    %v1784 = vpop.f32.mrf.mxu0
    %v1785 = vadd.f32 %v1756, %v1784
    %v1786 = vpop.f32.mrf.mxu0
    %v1787 = vadd.f32 %v1758, %v1786
    %1788 = vdwg.mxu0
    %1789 = vmatpush.bf16.msra.mxu0 %v1151
    %1790 = vmatpush.bf16.msra.mxu0 %v1148
    %1791 = vmatpush.bf16.msra.mxu0 %v1145
    %1792 = vmatpush.bf16.msra.mxu0 %v1142
    %1793 = vmatpush.bf16.msra.mxu0 %v1139
    %1794 = vmatpush.bf16.msra.mxu0 %v1136
    %1795 = vmatpush.bf16.msra.mxu0 %v1133
    %1796 = vmatpush.bf16.msra.mxu0 %v1130
    %1797 = vmatmul.bf16.gmra.mxu0 %v485
    %v1798 = vpop.f32.mrf.mxu0
    %v1799 = vadd.f32 %v1770, %v1798
    %v1800 = vpop.f32.mrf.mxu0
    %v1801 = vadd.f32 %v1772, %v1800
    %1802 = vmatmul.bf16.gmra.mxu0 %v491
    %v1803 = vpop.f32.mrf.mxu0
    %v1804 = vadd.f32 %v1775, %v1803
    %v1805 = vpop.f32.mrf.mxu0
    %v1806 = vadd.f32 %v1777, %v1805
    %1807 = vmatmul.bf16.gmra.mxu0 %v497
    %v1808 = vpop.f32.mrf.mxu0
    %v1809 = vadd.f32 %v1780, %v1808
    %v1810 = vpop.f32.mrf.mxu0
    %v1811 = vadd.f32 %v1782, %v1810
    %1812 = vmatmul.bf16.gmra.mxu0 %v503
    %v1813 = vpop.f32.mrf.mxu0
    %v1814 = vadd.f32 %v1785, %v1813
    %v1815 = vpop.f32.mrf.mxu0
    %v1816 = vadd.f32 %v1787, %v1815
    %1817 = vdwg.mxu0
    %v1818 = vld [vmem:[#allocation8] sm:$0xff]
    %v1819 = vld [vmem:[#allocation8 + $0x8] sm:$0xf]
    %v1820 = vld [vmem:[#allocation8 + $0xc] sm:$0xff]
    %v1821 = vld [vmem:[#allocation8 + $0x14] sm:$0xf]
    %v1822 = vld [vmem:[#allocation8 + $0x18] sm:$0xff]
    %v1823 = vld [vmem:[#allocation8 + $0x20] sm:$0xf]
    %v1824 = vld [vmem:[#allocation8 + $0x24] sm:$0xff]
    %v1825 = vld [vmem:[#allocation8 + $0x2c] sm:$0xf]
    %v1826 = vld [vmem:[#allocation8 + $0x30] sm:$0xff]
    %v1827 = vld [vmem:[#allocation8 + $0x38] sm:$0xf]
    %v1828 = vld [vmem:[#allocation8 + $0x3c] sm:$0xff]
    %v1829 = vld [vmem:[#allocation8 + $0x44] sm:$0xf]
    %v1830 = vld [vmem:[#allocation8 + $0x48] sm:$0xff]
    %v1831 = vld [vmem:[#allocation8 + $0x50] sm:$0xf]
    %v1832 = vld [vmem:[#allocation8 + $0x54] sm:$0xff]
    %v1833 = vld [vmem:[#allocation8 + $0x5c] sm:$0xf]
    %v1834 = vld [vmem:[#allocation8 + $0x60] sm:$0xff]
    %v1835 = vld [vmem:[#allocation8 + $0x68] sm:$0xf]
    %v1836 = vld [vmem:[#allocation8 + $0x6c] sm:$0xff]
    %v1837 = vld [vmem:[#allocation8 + $0x74] sm:$0xf]
    %v1838 = vld [vmem:[#allocation8 + $0x78] sm:$0xff]
    %v1839 = vld [vmem:[#allocation8 + $0x80] sm:$0xf]
    %v1840 = vld [vmem:[#allocation8 + $0x84] sm:$0xff]
    %v1841 = vld [vmem:[#allocation8 + $0x8c] sm:$0xf]
    %v1842 = vld [vmem:[#allocation8 + $0x90] sm:$0xff]
    %v1843 = vld [vmem:[#allocation8 + $0x98] sm:$0xf]
    %v1844 = vld [vmem:[#allocation8 + $0x9c] sm:$0xff]
    %v1845 = vld [vmem:[#allocation8 + $0xa4] sm:$0xf]
    %v1846 = vld [vmem:[#allocation8 + $0xa8] sm:$0xff]
    %v1847 = vld [vmem:[#allocation8 + $0xb0] sm:$0xf]
    %v1848 = vld [vmem:[#allocation8 + $0xb4] sm:$0xff]
    %v1849 = vld [vmem:[#allocation8 + $0xbc] sm:$0xf]
    %v1850 = vld [vmem:[%s4] sm:$0x1]
    %v1852 = vperm.slane %v1850, 0
    %v1886 = vunpack.c.l.b16 %v1818
    %v1887 = vunpack.c.h.b16 %v1818
    %v1888 = vunpack.c.l.b16 %v1819
    %v1889 = vunpack.c.l.b16 %v1820
    %v1890 = vunpack.c.h.b16 %v1820
    %v1891 = vunpack.c.l.b16 %v1821
    %v1892 = vunpack.c.l.b16 %v1822
    %v1893 = vunpack.c.h.b16 %v1822
    %v1894 = vunpack.c.l.b16 %v1823
    %v1895 = vunpack.c.l.b16 %v1824
    %v1896 = vunpack.c.h.b16 %v1824
    %v1897 = vunpack.c.l.b16 %v1825
    %v1898 = vunpack.c.l.b16 %v1826
    %v1899 = vunpack.c.h.b16 %v1826
    %v1900 = vunpack.c.l.b16 %v1827
    %v1901 = vunpack.c.l.b16 %v1828
    %v1902 = vunpack.c.h.b16 %v1828
    %v1903 = vunpack.c.l.b16 %v1829
    %v1904 = vunpack.c.l.b16 %v1830
    %v1905 = vunpack.c.h.b16 %v1830
    %v1906 = vunpack.c.l.b16 %v1831
    %v1907 = vunpack.c.l.b16 %v1832
    %v1908 = vunpack.c.h.b16 %v1832
    %v1909 = vunpack.c.l.b16 %v1833
    %v1910 = vunpack.c.l.b16 %v1834
    %v1911 = vunpack.c.h.b16 %v1834
    %v1912 = vunpack.c.l.b16 %v1835
    %v1913 = vunpack.c.l.b16 %v1836
    %v1914 = vunpack.c.h.b16 %v1836
    %v1915 = vunpack.c.l.b16 %v1837
    %v1916 = vunpack.c.l.b16 %v1838
    %v1917 = vunpack.c.h.b16 %v1838
    %v1918 = vunpack.c.l.b16 %v1839
    %v1919 = vunpack.c.l.b16 %v1840
    %v1920 = vunpack.c.h.b16 %v1840
    %v1921 = vunpack.c.l.b16 %v1841
    %v1922 = vunpack.c.l.b16 %v1842
    %v1923 = vunpack.c.h.b16 %v1842
    %v1924 = vunpack.c.l.b16 %v1843
    %v1925 = vunpack.c.l.b16 %v1844
    %v1926 = vunpack.c.h.b16 %v1844
    %v1927 = vunpack.c.l.b16 %v1845
    %v1928 = vunpack.c.l.b16 %v1846
    %v1929 = vunpack.c.h.b16 %v1846
    %v1930 = vunpack.c.l.b16 %v1847
    %v1931 = vunpack.c.l.b16 %v1848
    %v1932 = vunpack.c.h.b16 %v1848
    %v1933 = vunpack.c.l.b16 %v1849
    %v1934 = vpack.c.b16 %v1889, %v1886
    %v1935 = vpack.c.b16 %v1890, %v1887
    %v1936 = vpack.c.b16 %v1891, %v1888
    %v1937 = vpack.c.b16 %v1895, %v1892
    %v1938 = vpack.c.b16 %v1896, %v1893
    %v1939 = vpack.c.b16 %v1897, %v1894
    %v1940 = vpack.c.b16 %v1901, %v1898
    %v1941 = vpack.c.b16 %v1902, %v1899
    %v1942 = vpack.c.b16 %v1903, %v1900
    %v1943 = vpack.c.b16 %v1907, %v1904
    %v1944 = vpack.c.b16 %v1908, %v1905
    %v1945 = vpack.c.b16 %v1909, %v1906
    %v1946 = vpack.c.b16 %v1913, %v1910
    %v1947 = vpack.c.b16 %v1914, %v1911
    %v1948 = vpack.c.b16 %v1915, %v1912
    %v1949 = vpack.c.b16 %v1919, %v1916
    %v1950 = vpack.c.b16 %v1920, %v1917
    %v1951 = vpack.c.b16 %v1921, %v1918
    %v1952 = vpack.c.b16 %v1925, %v1922
    %v1953 = vpack.c.b16 %v1926, %v1923
    %v1954 = vpack.c.b16 %v1927, %v1924
    %v1955 = vpack.c.b16 %v1931, %v1928
    %v1956 = vpack.c.b16 %v1932, %v1929
    %v1957 = vpack.c.b16 %v1933, %v1930
    %1982 = vmatpush.bf16.msra.mxu0 %v1955
    %1983 = vmatpush.bf16.msra.mxu0 %v1952
    %1984 = vmatpush.bf16.msra.mxu0 %v1949
    %1985 = vmatpush.bf16.msra.mxu0 %v1946
    %1986 = vmatpush.bf16.msra.mxu0 %v1943
    %1987 = vmatpush.bf16.msra.mxu0 %v1940
    %1988 = vmatpush.bf16.msra.mxu0 %v1937
    %1989 = vmatpush.bf16.msra.mxu0 %v1934
    %1990 = vmatmul.bf16.gmra.mxu0 0
    %v1991 = vpop.f32.mrf.mxu0
    %v1992 = vadd.f32 0.0, %v1991
    %v1993 = vpop.f32.mrf.mxu0
    %1994 = vdwg.mxu0
    %1995 = vmatpush.bf16.msra.mxu0 %v1956
    %1996 = vmatpush.bf16.msra.mxu0 %v1953
    %1997 = vmatpush.bf16.msra.mxu0 %v1950
    %1998 = vmatpush.bf16.msra.mxu0 %v1947
    %1999 = vmatpush.bf16.msra.mxu0 %v1944
    %2000 = vmatpush.bf16.msra.mxu0 %v1941
    %2001 = vmatpush.bf16.msra.mxu0 %v1938
    %2002 = vmatpush.bf16.msra.mxu0 %v1935
    %2003 = vmatmul.bf16.gmra.mxu0 0
    %v2004 = vpop.f32.mrf.mxu0
    %v2005 = vadd.f32 0.0, %v2004
    %v2006 = vpop.f32.mrf.mxu0
    %2007 = vdwg.mxu0
    %2008 = vmatpush.bf16.msra.mxu0 %v1957
    %2009 = vmatpush.bf16.msra.mxu0 %v1954
    %2010 = vmatpush.bf16.msra.mxu0 %v1951
    %2011 = vmatpush.bf16.msra.mxu0 %v1948
    %2012 = vmatpush.bf16.msra.mxu0 %v1945
    %2013 = vmatpush.bf16.msra.mxu0 %v1942
    %2014 = vmatpush.bf16.msra.mxu0 %v1939
    %2015 = vmatpush.bf16.msra.mxu0 %v1936
    %2016 = vmatmul.bf16.gmra.mxu0 0
    %v2017 = vpop.f32.mrf.mxu0
    %v2018 = vadd.f32 0.0, %v2017
    %v2019 = vpop.f32.mrf.mxu0
    %2020 = vdwg.mxu0
    %v2021 = vadd.f32 %v1451, %v1992
    %v2022 = vxor.u32 %v2021, 2147483648
    %v2023 = vmul.f32 %v2022, 1.442695
    %v2024 = vpow.pop %v2023
    %v2025 = vadd.f32 %v2024, 1.0
    %v2026 = vrcp.pop %v2025
    %v2027 = vmul.f32 %v2025, %v2026
    %v2028 = vsub.f32 1.0, %v2027
    %v2029 = vmul.f32 %v2026, %v2028
    %v2030 = vadd.f32 %v2026, %v2029
    %vm2031 = vweird.f32 %v2025
    %vm2032 = vweird.f32 %v2026
    %vm2033 = vmor %vm2031, %vm2032
    %v2034 = vsel %vm2033, %v2026, %v2030
    %v2035 = vand.u32 2147483647, %v2025
    %vm2036 = vcmp.eq.f32.partialorder %v2035, 8.507059e+37
    %v2037 = vand.u32 %v2025, 2147483648
    %v2038 = vor.u32 1.1754944e-38, %v2037
    %v2039 = vsel %vm2036, %v2038, %v2034
    %v2040 = vmul.f32 1.0, %v2039
    %v2041 = vadd.f32 %v1625, %v2005
    %v2042 = vxor.u32 %v2041, 2147483648
    %v2043 = vmul.f32 %v2042, 1.442695
    %v2044 = vpow.pop %v2043
    %v2045 = vadd.f32 %v2044, 1.0
    %v2046 = vrcp.pop %v2045
    %v2047 = vmul.f32 %v2045, %v2046
    %v2048 = vsub.f32 1.0, %v2047
    %v2049 = vmul.f32 %v2046, %v2048
    %v2050 = vadd.f32 %v2046, %v2049
    %vm2051 = vweird.f32 %v2045
    %vm2052 = vweird.f32 %v2046
    %vm2053 = vmor %vm2051, %vm2052
    %v2054 = vsel %vm2053, %v2046, %v2050
    %v2055 = vand.u32 2147483647, %v2045
    %vm2056 = vcmp.eq.f32.partialorder %v2055, 8.507059e+37
    %v2057 = vand.u32 %v2045, 2147483648
    %v2058 = vor.u32 1.1754944e-38, %v2057
    %v2059 = vsel %vm2056, %v2058, %v2054
    %v2060 = vmul.f32 1.0, %v2059
    %v2061 = vadd.f32 %v2018, %v1852
    %v2062 = vmul.f32 %v2040, %v2061
    %v2063 = vadd.f32 %v1799, %v2062
    %v2064 = vtanh.pop %v2063
    %v2065 = vsub.f32 1.0, %v2060
    %v2066 = vmul.f32 %v2065, %v2064
    %v2067 = vmul.f32 %v2060, 0.0
    %v2068 = vadd.f32 %v2066, %v2067
    %v2069 = vpack.c.bf16 %v2068, %v2068
    %2070 = vmatpush.bf16.msra.mxu0 %v1955
    %2071 = vmatpush.bf16.msra.mxu0 %v1952
    %2072 = vmatpush.bf16.msra.mxu0 %v1949
    %2073 = vmatpush.bf16.msra.mxu0 %v1946
    %2074 = vmatpush.bf16.msra.mxu0 %v1943
    %2075 = vmatpush.bf16.msra.mxu0 %v1940
    %2076 = vmatpush.bf16.msra.mxu0 %v1937
    %2077 = vmatpush.bf16.msra.mxu0 %v1934
    %2078 = vmatmul.bf16.gmra.mxu0 %v2069
    %v2079 = vpop.f32.mrf.mxu0
    %v2080 = vadd.f32 0.0, %v2079
    %v2081 = vpop.f32.mrf.mxu0
    %2082 = vdwg.mxu0
    %2083 = vmatpush.bf16.msra.mxu0 %v1956
    %2084 = vmatpush.bf16.msra.mxu0 %v1953
    %2085 = vmatpush.bf16.msra.mxu0 %v1950
    %2086 = vmatpush.bf16.msra.mxu0 %v1947
    %2087 = vmatpush.bf16.msra.mxu0 %v1944
    %2088 = vmatpush.bf16.msra.mxu0 %v1941
    %2089 = vmatpush.bf16.msra.mxu0 %v1938
    %2090 = vmatpush.bf16.msra.mxu0 %v1935
    %2091 = vmatmul.bf16.gmra.mxu0 %v2069
    %v2092 = vpop.f32.mrf.mxu0
    %v2093 = vadd.f32 0.0, %v2092
    %v2094 = vpop.f32.mrf.mxu0
    %2095 = vdwg.mxu0
    %2096 = vmatpush.bf16.msra.mxu0 %v1957
    %2097 = vmatpush.bf16.msra.mxu0 %v1954
    %2098 = vmatpush.bf16.msra.mxu0 %v1951
    %2099 = vmatpush.bf16.msra.mxu0 %v1948
    %2100 = vmatpush.bf16.msra.mxu0 %v1945
    %2101 = vmatpush.bf16.msra.mxu0 %v1942
    %2102 = vmatpush.bf16.msra.mxu0 %v1939
    %2103 = vmatpush.bf16.msra.mxu0 %v1936
    %2104 = vmatmul.bf16.gmra.mxu0 %v2069
    %v2105 = vpop.f32.mrf.mxu0
    %v2106 = vadd.f32 0.0, %v2105
    %v2107 = vpop.f32.mrf.mxu0
    %2108 = vdwg.mxu0
    %v2109 = vadd.f32 %v1453, %v2080
    %v2110 = vxor.u32 %v2109, 2147483648
    %v2111 = vmul.f32 %v2110, 1.442695
    %v2112 = vpow.pop %v2111
    %v2113 = vadd.f32 %v2112, 1.0
    %v2114 = vrcp.pop %v2113
    %v2115 = vmul.f32 %v2113, %v2114
    %v2116 = vsub.f32 1.0, %v2115
    %v2117 = vmul.f32 %v2114, %v2116
    %v2118 = vadd.f32 %v2114, %v2117
    %vm2119 = vweird.f32 %v2113
    %vm2120 = vweird.f32 %v2114
    %vm2121 = vmor %vm2119, %vm2120
    %v2122 = vsel %vm2121, %v2114, %v2118
    %v2123 = vand.u32 2147483647, %v2113
    %vm2124 = vcmp.eq.f32.partialorder %v2123, 8.507059e+37
    %v2125 = vand.u32 %v2113, 2147483648
    %v2126 = vor.u32 1.1754944e-38, %v2125
    %v2127 = vsel %vm2124, %v2126, %v2122
    %v2128 = vmul.f32 1.0, %v2127
    %v2129 = vadd.f32 %v1627, %v2093
    %v2130 = vxor.u32 %v2129, 2147483648
    %v2131 = vmul.f32 %v2130, 1.442695
    %v2132 = vpow.pop %v2131
    %v2133 = vadd.f32 %v2132, 1.0
    %v2134 = vrcp.pop %v2133
    %v2135 = vmul.f32 %v2133, %v2134
    %v2136 = vsub.f32 1.0, %v2135
    %v2137 = vmul.f32 %v2134, %v2136
    %v2138 = vadd.f32 %v2134, %v2137
    %vm2139 = vweird.f32 %v2133
    %vm2140 = vweird.f32 %v2134
    %vm2141 = vmor %vm2139, %vm2140
    %v2142 = vsel %vm2141, %v2134, %v2138
    %v2143 = vand.u32 2147483647, %v2133
    %vm2144 = vcmp.eq.f32.partialorder %v2143, 8.507059e+37
    %v2145 = vand.u32 %v2133, 2147483648
    %v2146 = vor.u32 1.1754944e-38, %v2145
    %v2147 = vsel %vm2144, %v2146, %v2142
    %v2148 = vmul.f32 1.0, %v2147
    %v2149 = vadd.f32 %v2106, %v1852
    %v2150 = vmul.f32 %v2128, %v2149
    %v2151 = vadd.f32 %v1801, %v2150
    %v2152 = vtanh.pop %v2151
    %v2153 = vsub.f32 1.0, %v2148
    %v2154 = vmul.f32 %v2153, %v2152
    %v2155 = vmul.f32 %v2148, %v2068
    %v2156 = vadd.f32 %v2154, %v2155
    %v2157 = vpack.c.bf16 %v2156, %v2156
    %2158 = vmatpush.bf16.msra.mxu0 %v1955
    %2159 = vmatpush.bf16.msra.mxu0 %v1952
    %2160 = vmatpush.bf16.msra.mxu0 %v1949
    %2161 = vmatpush.bf16.msra.mxu0 %v1946
    %2162 = vmatpush.bf16.msra.mxu0 %v1943
    %2163 = vmatpush.bf16.msra.mxu0 %v1940
    %2164 = vmatpush.bf16.msra.mxu0 %v1937
    %2165 = vmatpush.bf16.msra.mxu0 %v1934
    %2166 = vmatmul.bf16.gmra.mxu0 %v2157
    %v2167 = vpop.f32.mrf.mxu0
    %v2168 = vadd.f32 0.0, %v2167
    %v2169 = vpop.f32.mrf.mxu0
    %2170 = vdwg.mxu0
    %2171 = vmatpush.bf16.msra.mxu0 %v1956
    %2172 = vmatpush.bf16.msra.mxu0 %v1953
    %2173 = vmatpush.bf16.msra.mxu0 %v1950
    %2174 = vmatpush.bf16.msra.mxu0 %v1947
    %2175 = vmatpush.bf16.msra.mxu0 %v1944
    %2176 = vmatpush.bf16.msra.mxu0 %v1941
    %2177 = vmatpush.bf16.msra.mxu0 %v1938
    %2178 = vmatpush.bf16.msra.mxu0 %v1935
    %2179 = vmatmul.bf16.gmra.mxu0 %v2157
    %v2180 = vpop.f32.mrf.mxu0
    %v2181 = vadd.f32 0.0, %v2180
    %v2182 = vpop.f32.mrf.mxu0
    %2183 = vdwg.mxu0
    %2184 = vmatpush.bf16.msra.mxu0 %v1957
    %2185 = vmatpush.bf16.msra.mxu0 %v1954
    %2186 = vmatpush.bf16.msra.mxu0 %v1951
    %2187 = vmatpush.bf16.msra.mxu0 %v1948
    %2188 = vmatpush.bf16.msra.mxu0 %v1945
    %2189 = vmatpush.bf16.msra.mxu0 %v1942
    %2190 = vmatpush.bf16.msra.mxu0 %v1939
    %2191 = vmatpush.bf16.msra.mxu0 %v1936
    %2192 = vmatmul.bf16.gmra.mxu0 %v2157
    %v2193 = vpop.f32.mrf.mxu0
    %v2194 = vadd.f32 0.0, %v2193
    %v2195 = vpop.f32.mrf.mxu0
    %2196 = vdwg.mxu0
    %v2197 = vadd.f32 %v1456, %v2168
    %v2198 = vxor.u32 %v2197, 2147483648
    %v2199 = vmul.f32 %v2198, 1.442695
    %v2200 = vpow.pop %v2199
    %v2201 = vadd.f32 %v2200, 1.0
    %v2202 = vrcp.pop %v2201
    %v2203 = vmul.f32 %v2201, %v2202
    %v2204 = vsub.f32 1.0, %v2203
    %v2205 = vmul.f32 %v2202, %v2204
    %v2206 = vadd.f32 %v2202, %v2205
    %vm2207 = vweird.f32 %v2201
    %vm2208 = vweird.f32 %v2202
    %vm2209 = vmor %vm2207, %vm2208
    %v2210 = vsel %vm2209, %v2202, %v2206
    %v2211 = vand.u32 2147483647, %v2201
    %vm2212 = vcmp.eq.f32.partialorder %v2211, 8.507059e+37
    %v2213 = vand.u32 %v2201, 2147483648
    %v2214 = vor.u32 1.1754944e-38, %v2213
    %v2215 = vsel %vm2212, %v2214, %v2210
    %v2216 = vmul.f32 1.0, %v2215
    %v2217 = vadd.f32 %v1630, %v2181
    %v2218 = vxor.u32 %v2217, 2147483648
    %v2219 = vmul.f32 %v2218, 1.442695
    %v2220 = vpow.pop %v2219
    %v2221 = vadd.f32 %v2220, 1.0
    %v2222 = vrcp.pop %v2221
    %v2223 = vmul.f32 %v2221, %v2222
    %v2224 = vsub.f32 1.0, %v2223
    %v2225 = vmul.f32 %v2222, %v2224
    %v2226 = vadd.f32 %v2222, %v2225
    %vm2227 = vweird.f32 %v2221
    %vm2228 = vweird.f32 %v2222
    %vm2229 = vmor %vm2227, %vm2228
    %v2230 = vsel %vm2229, %v2222, %v2226
    %v2231 = vand.u32 2147483647, %v2221
    %vm2232 = vcmp.eq.f32.partialorder %v2231, 8.507059e+37
    %v2233 = vand.u32 %v2221, 2147483648
    %v2234 = vor.u32 1.1754944e-38, %v2233
    %v2235 = vsel %vm2232, %v2234, %v2230
    %v2236 = vmul.f32 1.0, %v2235
    %v2237 = vadd.f32 %v2194, %v1852
    %v2238 = vmul.f32 %v2216, %v2237
    %v2239 = vadd.f32 %v1804, %v2238
    %v2240 = vtanh.pop %v2239
    %v2241 = vsub.f32 1.0, %v2236
    %v2242 = vmul.f32 %v2241, %v2240
    %v2243 = vmul.f32 %v2236, %v2156
    %v2244 = vadd.f32 %v2242, %v2243
    %v2245 = vpack.c.bf16 %v2244, %v2244
    %2246 = vmatpush.bf16.msra.mxu0 %v1955
    %2247 = vmatpush.bf16.msra.mxu0 %v1952
    %2248 = vmatpush.bf16.msra.mxu0 %v1949
    %2249 = vmatpush.bf16.msra.mxu0 %v1946
    %2250 = vmatpush.bf16.msra.mxu0 %v1943
    %2251 = vmatpush.bf16.msra.mxu0 %v1940
    %2252 = vmatpush.bf16.msra.mxu0 %v1937
    %2253 = vmatpush.bf16.msra.mxu0 %v1934
    %2254 = vmatmul.bf16.gmra.mxu0 %v2245
    %v2255 = vpop.f32.mrf.mxu0
    %v2256 = vadd.f32 0.0, %v2255
    %v2257 = vpop.f32.mrf.mxu0
    %2258 = vdwg.mxu0
    %2259 = vmatpush.bf16.msra.mxu0 %v1956
    %2260 = vmatpush.bf16.msra.mxu0 %v1953
    %2261 = vmatpush.bf16.msra.mxu0 %v1950
    %2262 = vmatpush.bf16.msra.mxu0 %v1947
    %2263 = vmatpush.bf16.msra.mxu0 %v1944
    %2264 = vmatpush.bf16.msra.mxu0 %v1941
    %2265 = vmatpush.bf16.msra.mxu0 %v1938
    %2266 = vmatpush.bf16.msra.mxu0 %v1935
    %2267 = vmatmul.bf16.gmra.mxu0 %v2245
    %v2268 = vpop.f32.mrf.mxu0
    %v2269 = vadd.f32 0.0, %v2268
    %v2270 = vpop.f32.mrf.mxu0
    %2271 = vdwg.mxu0
    %2272 = vmatpush.bf16.msra.mxu0 %v1957
    %2273 = vmatpush.bf16.msra.mxu0 %v1954
    %2274 = vmatpush.bf16.msra.mxu0 %v1951
    %2275 = vmatpush.bf16.msra.mxu0 %v1948
    %2276 = vmatpush.bf16.msra.mxu0 %v1945
    %2277 = vmatpush.bf16.msra.mxu0 %v1942
    %2278 = vmatpush.bf16.msra.mxu0 %v1939
    %2279 = vmatpush.bf16.msra.mxu0 %v1936
    %2280 = vmatmul.bf16.gmra.mxu0 %v2245
    %v2281 = vpop.f32.mrf.mxu0
    %v2282 = vadd.f32 0.0, %v2281
    %v2283 = vpop.f32.mrf.mxu0
    %2284 = vdwg.mxu0
    %v2285 = vadd.f32 %v1458, %v2256
    %v2286 = vxor.u32 %v2285, 2147483648
    %v2287 = vmul.f32 %v2286, 1.442695
    %v2288 = vpow.pop %v2287
    %v2289 = vadd.f32 %v2288, 1.0
    %v2290 = vrcp.pop %v2289
    %v2291 = vmul.f32 %v2289, %v2290
    %v2292 = vsub.f32 1.0, %v2291
    %v2293 = vmul.f32 %v2290, %v2292
    %v2294 = vadd.f32 %v2290, %v2293
    %vm2295 = vweird.f32 %v2289
    %vm2296 = vweird.f32 %v2290
    %vm2297 = vmor %vm2295, %vm2296
    %v2298 = vsel %vm2297, %v2290, %v2294
    %v2299 = vand.u32 2147483647, %v2289
    %vm2300 = vcmp.eq.f32.partialorder %v2299, 8.507059e+37
    %v2301 = vand.u32 %v2289, 2147483648
    %v2302 = vor.u32 1.1754944e-38, %v2301
    %v2303 = vsel %vm2300, %v2302, %v2298
    %v2304 = vmul.f32 1.0, %v2303
    %v2305 = vadd.f32 %v1632, %v2269
    %v2306 = vxor.u32 %v2305, 2147483648
    %v2307 = vmul.f32 %v2306, 1.442695
    %v2308 = vpow.pop %v2307
    %v2309 = vadd.f32 %v2308, 1.0
    %v2310 = vrcp.pop %v2309
    %v2311 = vmul.f32 %v2309, %v2310
    %v2312 = vsub.f32 1.0, %v2311
    %v2313 = vmul.f32 %v2310, %v2312
    %v2314 = vadd.f32 %v2310, %v2313
    %vm2315 = vweird.f32 %v2309
    %vm2316 = vweird.f32 %v2310
    %vm2317 = vmor %vm2315, %vm2316
    %v2318 = vsel %vm2317, %v2310, %v2314
    %v2319 = vand.u32 2147483647, %v2309
    %vm2320 = vcmp.eq.f32.partialorder %v2319, 8.507059e+37
    %v2321 = vand.u32 %v2309, 2147483648
    %v2322 = vor.u32 1.1754944e-38, %v2321
    %v2323 = vsel %vm2320, %v2322, %v2318
    %v2324 = vmul.f32 1.0, %v2323
    %v2325 = vadd.f32 %v2282, %v1852
    %v2326 = vmul.f32 %v2304, %v2325
    %v2327 = vadd.f32 %v1806, %v2326
    %v2328 = vtanh.pop %v2327
    %v2329 = vsub.f32 1.0, %v2324
    %v2330 = vmul.f32 %v2329, %v2328
    %v2331 = vmul.f32 %v2324, %v2244
    %v2332 = vadd.f32 %v2330, %v2331
    %v2333 = vpack.c.bf16 %v2332, %v2332
    %2334 = vmatpush.bf16.msra.mxu0 %v1955
    %2335 = vmatpush.bf16.msra.mxu0 %v1952
    %2336 = vmatpush.bf16.msra.mxu0 %v1949
    %2337 = vmatpush.bf16.msra.mxu0 %v1946
    %2338 = vmatpush.bf16.msra.mxu0 %v1943
    %2339 = vmatpush.bf16.msra.mxu0 %v1940
    %2340 = vmatpush.bf16.msra.mxu0 %v1937
    %2341 = vmatpush.bf16.msra.mxu0 %v1934
    %2342 = vmatmul.bf16.gmra.mxu0 %v2333
    %v2343 = vpop.f32.mrf.mxu0
    %v2344 = vadd.f32 0.0, %v2343
    %v2345 = vpop.f32.mrf.mxu0
    %2346 = vdwg.mxu0
    %2347 = vmatpush.bf16.msra.mxu0 %v1956
    %2348 = vmatpush.bf16.msra.mxu0 %v1953
    %2349 = vmatpush.bf16.msra.mxu0 %v1950
    %2350 = vmatpush.bf16.msra.mxu0 %v1947
    %2351 = vmatpush.bf16.msra.mxu0 %v1944
    %2352 = vmatpush.bf16.msra.mxu0 %v1941
    %2353 = vmatpush.bf16.msra.mxu0 %v1938
    %2354 = vmatpush.bf16.msra.mxu0 %v1935
    %2355 = vmatmul.bf16.gmra.mxu0 %v2333
    %v2356 = vpop.f32.mrf.mxu0
    %v2357 = vadd.f32 0.0, %v2356
    %v2358 = vpop.f32.mrf.mxu0
    %2359 = vdwg.mxu0
    %2360 = vmatpush.bf16.msra.mxu0 %v1957
    %2361 = vmatpush.bf16.msra.mxu0 %v1954
    %2362 = vmatpush.bf16.msra.mxu0 %v1951
    %2363 = vmatpush.bf16.msra.mxu0 %v1948
    %2364 = vmatpush.bf16.msra.mxu0 %v1945
    %2365 = vmatpush.bf16.msra.mxu0 %v1942
    %2366 = vmatpush.bf16.msra.mxu0 %v1939
    %2367 = vmatpush.bf16.msra.mxu0 %v1936
    %2368 = vmatmul.bf16.gmra.mxu0 %v2333
    %v2369 = vpop.f32.mrf.mxu0
    %v2370 = vadd.f32 0.0, %v2369
    %v2371 = vpop.f32.mrf.mxu0
    %2372 = vdwg.mxu0
    %v2373 = vadd.f32 %v1461, %v2344
    %v2374 = vxor.u32 %v2373, 2147483648
    %v2375 = vmul.f32 %v2374, 1.442695
    %v2376 = vpow.pop %v2375
    %v2377 = vadd.f32 %v2376, 1.0
    %v2378 = vrcp.pop %v2377
    %v2379 = vmul.f32 %v2377, %v2378
    %v2380 = vsub.f32 1.0, %v2379
    %v2381 = vmul.f32 %v2378, %v2380
    %v2382 = vadd.f32 %v2378, %v2381
    %vm2383 = vweird.f32 %v2377
    %vm2384 = vweird.f32 %v2378
    %vm2385 = vmor %vm2383, %vm2384
    %v2386 = vsel %vm2385, %v2378, %v2382
    %v2387 = vand.u32 2147483647, %v2377
    %vm2388 = vcmp.eq.f32.partialorder %v2387, 8.507059e+37
    %v2389 = vand.u32 %v2377, 2147483648
    %v2390 = vor.u32 1.1754944e-38, %v2389
    %v2391 = vsel %vm2388, %v2390, %v2386
    %v2392 = vmul.f32 1.0, %v2391
    %v2393 = vadd.f32 %v1635, %v2357
    %v2394 = vxor.u32 %v2393, 2147483648
    %v2395 = vmul.f32 %v2394, 1.442695
    %v2396 = vpow.pop %v2395
    %v2397 = vadd.f32 %v2396, 1.0
    %v2398 = vrcp.pop %v2397
    %v2399 = vmul.f32 %v2397, %v2398
    %v2400 = vsub.f32 1.0, %v2399
    %v2401 = vmul.f32 %v2398, %v2400
    %v2402 = vadd.f32 %v2398, %v2401
    %vm2403 = vweird.f32 %v2397
    %vm2404 = vweird.f32 %v2398
    %vm2405 = vmor %vm2403, %vm2404
    %v2406 = vsel %vm2405, %v2398, %v2402
    %v2407 = vand.u32 2147483647, %v2397
    %vm2408 = vcmp.eq.f32.partialorder %v2407, 8.507059e+37
    %v2409 = vand.u32 %v2397, 2147483648
    %v2410 = vor.u32 1.1754944e-38, %v2409
    %v2411 = vsel %vm2408, %v2410, %v2406
    %v2412 = vmul.f32 1.0, %v2411
    %v2413 = vadd.f32 %v2370, %v1852
    %v2414 = vmul.f32 %v2392, %v2413
    %v2415 = vadd.f32 %v1809, %v2414
    %v2416 = vtanh.pop %v2415
    %v2417 = vsub.f32 1.0, %v2412
    %v2418 = vmul.f32 %v2417, %v2416
    %v2419 = vmul.f32 %v2412, %v2332
    %v2420 = vadd.f32 %v2418, %v2419
    %v2421 = vpack.c.bf16 %v2420, %v2420
    %2422 = vmatpush.bf16.msra.mxu0 %v1955
    %2423 = vmatpush.bf16.msra.mxu0 %v1952
    %2424 = vmatpush.bf16.msra.mxu0 %v1949
    %2425 = vmatpush.bf16.msra.mxu0 %v1946
    %2426 = vmatpush.bf16.msra.mxu0 %v1943
    %2427 = vmatpush.bf16.msra.mxu0 %v1940
    %2428 = vmatpush.bf16.msra.mxu0 %v1937
    %2429 = vmatpush.bf16.msra.mxu0 %v1934
    %2430 = vmatmul.bf16.gmra.mxu0 %v2421
    %v2431 = vpop.f32.mrf.mxu0
    %v2432 = vadd.f32 0.0, %v2431
    %v2433 = vpop.f32.mrf.mxu0
    %2434 = vdwg.mxu0
    %2435 = vmatpush.bf16.msra.mxu0 %v1956
    %2436 = vmatpush.bf16.msra.mxu0 %v1953
    %2437 = vmatpush.bf16.msra.mxu0 %v1950
    %2438 = vmatpush.bf16.msra.mxu0 %v1947
    %2439 = vmatpush.bf16.msra.mxu0 %v1944
    %2440 = vmatpush.bf16.msra.mxu0 %v1941
    %2441 = vmatpush.bf16.msra.mxu0 %v1938
    %2442 = vmatpush.bf16.msra.mxu0 %v1935
    %2443 = vmatmul.bf16.gmra.mxu0 %v2421
    %v2444 = vpop.f32.mrf.mxu0
    %v2445 = vadd.f32 0.0, %v2444
    %v2446 = vpop.f32.mrf.mxu0
    %2447 = vdwg.mxu0
    %2448 = vmatpush.bf16.msra.mxu0 %v1957
    %2449 = vmatpush.bf16.msra.mxu0 %v1954
    %2450 = vmatpush.bf16.msra.mxu0 %v1951
    %2451 = vmatpush.bf16.msra.mxu0 %v1948
    %2452 = vmatpush.bf16.msra.mxu0 %v1945
    %2453 = vmatpush.bf16.msra.mxu0 %v1942
    %2454 = vmatpush.bf16.msra.mxu0 %v1939
    %2455 = vmatpush.bf16.msra.mxu0 %v1936
    %2456 = vmatmul.bf16.gmra.mxu0 %v2421
    %v2457 = vpop.f32.mrf.mxu0
    %v2458 = vadd.f32 0.0, %v2457
    %v2459 = vpop.f32.mrf.mxu0
    %2460 = vdwg.mxu0
    %v2461 = vadd.f32 %v1463, %v2432
    %v2462 = vxor.u32 %v2461, 2147483648
    %v2463 = vmul.f32 %v2462, 1.442695
    %v2464 = vpow.pop %v2463
    %v2465 = vadd.f32 %v2464, 1.0
    %v2466 = vrcp.pop %v2465
    %v2467 = vmul.f32 %v2465, %v2466
    %v2468 = vsub.f32 1.0, %v2467
    %v2469 = vmul.f32 %v2466, %v2468
    %v2470 = vadd.f32 %v2466, %v2469
    %vm2471 = vweird.f32 %v2465
    %vm2472 = vweird.f32 %v2466
    %vm2473 = vmor %vm2471, %vm2472
    %v2474 = vsel %vm2473, %v2466, %v2470
    %v2475 = vand.u32 2147483647, %v2465
    %vm2476 = vcmp.eq.f32.partialorder %v2475, 8.507059e+37
    %v2477 = vand.u32 %v2465, 2147483648
    %v2478 = vor.u32 1.1754944e-38, %v2477
    %v2479 = vsel %vm2476, %v2478, %v2474
    %v2480 = vmul.f32 1.0, %v2479
    %v2481 = vadd.f32 %v1637, %v2445
    %v2482 = vxor.u32 %v2481, 2147483648
    %v2483 = vmul.f32 %v2482, 1.442695
    %v2484 = vpow.pop %v2483
    %v2485 = vadd.f32 %v2484, 1.0
    %v2486 = vrcp.pop %v2485
    %v2487 = vmul.f32 %v2485, %v2486
    %v2488 = vsub.f32 1.0, %v2487
    %v2489 = vmul.f32 %v2486, %v2488
    %v2490 = vadd.f32 %v2486, %v2489
    %vm2491 = vweird.f32 %v2485
    %vm2492 = vweird.f32 %v2486
    %vm2493 = vmor %vm2491, %vm2492
    %v2494 = vsel %vm2493, %v2486, %v2490
    %v2495 = vand.u32 2147483647, %v2485
    %vm2496 = vcmp.eq.f32.partialorder %v2495, 8.507059e+37
    %v2497 = vand.u32 %v2485, 2147483648
    %v2498 = vor.u32 1.1754944e-38, %v2497
    %v2499 = vsel %vm2496, %v2498, %v2494
    %v2500 = vmul.f32 1.0, %v2499
    %v2501 = vadd.f32 %v2458, %v1852
    %v2502 = vmul.f32 %v2480, %v2501
    %v2503 = vadd.f32 %v1811, %v2502
    %v2504 = vtanh.pop %v2503
    %v2505 = vsub.f32 1.0, %v2500
    %v2506 = vmul.f32 %v2505, %v2504
    %v2507 = vmul.f32 %v2500, %v2420
    %v2508 = vadd.f32 %v2506, %v2507
    %v2509 = vpack.c.bf16 %v2508, %v2508
    %2510 = vmatpush.bf16.msra.mxu0 %v1955
    %2511 = vmatpush.bf16.msra.mxu0 %v1952
    %2512 = vmatpush.bf16.msra.mxu0 %v1949
    %2513 = vmatpush.bf16.msra.mxu0 %v1946
    %2514 = vmatpush.bf16.msra.mxu0 %v1943
    %2515 = vmatpush.bf16.msra.mxu0 %v1940
    %2516 = vmatpush.bf16.msra.mxu0 %v1937
    %2517 = vmatpush.bf16.msra.mxu0 %v1934
    %2518 = vmatmul.bf16.gmra.mxu0 %v2509
    %v2519 = vpop.f32.mrf.mxu0
    %v2520 = vadd.f32 0.0, %v2519
    %v2521 = vpop.f32.mrf.mxu0
    %2522 = vdwg.mxu0
    %2523 = vmatpush.bf16.msra.mxu0 %v1956
    %2524 = vmatpush.bf16.msra.mxu0 %v1953
    %2525 = vmatpush.bf16.msra.mxu0 %v1950
    %2526 = vmatpush.bf16.msra.mxu0 %v1947
    %2527 = vmatpush.bf16.msra.mxu0 %v1944
    %2528 = vmatpush.bf16.msra.mxu0 %v1941
    %2529 = vmatpush.bf16.msra.mxu0 %v1938
    %2530 = vmatpush.bf16.msra.mxu0 %v1935
    %2531 = vmatmul.bf16.gmra.mxu0 %v2509
    %v2532 = vpop.f32.mrf.mxu0
    %v2533 = vadd.f32 0.0, %v2532
    %v2534 = vpop.f32.mrf.mxu0
    %2535 = vdwg.mxu0
    %2536 = vmatpush.bf16.msra.mxu0 %v1957
    %2537 = vmatpush.bf16.msra.mxu0 %v1954
    %2538 = vmatpush.bf16.msra.mxu0 %v1951
    %2539 = vmatpush.bf16.msra.mxu0 %v1948
    %2540 = vmatpush.bf16.msra.mxu0 %v1945
    %2541 = vmatpush.bf16.msra.mxu0 %v1942
    %2542 = vmatpush.bf16.msra.mxu0 %v1939
    %2543 = vmatpush.bf16.msra.mxu0 %v1936
    %2544 = vmatmul.bf16.gmra.mxu0 %v2509
    %v2545 = vpop.f32.mrf.mxu0
    %v2546 = vadd.f32 0.0, %v2545
    %v2547 = vpop.f32.mrf.mxu0
    %2548 = vdwg.mxu0
    %v2549 = vadd.f32 %v1466, %v2520
    %v2550 = vxor.u32 %v2549, 2147483648
    %v2551 = vmul.f32 %v2550, 1.442695
    %v2552 = vpow.pop %v2551
    %v2553 = vadd.f32 %v2552, 1.0
    %v2554 = vrcp.pop %v2553
    %v2555 = vmul.f32 %v2553, %v2554
    %v2556 = vsub.f32 1.0, %v2555
    %v2557 = vmul.f32 %v2554, %v2556
    %v2558 = vadd.f32 %v2554, %v2557
    %vm2559 = vweird.f32 %v2553
    %vm2560 = vweird.f32 %v2554
    %vm2561 = vmor %vm2559, %vm2560
    %v2562 = vsel %vm2561, %v2554, %v2558
    %v2563 = vand.u32 2147483647, %v2553
    %vm2564 = vcmp.eq.f32.partialorder %v2563, 8.507059e+37
    %v2565 = vand.u32 %v2553, 2147483648
    %v2566 = vor.u32 1.1754944e-38, %v2565
    %v2567 = vsel %vm2564, %v2566, %v2562
    %v2568 = vmul.f32 1.0, %v2567
    %v2569 = vadd.f32 %v1640, %v2533
    %v2570 = vxor.u32 %v2569, 2147483648
    %v2571 = vmul.f32 %v2570, 1.442695
    %v2572 = vpow.pop %v2571
    %v2573 = vadd.f32 %v2572, 1.0
    %v2574 = vrcp.pop %v2573
    %v2575 = vmul.f32 %v2573, %v2574
    %v2576 = vsub.f32 1.0, %v2575
    %v2577 = vmul.f32 %v2574, %v2576
    %v2578 = vadd.f32 %v2574, %v2577
    %vm2579 = vweird.f32 %v2573
    %vm2580 = vweird.f32 %v2574
    %vm2581 = vmor %vm2579, %vm2580
    %v2582 = vsel %vm2581, %v2574, %v2578
    %v2583 = vand.u32 2147483647, %v2573
    %vm2584 = vcmp.eq.f32.partialorder %v2583, 8.507059e+37
    %v2585 = vand.u32 %v2573, 2147483648
    %v2586 = vor.u32 1.1754944e-38, %v2585
    %v2587 = vsel %vm2584, %v2586, %v2582
    %v2588 = vmul.f32 1.0, %v2587
    %v2589 = vadd.f32 %v2546, %v1852
    %v2590 = vmul.f32 %v2568, %v2589
    %v2591 = vadd.f32 %v1814, %v2590
    %v2592 = vtanh.pop %v2591
    %v2593 = vsub.f32 1.0, %v2588
    %v2594 = vmul.f32 %v2593, %v2592
    %v2595 = vmul.f32 %v2588, %v2508
    %v2596 = vadd.f32 %v2594, %v2595
    %v2597 = vpack.c.bf16 %v2596, %v2596
    %2598 = vmatpush.bf16.msra.mxu0 %v1955
    %2599 = vmatpush.bf16.msra.mxu0 %v1952
    %2600 = vmatpush.bf16.msra.mxu0 %v1949
    %2601 = vmatpush.bf16.msra.mxu0 %v1946
    %2602 = vmatpush.bf16.msra.mxu0 %v1943
    %2603 = vmatpush.bf16.msra.mxu0 %v1940
    %2604 = vmatpush.bf16.msra.mxu0 %v1937
    %2605 = vmatpush.bf16.msra.mxu0 %v1934
    %2606 = vmatmul.bf16.gmra.mxu0 %v2597
    %v2607 = vpop.f32.mrf.mxu0
    %v2608 = vadd.f32 0.0, %v2607
    %v2609 = vpop.f32.mrf.mxu0
    %2610 = vdwg.mxu0
    %2611 = vmatpush.bf16.msra.mxu0 %v1956
    %2612 = vmatpush.bf16.msra.mxu0 %v1953
    %2613 = vmatpush.bf16.msra.mxu0 %v1950
    %2614 = vmatpush.bf16.msra.mxu0 %v1947
    %2615 = vmatpush.bf16.msra.mxu0 %v1944
    %2616 = vmatpush.bf16.msra.mxu0 %v1941
    %2617 = vmatpush.bf16.msra.mxu0 %v1938
    %2618 = vmatpush.bf16.msra.mxu0 %v1935
    %2619 = vmatmul.bf16.gmra.mxu0 %v2597
    %v2620 = vpop.f32.mrf.mxu0
    %v2621 = vadd.f32 0.0, %v2620
    %v2622 = vpop.f32.mrf.mxu0
    %2623 = vdwg.mxu0
    %2624 = vmatpush.bf16.msra.mxu0 %v1957
    %2625 = vmatpush.bf16.msra.mxu0 %v1954
    %2626 = vmatpush.bf16.msra.mxu0 %v1951
    %2627 = vmatpush.bf16.msra.mxu0 %v1948
    %2628 = vmatpush.bf16.msra.mxu0 %v1945
    %2629 = vmatpush.bf16.msra.mxu0 %v1942
    %2630 = vmatpush.bf16.msra.mxu0 %v1939
    %2631 = vmatpush.bf16.msra.mxu0 %v1936
    %2632 = vmatmul.bf16.gmra.mxu0 %v2597
    %v2633 = vpop.f32.mrf.mxu0
    %v2634 = vadd.f32 0.0, %v2633
    %v2635 = vpop.f32.mrf.mxu0
    %2636 = vdwg.mxu0
    %v2637 = vadd.f32 %v1468, %v2608
    %v2638 = vxor.u32 %v2637, 2147483648
    %v2639 = vmul.f32 %v2638, 1.442695
    %v2640 = vpow.pop %v2639
    %v2641 = vadd.f32 %v2640, 1.0
    %v2642 = vrcp.pop %v2641
    %v2643 = vmul.f32 %v2641, %v2642
    %v2644 = vsub.f32 1.0, %v2643
    %v2645 = vmul.f32 %v2642, %v2644
    %v2646 = vadd.f32 %v2642, %v2645
    %vm2647 = vweird.f32 %v2641
    %vm2648 = vweird.f32 %v2642
    %vm2649 = vmor %vm2647, %vm2648
    %v2650 = vsel %vm2649, %v2642, %v2646
    %v2651 = vand.u32 2147483647, %v2641
    %vm2652 = vcmp.eq.f32.partialorder %v2651, 8.507059e+37
    %v2653 = vand.u32 %v2641, 2147483648
    %v2654 = vor.u32 1.1754944e-38, %v2653
    %v2655 = vsel %vm2652, %v2654, %v2650
    %v2656 = vmul.f32 1.0, %v2655
    %v2657 = vadd.f32 %v1642, %v2621
    %v2658 = vxor.u32 %v2657, 2147483648
    %v2659 = vmul.f32 %v2658, 1.442695
    %v2660 = vpow.pop %v2659
    %v2661 = vadd.f32 %v2660, 1.0
    %v2662 = vrcp.pop %v2661
    %v2663 = vmul.f32 %v2661, %v2662
    %v2664 = vsub.f32 1.0, %v2663
    %v2665 = vmul.f32 %v2662, %v2664
    %v2666 = vadd.f32 %v2662, %v2665
    %vm2667 = vweird.f32 %v2661
    %vm2668 = vweird.f32 %v2662
    %vm2669 = vmor %vm2667, %vm2668
    %v2670 = vsel %vm2669, %v2662, %v2666
    %v2671 = vand.u32 2147483647, %v2661
    %vm2672 = vcmp.eq.f32.partialorder %v2671, 8.507059e+37
    %v2673 = vand.u32 %v2661, 2147483648
    %v2674 = vor.u32 1.1754944e-38, %v2673
    %v2675 = vsel %vm2672, %v2674, %v2670
    %v2676 = vmul.f32 1.0, %v2675
    %v2677 = vadd.f32 %v2634, %v1852
    %v2678 = vmul.f32 %v2656, %v2677
    %v2679 = vadd.f32 %v1816, %v2678
    %v2680 = vtanh.pop %v2679
    %v2681 = vsub.f32 1.0, %v2676
    %v2682 = vmul.f32 %v2681, %v2680
    %v2683 = vmul.f32 %v2676, %v2596
    %v2684 = vadd.f32 %v2682, %v2683
    %v2685 = vpack.c.bf16 %v2156, %v2068
    %v2686 = vpack.c.bf16 %v2332, %v2244
    %v2687 = vpack.c.bf16 %v2508, %v2420
    %v2688 = vpack.c.bf16 %v2684, %v2596
    %v2689 = vld [vmem:[#allocation10] sm:$0xff]
    %v2690 = vld [vmem:[#allocation10 + $0x8] sm:$0xf]
    %v2691 = vld [vmem:[#allocation10 + $0xc] sm:$0xff]
    %v2692 = vld [vmem:[#allocation10 + $0x14] sm:$0xf]
    %v2693 = vld [vmem:[#allocation10 + $0x18] sm:$0xff]
    %v2694 = vld [vmem:[#allocation10 + $0x20] sm:$0xf]
    %v2695 = vld [vmem:[#allocation10 + $0x24] sm:$0xff]
    %v2696 = vld [vmem:[#allocation10 + $0x2c] sm:$0xf]
    %v2697 = vld [vmem:[#allocation10 + $0x30] sm:$0xff]
    %v2698 = vld [vmem:[#allocation10 + $0x38] sm:$0xf]
    %v2699 = vld [vmem:[#allocation10 + $0x3c] sm:$0xff]
    %v2700 = vld [vmem:[#allocation10 + $0x44] sm:$0xf]
    %v2701 = vld [vmem:[#allocation10 + $0x48] sm:$0xff]
    %v2702 = vld [vmem:[#allocation10 + $0x50] sm:$0xf]
    %v2703 = vld [vmem:[#allocation10 + $0x54] sm:$0xff]
    %v2704 = vld [vmem:[#allocation10 + $0x5c] sm:$0xf]
    %v2705 = vld [vmem:[#allocation10 + $0x60] sm:$0xff]
    %v2706 = vld [vmem:[#allocation10 + $0x68] sm:$0xf]
    %v2707 = vld [vmem:[#allocation10 + $0x6c] sm:$0xff]
    %v2708 = vld [vmem:[#allocation10 + $0x74] sm:$0xf]
    %v2709 = vld [vmem:[#allocation10 + $0x78] sm:$0xff]
    %v2710 = vld [vmem:[#allocation10 + $0x80] sm:$0xf]
    %v2711 = vld [vmem:[#allocation10 + $0x84] sm:$0xff]
    %v2712 = vld [vmem:[#allocation10 + $0x8c] sm:$0xf]
    %v2713 = vld [vmem:[#allocation10 + $0x90] sm:$0xff]
    %v2714 = vld [vmem:[#allocation10 + $0x98] sm:$0xf]
    %v2715 = vld [vmem:[#allocation10 + $0x9c] sm:$0xff]
    %v2716 = vld [vmem:[#allocation10 + $0xa4] sm:$0xf]
    %v2717 = vld [vmem:[#allocation10 + $0xa8] sm:$0xff]
    %v2718 = vld [vmem:[#allocation10 + $0xb0] sm:$0xf]
    %v2719 = vld [vmem:[#allocation10 + $0xb4] sm:$0xff]
    %v2720 = vld [vmem:[#allocation10 + $0xbc] sm:$0xf]
    %v2721 = vld [vmem:[#allocation11] sm:$0x7]
    %v2723 = vperm.slane %v2721, 0
    %v2724 = vperm.slane %v2721, 1
    %v2725 = vperm.slane %v2721, 2
    %v2761 = vunpack.c.l.b16 %v2689
    %v2762 = vunpack.c.h.b16 %v2689
    %v2763 = vunpack.c.l.b16 %v2690
    %v2764 = vunpack.c.l.b16 %v2691
    %v2765 = vunpack.c.h.b16 %v2691
    %v2766 = vunpack.c.l.b16 %v2692
    %v2767 = vunpack.c.l.b16 %v2693
    %v2768 = vunpack.c.h.b16 %v2693
    %v2769 = vunpack.c.l.b16 %v2694
    %v2770 = vunpack.c.l.b16 %v2695
    %v2771 = vunpack.c.h.b16 %v2695
    %v2772 = vunpack.c.l.b16 %v2696
    %v2773 = vunpack.c.l.b16 %v2697
    %v2774 = vunpack.c.h.b16 %v2697
    %v2775 = vunpack.c.l.b16 %v2698
    %v2776 = vunpack.c.l.b16 %v2699
    %v2777 = vunpack.c.h.b16 %v2699
    %v2778 = vunpack.c.l.b16 %v2700
    %v2779 = vunpack.c.l.b16 %v2701
    %v2780 = vunpack.c.h.b16 %v2701
    %v2781 = vunpack.c.l.b16 %v2702
    %v2782 = vunpack.c.l.b16 %v2703
    %v2783 = vunpack.c.h.b16 %v2703
    %v2784 = vunpack.c.l.b16 %v2704
    %v2785 = vunpack.c.l.b16 %v2705
    %v2786 = vunpack.c.h.b16 %v2705
    %v2787 = vunpack.c.l.b16 %v2706
    %v2788 = vunpack.c.l.b16 %v2707
    %v2789 = vunpack.c.h.b16 %v2707
    %v2790 = vunpack.c.l.b16 %v2708
    %v2791 = vunpack.c.l.b16 %v2709
    %v2792 = vunpack.c.h.b16 %v2709
    %v2793 = vunpack.c.l.b16 %v2710
    %v2794 = vunpack.c.l.b16 %v2711
    %v2795 = vunpack.c.h.b16 %v2711
    %v2796 = vunpack.c.l.b16 %v2712
    %v2797 = vunpack.c.l.b16 %v2713
    %v2798 = vunpack.c.h.b16 %v2713
    %v2799 = vunpack.c.l.b16 %v2714
    %v2800 = vunpack.c.l.b16 %v2715
    %v2801 = vunpack.c.h.b16 %v2715
    %v2802 = vunpack.c.l.b16 %v2716
    %v2803 = vunpack.c.l.b16 %v2717
    %v2804 = vunpack.c.h.b16 %v2717
    %v2805 = vunpack.c.l.b16 %v2718
    %v2806 = vunpack.c.l.b16 %v2719
    %v2807 = vunpack.c.h.b16 %v2719
    %v2808 = vunpack.c.l.b16 %v2720
    %v2809 = vpack.c.b16 %v2764, %v2761
    %v2810 = vpack.c.b16 %v2765, %v2762
    %v2811 = vpack.c.b16 %v2766, %v2763
    %v2812 = vpack.c.b16 %v2770, %v2767
    %v2813 = vpack.c.b16 %v2771, %v2768
    %v2814 = vpack.c.b16 %v2772, %v2769
    %v2815 = vpack.c.b16 %v2776, %v2773
    %v2816 = vpack.c.b16 %v2777, %v2774
    %v2817 = vpack.c.b16 %v2778, %v2775
    %v2818 = vpack.c.b16 %v2782, %v2779
    %v2819 = vpack.c.b16 %v2783, %v2780
    %v2820 = vpack.c.b16 %v2784, %v2781
    %v2821 = vpack.c.b16 %v2788, %v2785
    %v2822 = vpack.c.b16 %v2789, %v2786
    %v2823 = vpack.c.b16 %v2790, %v2787
    %v2824 = vpack.c.b16 %v2794, %v2791
    %v2825 = vpack.c.b16 %v2795, %v2792
    %v2826 = vpack.c.b16 %v2796, %v2793
    %v2827 = vpack.c.b16 %v2800, %v2797
    %v2828 = vpack.c.b16 %v2801, %v2798
    %v2829 = vpack.c.b16 %v2802, %v2799
    %v2830 = vpack.c.b16 %v2806, %v2803
    %v2831 = vpack.c.b16 %v2807, %v2804
    %v2832 = vpack.c.b16 %v2808, %v2805
    %2857 = vmatpush.bf16.msra.mxu0 %v2830
    %2858 = vmatpush.bf16.msra.mxu0 %v2827
    %2859 = vmatpush.bf16.msra.mxu0 %v2824
    %2860 = vmatpush.bf16.msra.mxu0 %v2821
    %2861 = vmatpush.bf16.msra.mxu0 %v2818
    %2862 = vmatpush.bf16.msra.mxu0 %v2815
    %2863 = vmatpush.bf16.msra.mxu0 %v2812
    %2864 = vmatpush.bf16.msra.mxu0 %v2809
    %2865 = vmatmul.bf16.gmra.mxu0 %v2685
    %v2866 = vpop.f32.mrf.mxu0
    %v2867 = vadd.f32 %v2723, %v2866
    %v2868 = vpop.f32.mrf.mxu0
    %v2869 = vadd.f32 %v2723, %v2868
    %2870 = vmatmul.bf16.gmra.mxu0 %v2686
    %v2871 = vpop.f32.mrf.mxu0
    %v2872 = vadd.f32 %v2723, %v2871
    %v2873 = vpop.f32.mrf.mxu0
    %v2874 = vadd.f32 %v2723, %v2873
    %2875 = vmatmul.bf16.gmra.mxu0 %v2687
    %v2876 = vpop.f32.mrf.mxu0
    %v2877 = vadd.f32 %v2723, %v2876
    %v2878 = vpop.f32.mrf.mxu0
    %v2879 = vadd.f32 %v2723, %v2878
    %2880 = vmatmul.bf16.gmra.mxu0 %v2688
    %v2881 = vpop.f32.mrf.mxu0
    %v2882 = vadd.f32 %v2723, %v2881
    %v2883 = vpop.f32.mrf.mxu0
    %v2884 = vadd.f32 %v2723, %v2883
    %2885 = vdwg.mxu0
    %2886 = vmatpush.bf16.msra.mxu0 %v2831
    %2887 = vmatpush.bf16.msra.mxu0 %v2828
    %2888 = vmatpush.bf16.msra.mxu0 %v2825
    %2889 = vmatpush.bf16.msra.mxu0 %v2822
    %2890 = vmatpush.bf16.msra.mxu0 %v2819
    %2891 = vmatpush.bf16.msra.mxu0 %v2816
    %2892 = vmatpush.bf16.msra.mxu0 %v2813
    %2893 = vmatpush.bf16.msra.mxu0 %v2810
    %2894 = vmatmul.bf16.gmra.mxu0 %v2685
    %v2895 = vpop.f32.mrf.mxu0
    %v2896 = vadd.f32 %v2724, %v2895
    %v2897 = vpop.f32.mrf.mxu0
    %v2898 = vadd.f32 %v2724, %v2897
    %2899 = vmatmul.bf16.gmra.mxu0 %v2686
    %v2900 = vpop.f32.mrf.mxu0
    %v2901 = vadd.f32 %v2724, %v2900
    %v2902 = vpop.f32.mrf.mxu0
    %v2903 = vadd.f32 %v2724, %v2902
    %2904 = vmatmul.bf16.gmra.mxu0 %v2687
    %v2905 = vpop.f32.mrf.mxu0
    %v2906 = vadd.f32 %v2724, %v2905
    %v2907 = vpop.f32.mrf.mxu0
    %v2908 = vadd.f32 %v2724, %v2907
    %2909 = vmatmul.bf16.gmra.mxu0 %v2688
    %v2910 = vpop.f32.mrf.mxu0
    %v2911 = vadd.f32 %v2724, %v2910
    %v2912 = vpop.f32.mrf.mxu0
    %v2913 = vadd.f32 %v2724, %v2912
    %2914 = vdwg.mxu0
    %2915 = vmatpush.bf16.msra.mxu0 %v2832
    %2916 = vmatpush.bf16.msra.mxu0 %v2829
    %2917 = vmatpush.bf16.msra.mxu0 %v2826
    %2918 = vmatpush.bf16.msra.mxu0 %v2823
    %2919 = vmatpush.bf16.msra.mxu0 %v2820
    %2920 = vmatpush.bf16.msra.mxu0 %v2817
    %2921 = vmatpush.bf16.msra.mxu0 %v2814
    %2922 = vmatpush.bf16.msra.mxu0 %v2811
    %2923 = vmatmul.bf16.gmra.mxu0 %v2685
    %v2924 = vpop.f32.mrf.mxu0
    %v2925 = vadd.f32 %v2725, %v2924
    %v2926 = vpop.f32.mrf.mxu0
    %v2927 = vadd.f32 %v2725, %v2926
    %2928 = vmatmul.bf16.gmra.mxu0 %v2686
    %v2929 = vpop.f32.mrf.mxu0
    %v2930 = vadd.f32 %v2725, %v2929
    %v2931 = vpop.f32.mrf.mxu0
    %v2932 = vadd.f32 %v2725, %v2931
    %2933 = vmatmul.bf16.gmra.mxu0 %v2687
    %v2934 = vpop.f32.mrf.mxu0
    %v2935 = vadd.f32 %v2725, %v2934
    %v2936 = vpop.f32.mrf.mxu0
    %v2937 = vadd.f32 %v2725, %v2936
    %2938 = vmatmul.bf16.gmra.mxu0 %v2688
    %v2939 = vpop.f32.mrf.mxu0
    %v2940 = vadd.f32 %v2725, %v2939
    %v2941 = vpop.f32.mrf.mxu0
    %v2942 = vadd.f32 %v2725, %v2941
    %2943 = vdwg.mxu0
    %v2944 = vld [vmem:[#allocation13] sm:$0xff]
    %v2945 = vld [vmem:[#allocation13 + $0x8] sm:$0xf]
    %v2946 = vld [vmem:[#allocation13 + $0xc] sm:$0xff]
    %v2947 = vld [vmem:[#allocation13 + $0x14] sm:$0xf]
    %v2948 = vld [vmem:[#allocation13 + $0x18] sm:$0xff]
    %v2949 = vld [vmem:[#allocation13 + $0x20] sm:$0xf]
    %v2950 = vld [vmem:[#allocation13 + $0x24] sm:$0xff]
    %v2951 = vld [vmem:[#allocation13 + $0x2c] sm:$0xf]
    %v2952 = vld [vmem:[#allocation13 + $0x30] sm:$0xff]
    %v2953 = vld [vmem:[#allocation13 + $0x38] sm:$0xf]
    %v2954 = vld [vmem:[#allocation13 + $0x3c] sm:$0xff]
    %v2955 = vld [vmem:[#allocation13 + $0x44] sm:$0xf]
    %v2956 = vld [vmem:[#allocation13 + $0x48] sm:$0xff]
    %v2957 = vld [vmem:[#allocation13 + $0x50] sm:$0xf]
    %v2958 = vld [vmem:[#allocation13 + $0x54] sm:$0xff]
    %v2959 = vld [vmem:[#allocation13 + $0x5c] sm:$0xf]
    %v2960 = vld [vmem:[#allocation13 + $0x60] sm:$0xff]
    %v2961 = vld [vmem:[#allocation13 + $0x68] sm:$0xf]
    %v2962 = vld [vmem:[#allocation13 + $0x6c] sm:$0xff]
    %v2963 = vld [vmem:[#allocation13 + $0x74] sm:$0xf]
    %v2964 = vld [vmem:[#allocation13 + $0x78] sm:$0xff]
    %v2965 = vld [vmem:[#allocation13 + $0x80] sm:$0xf]
    %v2966 = vld [vmem:[#allocation13 + $0x84] sm:$0xff]
    %v2967 = vld [vmem:[#allocation13 + $0x8c] sm:$0xf]
    %v2968 = vld [vmem:[#allocation13 + $0x90] sm:$0xff]
    %v2969 = vld [vmem:[#allocation13 + $0x98] sm:$0xf]
    %v2970 = vld [vmem:[#allocation13 + $0x9c] sm:$0xff]
    %v2971 = vld [vmem:[#allocation13 + $0xa4] sm:$0xf]
    %v2972 = vld [vmem:[#allocation13 + $0xa8] sm:$0xff]
    %v2973 = vld [vmem:[#allocation13 + $0xb0] sm:$0xf]
    %v2974 = vld [vmem:[#allocation13 + $0xb4] sm:$0xff]
    %v2975 = vld [vmem:[#allocation13 + $0xbc] sm:$0xf]
    %v2976 = vld [vmem:[%s8] sm:$0x1]
    %v2978 = vperm.slane %v2976, 0
    %v3012 = vunpack.c.l.b16 %v2944
    %v3013 = vunpack.c.h.b16 %v2944
    %v3014 = vunpack.c.l.b16 %v2945
    %v3015 = vunpack.c.l.b16 %v2946
    %v3016 = vunpack.c.h.b16 %v2946
    %v3017 = vunpack.c.l.b16 %v2947
    %v3018 = vunpack.c.l.b16 %v2948
    %v3019 = vunpack.c.h.b16 %v2948
    %v3020 = vunpack.c.l.b16 %v2949
    %v3021 = vunpack.c.l.b16 %v2950
    %v3022 = vunpack.c.h.b16 %v2950
    %v3023 = vunpack.c.l.b16 %v2951
    %v3024 = vunpack.c.l.b16 %v2952
    %v3025 = vunpack.c.h.b16 %v2952
    %v3026 = vunpack.c.l.b16 %v2953
    %v3027 = vunpack.c.l.b16 %v2954
    %v3028 = vunpack.c.h.b16 %v2954
    %v3029 = vunpack.c.l.b16 %v2955
    %v3030 = vunpack.c.l.b16 %v2956
    %v3031 = vunpack.c.h.b16 %v2956
    %v3032 = vunpack.c.l.b16 %v2957
    %v3033 = vunpack.c.l.b16 %v2958
    %v3034 = vunpack.c.h.b16 %v2958
    %v3035 = vunpack.c.l.b16 %v2959
    %v3036 = vunpack.c.l.b16 %v2960
    %v3037 = vunpack.c.h.b16 %v2960
    %v3038 = vunpack.c.l.b16 %v2961
    %v3039 = vunpack.c.l.b16 %v2962
    %v3040 = vunpack.c.h.b16 %v2962
    %v3041 = vunpack.c.l.b16 %v2963
    %v3042 = vunpack.c.l.b16 %v2964
    %v3043 = vunpack.c.h.b16 %v2964
    %v3044 = vunpack.c.l.b16 %v2965
    %v3045 = vunpack.c.l.b16 %v2966
    %v3046 = vunpack.c.h.b16 %v2966
    %v3047 = vunpack.c.l.b16 %v2967
    %v3048 = vunpack.c.l.b16 %v2968
    %v3049 = vunpack.c.h.b16 %v2968
    %v3050 = vunpack.c.l.b16 %v2969
    %v3051 = vunpack.c.l.b16 %v2970
    %v3052 = vunpack.c.h.b16 %v2970
    %v3053 = vunpack.c.l.b16 %v2971
    %v3054 = vunpack.c.l.b16 %v2972
    %v3055 = vunpack.c.h.b16 %v2972
    %v3056 = vunpack.c.l.b16 %v2973
    %v3057 = vunpack.c.l.b16 %v2974
    %v3058 = vunpack.c.h.b16 %v2974
    %v3059 = vunpack.c.l.b16 %v2975
    %v3060 = vpack.c.b16 %v3015, %v3012
    %v3061 = vpack.c.b16 %v3016, %v3013
    %v3062 = vpack.c.b16 %v3017, %v3014
    %v3063 = vpack.c.b16 %v3021, %v3018
    %v3064 = vpack.c.b16 %v3022, %v3019
    %v3065 = vpack.c.b16 %v3023, %v3020
    %v3066 = vpack.c.b16 %v3027, %v3024
    %v3067 = vpack.c.b16 %v3028, %v3025
    %v3068 = vpack.c.b16 %v3029, %v3026
    %v3069 = vpack.c.b16 %v3033, %v3030
    %v3070 = vpack.c.b16 %v3034, %v3031
    %v3071 = vpack.c.b16 %v3035, %v3032
    %v3072 = vpack.c.b16 %v3039, %v3036
    %v3073 = vpack.c.b16 %v3040, %v3037
    %v3074 = vpack.c.b16 %v3041, %v3038
    %v3075 = vpack.c.b16 %v3045, %v3042
    %v3076 = vpack.c.b16 %v3046, %v3043
    %v3077 = vpack.c.b16 %v3047, %v3044
    %v3078 = vpack.c.b16 %v3051, %v3048
    %v3079 = vpack.c.b16 %v3052, %v3049
    %v3080 = vpack.c.b16 %v3053, %v3050
    %v3081 = vpack.c.b16 %v3057, %v3054
    %v3082 = vpack.c.b16 %v3058, %v3055
    %v3083 = vpack.c.b16 %v3059, %v3056
    %3108 = vmatpush.bf16.msra.mxu0 %v3081
    %3109 = vmatpush.bf16.msra.mxu0 %v3078
    %3110 = vmatpush.bf16.msra.mxu0 %v3075
    %3111 = vmatpush.bf16.msra.mxu0 %v3072
    %3112 = vmatpush.bf16.msra.mxu0 %v3069
    %3113 = vmatpush.bf16.msra.mxu0 %v3066
    %3114 = vmatpush.bf16.msra.mxu0 %v3063
    %3115 = vmatpush.bf16.msra.mxu0 %v3060
    %3116 = vmatmul.bf16.gmra.mxu0 0
    %v3117 = vpop.f32.mrf.mxu0
    %v3118 = vadd.f32 0.0, %v3117
    %v3119 = vpop.f32.mrf.mxu0
    %3120 = vdwg.mxu0
    %3121 = vmatpush.bf16.msra.mxu0 %v3082
    %3122 = vmatpush.bf16.msra.mxu0 %v3079
    %3123 = vmatpush.bf16.msra.mxu0 %v3076
    %3124 = vmatpush.bf16.msra.mxu0 %v3073
    %3125 = vmatpush.bf16.msra.mxu0 %v3070
    %3126 = vmatpush.bf16.msra.mxu0 %v3067
    %3127 = vmatpush.bf16.msra.mxu0 %v3064
    %3128 = vmatpush.bf16.msra.mxu0 %v3061
    %3129 = vmatmul.bf16.gmra.mxu0 0
    %v3130 = vpop.f32.mrf.mxu0
    %v3131 = vadd.f32 0.0, %v3130
    %v3132 = vpop.f32.mrf.mxu0
    %3133 = vdwg.mxu0
    %3134 = vmatpush.bf16.msra.mxu0 %v3083
    %3135 = vmatpush.bf16.msra.mxu0 %v3080
    %3136 = vmatpush.bf16.msra.mxu0 %v3077
    %3137 = vmatpush.bf16.msra.mxu0 %v3074
    %3138 = vmatpush.bf16.msra.mxu0 %v3071
    %3139 = vmatpush.bf16.msra.mxu0 %v3068
    %3140 = vmatpush.bf16.msra.mxu0 %v3065
    %3141 = vmatpush.bf16.msra.mxu0 %v3062
    %3142 = vmatmul.bf16.gmra.mxu0 0
    %v3143 = vpop.f32.mrf.mxu0
    %v3144 = vadd.f32 0.0, %v3143
    %v3145 = vpop.f32.mrf.mxu0
    %3146 = vdwg.mxu0
    %v3147 = vadd.f32 %v2867, %v3118
    %v3148 = vxor.u32 %v3147, 2147483648
    %v3149 = vmul.f32 %v3148, 1.442695
    %v3150 = vpow.pop %v3149
    %v3151 = vadd.f32 %v3150, 1.0
    %v3152 = vrcp.pop %v3151
    %v3153 = vmul.f32 %v3151, %v3152
    %v3154 = vsub.f32 1.0, %v3153
    %v3155 = vmul.f32 %v3152, %v3154
    %v3156 = vadd.f32 %v3152, %v3155
    %vm3157 = vweird.f32 %v3151
    %vm3158 = vweird.f32 %v3152
    %vm3159 = vmor %vm3157, %vm3158
    %v3160 = vsel %vm3159, %v3152, %v3156
    %v3161 = vand.u32 2147483647, %v3151
    %vm3162 = vcmp.eq.f32.partialorder %v3161, 8.507059e+37
    %v3163 = vand.u32 %v3151, 2147483648
    %v3164 = vor.u32 1.1754944e-38, %v3163
    %v3165 = vsel %vm3162, %v3164, %v3160
    %v3166 = vmul.f32 1.0, %v3165
    %v3167 = vadd.f32 %v2896, %v3131
    %v3168 = vxor.u32 %v3167, 2147483648
    %v3169 = vmul.f32 %v3168, 1.442695
    %v3170 = vpow.pop %v3169
    %v3171 = vadd.f32 %v3170, 1.0
    %v3172 = vrcp.pop %v3171
    %v3173 = vmul.f32 %v3171, %v3172
    %v3174 = vsub.f32 1.0, %v3173
    %v3175 = vmul.f32 %v3172, %v3174
    %v3176 = vadd.f32 %v3172, %v3175
    %vm3177 = vweird.f32 %v3171
    %vm3178 = vweird.f32 %v3172
    %vm3179 = vmor %vm3177, %vm3178
    %v3180 = vsel %vm3179, %v3172, %v3176
    %v3181 = vand.u32 2147483647, %v3171
    %vm3182 = vcmp.eq.f32.partialorder %v3181, 8.507059e+37
    %v3183 = vand.u32 %v3171, 2147483648
    %v3184 = vor.u32 1.1754944e-38, %v3183
    %v3185 = vsel %vm3182, %v3184, %v3180
    %v3186 = vmul.f32 1.0, %v3185
    %v3187 = vadd.f32 %v3144, %v2978
    %v3188 = vmul.f32 %v3166, %v3187
    %v3189 = vadd.f32 %v2925, %v3188
    %v3190 = vtanh.pop %v3189
    %v3191 = vsub.f32 1.0, %v3186
    %v3192 = vmul.f32 %v3191, %v3190
    %v3193 = vmul.f32 %v3186, 0.0
    %v3194 = vadd.f32 %v3192, %v3193
    %v3195 = vpack.c.bf16 %v3194, %v3194
    %3196 = vmatpush.bf16.msra.mxu0 %v3081
    %3197 = vmatpush.bf16.msra.mxu0 %v3078
    %3198 = vmatpush.bf16.msra.mxu0 %v3075
    %3199 = vmatpush.bf16.msra.mxu0 %v3072
    %3200 = vmatpush.bf16.msra.mxu0 %v3069
    %3201 = vmatpush.bf16.msra.mxu0 %v3066
    %3202 = vmatpush.bf16.msra.mxu0 %v3063
    %3203 = vmatpush.bf16.msra.mxu0 %v3060
    %3204 = vmatmul.bf16.gmra.mxu0 %v3195
    %v3205 = vpop.f32.mrf.mxu0
    %v3206 = vadd.f32 0.0, %v3205
    %v3207 = vpop.f32.mrf.mxu0
    %3208 = vdwg.mxu0
    %3209 = vmatpush.bf16.msra.mxu0 %v3082
    %3210 = vmatpush.bf16.msra.mxu0 %v3079
    %3211 = vmatpush.bf16.msra.mxu0 %v3076
    %3212 = vmatpush.bf16.msra.mxu0 %v3073
    %3213 = vmatpush.bf16.msra.mxu0 %v3070
    %3214 = vmatpush.bf16.msra.mxu0 %v3067
    %3215 = vmatpush.bf16.msra.mxu0 %v3064
    %3216 = vmatpush.bf16.msra.mxu0 %v3061
    %3217 = vmatmul.bf16.gmra.mxu0 %v3195
    %v3218 = vpop.f32.mrf.mxu0
    %v3219 = vadd.f32 0.0, %v3218
    %v3220 = vpop.f32.mrf.mxu0
    %3221 = vdwg.mxu0
    %3222 = vmatpush.bf16.msra.mxu0 %v3083
    %3223 = vmatpush.bf16.msra.mxu0 %v3080
    %3224 = vmatpush.bf16.msra.mxu0 %v3077
    %3225 = vmatpush.bf16.msra.mxu0 %v3074
    %3226 = vmatpush.bf16.msra.mxu0 %v3071
    %3227 = vmatpush.bf16.msra.mxu0 %v3068
    %3228 = vmatpush.bf16.msra.mxu0 %v3065
    %3229 = vmatpush.bf16.msra.mxu0 %v3062
    %3230 = vmatmul.bf16.gmra.mxu0 %v3195
    %v3231 = vpop.f32.mrf.mxu0
    %v3232 = vadd.f32 0.0, %v3231
    %v3233 = vpop.f32.mrf.mxu0
    %3234 = vdwg.mxu0
    %v3235 = vadd.f32 %v2869, %v3206
    %v3236 = vxor.u32 %v3235, 2147483648
    %v3237 = vmul.f32 %v3236, 1.442695
    %v3238 = vpow.pop %v3237
    %v3239 = vadd.f32 %v3238, 1.0
    %v3240 = vrcp.pop %v3239
    %v3241 = vmul.f32 %v3239, %v3240
    %v3242 = vsub.f32 1.0, %v3241
    %v3243 = vmul.f32 %v3240, %v3242
    %v3244 = vadd.f32 %v3240, %v3243
    %vm3245 = vweird.f32 %v3239
    %vm3246 = vweird.f32 %v3240
    %vm3247 = vmor %vm3245, %vm3246
    %v3248 = vsel %vm3247, %v3240, %v3244
    %v3249 = vand.u32 2147483647, %v3239
    %vm3250 = vcmp.eq.f32.partialorder %v3249, 8.507059e+37
    %v3251 = vand.u32 %v3239, 2147483648
    %v3252 = vor.u32 1.1754944e-38, %v3251
    %v3253 = vsel %vm3250, %v3252, %v3248
    %v3254 = vmul.f32 1.0, %v3253
    %v3255 = vadd.f32 %v2898, %v3219
    %v3256 = vxor.u32 %v3255, 2147483648
    %v3257 = vmul.f32 %v3256, 1.442695
    %v3258 = vpow.pop %v3257
    %v3259 = vadd.f32 %v3258, 1.0
    %v3260 = vrcp.pop %v3259
    %v3261 = vmul.f32 %v3259, %v3260
    %v3262 = vsub.f32 1.0, %v3261
    %v3263 = vmul.f32 %v3260, %v3262
    %v3264 = vadd.f32 %v3260, %v3263
    %vm3265 = vweird.f32 %v3259
    %vm3266 = vweird.f32 %v3260
    %vm3267 = vmor %vm3265, %vm3266
    %v3268 = vsel %vm3267, %v3260, %v3264
    %v3269 = vand.u32 2147483647, %v3259
    %vm3270 = vcmp.eq.f32.partialorder %v3269, 8.507059e+37
    %v3271 = vand.u32 %v3259, 2147483648
    %v3272 = vor.u32 1.1754944e-38, %v3271
    %v3273 = vsel %vm3270, %v3272, %v3268
    %v3274 = vmul.f32 1.0, %v3273
    %v3275 = vadd.f32 %v3232, %v2978
    %v3276 = vmul.f32 %v3254, %v3275
    %v3277 = vadd.f32 %v2927, %v3276
    %v3278 = vtanh.pop %v3277
    %v3279 = vsub.f32 1.0, %v3274
    %v3280 = vmul.f32 %v3279, %v3278
    %v3281 = vmul.f32 %v3274, %v3194
    %v3282 = vadd.f32 %v3280, %v3281
    %v3283 = vpack.c.bf16 %v3282, %v3282
    %3284 = vmatpush.bf16.msra.mxu0 %v3081
    %3285 = vmatpush.bf16.msra.mxu0 %v3078
    %3286 = vmatpush.bf16.msra.mxu0 %v3075
    %3287 = vmatpush.bf16.msra.mxu0 %v3072
    %3288 = vmatpush.bf16.msra.mxu0 %v3069
    %3289 = vmatpush.bf16.msra.mxu0 %v3066
    %3290 = vmatpush.bf16.msra.mxu0 %v3063
    %3291 = vmatpush.bf16.msra.mxu0 %v3060
    %3292 = vmatmul.bf16.gmra.mxu0 %v3283
    %v3293 = vpop.f32.mrf.mxu0
    %v3294 = vadd.f32 0.0, %v3293
    %v3295 = vpop.f32.mrf.mxu0
    %3296 = vdwg.mxu0
    %3297 = vmatpush.bf16.msra.mxu0 %v3082
    %3298 = vmatpush.bf16.msra.mxu0 %v3079
    %3299 = vmatpush.bf16.msra.mxu0 %v3076
    %3300 = vmatpush.bf16.msra.mxu0 %v3073
    %3301 = vmatpush.bf16.msra.mxu0 %v3070
    %3302 = vmatpush.bf16.msra.mxu0 %v3067
    %3303 = vmatpush.bf16.msra.mxu0 %v3064
    %3304 = vmatpush.bf16.msra.mxu0 %v3061
    %3305 = vmatmul.bf16.gmra.mxu0 %v3283
    %v3306 = vpop.f32.mrf.mxu0
    %v3307 = vadd.f32 0.0, %v3306
    %v3308 = vpop.f32.mrf.mxu0
    %3309 = vdwg.mxu0
    %3310 = vmatpush.bf16.msra.mxu0 %v3083
    %3311 = vmatpush.bf16.msra.mxu0 %v3080
    %3312 = vmatpush.bf16.msra.mxu0 %v3077
    %3313 = vmatpush.bf16.msra.mxu0 %v3074
    %3314 = vmatpush.bf16.msra.mxu0 %v3071
    %3315 = vmatpush.bf16.msra.mxu0 %v3068
    %3316 = vmatpush.bf16.msra.mxu0 %v3065
    %3317 = vmatpush.bf16.msra.mxu0 %v3062
    %3318 = vmatmul.bf16.gmra.mxu0 %v3283
    %v3319 = vpop.f32.mrf.mxu0
    %v3320 = vadd.f32 0.0, %v3319
    %v3321 = vpop.f32.mrf.mxu0
    %3322 = vdwg.mxu0
    %v3323 = vadd.f32 %v2872, %v3294
    %v3324 = vxor.u32 %v3323, 2147483648
    %v3325 = vmul.f32 %v3324, 1.442695
    %v3326 = vpow.pop %v3325
    %v3327 = vadd.f32 %v3326, 1.0
    %v3328 = vrcp.pop %v3327
    %v3329 = vmul.f32 %v3327, %v3328
    %v3330 = vsub.f32 1.0, %v3329
    %v3331 = vmul.f32 %v3328, %v3330
    %v3332 = vadd.f32 %v3328, %v3331
    %vm3333 = vweird.f32 %v3327
    %vm3334 = vweird.f32 %v3328
    %vm3335 = vmor %vm3333, %vm3334
    %v3336 = vsel %vm3335, %v3328, %v3332
    %v3337 = vand.u32 2147483647, %v3327
    %vm3338 = vcmp.eq.f32.partialorder %v3337, 8.507059e+37
    %v3339 = vand.u32 %v3327, 2147483648
    %v3340 = vor.u32 1.1754944e-38, %v3339
    %v3341 = vsel %vm3338, %v3340, %v3336
    %v3342 = vmul.f32 1.0, %v3341
    %v3343 = vadd.f32 %v2901, %v3307
    %v3344 = vxor.u32 %v3343, 2147483648
    %v3345 = vmul.f32 %v3344, 1.442695
    %v3346 = vpow.pop %v3345
    %v3347 = vadd.f32 %v3346, 1.0
    %v3348 = vrcp.pop %v3347
    %v3349 = vmul.f32 %v3347, %v3348
    %v3350 = vsub.f32 1.0, %v3349
    %v3351 = vmul.f32 %v3348, %v3350
    %v3352 = vadd.f32 %v3348, %v3351
    %vm3353 = vweird.f32 %v3347
    %vm3354 = vweird.f32 %v3348
    %vm3355 = vmor %vm3353, %vm3354
    %v3356 = vsel %vm3355, %v3348, %v3352
    %v3357 = vand.u32 2147483647, %v3347
    %vm3358 = vcmp.eq.f32.partialorder %v3357, 8.507059e+37
    %v3359 = vand.u32 %v3347, 2147483648
    %v3360 = vor.u32 1.1754944e-38, %v3359
    %v3361 = vsel %vm3358, %v3360, %v3356
    %v3362 = vmul.f32 1.0, %v3361
    %v3363 = vadd.f32 %v3320, %v2978
    %v3364 = vmul.f32 %v3342, %v3363
    %v3365 = vadd.f32 %v2930, %v3364
    %v3366 = vtanh.pop %v3365
    %v3367 = vsub.f32 1.0, %v3362
    %v3368 = vmul.f32 %v3367, %v3366
    %v3369 = vmul.f32 %v3362, %v3282
    %v3370 = vadd.f32 %v3368, %v3369
    %v3371 = vpack.c.bf16 %v3370, %v3370
    %3372 = vmatpush.bf16.msra.mxu0 %v3081
    %3373 = vmatpush.bf16.msra.mxu0 %v3078
    %3374 = vmatpush.bf16.msra.mxu0 %v3075
    %3375 = vmatpush.bf16.msra.mxu0 %v3072
    %3376 = vmatpush.bf16.msra.mxu0 %v3069
    %3377 = vmatpush.bf16.msra.mxu0 %v3066
    %3378 = vmatpush.bf16.msra.mxu0 %v3063
    %3379 = vmatpush.bf16.msra.mxu0 %v3060
    %3380 = vmatmul.bf16.gmra.mxu0 %v3371
    %v3381 = vpop.f32.mrf.mxu0
    %v3382 = vadd.f32 0.0, %v3381
    %v3383 = vpop.f32.mrf.mxu0
    %3384 = vdwg.mxu0
    %3385 = vmatpush.bf16.msra.mxu0 %v3082
    %3386 = vmatpush.bf16.msra.mxu0 %v3079
    %3387 = vmatpush.bf16.msra.mxu0 %v3076
    %3388 = vmatpush.bf16.msra.mxu0 %v3073
    %3389 = vmatpush.bf16.msra.mxu0 %v3070
    %3390 = vmatpush.bf16.msra.mxu0 %v3067
    %3391 = vmatpush.bf16.msra.mxu0 %v3064
    %3392 = vmatpush.bf16.msra.mxu0 %v3061
    %3393 = vmatmul.bf16.gmra.mxu0 %v3371
    %v3394 = vpop.f32.mrf.mxu0
    %v3395 = vadd.f32 0.0, %v3394
    %v3396 = vpop.f32.mrf.mxu0
    %3397 = vdwg.mxu0
    %3398 = vmatpush.bf16.msra.mxu0 %v3083
    %3399 = vmatpush.bf16.msra.mxu0 %v3080
    %3400 = vmatpush.bf16.msra.mxu0 %v3077
    %3401 = vmatpush.bf16.msra.mxu0 %v3074
    %3402 = vmatpush.bf16.msra.mxu0 %v3071
    %3403 = vmatpush.bf16.msra.mxu0 %v3068
    %3404 = vmatpush.bf16.msra.mxu0 %v3065
    %3405 = vmatpush.bf16.msra.mxu0 %v3062
    %3406 = vmatmul.bf16.gmra.mxu0 %v3371
    %v3407 = vpop.f32.mrf.mxu0
    %v3408 = vadd.f32 0.0, %v3407
    %v3409 = vpop.f32.mrf.mxu0
    %3410 = vdwg.mxu0
    %v3411 = vadd.f32 %v2874, %v3382
    %v3412 = vxor.u32 %v3411, 2147483648
    %v3413 = vmul.f32 %v3412, 1.442695
    %v3414 = vpow.pop %v3413
    %v3415 = vadd.f32 %v3414, 1.0
    %v3416 = vrcp.pop %v3415
    %v3417 = vmul.f32 %v3415, %v3416
    %v3418 = vsub.f32 1.0, %v3417
    %v3419 = vmul.f32 %v3416, %v3418
    %v3420 = vadd.f32 %v3416, %v3419
    %vm3421 = vweird.f32 %v3415
    %vm3422 = vweird.f32 %v3416
    %vm3423 = vmor %vm3421, %vm3422
    %v3424 = vsel %vm3423, %v3416, %v3420
    %v3425 = vand.u32 2147483647, %v3415
    %vm3426 = vcmp.eq.f32.partialorder %v3425, 8.507059e+37
    %v3427 = vand.u32 %v3415, 2147483648
    %v3428 = vor.u32 1.1754944e-38, %v3427
    %v3429 = vsel %vm3426, %v3428, %v3424
    %v3430 = vmul.f32 1.0, %v3429
    %v3431 = vadd.f32 %v2903, %v3395
    %v3432 = vxor.u32 %v3431, 2147483648
    %v3433 = vmul.f32 %v3432, 1.442695
    %v3434 = vpow.pop %v3433
    %v3435 = vadd.f32 %v3434, 1.0
    %v3436 = vrcp.pop %v3435
    %v3437 = vmul.f32 %v3435, %v3436
    %v3438 = vsub.f32 1.0, %v3437
    %v3439 = vmul.f32 %v3436, %v3438
    %v3440 = vadd.f32 %v3436, %v3439
    %vm3441 = vweird.f32 %v3435
    %vm3442 = vweird.f32 %v3436
    %vm3443 = vmor %vm3441, %vm3442
    %v3444 = vsel %vm3443, %v3436, %v3440
    %v3445 = vand.u32 2147483647, %v3435
    %vm3446 = vcmp.eq.f32.partialorder %v3445, 8.507059e+37
    %v3447 = vand.u32 %v3435, 2147483648
    %v3448 = vor.u32 1.1754944e-38, %v3447
    %v3449 = vsel %vm3446, %v3448, %v3444
    %v3450 = vmul.f32 1.0, %v3449
    %v3451 = vadd.f32 %v3408, %v2978
    %v3452 = vmul.f32 %v3430, %v3451
    %v3453 = vadd.f32 %v2932, %v3452
    %v3454 = vtanh.pop %v3453
    %v3455 = vsub.f32 1.0, %v3450
    %v3456 = vmul.f32 %v3455, %v3454
    %v3457 = vmul.f32 %v3450, %v3370
    %v3458 = vadd.f32 %v3456, %v3457
    %v3459 = vpack.c.bf16 %v3458, %v3458
    %3460 = vmatpush.bf16.msra.mxu0 %v3081
    %3461 = vmatpush.bf16.msra.mxu0 %v3078
    %3462 = vmatpush.bf16.msra.mxu0 %v3075
    %3463 = vmatpush.bf16.msra.mxu0 %v3072
    %3464 = vmatpush.bf16.msra.mxu0 %v3069
    %3465 = vmatpush.bf16.msra.mxu0 %v3066
    %3466 = vmatpush.bf16.msra.mxu0 %v3063
    %3467 = vmatpush.bf16.msra.mxu0 %v3060
    %3468 = vmatmul.bf16.gmra.mxu0 %v3459
    %v3469 = vpop.f32.mrf.mxu0
    %v3470 = vadd.f32 0.0, %v3469
    %v3471 = vpop.f32.mrf.mxu0
    %3472 = vdwg.mxu0
    %3473 = vmatpush.bf16.msra.mxu0 %v3082
    %3474 = vmatpush.bf16.msra.mxu0 %v3079
    %3475 = vmatpush.bf16.msra.mxu0 %v3076
    %3476 = vmatpush.bf16.msra.mxu0 %v3073
    %3477 = vmatpush.bf16.msra.mxu0 %v3070
    %3478 = vmatpush.bf16.msra.mxu0 %v3067
    %3479 = vmatpush.bf16.msra.mxu0 %v3064
    %3480 = vmatpush.bf16.msra.mxu0 %v3061
    %3481 = vmatmul.bf16.gmra.mxu0 %v3459
    %v3482 = vpop.f32.mrf.mxu0
    %v3483 = vadd.f32 0.0, %v3482
    %v3484 = vpop.f32.mrf.mxu0
    %3485 = vdwg.mxu0
    %3486 = vmatpush.bf16.msra.mxu0 %v3083
    %3487 = vmatpush.bf16.msra.mxu0 %v3080
    %3488 = vmatpush.bf16.msra.mxu0 %v3077
    %3489 = vmatpush.bf16.msra.mxu0 %v3074
    %3490 = vmatpush.bf16.msra.mxu0 %v3071
    %3491 = vmatpush.bf16.msra.mxu0 %v3068
    %3492 = vmatpush.bf16.msra.mxu0 %v3065
    %3493 = vmatpush.bf16.msra.mxu0 %v3062
    %3494 = vmatmul.bf16.gmra.mxu0 %v3459
    %v3495 = vpop.f32.mrf.mxu0
    %v3496 = vadd.f32 0.0, %v3495
    %v3497 = vpop.f32.mrf.mxu0
    %3498 = vdwg.mxu0
    %v3499 = vadd.f32 %v2877, %v3470
    %v3500 = vxor.u32 %v3499, 2147483648
    %v3501 = vmul.f32 %v3500, 1.442695
    %v3502 = vpow.pop %v3501
    %v3503 = vadd.f32 %v3502, 1.0
    %v3504 = vrcp.pop %v3503
    %v3505 = vmul.f32 %v3503, %v3504
    %v3506 = vsub.f32 1.0, %v3505
    %v3507 = vmul.f32 %v3504, %v3506
    %v3508 = vadd.f32 %v3504, %v3507
    %vm3509 = vweird.f32 %v3503
    %vm3510 = vweird.f32 %v3504
    %vm3511 = vmor %vm3509, %vm3510
    %v3512 = vsel %vm3511, %v3504, %v3508
    %v3513 = vand.u32 2147483647, %v3503
    %vm3514 = vcmp.eq.f32.partialorder %v3513, 8.507059e+37
    %v3515 = vand.u32 %v3503, 2147483648
    %v3516 = vor.u32 1.1754944e-38, %v3515
    %v3517 = vsel %vm3514, %v3516, %v3512
    %v3518 = vmul.f32 1.0, %v3517
    %v3519 = vadd.f32 %v2906, %v3483
    %v3520 = vxor.u32 %v3519, 2147483648
    %v3521 = vmul.f32 %v3520, 1.442695
    %v3522 = vpow.pop %v3521
    %v3523 = vadd.f32 %v3522, 1.0
    %v3524 = vrcp.pop %v3523
    %v3525 = vmul.f32 %v3523, %v3524
    %v3526 = vsub.f32 1.0, %v3525
    %v3527 = vmul.f32 %v3524, %v3526
    %v3528 = vadd.f32 %v3524, %v3527
    %vm3529 = vweird.f32 %v3523
    %vm3530 = vweird.f32 %v3524
    %vm3531 = vmor %vm3529, %vm3530
    %v3532 = vsel %vm3531, %v3524, %v3528
    %v3533 = vand.u32 2147483647, %v3523
    %vm3534 = vcmp.eq.f32.partialorder %v3533, 8.507059e+37
    %v3535 = vand.u32 %v3523, 2147483648
    %v3536 = vor.u32 1.1754944e-38, %v3535
    %v3537 = vsel %vm3534, %v3536, %v3532
    %v3538 = vmul.f32 1.0, %v3537
    %v3539 = vadd.f32 %v3496, %v2978
    %v3540 = vmul.f32 %v3518, %v3539
    %v3541 = vadd.f32 %v2935, %v3540
    %v3542 = vtanh.pop %v3541
    %v3543 = vsub.f32 1.0, %v3538
    %v3544 = vmul.f32 %v3543, %v3542
    %v3545 = vmul.f32 %v3538, %v3458
    %v3546 = vadd.f32 %v3544, %v3545
    %v3547 = vpack.c.bf16 %v3546, %v3546
    %3548 = vmatpush.bf16.msra.mxu0 %v3081
    %3549 = vmatpush.bf16.msra.mxu0 %v3078
    %3550 = vmatpush.bf16.msra.mxu0 %v3075
    %3551 = vmatpush.bf16.msra.mxu0 %v3072
    %3552 = vmatpush.bf16.msra.mxu0 %v3069
    %3553 = vmatpush.bf16.msra.mxu0 %v3066
    %3554 = vmatpush.bf16.msra.mxu0 %v3063
    %3555 = vmatpush.bf16.msra.mxu0 %v3060
    %3556 = vmatmul.bf16.gmra.mxu0 %v3547
    %v3557 = vpop.f32.mrf.mxu0
    %v3558 = vadd.f32 0.0, %v3557
    %v3559 = vpop.f32.mrf.mxu0
    %3560 = vdwg.mxu0
    %3561 = vmatpush.bf16.msra.mxu0 %v3082
    %3562 = vmatpush.bf16.msra.mxu0 %v3079
    %3563 = vmatpush.bf16.msra.mxu0 %v3076
    %3564 = vmatpush.bf16.msra.mxu0 %v3073
    %3565 = vmatpush.bf16.msra.mxu0 %v3070
    %3566 = vmatpush.bf16.msra.mxu0 %v3067
    %3567 = vmatpush.bf16.msra.mxu0 %v3064
    %3568 = vmatpush.bf16.msra.mxu0 %v3061
    %3569 = vmatmul.bf16.gmra.mxu0 %v3547
    %v3570 = vpop.f32.mrf.mxu0
    %v3571 = vadd.f32 0.0, %v3570
    %v3572 = vpop.f32.mrf.mxu0
    %3573 = vdwg.mxu0
    %3574 = vmatpush.bf16.msra.mxu0 %v3083
    %3575 = vmatpush.bf16.msra.mxu0 %v3080
    %3576 = vmatpush.bf16.msra.mxu0 %v3077
    %3577 = vmatpush.bf16.msra.mxu0 %v3074
    %3578 = vmatpush.bf16.msra.mxu0 %v3071
    %3579 = vmatpush.bf16.msra.mxu0 %v3068
    %3580 = vmatpush.bf16.msra.mxu0 %v3065
    %3581 = vmatpush.bf16.msra.mxu0 %v3062
    %3582 = vmatmul.bf16.gmra.mxu0 %v3547
    %v3583 = vpop.f32.mrf.mxu0
    %v3584 = vadd.f32 0.0, %v3583
    %v3585 = vpop.f32.mrf.mxu0
    %3586 = vdwg.mxu0
    %v3587 = vadd.f32 %v2879, %v3558
    %v3588 = vxor.u32 %v3587, 2147483648
    %v3589 = vmul.f32 %v3588, 1.442695
    %v3590 = vpow.pop %v3589
    %v3591 = vadd.f32 %v3590, 1.0
    %v3592 = vrcp.pop %v3591
    %v3593 = vmul.f32 %v3591, %v3592
    %v3594 = vsub.f32 1.0, %v3593
    %v3595 = vmul.f32 %v3592, %v3594
    %v3596 = vadd.f32 %v3592, %v3595
    %vm3597 = vweird.f32 %v3591
    %vm3598 = vweird.f32 %v3592
    %vm3599 = vmor %vm3597, %vm3598
    %v3600 = vsel %vm3599, %v3592, %v3596
    %v3601 = vand.u32 2147483647, %v3591
    %vm3602 = vcmp.eq.f32.partialorder %v3601, 8.507059e+37
    %v3603 = vand.u32 %v3591, 2147483648
    %v3604 = vor.u32 1.1754944e-38, %v3603
    %v3605 = vsel %vm3602, %v3604, %v3600
    %v3606 = vmul.f32 1.0, %v3605
    %v3607 = vadd.f32 %v2908, %v3571
    %v3608 = vxor.u32 %v3607, 2147483648
    %v3609 = vmul.f32 %v3608, 1.442695
    %v3610 = vpow.pop %v3609
    %v3611 = vadd.f32 %v3610, 1.0
    %v3612 = vrcp.pop %v3611
    %v3613 = vmul.f32 %v3611, %v3612
    %v3614 = vsub.f32 1.0, %v3613
    %v3615 = vmul.f32 %v3612, %v3614
    %v3616 = vadd.f32 %v3612, %v3615
    %vm3617 = vweird.f32 %v3611
    %vm3618 = vweird.f32 %v3612
    %vm3619 = vmor %vm3617, %vm3618
    %v3620 = vsel %vm3619, %v3612, %v3616
    %v3621 = vand.u32 2147483647, %v3611
    %vm3622 = vcmp.eq.f32.partialorder %v3621, 8.507059e+37
    %v3623 = vand.u32 %v3611, 2147483648
    %v3624 = vor.u32 1.1754944e-38, %v3623
    %v3625 = vsel %vm3622, %v3624, %v3620
    %v3626 = vmul.f32 1.0, %v3625
    %v3627 = vadd.f32 %v3584, %v2978
    %v3628 = vmul.f32 %v3606, %v3627
    %v3629 = vadd.f32 %v2937, %v3628
    %v3630 = vtanh.pop %v3629
    %v3631 = vsub.f32 1.0, %v3626
    %v3632 = vmul.f32 %v3631, %v3630
    %v3633 = vmul.f32 %v3626, %v3546
    %v3634 = vadd.f32 %v3632, %v3633
    %v3635 = vpack.c.bf16 %v3634, %v3634
    %3636 = vmatpush.bf16.msra.mxu0 %v3081
    %3637 = vmatpush.bf16.msra.mxu0 %v3078
    %3638 = vmatpush.bf16.msra.mxu0 %v3075
    %3639 = vmatpush.bf16.msra.mxu0 %v3072
    %3640 = vmatpush.bf16.msra.mxu0 %v3069
    %3641 = vmatpush.bf16.msra.mxu0 %v3066
    %3642 = vmatpush.bf16.msra.mxu0 %v3063
    %3643 = vmatpush.bf16.msra.mxu0 %v3060
    %3644 = vmatmul.bf16.gmra.mxu0 %v3635
    %v3645 = vpop.f32.mrf.mxu0
    %v3646 = vadd.f32 0.0, %v3645
    %v3647 = vpop.f32.mrf.mxu0
    %3648 = vdwg.mxu0
    %3649 = vmatpush.bf16.msra.mxu0 %v3082
    %3650 = vmatpush.bf16.msra.mxu0 %v3079
    %3651 = vmatpush.bf16.msra.mxu0 %v3076
    %3652 = vmatpush.bf16.msra.mxu0 %v3073
    %3653 = vmatpush.bf16.msra.mxu0 %v3070
    %3654 = vmatpush.bf16.msra.mxu0 %v3067
    %3655 = vmatpush.bf16.msra.mxu0 %v3064
    %3656 = vmatpush.bf16.msra.mxu0 %v3061
    %3657 = vmatmul.bf16.gmra.mxu0 %v3635
    %v3658 = vpop.f32.mrf.mxu0
    %v3659 = vadd.f32 0.0, %v3658
    %v3660 = vpop.f32.mrf.mxu0
    %3661 = vdwg.mxu0
    %3662 = vmatpush.bf16.msra.mxu0 %v3083
    %3663 = vmatpush.bf16.msra.mxu0 %v3080
    %3664 = vmatpush.bf16.msra.mxu0 %v3077
    %3665 = vmatpush.bf16.msra.mxu0 %v3074
    %3666 = vmatpush.bf16.msra.mxu0 %v3071
    %3667 = vmatpush.bf16.msra.mxu0 %v3068
    %3668 = vmatpush.bf16.msra.mxu0 %v3065
    %3669 = vmatpush.bf16.msra.mxu0 %v3062
    %3670 = vmatmul.bf16.gmra.mxu0 %v3635
    %v3671 = vpop.f32.mrf.mxu0
    %v3672 = vadd.f32 0.0, %v3671
    %v3673 = vpop.f32.mrf.mxu0
    %3674 = vdwg.mxu0
    %v3675 = vadd.f32 %v2882, %v3646
    %v3676 = vxor.u32 %v3675, 2147483648
    %v3677 = vmul.f32 %v3676, 1.442695
    %v3678 = vpow.pop %v3677
    %v3679 = vadd.f32 %v3678, 1.0
    %v3680 = vrcp.pop %v3679
    %v3681 = vmul.f32 %v3679, %v3680
    %v3682 = vsub.f32 1.0, %v3681
    %v3683 = vmul.f32 %v3680, %v3682
    %v3684 = vadd.f32 %v3680, %v3683
    %vm3685 = vweird.f32 %v3679
    %vm3686 = vweird.f32 %v3680
    %vm3687 = vmor %vm3685, %vm3686
    %v3688 = vsel %vm3687, %v3680, %v3684
    %v3689 = vand.u32 2147483647, %v3679
    %vm3690 = vcmp.eq.f32.partialorder %v3689, 8.507059e+37
    %v3691 = vand.u32 %v3679, 2147483648
    %v3692 = vor.u32 1.1754944e-38, %v3691
    %v3693 = vsel %vm3690, %v3692, %v3688
    %v3694 = vmul.f32 1.0, %v3693
    %v3695 = vadd.f32 %v2911, %v3659
    %v3696 = vxor.u32 %v3695, 2147483648
    %v3697 = vmul.f32 %v3696, 1.442695
    %v3698 = vpow.pop %v3697
    %v3699 = vadd.f32 %v3698, 1.0
    %v3700 = vrcp.pop %v3699
    %v3701 = vmul.f32 %v3699, %v3700
    %v3702 = vsub.f32 1.0, %v3701
    %v3703 = vmul.f32 %v3700, %v3702
    %v3704 = vadd.f32 %v3700, %v3703
    %vm3705 = vweird.f32 %v3699
    %vm3706 = vweird.f32 %v3700
    %vm3707 = vmor %vm3705, %vm3706
    %v3708 = vsel %vm3707, %v3700, %v3704
    %v3709 = vand.u32 2147483647, %v3699
    %vm3710 = vcmp.eq.f32.partialorder %v3709, 8.507059e+37
    %v3711 = vand.u32 %v3699, 2147483648
    %v3712 = vor.u32 1.1754944e-38, %v3711
    %v3713 = vsel %vm3710, %v3712, %v3708
    %v3714 = vmul.f32 1.0, %v3713
    %v3715 = vadd.f32 %v3672, %v2978
    %v3716 = vmul.f32 %v3694, %v3715
    %v3717 = vadd.f32 %v2940, %v3716
    %v3718 = vtanh.pop %v3717
    %v3719 = vsub.f32 1.0, %v3714
    %v3720 = vmul.f32 %v3719, %v3718
    %v3721 = vmul.f32 %v3714, %v3634
    %v3722 = vadd.f32 %v3720, %v3721
    %v3723 = vpack.c.bf16 %v3722, %v3722
    %3724 = vmatpush.bf16.msra.mxu0 %v3081
    %3725 = vmatpush.bf16.msra.mxu0 %v3078
    %3726 = vmatpush.bf16.msra.mxu0 %v3075
    %3727 = vmatpush.bf16.msra.mxu0 %v3072
    %3728 = vmatpush.bf16.msra.mxu0 %v3069
    %3729 = vmatpush.bf16.msra.mxu0 %v3066
    %3730 = vmatpush.bf16.msra.mxu0 %v3063
    %3731 = vmatpush.bf16.msra.mxu0 %v3060
    %3732 = vmatmul.bf16.gmra.mxu0 %v3723
    %v3733 = vpop.f32.mrf.mxu0
    %v3734 = vadd.f32 0.0, %v3733
    %v3735 = vpop.f32.mrf.mxu0
    %3736 = vdwg.mxu0
    %3737 = vmatpush.bf16.msra.mxu0 %v3082
    %3738 = vmatpush.bf16.msra.mxu0 %v3079
    %3739 = vmatpush.bf16.msra.mxu0 %v3076
    %3740 = vmatpush.bf16.msra.mxu0 %v3073
    %3741 = vmatpush.bf16.msra.mxu0 %v3070
    %3742 = vmatpush.bf16.msra.mxu0 %v3067
    %3743 = vmatpush.bf16.msra.mxu0 %v3064
    %3744 = vmatpush.bf16.msra.mxu0 %v3061
    %3745 = vmatmul.bf16.gmra.mxu0 %v3723
    %v3746 = vpop.f32.mrf.mxu0
    %v3747 = vadd.f32 0.0, %v3746
    %v3748 = vpop.f32.mrf.mxu0
    %3749 = vdwg.mxu0
    %3750 = vmatpush.bf16.msra.mxu0 %v3083
    %3751 = vmatpush.bf16.msra.mxu0 %v3080
    %3752 = vmatpush.bf16.msra.mxu0 %v3077
    %3753 = vmatpush.bf16.msra.mxu0 %v3074
    %3754 = vmatpush.bf16.msra.mxu0 %v3071
    %3755 = vmatpush.bf16.msra.mxu0 %v3068
    %3756 = vmatpush.bf16.msra.mxu0 %v3065
    %3757 = vmatpush.bf16.msra.mxu0 %v3062
    %3758 = vmatmul.bf16.gmra.mxu0 %v3723
    %v3759 = vpop.f32.mrf.mxu0
    %v3760 = vadd.f32 0.0, %v3759
    %v3761 = vpop.f32.mrf.mxu0
    %3762 = vdwg.mxu0
    %v3763 = vadd.f32 %v2884, %v3734
    %v3764 = vxor.u32 %v3763, 2147483648
    %v3765 = vmul.f32 %v3764, 1.442695
    %v3766 = vpow.pop %v3765
    %v3767 = vadd.f32 %v3766, 1.0
    %v3768 = vrcp.pop %v3767
    %v3769 = vmul.f32 %v3767, %v3768
    %v3770 = vsub.f32 1.0, %v3769
    %v3771 = vmul.f32 %v3768, %v3770
    %v3772 = vadd.f32 %v3768, %v3771
    %vm3773 = vweird.f32 %v3767
    %vm3774 = vweird.f32 %v3768
    %vm3775 = vmor %vm3773, %vm3774
    %v3776 = vsel %vm3775, %v3768, %v3772
    %v3777 = vand.u32 2147483647, %v3767
    %vm3778 = vcmp.eq.f32.partialorder %v3777, 8.507059e+37
    %v3779 = vand.u32 %v3767, 2147483648
    %v3780 = vor.u32 1.1754944e-38, %v3779
    %v3781 = vsel %vm3778, %v3780, %v3776
    %v3782 = vmul.f32 1.0, %v3781
    %v3783 = vadd.f32 %v2913, %v3747
    %v3784 = vxor.u32 %v3783, 2147483648
    %v3785 = vmul.f32 %v3784, 1.442695
    %v3786 = vpow.pop %v3785
    %v3787 = vadd.f32 %v3786, 1.0
    %v3788 = vrcp.pop %v3787
    %v3789 = vmul.f32 %v3787, %v3788
    %v3790 = vsub.f32 1.0, %v3789
    %v3791 = vmul.f32 %v3788, %v3790
    %v3792 = vadd.f32 %v3788, %v3791
    %vm3793 = vweird.f32 %v3787
    %vm3794 = vweird.f32 %v3788
    %vm3795 = vmor %vm3793, %vm3794
    %v3796 = vsel %vm3795, %v3788, %v3792
    %v3797 = vand.u32 2147483647, %v3787
    %vm3798 = vcmp.eq.f32.partialorder %v3797, 8.507059e+37
    %v3799 = vand.u32 %v3787, 2147483648
    %v3800 = vor.u32 1.1754944e-38, %v3799
    %v3801 = vsel %vm3798, %v3800, %v3796
    %v3802 = vmul.f32 1.0, %v3801
    %v3803 = vadd.f32 %v3760, %v2978
    %v3804 = vmul.f32 %v3782, %v3803
    %v3805 = vadd.f32 %v2942, %v3804
    %v3806 = vtanh.pop %v3805
    %v3807 = vsub.f32 1.0, %v3802
    %v3808 = vmul.f32 %v3807, %v3806
    %v3809 = vmul.f32 %v3802, %v3722
    %v3810 = vadd.f32 %v3808, %v3809
    %v3811 = vpack.c.bf16 %v3282, %v3194
    %v3812 = vpack.c.bf16 %v3458, %v3370
    %v3813 = vpack.c.bf16 %v3634, %v3546
    %v3814 = vpack.c.bf16 %v3810, %v3722
    %s3815 = scalar_lea.vmem [#allocation10], 192
    %v3816 = vld [vmem:[%s3815] sm:$0xff]
    %v3817 = vld [vmem:[%s3815 + $0x8] sm:$0xf]
    %v3818 = vld [vmem:[%s3815 + $0xc] sm:$0xff]
    %v3819 = vld [vmem:[%s3815 + $0x14] sm:$0xf]
    %v3820 = vld [vmem:[%s3815 + $0x18] sm:$0xff]
    %v3821 = vld [vmem:[%s3815 + $0x20] sm:$0xf]
    %v3822 = vld [vmem:[%s3815 + $0x24] sm:$0xff]
    %v3823 = vld [vmem:[%s3815 + $0x2c] sm:$0xf]
    %v3824 = vld [vmem:[%s3815 + $0x30] sm:$0xff]
    %v3825 = vld [vmem:[%s3815 + $0x38] sm:$0xf]
    %v3826 = vld [vmem:[%s3815 + $0x3c] sm:$0xff]
    %v3827 = vld [vmem:[%s3815 + $0x44] sm:$0xf]
    %v3828 = vld [vmem:[%s3815 + $0x48] sm:$0xff]
    %v3829 = vld [vmem:[%s3815 + $0x50] sm:$0xf]
    %v3830 = vld [vmem:[%s3815 + $0x54] sm:$0xff]
    %v3831 = vld [vmem:[%s3815 + $0x5c] sm:$0xf]
    %v3832 = vld [vmem:[%s3815 + $0x60] sm:$0xff]
    %v3833 = vld [vmem:[%s3815 + $0x68] sm:$0xf]
    %v3834 = vld [vmem:[%s3815 + $0x6c] sm:$0xff]
    %v3835 = vld [vmem:[%s3815 + $0x74] sm:$0xf]
    %v3836 = vld [vmem:[%s3815 + $0x78] sm:$0xff]
    %v3837 = vld [vmem:[%s3815 + $0x80] sm:$0xf]
    %v3838 = vld [vmem:[%s3815 + $0x84] sm:$0xff]
    %v3839 = vld [vmem:[%s3815 + $0x8c] sm:$0xf]
    %v3840 = vld [vmem:[%s3815 + $0x90] sm:$0xff]
    %v3841 = vld [vmem:[%s3815 + $0x98] sm:$0xf]
    %v3842 = vld [vmem:[%s3815 + $0x9c] sm:$0xff]
    %v3843 = vld [vmem:[%s3815 + $0xa4] sm:$0xf]
    %v3844 = vld [vmem:[%s3815 + $0xa8] sm:$0xff]
    %v3845 = vld [vmem:[%s3815 + $0xb0] sm:$0xf]
    %v3846 = vld [vmem:[%s3815 + $0xb4] sm:$0xff]
    %v3847 = vld [vmem:[%s3815 + $0xbc] sm:$0xf]
    %s3848 = scalar_lea.vmem [#allocation11], 3
    %v3849 = vld [vmem:[%s3848] sm:$0x7]
    %v3851 = vperm.slane %v3849, 0
    %v3852 = vperm.slane %v3849, 1
    %v3853 = vperm.slane %v3849, 2
    %v3889 = vunpack.c.l.b16 %v3816
    %v3890 = vunpack.c.h.b16 %v3816
    %v3891 = vunpack.c.l.b16 %v3817
    %v3892 = vunpack.c.l.b16 %v3818
    %v3893 = vunpack.c.h.b16 %v3818
    %v3894 = vunpack.c.l.b16 %v3819
    %v3895 = vunpack.c.l.b16 %v3820
    %v3896 = vunpack.c.h.b16 %v3820
    %v3897 = vunpack.c.l.b16 %v3821
    %v3898 = vunpack.c.l.b16 %v3822
    %v3899 = vunpack.c.h.b16 %v3822
    %v3900 = vunpack.c.l.b16 %v3823
    %v3901 = vunpack.c.l.b16 %v3824
    %v3902 = vunpack.c.h.b16 %v3824
    %v3903 = vunpack.c.l.b16 %v3825
    %v3904 = vunpack.c.l.b16 %v3826
    %v3905 = vunpack.c.h.b16 %v3826
    %v3906 = vunpack.c.l.b16 %v3827
    %v3907 = vunpack.c.l.b16 %v3828
    %v3908 = vunpack.c.h.b16 %v3828
    %v3909 = vunpack.c.l.b16 %v3829
    %v3910 = vunpack.c.l.b16 %v3830
    %v3911 = vunpack.c.h.b16 %v3830
    %v3912 = vunpack.c.l.b16 %v3831
    %v3913 = vunpack.c.l.b16 %v3832
    %v3914 = vunpack.c.h.b16 %v3832
    %v3915 = vunpack.c.l.b16 %v3833
    %v3916 = vunpack.c.l.b16 %v3834
    %v3917 = vunpack.c.h.b16 %v3834
    %v3918 = vunpack.c.l.b16 %v3835
    %v3919 = vunpack.c.l.b16 %v3836
    %v3920 = vunpack.c.h.b16 %v3836
    %v3921 = vunpack.c.l.b16 %v3837
    %v3922 = vunpack.c.l.b16 %v3838
    %v3923 = vunpack.c.h.b16 %v3838
    %v3924 = vunpack.c.l.b16 %v3839
    %v3925 = vunpack.c.l.b16 %v3840
    %v3926 = vunpack.c.h.b16 %v3840
    %v3927 = vunpack.c.l.b16 %v3841
    %v3928 = vunpack.c.l.b16 %v3842
    %v3929 = vunpack.c.h.b16 %v3842
    %v3930 = vunpack.c.l.b16 %v3843
    %v3931 = vunpack.c.l.b16 %v3844
    %v3932 = vunpack.c.h.b16 %v3844
    %v3933 = vunpack.c.l.b16 %v3845
    %v3934 = vunpack.c.l.b16 %v3846
    %v3935 = vunpack.c.h.b16 %v3846
    %v3936 = vunpack.c.l.b16 %v3847
    %v3937 = vpack.c.b16 %v3892, %v3889
    %v3938 = vpack.c.b16 %v3893, %v3890
    %v3939 = vpack.c.b16 %v3894, %v3891
    %v3940 = vpack.c.b16 %v3898, %v3895
    %v3941 = vpack.c.b16 %v3899, %v3896
    %v3942 = vpack.c.b16 %v3900, %v3897
    %v3943 = vpack.c.b16 %v3904, %v3901
    %v3944 = vpack.c.b16 %v3905, %v3902
    %v3945 = vpack.c.b16 %v3906, %v3903
    %v3946 = vpack.c.b16 %v3910, %v3907
    %v3947 = vpack.c.b16 %v3911, %v3908
    %v3948 = vpack.c.b16 %v3912, %v3909
    %v3949 = vpack.c.b16 %v3916, %v3913
    %v3950 = vpack.c.b16 %v3917, %v3914
    %v3951 = vpack.c.b16 %v3918, %v3915
    %v3952 = vpack.c.b16 %v3922, %v3919
    %v3953 = vpack.c.b16 %v3923, %v3920
    %v3954 = vpack.c.b16 %v3924, %v3921
    %v3955 = vpack.c.b16 %v3928, %v3925
    %v3956 = vpack.c.b16 %v3929, %v3926
    %v3957 = vpack.c.b16 %v3930, %v3927
    %v3958 = vpack.c.b16 %v3934, %v3931
    %v3959 = vpack.c.b16 %v3935, %v3932
    %v3960 = vpack.c.b16 %v3936, %v3933
    %3985 = vmatpush.bf16.msra.mxu0 %v3958
    %3986 = vmatpush.bf16.msra.mxu0 %v3955
    %3987 = vmatpush.bf16.msra.mxu0 %v3952
    %3988 = vmatpush.bf16.msra.mxu0 %v3949
    %3989 = vmatpush.bf16.msra.mxu0 %v3946
    %3990 = vmatpush.bf16.msra.mxu0 %v3943
    %3991 = vmatpush.bf16.msra.mxu0 %v3940
    %3992 = vmatpush.bf16.msra.mxu0 %v3937
    %3993 = vmatmul.bf16.gmra.mxu0 %v3811
    %v3994 = vpop.f32.mrf.mxu0
    %v3995 = vadd.f32 %v3851, %v3994
    %v3996 = vpop.f32.mrf.mxu0
    %v3997 = vadd.f32 %v3851, %v3996
    %3998 = vmatmul.bf16.gmra.mxu0 %v3812
    %v3999 = vpop.f32.mrf.mxu0
    %v4000 = vadd.f32 %v3851, %v3999
    %v4001 = vpop.f32.mrf.mxu0
    %v4002 = vadd.f32 %v3851, %v4001
    %4003 = vmatmul.bf16.gmra.mxu0 %v3813
    %v4004 = vpop.f32.mrf.mxu0
    %v4005 = vadd.f32 %v3851, %v4004
    %v4006 = vpop.f32.mrf.mxu0
    %v4007 = vadd.f32 %v3851, %v4006
    %4008 = vmatmul.bf16.gmra.mxu0 %v3814
    %v4009 = vpop.f32.mrf.mxu0
    %v4010 = vadd.f32 %v3851, %v4009
    %v4011 = vpop.f32.mrf.mxu0
    %v4012 = vadd.f32 %v3851, %v4011
    %4013 = vdwg.mxu0
    %4014 = vmatpush.bf16.msra.mxu0 %v3959
    %4015 = vmatpush.bf16.msra.mxu0 %v3956
    %4016 = vmatpush.bf16.msra.mxu0 %v3953
    %4017 = vmatpush.bf16.msra.mxu0 %v3950
    %4018 = vmatpush.bf16.msra.mxu0 %v3947
    %4019 = vmatpush.bf16.msra.mxu0 %v3944
    %4020 = vmatpush.bf16.msra.mxu0 %v3941
    %4021 = vmatpush.bf16.msra.mxu0 %v3938
    %4022 = vmatmul.bf16.gmra.mxu0 %v3811
    %v4023 = vpop.f32.mrf.mxu0
    %v4024 = vadd.f32 %v3852, %v4023
    %v4025 = vpop.f32.mrf.mxu0
    %v4026 = vadd.f32 %v3852, %v4025
    %4027 = vmatmul.bf16.gmra.mxu0 %v3812
    %v4028 = vpop.f32.mrf.mxu0
    %v4029 = vadd.f32 %v3852, %v4028
    %v4030 = vpop.f32.mrf.mxu0
    %v4031 = vadd.f32 %v3852, %v4030
    %4032 = vmatmul.bf16.gmra.mxu0 %v3813
    %v4033 = vpop.f32.mrf.mxu0
    %v4034 = vadd.f32 %v3852, %v4033
    %v4035 = vpop.f32.mrf.mxu0
    %v4036 = vadd.f32 %v3852, %v4035
    %4037 = vmatmul.bf16.gmra.mxu0 %v3814
    %v4038 = vpop.f32.mrf.mxu0
    %v4039 = vadd.f32 %v3852, %v4038
    %v4040 = vpop.f32.mrf.mxu0
    %v4041 = vadd.f32 %v3852, %v4040
    %4042 = vdwg.mxu0
    %4043 = vmatpush.bf16.msra.mxu0 %v3960
    %4044 = vmatpush.bf16.msra.mxu0 %v3957
    %4045 = vmatpush.bf16.msra.mxu0 %v3954
    %4046 = vmatpush.bf16.msra.mxu0 %v3951
    %4047 = vmatpush.bf16.msra.mxu0 %v3948
    %4048 = vmatpush.bf16.msra.mxu0 %v3945
    %4049 = vmatpush.bf16.msra.mxu0 %v3942
    %4050 = vmatpush.bf16.msra.mxu0 %v3939
    %4051 = vmatmul.bf16.gmra.mxu0 %v3811
    %v4052 = vpop.f32.mrf.mxu0
    %v4053 = vadd.f32 %v3853, %v4052
    %v4054 = vpop.f32.mrf.mxu0
    %v4055 = vadd.f32 %v3853, %v4054
    %4056 = vmatmul.bf16.gmra.mxu0 %v3812
    %v4057 = vpop.f32.mrf.mxu0
    %v4058 = vadd.f32 %v3853, %v4057
    %v4059 = vpop.f32.mrf.mxu0
    %v4060 = vadd.f32 %v3853, %v4059
    %4061 = vmatmul.bf16.gmra.mxu0 %v3813
    %v4062 = vpop.f32.mrf.mxu0
    %v4063 = vadd.f32 %v3853, %v4062
    %v4064 = vpop.f32.mrf.mxu0
    %v4065 = vadd.f32 %v3853, %v4064
    %4066 = vmatmul.bf16.gmra.mxu0 %v3814
    %v4067 = vpop.f32.mrf.mxu0
    %v4068 = vadd.f32 %v3853, %v4067
    %v4069 = vpop.f32.mrf.mxu0
    %v4070 = vadd.f32 %v3853, %v4069
    %4071 = vdwg.mxu0
    %s4072 = scalar_lea.vmem [#allocation13], 192
    %v4073 = vld [vmem:[%s4072] sm:$0xff]
    %v4074 = vld [vmem:[%s4072 + $0x8] sm:$0xf]
    %v4075 = vld [vmem:[%s4072 + $0xc] sm:$0xff]
    %v4076 = vld [vmem:[%s4072 + $0x14] sm:$0xf]
    %v4077 = vld [vmem:[%s4072 + $0x18] sm:$0xff]
    %v4078 = vld [vmem:[%s4072 + $0x20] sm:$0xf]
    %v4079 = vld [vmem:[%s4072 + $0x24] sm:$0xff]
    %v4080 = vld [vmem:[%s4072 + $0x2c] sm:$0xf]
    %v4081 = vld [vmem:[%s4072 + $0x30] sm:$0xff]
    %v4082 = vld [vmem:[%s4072 + $0x38] sm:$0xf]
    %v4083 = vld [vmem:[%s4072 + $0x3c] sm:$0xff]
    %v4084 = vld [vmem:[%s4072 + $0x44] sm:$0xf]
    %v4085 = vld [vmem:[%s4072 + $0x48] sm:$0xff]
    %v4086 = vld [vmem:[%s4072 + $0x50] sm:$0xf]
    %v4087 = vld [vmem:[%s4072 + $0x54] sm:$0xff]
    %v4088 = vld [vmem:[%s4072 + $0x5c] sm:$0xf]
    %v4089 = vld [vmem:[%s4072 + $0x60] sm:$0xff]
    %v4090 = vld [vmem:[%s4072 + $0x68] sm:$0xf]
    %v4091 = vld [vmem:[%s4072 + $0x6c] sm:$0xff]
    %v4092 = vld [vmem:[%s4072 + $0x74] sm:$0xf]
    %v4093 = vld [vmem:[%s4072 + $0x78] sm:$0xff]
    %v4094 = vld [vmem:[%s4072 + $0x80] sm:$0xf]
    %v4095 = vld [vmem:[%s4072 + $0x84] sm:$0xff]
    %v4096 = vld [vmem:[%s4072 + $0x8c] sm:$0xf]
    %v4097 = vld [vmem:[%s4072 + $0x90] sm:$0xff]
    %v4098 = vld [vmem:[%s4072 + $0x98] sm:$0xf]
    %v4099 = vld [vmem:[%s4072 + $0x9c] sm:$0xff]
    %v4100 = vld [vmem:[%s4072 + $0xa4] sm:$0xf]
    %v4101 = vld [vmem:[%s4072 + $0xa8] sm:$0xff]
    %v4102 = vld [vmem:[%s4072 + $0xb0] sm:$0xf]
    %v4103 = vld [vmem:[%s4072 + $0xb4] sm:$0xff]
    %v4104 = vld [vmem:[%s4072 + $0xbc] sm:$0xf]
    %s4105 = scalar_lea.vmem %s8, 1
    %v4106 = vld [vmem:[%s4105] sm:$0x1]
    %v4108 = vperm.slane %v4106, 0
    %v4142 = vunpack.c.l.b16 %v4073
    %v4143 = vunpack.c.h.b16 %v4073
    %v4144 = vunpack.c.l.b16 %v4074
    %v4145 = vunpack.c.l.b16 %v4075
    %v4146 = vunpack.c.h.b16 %v4075
    %v4147 = vunpack.c.l.b16 %v4076
    %v4148 = vunpack.c.l.b16 %v4077
    %v4149 = vunpack.c.h.b16 %v4077
    %v4150 = vunpack.c.l.b16 %v4078
    %v4151 = vunpack.c.l.b16 %v4079
    %v4152 = vunpack.c.h.b16 %v4079
    %v4153 = vunpack.c.l.b16 %v4080
    %v4154 = vunpack.c.l.b16 %v4081
    %v4155 = vunpack.c.h.b16 %v4081
    %v4156 = vunpack.c.l.b16 %v4082
    %v4157 = vunpack.c.l.b16 %v4083
    %v4158 = vunpack.c.h.b16 %v4083
    %v4159 = vunpack.c.l.b16 %v4084
    %v4160 = vunpack.c.l.b16 %v4085
    %v4161 = vunpack.c.h.b16 %v4085
    %v4162 = vunpack.c.l.b16 %v4086
    %v4163 = vunpack.c.l.b16 %v4087
    %v4164 = vunpack.c.h.b16 %v4087
    %v4165 = vunpack.c.l.b16 %v4088
    %v4166 = vunpack.c.l.b16 %v4089
    %v4167 = vunpack.c.h.b16 %v4089
    %v4168 = vunpack.c.l.b16 %v4090
    %v4169 = vunpack.c.l.b16 %v4091
    %v4170 = vunpack.c.h.b16 %v4091
    %v4171 = vunpack.c.l.b16 %v4092
    %v4172 = vunpack.c.l.b16 %v4093
    %v4173 = vunpack.c.h.b16 %v4093
    %v4174 = vunpack.c.l.b16 %v4094
    %v4175 = vunpack.c.l.b16 %v4095
    %v4176 = vunpack.c.h.b16 %v4095
    %v4177 = vunpack.c.l.b16 %v4096
    %v4178 = vunpack.c.l.b16 %v4097
    %v4179 = vunpack.c.h.b16 %v4097
    %v4180 = vunpack.c.l.b16 %v4098
    %v4181 = vunpack.c.l.b16 %v4099
    %v4182 = vunpack.c.h.b16 %v4099
    %v4183 = vunpack.c.l.b16 %v4100
    %v4184 = vunpack.c.l.b16 %v4101
    %v4185 = vunpack.c.h.b16 %v4101
    %v4186 = vunpack.c.l.b16 %v4102
    %v4187 = vunpack.c.l.b16 %v4103
    %v4188 = vunpack.c.h.b16 %v4103
    %v4189 = vunpack.c.l.b16 %v4104
    %v4190 = vpack.c.b16 %v4145, %v4142
    %v4191 = vpack.c.b16 %v4146, %v4143
    %v4192 = vpack.c.b16 %v4147, %v4144
    %v4193 = vpack.c.b16 %v4151, %v4148
    %v4194 = vpack.c.b16 %v4152, %v4149
    %v4195 = vpack.c.b16 %v4153, %v4150
    %v4196 = vpack.c.b16 %v4157, %v4154
    %v4197 = vpack.c.b16 %v4158, %v4155
    %v4198 = vpack.c.b16 %v4159, %v4156
    %v4199 = vpack.c.b16 %v4163, %v4160
    %v4200 = vpack.c.b16 %v4164, %v4161
    %v4201 = vpack.c.b16 %v4165, %v4162
    %v4202 = vpack.c.b16 %v4169, %v4166
    %v4203 = vpack.c.b16 %v4170, %v4167
    %v4204 = vpack.c.b16 %v4171, %v4168
    %v4205 = vpack.c.b16 %v4175, %v4172
    %v4206 = vpack.c.b16 %v4176, %v4173
    %v4207 = vpack.c.b16 %v4177, %v4174
    %v4208 = vpack.c.b16 %v4181, %v4178
    %v4209 = vpack.c.b16 %v4182, %v4179
    %v4210 = vpack.c.b16 %v4183, %v4180
    %v4211 = vpack.c.b16 %v4187, %v4184
    %v4212 = vpack.c.b16 %v4188, %v4185
    %v4213 = vpack.c.b16 %v4189, %v4186
    %4238 = vmatpush.bf16.msra.mxu0 %v4211
    %4239 = vmatpush.bf16.msra.mxu0 %v4208
    %4240 = vmatpush.bf16.msra.mxu0 %v4205
    %4241 = vmatpush.bf16.msra.mxu0 %v4202
    %4242 = vmatpush.bf16.msra.mxu0 %v4199
    %4243 = vmatpush.bf16.msra.mxu0 %v4196
    %4244 = vmatpush.bf16.msra.mxu0 %v4193
    %4245 = vmatpush.bf16.msra.mxu0 %v4190
    %4246 = vmatmul.bf16.gmra.mxu0 0
    %v4247 = vpop.f32.mrf.mxu0
    %v4248 = vadd.f32 0.0, %v4247
    %v4249 = vpop.f32.mrf.mxu0
    %4250 = vdwg.mxu0
    %4251 = vmatpush.bf16.msra.mxu0 %v4212
    %4252 = vmatpush.bf16.msra.mxu0 %v4209
    %4253 = vmatpush.bf16.msra.mxu0 %v4206
    %4254 = vmatpush.bf16.msra.mxu0 %v4203
    %4255 = vmatpush.bf16.msra.mxu0 %v4200
    %4256 = vmatpush.bf16.msra.mxu0 %v4197
    %4257 = vmatpush.bf16.msra.mxu0 %v4194
    %4258 = vmatpush.bf16.msra.mxu0 %v4191
    %4259 = vmatmul.bf16.gmra.mxu0 0
    %v4260 = vpop.f32.mrf.mxu0
    %v4261 = vadd.f32 0.0, %v4260
    %v4262 = vpop.f32.mrf.mxu0
    %4263 = vdwg.mxu0
    %4264 = vmatpush.bf16.msra.mxu0 %v4213
    %4265 = vmatpush.bf16.msra.mxu0 %v4210
    %4266 = vmatpush.bf16.msra.mxu0 %v4207
    %4267 = vmatpush.bf16.msra.mxu0 %v4204
    %4268 = vmatpush.bf16.msra.mxu0 %v4201
    %4269 = vmatpush.bf16.msra.mxu0 %v4198
    %4270 = vmatpush.bf16.msra.mxu0 %v4195
    %4271 = vmatpush.bf16.msra.mxu0 %v4192
    %4272 = vmatmul.bf16.gmra.mxu0 0
    %v4273 = vpop.f32.mrf.mxu0
    %v4274 = vadd.f32 0.0, %v4273
    %v4275 = vpop.f32.mrf.mxu0
    %4276 = vdwg.mxu0
    %v4277 = vadd.f32 %v3995, %v4248
    %v4278 = vxor.u32 %v4277, 2147483648
    %v4279 = vmul.f32 %v4278, 1.442695
    %v4280 = vpow.pop %v4279
    %v4281 = vadd.f32 %v4280, 1.0
    %v4282 = vrcp.pop %v4281
    %v4283 = vmul.f32 %v4281, %v4282
    %v4284 = vsub.f32 1.0, %v4283
    %v4285 = vmul.f32 %v4282, %v4284
    %v4286 = vadd.f32 %v4282, %v4285
    %vm4287 = vweird.f32 %v4281
    %vm4288 = vweird.f32 %v4282
    %vm4289 = vmor %vm4287, %vm4288
    %v4290 = vsel %vm4289, %v4282, %v4286
    %v4291 = vand.u32 2147483647, %v4281
    %vm4292 = vcmp.eq.f32.partialorder %v4291, 8.507059e+37
    %v4293 = vand.u32 %v4281, 2147483648
    %v4294 = vor.u32 1.1754944e-38, %v4293
    %v4295 = vsel %vm4292, %v4294, %v4290
    %v4296 = vmul.f32 1.0, %v4295
    %v4297 = vadd.f32 %v4024, %v4261
    %v4298 = vxor.u32 %v4297, 2147483648
    %v4299 = vmul.f32 %v4298, 1.442695
    %v4300 = vpow.pop %v4299
    %v4301 = vadd.f32 %v4300, 1.0
    %v4302 = vrcp.pop %v4301
    %v4303 = vmul.f32 %v4301, %v4302
    %v4304 = vsub.f32 1.0, %v4303
    %v4305 = vmul.f32 %v4302, %v4304
    %v4306 = vadd.f32 %v4302, %v4305
    %vm4307 = vweird.f32 %v4301
    %vm4308 = vweird.f32 %v4302
    %vm4309 = vmor %vm4307, %vm4308
    %v4310 = vsel %vm4309, %v4302, %v4306
    %v4311 = vand.u32 2147483647, %v4301
    %vm4312 = vcmp.eq.f32.partialorder %v4311, 8.507059e+37
    %v4313 = vand.u32 %v4301, 2147483648
    %v4314 = vor.u32 1.1754944e-38, %v4313
    %v4315 = vsel %vm4312, %v4314, %v4310
    %v4316 = vmul.f32 1.0, %v4315
    %v4317 = vadd.f32 %v4274, %v4108
    %v4318 = vmul.f32 %v4296, %v4317
    %v4319 = vadd.f32 %v4053, %v4318
    %v4320 = vtanh.pop %v4319
    %v4321 = vsub.f32 1.0, %v4316
    %v4322 = vmul.f32 %v4321, %v4320
    %v4323 = vmul.f32 %v4316, 0.0
    %v4324 = vadd.f32 %v4322, %v4323
    %v4325 = vpack.c.bf16 %v4324, %v4324
    %4326 = vmatpush.bf16.msra.mxu0 %v4211
    %4327 = vmatpush.bf16.msra.mxu0 %v4208
    %4328 = vmatpush.bf16.msra.mxu0 %v4205
    %4329 = vmatpush.bf16.msra.mxu0 %v4202
    %4330 = vmatpush.bf16.msra.mxu0 %v4199
    %4331 = vmatpush.bf16.msra.mxu0 %v4196
    %4332 = vmatpush.bf16.msra.mxu0 %v4193
    %4333 = vmatpush.bf16.msra.mxu0 %v4190
    %4334 = vmatmul.bf16.gmra.mxu0 %v4325
    %v4335 = vpop.f32.mrf.mxu0
    %v4336 = vadd.f32 0.0, %v4335
    %v4337 = vpop.f32.mrf.mxu0
    %4338 = vdwg.mxu0
    %4339 = vmatpush.bf16.msra.mxu0 %v4212
    %4340 = vmatpush.bf16.msra.mxu0 %v4209
    %4341 = vmatpush.bf16.msra.mxu0 %v4206
    %4342 = vmatpush.bf16.msra.mxu0 %v4203
    %4343 = vmatpush.bf16.msra.mxu0 %v4200
    %4344 = vmatpush.bf16.msra.mxu0 %v4197
    %4345 = vmatpush.bf16.msra.mxu0 %v4194
    %4346 = vmatpush.bf16.msra.mxu0 %v4191
    %4347 = vmatmul.bf16.gmra.mxu0 %v4325
    %v4348 = vpop.f32.mrf.mxu0
    %v4349 = vadd.f32 0.0, %v4348
    %v4350 = vpop.f32.mrf.mxu0
    %4351 = vdwg.mxu0
    %4352 = vmatpush.bf16.msra.mxu0 %v4213
    %4353 = vmatpush.bf16.msra.mxu0 %v4210
    %4354 = vmatpush.bf16.msra.mxu0 %v4207
    %4355 = vmatpush.bf16.msra.mxu0 %v4204
    %4356 = vmatpush.bf16.msra.mxu0 %v4201
    %4357 = vmatpush.bf16.msra.mxu0 %v4198
    %4358 = vmatpush.bf16.msra.mxu0 %v4195
    %4359 = vmatpush.bf16.msra.mxu0 %v4192
    %4360 = vmatmul.bf16.gmra.mxu0 %v4325
    %v4361 = vpop.f32.mrf.mxu0
    %v4362 = vadd.f32 0.0, %v4361
    %v4363 = vpop.f32.mrf.mxu0
    %4364 = vdwg.mxu0
    %v4365 = vadd.f32 %v3997, %v4336
    %v4366 = vxor.u32 %v4365, 2147483648
    %v4367 = vmul.f32 %v4366, 1.442695
    %v4368 = vpow.pop %v4367
    %v4369 = vadd.f32 %v4368, 1.0
    %v4370 = vrcp.pop %v4369
    %v4371 = vmul.f32 %v4369, %v4370
    %v4372 = vsub.f32 1.0, %v4371
    %v4373 = vmul.f32 %v4370, %v4372
    %v4374 = vadd.f32 %v4370, %v4373
    %vm4375 = vweird.f32 %v4369
    %vm4376 = vweird.f32 %v4370
    %vm4377 = vmor %vm4375, %vm4376
    %v4378 = vsel %vm4377, %v4370, %v4374
    %v4379 = vand.u32 2147483647, %v4369
    %vm4380 = vcmp.eq.f32.partialorder %v4379, 8.507059e+37
    %v4381 = vand.u32 %v4369, 2147483648
    %v4382 = vor.u32 1.1754944e-38, %v4381
    %v4383 = vsel %vm4380, %v4382, %v4378
    %v4384 = vmul.f32 1.0, %v4383
    %v4385 = vadd.f32 %v4026, %v4349
    %v4386 = vxor.u32 %v4385, 2147483648
    %v4387 = vmul.f32 %v4386, 1.442695
    %v4388 = vpow.pop %v4387
    %v4389 = vadd.f32 %v4388, 1.0
    %v4390 = vrcp.pop %v4389
    %v4391 = vmul.f32 %v4389, %v4390
    %v4392 = vsub.f32 1.0, %v4391
    %v4393 = vmul.f32 %v4390, %v4392
    %v4394 = vadd.f32 %v4390, %v4393
    %vm4395 = vweird.f32 %v4389
    %vm4396 = vweird.f32 %v4390
    %vm4397 = vmor %vm4395, %vm4396
    %v4398 = vsel %vm4397, %v4390, %v4394
    %v4399 = vand.u32 2147483647, %v4389
    %vm4400 = vcmp.eq.f32.partialorder %v4399, 8.507059e+37
    %v4401 = vand.u32 %v4389, 2147483648
    %v4402 = vor.u32 1.1754944e-38, %v4401
    %v4403 = vsel %vm4400, %v4402, %v4398
    %v4404 = vmul.f32 1.0, %v4403
    %v4405 = vadd.f32 %v4362, %v4108
    %v4406 = vmul.f32 %v4384, %v4405
    %v4407 = vadd.f32 %v4055, %v4406
    %v4408 = vtanh.pop %v4407
    %v4409 = vsub.f32 1.0, %v4404
    %v4410 = vmul.f32 %v4409, %v4408
    %v4411 = vmul.f32 %v4404, %v4324
    %v4412 = vadd.f32 %v4410, %v4411
    %v4413 = vpack.c.bf16 %v4412, %v4412
    %4414 = vmatpush.bf16.msra.mxu0 %v4211
    %4415 = vmatpush.bf16.msra.mxu0 %v4208
    %4416 = vmatpush.bf16.msra.mxu0 %v4205
    %4417 = vmatpush.bf16.msra.mxu0 %v4202
    %4418 = vmatpush.bf16.msra.mxu0 %v4199
    %4419 = vmatpush.bf16.msra.mxu0 %v4196
    %4420 = vmatpush.bf16.msra.mxu0 %v4193
    %4421 = vmatpush.bf16.msra.mxu0 %v4190
    %4422 = vmatmul.bf16.gmra.mxu0 %v4413
    %v4423 = vpop.f32.mrf.mxu0
    %v4424 = vadd.f32 0.0, %v4423
    %v4425 = vpop.f32.mrf.mxu0
    %4426 = vdwg.mxu0
    %4427 = vmatpush.bf16.msra.mxu0 %v4212
    %4428 = vmatpush.bf16.msra.mxu0 %v4209
    %4429 = vmatpush.bf16.msra.mxu0 %v4206
    %4430 = vmatpush.bf16.msra.mxu0 %v4203
    %4431 = vmatpush.bf16.msra.mxu0 %v4200
    %4432 = vmatpush.bf16.msra.mxu0 %v4197
    %4433 = vmatpush.bf16.msra.mxu0 %v4194
    %4434 = vmatpush.bf16.msra.mxu0 %v4191
    %4435 = vmatmul.bf16.gmra.mxu0 %v4413
    %v4436 = vpop.f32.mrf.mxu0
    %v4437 = vadd.f32 0.0, %v4436
    %v4438 = vpop.f32.mrf.mxu0
    %4439 = vdwg.mxu0
    %4440 = vmatpush.bf16.msra.mxu0 %v4213
    %4441 = vmatpush.bf16.msra.mxu0 %v4210
    %4442 = vmatpush.bf16.msra.mxu0 %v4207
    %4443 = vmatpush.bf16.msra.mxu0 %v4204
    %4444 = vmatpush.bf16.msra.mxu0 %v4201
    %4445 = vmatpush.bf16.msra.mxu0 %v4198
    %4446 = vmatpush.bf16.msra.mxu0 %v4195
    %4447 = vmatpush.bf16.msra.mxu0 %v4192
    %4448 = vmatmul.bf16.gmra.mxu0 %v4413
    %v4449 = vpop.f32.mrf.mxu0
    %v4450 = vadd.f32 0.0, %v4449
    %v4451 = vpop.f32.mrf.mxu0
    %4452 = vdwg.mxu0
    %v4453 = vadd.f32 %v4000, %v4424
    %v4454 = vxor.u32 %v4453, 2147483648
    %v4455 = vmul.f32 %v4454, 1.442695
    %v4456 = vpow.pop %v4455
    %v4457 = vadd.f32 %v4456, 1.0
    %v4458 = vrcp.pop %v4457
    %v4459 = vmul.f32 %v4457, %v4458
    %v4460 = vsub.f32 1.0, %v4459
    %v4461 = vmul.f32 %v4458, %v4460
    %v4462 = vadd.f32 %v4458, %v4461
    %vm4463 = vweird.f32 %v4457
    %vm4464 = vweird.f32 %v4458
    %vm4465 = vmor %vm4463, %vm4464
    %v4466 = vsel %vm4465, %v4458, %v4462
    %v4467 = vand.u32 2147483647, %v4457
    %vm4468 = vcmp.eq.f32.partialorder %v4467, 8.507059e+37
    %v4469 = vand.u32 %v4457, 2147483648
    %v4470 = vor.u32 1.1754944e-38, %v4469
    %v4471 = vsel %vm4468, %v4470, %v4466
    %v4472 = vmul.f32 1.0, %v4471
    %v4473 = vadd.f32 %v4029, %v4437
    %v4474 = vxor.u32 %v4473, 2147483648
    %v4475 = vmul.f32 %v4474, 1.442695
    %v4476 = vpow.pop %v4475
    %v4477 = vadd.f32 %v4476, 1.0
    %v4478 = vrcp.pop %v4477
    %v4479 = vmul.f32 %v4477, %v4478
    %v4480 = vsub.f32 1.0, %v4479
    %v4481 = vmul.f32 %v4478, %v4480
    %v4482 = vadd.f32 %v4478, %v4481
    %vm4483 = vweird.f32 %v4477
    %vm4484 = vweird.f32 %v4478
    %vm4485 = vmor %vm4483, %vm4484
    %v4486 = vsel %vm4485, %v4478, %v4482
    %v4487 = vand.u32 2147483647, %v4477
    %vm4488 = vcmp.eq.f32.partialorder %v4487, 8.507059e+37
    %v4489 = vand.u32 %v4477, 2147483648
    %v4490 = vor.u32 1.1754944e-38, %v4489
    %v4491 = vsel %vm4488, %v4490, %v4486
    %v4492 = vmul.f32 1.0, %v4491
    %v4493 = vadd.f32 %v4450, %v4108
    %v4494 = vmul.f32 %v4472, %v4493
    %v4495 = vadd.f32 %v4058, %v4494
    %v4496 = vtanh.pop %v4495
    %v4497 = vsub.f32 1.0, %v4492
    %v4498 = vmul.f32 %v4497, %v4496
    %v4499 = vmul.f32 %v4492, %v4412
    %v4500 = vadd.f32 %v4498, %v4499
    %v4501 = vpack.c.bf16 %v4500, %v4500
    %4502 = vmatpush.bf16.msra.mxu0 %v4211
    %4503 = vmatpush.bf16.msra.mxu0 %v4208
    %4504 = vmatpush.bf16.msra.mxu0 %v4205
    %4505 = vmatpush.bf16.msra.mxu0 %v4202
    %4506 = vmatpush.bf16.msra.mxu0 %v4199
    %4507 = vmatpush.bf16.msra.mxu0 %v4196
    %4508 = vmatpush.bf16.msra.mxu0 %v4193
    %4509 = vmatpush.bf16.msra.mxu0 %v4190
    %4510 = vmatmul.bf16.gmra.mxu0 %v4501
    %v4511 = vpop.f32.mrf.mxu0
    %v4512 = vadd.f32 0.0, %v4511
    %v4513 = vpop.f32.mrf.mxu0
    %4514 = vdwg.mxu0
    %4515 = vmatpush.bf16.msra.mxu0 %v4212
    %4516 = vmatpush.bf16.msra.mxu0 %v4209
    %4517 = vmatpush.bf16.msra.mxu0 %v4206
    %4518 = vmatpush.bf16.msra.mxu0 %v4203
    %4519 = vmatpush.bf16.msra.mxu0 %v4200
    %4520 = vmatpush.bf16.msra.mxu0 %v4197
    %4521 = vmatpush.bf16.msra.mxu0 %v4194
    %4522 = vmatpush.bf16.msra.mxu0 %v4191
    %4523 = vmatmul.bf16.gmra.mxu0 %v4501
    %v4524 = vpop.f32.mrf.mxu0
    %v4525 = vadd.f32 0.0, %v4524
    %v4526 = vpop.f32.mrf.mxu0
    %4527 = vdwg.mxu0
    %4528 = vmatpush.bf16.msra.mxu0 %v4213
    %4529 = vmatpush.bf16.msra.mxu0 %v4210
    %4530 = vmatpush.bf16.msra.mxu0 %v4207
    %4531 = vmatpush.bf16.msra.mxu0 %v4204
    %4532 = vmatpush.bf16.msra.mxu0 %v4201
    %4533 = vmatpush.bf16.msra.mxu0 %v4198
    %4534 = vmatpush.bf16.msra.mxu0 %v4195
    %4535 = vmatpush.bf16.msra.mxu0 %v4192
    %4536 = vmatmul.bf16.gmra.mxu0 %v4501
    %v4537 = vpop.f32.mrf.mxu0
    %v4538 = vadd.f32 0.0, %v4537
    %v4539 = vpop.f32.mrf.mxu0
    %4540 = vdwg.mxu0
    %v4541 = vadd.f32 %v4002, %v4512
    %v4542 = vxor.u32 %v4541, 2147483648
    %v4543 = vmul.f32 %v4542, 1.442695
    %v4544 = vpow.pop %v4543
    %v4545 = vadd.f32 %v4544, 1.0
    %v4546 = vrcp.pop %v4545
    %v4547 = vmul.f32 %v4545, %v4546
    %v4548 = vsub.f32 1.0, %v4547
    %v4549 = vmul.f32 %v4546, %v4548
    %v4550 = vadd.f32 %v4546, %v4549
    %vm4551 = vweird.f32 %v4545
    %vm4552 = vweird.f32 %v4546
    %vm4553 = vmor %vm4551, %vm4552
    %v4554 = vsel %vm4553, %v4546, %v4550
    %v4555 = vand.u32 2147483647, %v4545
    %vm4556 = vcmp.eq.f32.partialorder %v4555, 8.507059e+37
    %v4557 = vand.u32 %v4545, 2147483648
    %v4558 = vor.u32 1.1754944e-38, %v4557
    %v4559 = vsel %vm4556, %v4558, %v4554
    %v4560 = vmul.f32 1.0, %v4559
    %v4561 = vadd.f32 %v4031, %v4525
    %v4562 = vxor.u32 %v4561, 2147483648
    %v4563 = vmul.f32 %v4562, 1.442695
    %v4564 = vpow.pop %v4563
    %v4565 = vadd.f32 %v4564, 1.0
    %v4566 = vrcp.pop %v4565
    %v4567 = vmul.f32 %v4565, %v4566
    %v4568 = vsub.f32 1.0, %v4567
    %v4569 = vmul.f32 %v4566, %v4568
    %v4570 = vadd.f32 %v4566, %v4569
    %vm4571 = vweird.f32 %v4565
    %vm4572 = vweird.f32 %v4566
    %vm4573 = vmor %vm4571, %vm4572
    %v4574 = vsel %vm4573, %v4566, %v4570
    %v4575 = vand.u32 2147483647, %v4565
    %vm4576 = vcmp.eq.f32.partialorder %v4575, 8.507059e+37
    %v4577 = vand.u32 %v4565, 2147483648
    %v4578 = vor.u32 1.1754944e-38, %v4577
    %v4579 = vsel %vm4576, %v4578, %v4574
    %v4580 = vmul.f32 1.0, %v4579
    %v4581 = vadd.f32 %v4538, %v4108
    %v4582 = vmul.f32 %v4560, %v4581
    %v4583 = vadd.f32 %v4060, %v4582
    %v4584 = vtanh.pop %v4583
    %v4585 = vsub.f32 1.0, %v4580
    %v4586 = vmul.f32 %v4585, %v4584
    %v4587 = vmul.f32 %v4580, %v4500
    %v4588 = vadd.f32 %v4586, %v4587
    %v4589 = vpack.c.bf16 %v4588, %v4588
    %4590 = vmatpush.bf16.msra.mxu0 %v4211
    %4591 = vmatpush.bf16.msra.mxu0 %v4208
    %4592 = vmatpush.bf16.msra.mxu0 %v4205
    %4593 = vmatpush.bf16.msra.mxu0 %v4202
    %4594 = vmatpush.bf16.msra.mxu0 %v4199
    %4595 = vmatpush.bf16.msra.mxu0 %v4196
    %4596 = vmatpush.bf16.msra.mxu0 %v4193
    %4597 = vmatpush.bf16.msra.mxu0 %v4190
    %4598 = vmatmul.bf16.gmra.mxu0 %v4589
    %v4599 = vpop.f32.mrf.mxu0
    %v4600 = vadd.f32 0.0, %v4599
    %v4601 = vpop.f32.mrf.mxu0
    %4602 = vdwg.mxu0
    %4603 = vmatpush.bf16.msra.mxu0 %v4212
    %4604 = vmatpush.bf16.msra.mxu0 %v4209
    %4605 = vmatpush.bf16.msra.mxu0 %v4206
    %4606 = vmatpush.bf16.msra.mxu0 %v4203
    %4607 = vmatpush.bf16.msra.mxu0 %v4200
    %4608 = vmatpush.bf16.msra.mxu0 %v4197
    %4609 = vmatpush.bf16.msra.mxu0 %v4194
    %4610 = vmatpush.bf16.msra.mxu0 %v4191
    %4611 = vmatmul.bf16.gmra.mxu0 %v4589
    %v4612 = vpop.f32.mrf.mxu0
    %v4613 = vadd.f32 0.0, %v4612
    %v4614 = vpop.f32.mrf.mxu0
    %4615 = vdwg.mxu0
    %4616 = vmatpush.bf16.msra.mxu0 %v4213
    %4617 = vmatpush.bf16.msra.mxu0 %v4210
    %4618 = vmatpush.bf16.msra.mxu0 %v4207
    %4619 = vmatpush.bf16.msra.mxu0 %v4204
    %4620 = vmatpush.bf16.msra.mxu0 %v4201
    %4621 = vmatpush.bf16.msra.mxu0 %v4198
    %4622 = vmatpush.bf16.msra.mxu0 %v4195
    %4623 = vmatpush.bf16.msra.mxu0 %v4192
    %4624 = vmatmul.bf16.gmra.mxu0 %v4589
    %v4625 = vpop.f32.mrf.mxu0
    %v4626 = vadd.f32 0.0, %v4625
    %v4627 = vpop.f32.mrf.mxu0
    %4628 = vdwg.mxu0
    %v4629 = vadd.f32 %v4005, %v4600
    %v4630 = vxor.u32 %v4629, 2147483648
    %v4631 = vmul.f32 %v4630, 1.442695
    %v4632 = vpow.pop %v4631
    %v4633 = vadd.f32 %v4632, 1.0
    %v4634 = vrcp.pop %v4633
    %v4635 = vmul.f32 %v4633, %v4634
    %v4636 = vsub.f32 1.0, %v4635
    %v4637 = vmul.f32 %v4634, %v4636
    %v4638 = vadd.f32 %v4634, %v4637
    %vm4639 = vweird.f32 %v4633
    %vm4640 = vweird.f32 %v4634
    %vm4641 = vmor %vm4639, %vm4640
    %v4642 = vsel %vm4641, %v4634, %v4638
    %v4643 = vand.u32 2147483647, %v4633
    %vm4644 = vcmp.eq.f32.partialorder %v4643, 8.507059e+37
    %v4645 = vand.u32 %v4633, 2147483648
    %v4646 = vor.u32 1.1754944e-38, %v4645
    %v4647 = vsel %vm4644, %v4646, %v4642
    %v4648 = vmul.f32 1.0, %v4647
    %v4649 = vadd.f32 %v4034, %v4613
    %v4650 = vxor.u32 %v4649, 2147483648
    %v4651 = vmul.f32 %v4650, 1.442695
    %v4652 = vpow.pop %v4651
    %v4653 = vadd.f32 %v4652, 1.0
    %v4654 = vrcp.pop %v4653
    %v4655 = vmul.f32 %v4653, %v4654
    %v4656 = vsub.f32 1.0, %v4655
    %v4657 = vmul.f32 %v4654, %v4656
    %v4658 = vadd.f32 %v4654, %v4657
    %vm4659 = vweird.f32 %v4653
    %vm4660 = vweird.f32 %v4654
    %vm4661 = vmor %vm4659, %vm4660
    %v4662 = vsel %vm4661, %v4654, %v4658
    %v4663 = vand.u32 2147483647, %v4653
    %vm4664 = vcmp.eq.f32.partialorder %v4663, 8.507059e+37
    %v4665 = vand.u32 %v4653, 2147483648
    %v4666 = vor.u32 1.1754944e-38, %v4665
    %v4667 = vsel %vm4664, %v4666, %v4662
    %v4668 = vmul.f32 1.0, %v4667
    %v4669 = vadd.f32 %v4626, %v4108
    %v4670 = vmul.f32 %v4648, %v4669
    %v4671 = vadd.f32 %v4063, %v4670
    %v4672 = vtanh.pop %v4671
    %v4673 = vsub.f32 1.0, %v4668
    %v4674 = vmul.f32 %v4673, %v4672
    %v4675 = vmul.f32 %v4668, %v4588
    %v4676 = vadd.f32 %v4674, %v4675
    %v4677 = vpack.c.bf16 %v4676, %v4676
    %4678 = vmatpush.bf16.msra.mxu0 %v4211
    %4679 = vmatpush.bf16.msra.mxu0 %v4208
    %4680 = vmatpush.bf16.msra.mxu0 %v4205
    %4681 = vmatpush.bf16.msra.mxu0 %v4202
    %4682 = vmatpush.bf16.msra.mxu0 %v4199
    %4683 = vmatpush.bf16.msra.mxu0 %v4196
    %4684 = vmatpush.bf16.msra.mxu0 %v4193
    %4685 = vmatpush.bf16.msra.mxu0 %v4190
    %4686 = vmatmul.bf16.gmra.mxu0 %v4677
    %v4687 = vpop.f32.mrf.mxu0
    %v4688 = vadd.f32 0.0, %v4687
    %v4689 = vpop.f32.mrf.mxu0
    %4690 = vdwg.mxu0
    %4691 = vmatpush.bf16.msra.mxu0 %v4212
    %4692 = vmatpush.bf16.msra.mxu0 %v4209
    %4693 = vmatpush.bf16.msra.mxu0 %v4206
    %4694 = vmatpush.bf16.msra.mxu0 %v4203
    %4695 = vmatpush.bf16.msra.mxu0 %v4200
    %4696 = vmatpush.bf16.msra.mxu0 %v4197
    %4697 = vmatpush.bf16.msra.mxu0 %v4194
    %4698 = vmatpush.bf16.msra.mxu0 %v4191
    %4699 = vmatmul.bf16.gmra.mxu0 %v4677
    %v4700 = vpop.f32.mrf.mxu0
    %v4701 = vadd.f32 0.0, %v4700
    %v4702 = vpop.f32.mrf.mxu0
    %4703 = vdwg.mxu0
    %4704 = vmatpush.bf16.msra.mxu0 %v4213
    %4705 = vmatpush.bf16.msra.mxu0 %v4210
    %4706 = vmatpush.bf16.msra.mxu0 %v4207
    %4707 = vmatpush.bf16.msra.mxu0 %v4204
    %4708 = vmatpush.bf16.msra.mxu0 %v4201
    %4709 = vmatpush.bf16.msra.mxu0 %v4198
    %4710 = vmatpush.bf16.msra.mxu0 %v4195
    %4711 = vmatpush.bf16.msra.mxu0 %v4192
    %4712 = vmatmul.bf16.gmra.mxu0 %v4677
    %v4713 = vpop.f32.mrf.mxu0
    %v4714 = vadd.f32 0.0, %v4713
    %v4715 = vpop.f32.mrf.mxu0
    %4716 = vdwg.mxu0
    %v4717 = vadd.f32 %v4007, %v4688
    %v4718 = vxor.u32 %v4717, 2147483648
    %v4719 = vmul.f32 %v4718, 1.442695
    %v4720 = vpow.pop %v4719
    %v4721 = vadd.f32 %v4720, 1.0
    %v4722 = vrcp.pop %v4721
    %v4723 = vmul.f32 %v4721, %v4722
    %v4724 = vsub.f32 1.0, %v4723
    %v4725 = vmul.f32 %v4722, %v4724
    %v4726 = vadd.f32 %v4722, %v4725
    %vm4727 = vweird.f32 %v4721
    %vm4728 = vweird.f32 %v4722
    %vm4729 = vmor %vm4727, %vm4728
    %v4730 = vsel %vm4729, %v4722, %v4726
    %v4731 = vand.u32 2147483647, %v4721
    %vm4732 = vcmp.eq.f32.partialorder %v4731, 8.507059e+37
    %v4733 = vand.u32 %v4721, 2147483648
    %v4734 = vor.u32 1.1754944e-38, %v4733
    %v4735 = vsel %vm4732, %v4734, %v4730
    %v4736 = vmul.f32 1.0, %v4735
    %v4737 = vadd.f32 %v4036, %v4701
    %v4738 = vxor.u32 %v4737, 2147483648
    %v4739 = vmul.f32 %v4738, 1.442695
    %v4740 = vpow.pop %v4739
    %v4741 = vadd.f32 %v4740, 1.0
    %v4742 = vrcp.pop %v4741
    %v4743 = vmul.f32 %v4741, %v4742
    %v4744 = vsub.f32 1.0, %v4743
    %v4745 = vmul.f32 %v4742, %v4744
    %v4746 = vadd.f32 %v4742, %v4745
    %vm4747 = vweird.f32 %v4741
    %vm4748 = vweird.f32 %v4742
    %vm4749 = vmor %vm4747, %vm4748
    %v4750 = vsel %vm4749, %v4742, %v4746
    %v4751 = vand.u32 2147483647, %v4741
    %vm4752 = vcmp.eq.f32.partialorder %v4751, 8.507059e+37
    %v4753 = vand.u32 %v4741, 2147483648
    %v4754 = vor.u32 1.1754944e-38, %v4753
    %v4755 = vsel %vm4752, %v4754, %v4750
    %v4756 = vmul.f32 1.0, %v4755
    %v4757 = vadd.f32 %v4714, %v4108
    %v4758 = vmul.f32 %v4736, %v4757
    %v4759 = vadd.f32 %v4065, %v4758
    %v4760 = vtanh.pop %v4759
    %v4761 = vsub.f32 1.0, %v4756
    %v4762 = vmul.f32 %v4761, %v4760
    %v4763 = vmul.f32 %v4756, %v4676
    %v4764 = vadd.f32 %v4762, %v4763
    %v4765 = vpack.c.bf16 %v4764, %v4764
    %4766 = vmatpush.bf16.msra.mxu0 %v4211
    %4767 = vmatpush.bf16.msra.mxu0 %v4208
    %4768 = vmatpush.bf16.msra.mxu0 %v4205
    %4769 = vmatpush.bf16.msra.mxu0 %v4202
    %4770 = vmatpush.bf16.msra.mxu0 %v4199
    %4771 = vmatpush.bf16.msra.mxu0 %v4196
    %4772 = vmatpush.bf16.msra.mxu0 %v4193
    %4773 = vmatpush.bf16.msra.mxu0 %v4190
    %4774 = vmatmul.bf16.gmra.mxu0 %v4765
    %v4775 = vpop.f32.mrf.mxu0
    %v4776 = vadd.f32 0.0, %v4775
    %v4777 = vpop.f32.mrf.mxu0
    %4778 = vdwg.mxu0
    %4779 = vmatpush.bf16.msra.mxu0 %v4212
    %4780 = vmatpush.bf16.msra.mxu0 %v4209
    %4781 = vmatpush.bf16.msra.mxu0 %v4206
    %4782 = vmatpush.bf16.msra.mxu0 %v4203
    %4783 = vmatpush.bf16.msra.mxu0 %v4200
    %4784 = vmatpush.bf16.msra.mxu0 %v4197
    %4785 = vmatpush.bf16.msra.mxu0 %v4194
    %4786 = vmatpush.bf16.msra.mxu0 %v4191
    %4787 = vmatmul.bf16.gmra.mxu0 %v4765
    %v4788 = vpop.f32.mrf.mxu0
    %v4789 = vadd.f32 0.0, %v4788
    %v4790 = vpop.f32.mrf.mxu0
    %4791 = vdwg.mxu0
    %4792 = vmatpush.bf16.msra.mxu0 %v4213
    %4793 = vmatpush.bf16.msra.mxu0 %v4210
    %4794 = vmatpush.bf16.msra.mxu0 %v4207
    %4795 = vmatpush.bf16.msra.mxu0 %v4204
    %4796 = vmatpush.bf16.msra.mxu0 %v4201
    %4797 = vmatpush.bf16.msra.mxu0 %v4198
    %4798 = vmatpush.bf16.msra.mxu0 %v4195
    %4799 = vmatpush.bf16.msra.mxu0 %v4192
    %4800 = vmatmul.bf16.gmra.mxu0 %v4765
    %v4801 = vpop.f32.mrf.mxu0
    %v4802 = vadd.f32 0.0, %v4801
    %v4803 = vpop.f32.mrf.mxu0
    %4804 = vdwg.mxu0
    %v4805 = vadd.f32 %v4010, %v4776
    %v4806 = vxor.u32 %v4805, 2147483648
    %v4807 = vmul.f32 %v4806, 1.442695
    %v4808 = vpow.pop %v4807
    %v4809 = vadd.f32 %v4808, 1.0
    %v4810 = vrcp.pop %v4809
    %v4811 = vmul.f32 %v4809, %v4810
    %v4812 = vsub.f32 1.0, %v4811
    %v4813 = vmul.f32 %v4810, %v4812
    %v4814 = vadd.f32 %v4810, %v4813
    %vm4815 = vweird.f32 %v4809
    %vm4816 = vweird.f32 %v4810
    %vm4817 = vmor %vm4815, %vm4816
    %v4818 = vsel %vm4817, %v4810, %v4814
    %v4819 = vand.u32 2147483647, %v4809
    %vm4820 = vcmp.eq.f32.partialorder %v4819, 8.507059e+37
    %v4821 = vand.u32 %v4809, 2147483648
    %v4822 = vor.u32 1.1754944e-38, %v4821
    %v4823 = vsel %vm4820, %v4822, %v4818
    %v4824 = vmul.f32 1.0, %v4823
    %v4825 = vadd.f32 %v4039, %v4789
    %v4826 = vxor.u32 %v4825, 2147483648
    %v4827 = vmul.f32 %v4826, 1.442695
    %v4828 = vpow.pop %v4827
    %v4829 = vadd.f32 %v4828, 1.0
    %v4830 = vrcp.pop %v4829
    %v4831 = vmul.f32 %v4829, %v4830
    %v4832 = vsub.f32 1.0, %v4831
    %v4833 = vmul.f32 %v4830, %v4832
    %v4834 = vadd.f32 %v4830, %v4833
    %vm4835 = vweird.f32 %v4829
    %vm4836 = vweird.f32 %v4830
    %vm4837 = vmor %vm4835, %vm4836
    %v4838 = vsel %vm4837, %v4830, %v4834
    %v4839 = vand.u32 2147483647, %v4829
    %vm4840 = vcmp.eq.f32.partialorder %v4839, 8.507059e+37
    %v4841 = vand.u32 %v4829, 2147483648
    %v4842 = vor.u32 1.1754944e-38, %v4841
    %v4843 = vsel %vm4840, %v4842, %v4838
    %v4844 = vmul.f32 1.0, %v4843
    %v4845 = vadd.f32 %v4802, %v4108
    %v4846 = vmul.f32 %v4824, %v4845
    %v4847 = vadd.f32 %v4068, %v4846
    %v4848 = vtanh.pop %v4847
    %v4849 = vsub.f32 1.0, %v4844
    %v4850 = vmul.f32 %v4849, %v4848
    %v4851 = vmul.f32 %v4844, %v4764
    %v4852 = vadd.f32 %v4850, %v4851
    %v4853 = vpack.c.bf16 %v4852, %v4852
    %4854 = vmatpush.bf16.msra.mxu0 %v4211
    %4855 = vmatpush.bf16.msra.mxu0 %v4208
    %4856 = vmatpush.bf16.msra.mxu0 %v4205
    %4857 = vmatpush.bf16.msra.mxu0 %v4202
    %4858 = vmatpush.bf16.msra.mxu0 %v4199
    %4859 = vmatpush.bf16.msra.mxu0 %v4196
    %4860 = vmatpush.bf16.msra.mxu0 %v4193
    %4861 = vmatpush.bf16.msra.mxu0 %v4190
    %4862 = vmatmul.bf16.gmra.mxu0 %v4853
    %v4863 = vpop.f32.mrf.mxu0
    %v4864 = vadd.f32 0.0, %v4863
    %v4865 = vpop.f32.mrf.mxu0
    %4866 = vdwg.mxu0
    %4867 = vmatpush.bf16.msra.mxu0 %v4212
    %4868 = vmatpush.bf16.msra.mxu0 %v4209
    %4869 = vmatpush.bf16.msra.mxu0 %v4206
    %4870 = vmatpush.bf16.msra.mxu0 %v4203
    %4871 = vmatpush.bf16.msra.mxu0 %v4200
    %4872 = vmatpush.bf16.msra.mxu0 %v4197
    %4873 = vmatpush.bf16.msra.mxu0 %v4194
    %4874 = vmatpush.bf16.msra.mxu0 %v4191
    %4875 = vmatmul.bf16.gmra.mxu0 %v4853
    %v4876 = vpop.f32.mrf.mxu0
    %v4877 = vadd.f32 0.0, %v4876
    %v4878 = vpop.f32.mrf.mxu0
    %4879 = vdwg.mxu0
    %4880 = vmatpush.bf16.msra.mxu0 %v4213
    %4881 = vmatpush.bf16.msra.mxu0 %v4210
    %4882 = vmatpush.bf16.msra.mxu0 %v4207
    %4883 = vmatpush.bf16.msra.mxu0 %v4204
    %4884 = vmatpush.bf16.msra.mxu0 %v4201
    %4885 = vmatpush.bf16.msra.mxu0 %v4198
    %4886 = vmatpush.bf16.msra.mxu0 %v4195
    %4887 = vmatpush.bf16.msra.mxu0 %v4192
    %4888 = vmatmul.bf16.gmra.mxu0 %v4853
    %v4889 = vpop.f32.mrf.mxu0
    %v4890 = vadd.f32 0.0, %v4889
    %v4891 = vpop.f32.mrf.mxu0
    %4892 = vdwg.mxu0
    %v4893 = vadd.f32 %v4012, %v4864
    %v4894 = vxor.u32 %v4893, 2147483648
    %v4895 = vmul.f32 %v4894, 1.442695
    %v4896 = vpow.pop %v4895
    %v4897 = vadd.f32 %v4896, 1.0
    %v4898 = vrcp.pop %v4897
    %v4899 = vmul.f32 %v4897, %v4898
    %v4900 = vsub.f32 1.0, %v4899
    %v4901 = vmul.f32 %v4898, %v4900
    %v4902 = vadd.f32 %v4898, %v4901
    %vm4903 = vweird.f32 %v4897
    %vm4904 = vweird.f32 %v4898
    %vm4905 = vmor %vm4903, %vm4904
    %v4906 = vsel %vm4905, %v4898, %v4902
    %v4907 = vand.u32 2147483647, %v4897
    %vm4908 = vcmp.eq.f32.partialorder %v4907, 8.507059e+37
    %v4909 = vand.u32 %v4897, 2147483648
    %v4910 = vor.u32 1.1754944e-38, %v4909
    %v4911 = vsel %vm4908, %v4910, %v4906
    %v4912 = vmul.f32 1.0, %v4911
    %v4913 = vadd.f32 %v4041, %v4877
    %v4914 = vxor.u32 %v4913, 2147483648
    %v4915 = vmul.f32 %v4914, 1.442695
    %v4916 = vpow.pop %v4915
    %v4917 = vadd.f32 %v4916, 1.0
    %v4918 = vrcp.pop %v4917
    %v4919 = vmul.f32 %v4917, %v4918
    %v4920 = vsub.f32 1.0, %v4919
    %v4921 = vmul.f32 %v4918, %v4920
    %v4922 = vadd.f32 %v4918, %v4921
    %vm4923 = vweird.f32 %v4917
    %vm4924 = vweird.f32 %v4918
    %vm4925 = vmor %vm4923, %vm4924
    %v4926 = vsel %vm4925, %v4918, %v4922
    %v4927 = vand.u32 2147483647, %v4917
    %vm4928 = vcmp.eq.f32.partialorder %v4927, 8.507059e+37
    %v4929 = vand.u32 %v4917, 2147483648
    %v4930 = vor.u32 1.1754944e-38, %v4929
    %v4931 = vsel %vm4928, %v4930, %v4926
    %v4932 = vmul.f32 1.0, %v4931
    %v4933 = vadd.f32 %v4890, %v4108
    %v4934 = vmul.f32 %v4912, %v4933
    %v4935 = vadd.f32 %v4070, %v4934
    %v4936 = vtanh.pop %v4935
    %v4937 = vsub.f32 1.0, %v4932
    %v4938 = vmul.f32 %v4937, %v4936
    %v4939 = vmul.f32 %v4932, %v4852
    %v4940 = vadd.f32 %v4938, %v4939
    %v4941 = vpack.c.bf16 %v4412, %v4324
    %v4942 = vpack.c.bf16 %v4588, %v4500
    %v4943 = vpack.c.bf16 %v4764, %v4676
    %v4944 = vpack.c.bf16 %v4940, %v4852
    %s4945 = scalar_lea.vmem [#allocation10], 384
    %v4946 = vld [vmem:[%s4945] sm:$0xff]
    %v4947 = vld [vmem:[%s4945 + $0x8] sm:$0xf]
    %v4948 = vld [vmem:[%s4945 + $0xc] sm:$0xff]
    %v4949 = vld [vmem:[%s4945 + $0x14] sm:$0xf]
    %v4950 = vld [vmem:[%s4945 + $0x18] sm:$0xff]
    %v4951 = vld [vmem:[%s4945 + $0x20] sm:$0xf]
    %v4952 = vld [vmem:[%s4945 + $0x24] sm:$0xff]
    %v4953 = vld [vmem:[%s4945 + $0x2c] sm:$0xf]
    %v4954 = vld [vmem:[%s4945 + $0x30] sm:$0xff]
    %v4955 = vld [vmem:[%s4945 + $0x38] sm:$0xf]
    %v4956 = vld [vmem:[%s4945 + $0x3c] sm:$0xff]
    %v4957 = vld [vmem:[%s4945 + $0x44] sm:$0xf]
    %v4958 = vld [vmem:[%s4945 + $0x48] sm:$0xff]
    %v4959 = vld [vmem:[%s4945 + $0x50] sm:$0xf]
    %v4960 = vld [vmem:[%s4945 + $0x54] sm:$0xff]
    %v4961 = vld [vmem:[%s4945 + $0x5c] sm:$0xf]
    %v4962 = vld [vmem:[%s4945 + $0x60] sm:$0xff]
    %v4963 = vld [vmem:[%s4945 + $0x68] sm:$0xf]
    %v4964 = vld [vmem:[%s4945 + $0x6c] sm:$0xff]
    %v4965 = vld [vmem:[%s4945 + $0x74] sm:$0xf]
    %v4966 = vld [vmem:[%s4945 + $0x78] sm:$0xff]
    %v4967 = vld [vmem:[%s4945 + $0x80] sm:$0xf]
    %v4968 = vld [vmem:[%s4945 + $0x84] sm:$0xff]
    %v4969 = vld [vmem:[%s4945 + $0x8c] sm:$0xf]
    %v4970 = vld [vmem:[%s4945 + $0x90] sm:$0xff]
    %v4971 = vld [vmem:[%s4945 + $0x98] sm:$0xf]
    %v4972 = vld [vmem:[%s4945 + $0x9c] sm:$0xff]
    %v4973 = vld [vmem:[%s4945 + $0xa4] sm:$0xf]
    %v4974 = vld [vmem:[%s4945 + $0xa8] sm:$0xff]
    %v4975 = vld [vmem:[%s4945 + $0xb0] sm:$0xf]
    %v4976 = vld [vmem:[%s4945 + $0xb4] sm:$0xff]
    %v4977 = vld [vmem:[%s4945 + $0xbc] sm:$0xf]
    %s4978 = scalar_lea.vmem [#allocation11], 6
    %v4979 = vld [vmem:[%s4978] sm:$0x7]
    %v4981 = vperm.slane %v4979, 0
    %v4982 = vperm.slane %v4979, 1
    %v4983 = vperm.slane %v4979, 2
    %v5019 = vunpack.c.l.b16 %v4946
    %v5020 = vunpack.c.h.b16 %v4946
    %v5021 = vunpack.c.l.b16 %v4947
    %v5022 = vunpack.c.l.b16 %v4948
    %v5023 = vunpack.c.h.b16 %v4948
    %v5024 = vunpack.c.l.b16 %v4949
    %v5025 = vunpack.c.l.b16 %v4950
    %v5026 = vunpack.c.h.b16 %v4950
    %v5027 = vunpack.c.l.b16 %v4951
    %v5028 = vunpack.c.l.b16 %v4952
    %v5029 = vunpack.c.h.b16 %v4952
    %v5030 = vunpack.c.l.b16 %v4953
    %v5031 = vunpack.c.l.b16 %v4954
    %v5032 = vunpack.c.h.b16 %v4954
    %v5033 = vunpack.c.l.b16 %v4955
    %v5034 = vunpack.c.l.b16 %v4956
    %v5035 = vunpack.c.h.b16 %v4956
    %v5036 = vunpack.c.l.b16 %v4957
    %v5037 = vunpack.c.l.b16 %v4958
    %v5038 = vunpack.c.h.b16 %v4958
    %v5039 = vunpack.c.l.b16 %v4959
    %v5040 = vunpack.c.l.b16 %v4960
    %v5041 = vunpack.c.h.b16 %v4960
    %v5042 = vunpack.c.l.b16 %v4961
    %v5043 = vunpack.c.l.b16 %v4962
    %v5044 = vunpack.c.h.b16 %v4962
    %v5045 = vunpack.c.l.b16 %v4963
    %v5046 = vunpack.c.l.b16 %v4964
    %v5047 = vunpack.c.h.b16 %v4964
    %v5048 = vunpack.c.l.b16 %v4965
    %v5049 = vunpack.c.l.b16 %v4966
    %v5050 = vunpack.c.h.b16 %v4966
    %v5051 = vunpack.c.l.b16 %v4967
    %v5052 = vunpack.c.l.b16 %v4968
    %v5053 = vunpack.c.h.b16 %v4968
    %v5054 = vunpack.c.l.b16 %v4969
    %v5055 = vunpack.c.l.b16 %v4970
    %v5056 = vunpack.c.h.b16 %v4970
    %v5057 = vunpack.c.l.b16 %v4971
    %v5058 = vunpack.c.l.b16 %v4972
    %v5059 = vunpack.c.h.b16 %v4972
    %v5060 = vunpack.c.l.b16 %v4973
    %v5061 = vunpack.c.l.b16 %v4974
    %v5062 = vunpack.c.h.b16 %v4974
    %v5063 = vunpack.c.l.b16 %v4975
    %v5064 = vunpack.c.l.b16 %v4976
    %v5065 = vunpack.c.h.b16 %v4976
    %v5066 = vunpack.c.l.b16 %v4977
    %v5067 = vpack.c.b16 %v5022, %v5019
    %v5068 = vpack.c.b16 %v5023, %v5020
    %v5069 = vpack.c.b16 %v5024, %v5021
    %v5070 = vpack.c.b16 %v5028, %v5025
    %v5071 = vpack.c.b16 %v5029, %v5026
    %v5072 = vpack.c.b16 %v5030, %v5027
    %v5073 = vpack.c.b16 %v5034, %v5031
    %v5074 = vpack.c.b16 %v5035, %v5032
    %v5075 = vpack.c.b16 %v5036, %v5033
    %v5076 = vpack.c.b16 %v5040, %v5037
    %v5077 = vpack.c.b16 %v5041, %v5038
    %v5078 = vpack.c.b16 %v5042, %v5039
    %v5079 = vpack.c.b16 %v5046, %v5043
    %v5080 = vpack.c.b16 %v5047, %v5044
    %v5081 = vpack.c.b16 %v5048, %v5045
    %v5082 = vpack.c.b16 %v5052, %v5049
    %v5083 = vpack.c.b16 %v5053, %v5050
    %v5084 = vpack.c.b16 %v5054, %v5051
    %v5085 = vpack.c.b16 %v5058, %v5055
    %v5086 = vpack.c.b16 %v5059, %v5056
    %v5087 = vpack.c.b16 %v5060, %v5057
    %v5088 = vpack.c.b16 %v5064, %v5061
    %v5089 = vpack.c.b16 %v5065, %v5062
    %v5090 = vpack.c.b16 %v5066, %v5063
    %5115 = vmatpush.bf16.msra.mxu0 %v5088
    %5116 = vmatpush.bf16.msra.mxu0 %v5085
    %5117 = vmatpush.bf16.msra.mxu0 %v5082
    %5118 = vmatpush.bf16.msra.mxu0 %v5079
    %5119 = vmatpush.bf16.msra.mxu0 %v5076
    %5120 = vmatpush.bf16.msra.mxu0 %v5073
    %5121 = vmatpush.bf16.msra.mxu0 %v5070
    %5122 = vmatpush.bf16.msra.mxu0 %v5067
    %5123 = vmatmul.bf16.gmra.mxu0 %v4941
    %v5124 = vpop.f32.mrf.mxu0
    %v5125 = vadd.f32 %v4981, %v5124
    %v5126 = vpop.f32.mrf.mxu0
    %v5127 = vadd.f32 %v4981, %v5126
    %5128 = vmatmul.bf16.gmra.mxu0 %v4942
    %v5129 = vpop.f32.mrf.mxu0
    %v5130 = vadd.f32 %v4981, %v5129
    %v5131 = vpop.f32.mrf.mxu0
    %v5132 = vadd.f32 %v4981, %v5131
    %5133 = vmatmul.bf16.gmra.mxu0 %v4943
    %v5134 = vpop.f32.mrf.mxu0
    %v5135 = vadd.f32 %v4981, %v5134
    %v5136 = vpop.f32.mrf.mxu0
    %v5137 = vadd.f32 %v4981, %v5136
    %5138 = vmatmul.bf16.gmra.mxu0 %v4944
    %v5139 = vpop.f32.mrf.mxu0
    %v5140 = vadd.f32 %v4981, %v5139
    %v5141 = vpop.f32.mrf.mxu0
    %v5142 = vadd.f32 %v4981, %v5141
    %5143 = vdwg.mxu0
    %5144 = vmatpush.bf16.msra.mxu0 %v5089
    %5145 = vmatpush.bf16.msra.mxu0 %v5086
    %5146 = vmatpush.bf16.msra.mxu0 %v5083
    %5147 = vmatpush.bf16.msra.mxu0 %v5080
    %5148 = vmatpush.bf16.msra.mxu0 %v5077
    %5149 = vmatpush.bf16.msra.mxu0 %v5074
    %5150 = vmatpush.bf16.msra.mxu0 %v5071
    %5151 = vmatpush.bf16.msra.mxu0 %v5068
    %5152 = vmatmul.bf16.gmra.mxu0 %v4941
    %v5153 = vpop.f32.mrf.mxu0
    %v5154 = vadd.f32 %v4982, %v5153
    %v5155 = vpop.f32.mrf.mxu0
    %v5156 = vadd.f32 %v4982, %v5155
    %5157 = vmatmul.bf16.gmra.mxu0 %v4942
    %v5158 = vpop.f32.mrf.mxu0
    %v5159 = vadd.f32 %v4982, %v5158
    %v5160 = vpop.f32.mrf.mxu0
    %v5161 = vadd.f32 %v4982, %v5160
    %5162 = vmatmul.bf16.gmra.mxu0 %v4943
    %v5163 = vpop.f32.mrf.mxu0
    %v5164 = vadd.f32 %v4982, %v5163
    %v5165 = vpop.f32.mrf.mxu0
    %v5166 = vadd.f32 %v4982, %v5165
    %5167 = vmatmul.bf16.gmra.mxu0 %v4944
    %v5168 = vpop.f32.mrf.mxu0
    %v5169 = vadd.f32 %v4982, %v5168
    %v5170 = vpop.f32.mrf.mxu0
    %v5171 = vadd.f32 %v4982, %v5170
    %5172 = vdwg.mxu0
    %5173 = vmatpush.bf16.msra.mxu0 %v5090
    %5174 = vmatpush.bf16.msra.mxu0 %v5087
    %5175 = vmatpush.bf16.msra.mxu0 %v5084
    %5176 = vmatpush.bf16.msra.mxu0 %v5081
    %5177 = vmatpush.bf16.msra.mxu0 %v5078
    %5178 = vmatpush.bf16.msra.mxu0 %v5075
    %5179 = vmatpush.bf16.msra.mxu0 %v5072
    %5180 = vmatpush.bf16.msra.mxu0 %v5069
    %5181 = vmatmul.bf16.gmra.mxu0 %v4941
    %v5182 = vpop.f32.mrf.mxu0
    %v5183 = vadd.f32 %v4983, %v5182
    %v5184 = vpop.f32.mrf.mxu0
    %v5185 = vadd.f32 %v4983, %v5184
    %5186 = vmatmul.bf16.gmra.mxu0 %v4942
    %v5187 = vpop.f32.mrf.mxu0
    %v5188 = vadd.f32 %v4983, %v5187
    %v5189 = vpop.f32.mrf.mxu0
    %v5190 = vadd.f32 %v4983, %v5189
    %5191 = vmatmul.bf16.gmra.mxu0 %v4943
    %v5192 = vpop.f32.mrf.mxu0
    %v5193 = vadd.f32 %v4983, %v5192
    %v5194 = vpop.f32.mrf.mxu0
    %v5195 = vadd.f32 %v4983, %v5194
    %5196 = vmatmul.bf16.gmra.mxu0 %v4944
    %v5197 = vpop.f32.mrf.mxu0
    %v5198 = vadd.f32 %v4983, %v5197
    %v5199 = vpop.f32.mrf.mxu0
    %v5200 = vadd.f32 %v4983, %v5199
    %5201 = vdwg.mxu0
    %s5202 = scalar_lea.vmem [#allocation13], 384
    %v5203 = vld [vmem:[%s5202] sm:$0xff]
    %v5204 = vld [vmem:[%s5202 + $0x8] sm:$0xf]
    %v5205 = vld [vmem:[%s5202 + $0xc] sm:$0xff]
    %v5206 = vld [vmem:[%s5202 + $0x14] sm:$0xf]
    %v5207 = vld [vmem:[%s5202 + $0x18] sm:$0xff]
    %v5208 = vld [vmem:[%s5202 + $0x20] sm:$0xf]
    %v5209 = vld [vmem:[%s5202 + $0x24] sm:$0xff]
    %v5210 = vld [vmem:[%s5202 + $0x2c] sm:$0xf]
    %v5211 = vld [vmem:[%s5202 + $0x30] sm:$0xff]
    %v5212 = vld [vmem:[%s5202 + $0x38] sm:$0xf]
    %v5213 = vld [vmem:[%s5202 + $0x3c] sm:$0xff]
    %v5214 = vld [vmem:[%s5202 + $0x44] sm:$0xf]
    %v5215 = vld [vmem:[%s5202 + $0x48] sm:$0xff]
    %v5216 = vld [vmem:[%s5202 + $0x50] sm:$0xf]
    %v5217 = vld [vmem:[%s5202 + $0x54] sm:$0xff]
    %v5218 = vld [vmem:[%s5202 + $0x5c] sm:$0xf]
    %v5219 = vld [vmem:[%s5202 + $0x60] sm:$0xff]
    %v5220 = vld [vmem:[%s5202 + $0x68] sm:$0xf]
    %v5221 = vld [vmem:[%s5202 + $0x6c] sm:$0xff]
    %v5222 = vld [vmem:[%s5202 + $0x74] sm:$0xf]
    %v5223 = vld [vmem:[%s5202 + $0x78] sm:$0xff]
    %v5224 = vld [vmem:[%s5202 + $0x80] sm:$0xf]
    %v5225 = vld [vmem:[%s5202 + $0x84] sm:$0xff]
    %v5226 = vld [vmem:[%s5202 + $0x8c] sm:$0xf]
    %v5227 = vld [vmem:[%s5202 + $0x90] sm:$0xff]
    %v5228 = vld [vmem:[%s5202 + $0x98] sm:$0xf]
    %v5229 = vld [vmem:[%s5202 + $0x9c] sm:$0xff]
    %v5230 = vld [vmem:[%s5202 + $0xa4] sm:$0xf]
    %v5231 = vld [vmem:[%s5202 + $0xa8] sm:$0xff]
    %v5232 = vld [vmem:[%s5202 + $0xb0] sm:$0xf]
    %v5233 = vld [vmem:[%s5202 + $0xb4] sm:$0xff]
    %v5234 = vld [vmem:[%s5202 + $0xbc] sm:$0xf]
    %s5235 = scalar_lea.vmem %s8, 2
    %v5236 = vld [vmem:[%s5235] sm:$0x1]
    %v5238 = vperm.slane %v5236, 0
    %v5272 = vunpack.c.l.b16 %v5203
    %v5273 = vunpack.c.h.b16 %v5203
    %v5274 = vunpack.c.l.b16 %v5204
    %v5275 = vunpack.c.l.b16 %v5205
    %v5276 = vunpack.c.h.b16 %v5205
    %v5277 = vunpack.c.l.b16 %v5206
    %v5278 = vunpack.c.l.b16 %v5207
    %v5279 = vunpack.c.h.b16 %v5207
    %v5280 = vunpack.c.l.b16 %v5208
    %v5281 = vunpack.c.l.b16 %v5209
    %v5282 = vunpack.c.h.b16 %v5209
    %v5283 = vunpack.c.l.b16 %v5210
    %v5284 = vunpack.c.l.b16 %v5211
    %v5285 = vunpack.c.h.b16 %v5211
    %v5286 = vunpack.c.l.b16 %v5212
    %v5287 = vunpack.c.l.b16 %v5213
    %v5288 = vunpack.c.h.b16 %v5213
    %v5289 = vunpack.c.l.b16 %v5214
    %v5290 = vunpack.c.l.b16 %v5215
    %v5291 = vunpack.c.h.b16 %v5215
    %v5292 = vunpack.c.l.b16 %v5216
    %v5293 = vunpack.c.l.b16 %v5217
    %v5294 = vunpack.c.h.b16 %v5217
    %v5295 = vunpack.c.l.b16 %v5218
    %v5296 = vunpack.c.l.b16 %v5219
    %v5297 = vunpack.c.h.b16 %v5219
    %v5298 = vunpack.c.l.b16 %v5220
    %v5299 = vunpack.c.l.b16 %v5221
    %v5300 = vunpack.c.h.b16 %v5221
    %v5301 = vunpack.c.l.b16 %v5222
    %v5302 = vunpack.c.l.b16 %v5223
    %v5303 = vunpack.c.h.b16 %v5223
    %v5304 = vunpack.c.l.b16 %v5224
    %v5305 = vunpack.c.l.b16 %v5225
    %v5306 = vunpack.c.h.b16 %v5225
    %v5307 = vunpack.c.l.b16 %v5226
    %v5308 = vunpack.c.l.b16 %v5227
    %v5309 = vunpack.c.h.b16 %v5227
    %v5310 = vunpack.c.l.b16 %v5228
    %v5311 = vunpack.c.l.b16 %v5229
    %v5312 = vunpack.c.h.b16 %v5229
    %v5313 = vunpack.c.l.b16 %v5230
    %v5314 = vunpack.c.l.b16 %v5231
    %v5315 = vunpack.c.h.b16 %v5231
    %v5316 = vunpack.c.l.b16 %v5232
    %v5317 = vunpack.c.l.b16 %v5233
    %v5318 = vunpack.c.h.b16 %v5233
    %v5319 = vunpack.c.l.b16 %v5234
    %v5320 = vpack.c.b16 %v5275, %v5272
    %v5321 = vpack.c.b16 %v5276, %v5273
    %v5322 = vpack.c.b16 %v5277, %v5274
    %v5323 = vpack.c.b16 %v5281, %v5278
    %v5324 = vpack.c.b16 %v5282, %v5279
    %v5325 = vpack.c.b16 %v5283, %v5280
    %v5326 = vpack.c.b16 %v5287, %v5284
    %v5327 = vpack.c.b16 %v5288, %v5285
    %v5328 = vpack.c.b16 %v5289, %v5286
    %v5329 = vpack.c.b16 %v5293, %v5290
    %v5330 = vpack.c.b16 %v5294, %v5291
    %v5331 = vpack.c.b16 %v5295, %v5292
    %v5332 = vpack.c.b16 %v5299, %v5296
    %v5333 = vpack.c.b16 %v5300, %v5297
    %v5334 = vpack.c.b16 %v5301, %v5298
    %v5335 = vpack.c.b16 %v5305, %v5302
    %v5336 = vpack.c.b16 %v5306, %v5303
    %v5337 = vpack.c.b16 %v5307, %v5304
    %v5338 = vpack.c.b16 %v5311, %v5308
    %v5339 = vpack.c.b16 %v5312, %v5309
    %v5340 = vpack.c.b16 %v5313, %v5310
    %v5341 = vpack.c.b16 %v5317, %v5314
    %v5342 = vpack.c.b16 %v5318, %v5315
    %v5343 = vpack.c.b16 %v5319, %v5316
    %5368 = vmatpush.bf16.msra.mxu0 %v5341
    %5369 = vmatpush.bf16.msra.mxu0 %v5338
    %5370 = vmatpush.bf16.msra.mxu0 %v5335
    %5371 = vmatpush.bf16.msra.mxu0 %v5332
    %5372 = vmatpush.bf16.msra.mxu0 %v5329
    %5373 = vmatpush.bf16.msra.mxu0 %v5326
    %5374 = vmatpush.bf16.msra.mxu0 %v5323
    %5375 = vmatpush.bf16.msra.mxu0 %v5320
    %5376 = vmatmul.bf16.gmra.mxu0 0
    %v5377 = vpop.f32.mrf.mxu0
    %v5378 = vadd.f32 0.0, %v5377
    %v5379 = vpop.f32.mrf.mxu0
    %5380 = vdwg.mxu0
    %5381 = vmatpush.bf16.msra.mxu0 %v5342
    %5382 = vmatpush.bf16.msra.mxu0 %v5339
    %5383 = vmatpush.bf16.msra.mxu0 %v5336
    %5384 = vmatpush.bf16.msra.mxu0 %v5333
    %5385 = vmatpush.bf16.msra.mxu0 %v5330
    %5386 = vmatpush.bf16.msra.mxu0 %v5327
    %5387 = vmatpush.bf16.msra.mxu0 %v5324
    %5388 = vmatpush.bf16.msra.mxu0 %v5321
    %5389 = vmatmul.bf16.gmra.mxu0 0
    %v5390 = vpop.f32.mrf.mxu0
    %v5391 = vadd.f32 0.0, %v5390
    %v5392 = vpop.f32.mrf.mxu0
    %5393 = vdwg.mxu0
    %5394 = vmatpush.bf16.msra.mxu0 %v5343
    %5395 = vmatpush.bf16.msra.mxu0 %v5340
    %5396 = vmatpush.bf16.msra.mxu0 %v5337
    %5397 = vmatpush.bf16.msra.mxu0 %v5334
    %5398 = vmatpush.bf16.msra.mxu0 %v5331
    %5399 = vmatpush.bf16.msra.mxu0 %v5328
    %5400 = vmatpush.bf16.msra.mxu0 %v5325
    %5401 = vmatpush.bf16.msra.mxu0 %v5322
    %5402 = vmatmul.bf16.gmra.mxu0 0
    %v5403 = vpop.f32.mrf.mxu0
    %v5404 = vadd.f32 0.0, %v5403
    %v5405 = vpop.f32.mrf.mxu0
    %5406 = vdwg.mxu0
    %v5407 = vadd.f32 %v5125, %v5378
    %v5408 = vxor.u32 %v5407, 2147483648
    %v5409 = vmul.f32 %v5408, 1.442695
    %v5410 = vpow.pop %v5409
    %v5411 = vadd.f32 %v5410, 1.0
    %v5412 = vrcp.pop %v5411
    %v5413 = vmul.f32 %v5411, %v5412
    %v5414 = vsub.f32 1.0, %v5413
    %v5415 = vmul.f32 %v5412, %v5414
    %v5416 = vadd.f32 %v5412, %v5415
    %vm5417 = vweird.f32 %v5411
    %vm5418 = vweird.f32 %v5412
    %vm5419 = vmor %vm5417, %vm5418
    %v5420 = vsel %vm5419, %v5412, %v5416
    %v5421 = vand.u32 2147483647, %v5411
    %vm5422 = vcmp.eq.f32.partialorder %v5421, 8.507059e+37
    %v5423 = vand.u32 %v5411, 2147483648
    %v5424 = vor.u32 1.1754944e-38, %v5423
    %v5425 = vsel %vm5422, %v5424, %v5420
    %v5426 = vmul.f32 1.0, %v5425
    %v5427 = vadd.f32 %v5154, %v5391
    %v5428 = vxor.u32 %v5427, 2147483648
    %v5429 = vmul.f32 %v5428, 1.442695
    %v5430 = vpow.pop %v5429
    %v5431 = vadd.f32 %v5430, 1.0
    %v5432 = vrcp.pop %v5431
    %v5433 = vmul.f32 %v5431, %v5432
    %v5434 = vsub.f32 1.0, %v5433
    %v5435 = vmul.f32 %v5432, %v5434
    %v5436 = vadd.f32 %v5432, %v5435
    %vm5437 = vweird.f32 %v5431
    %vm5438 = vweird.f32 %v5432
    %vm5439 = vmor %vm5437, %vm5438
    %v5440 = vsel %vm5439, %v5432, %v5436
    %v5441 = vand.u32 2147483647, %v5431
    %vm5442 = vcmp.eq.f32.partialorder %v5441, 8.507059e+37
    %v5443 = vand.u32 %v5431, 2147483648
    %v5444 = vor.u32 1.1754944e-38, %v5443
    %v5445 = vsel %vm5442, %v5444, %v5440
    %v5446 = vmul.f32 1.0, %v5445
    %v5447 = vadd.f32 %v5404, %v5238
    %v5448 = vmul.f32 %v5426, %v5447
    %v5449 = vadd.f32 %v5183, %v5448
    %v5450 = vtanh.pop %v5449
    %v5451 = vsub.f32 1.0, %v5446
    %v5452 = vmul.f32 %v5451, %v5450
    %v5453 = vmul.f32 %v5446, 0.0
    %v5454 = vadd.f32 %v5452, %v5453
    %v5455 = vpack.c.bf16 %v5454, %v5454
    %5456 = vmatpush.bf16.msra.mxu0 %v5341
    %5457 = vmatpush.bf16.msra.mxu0 %v5338
    %5458 = vmatpush.bf16.msra.mxu0 %v5335
    %5459 = vmatpush.bf16.msra.mxu0 %v5332
    %5460 = vmatpush.bf16.msra.mxu0 %v5329
    %5461 = vmatpush.bf16.msra.mxu0 %v5326
    %5462 = vmatpush.bf16.msra.mxu0 %v5323
    %5463 = vmatpush.bf16.msra.mxu0 %v5320
    %5464 = vmatmul.bf16.gmra.mxu0 %v5455
    %v5465 = vpop.f32.mrf.mxu0
    %v5466 = vadd.f32 0.0, %v5465
    %v5467 = vpop.f32.mrf.mxu0
    %5468 = vdwg.mxu0
    %5469 = vmatpush.bf16.msra.mxu0 %v5342
    %5470 = vmatpush.bf16.msra.mxu0 %v5339
    %5471 = vmatpush.bf16.msra.mxu0 %v5336
    %5472 = vmatpush.bf16.msra.mxu0 %v5333
    %5473 = vmatpush.bf16.msra.mxu0 %v5330
    %5474 = vmatpush.bf16.msra.mxu0 %v5327
    %5475 = vmatpush.bf16.msra.mxu0 %v5324
    %5476 = vmatpush.bf16.msra.mxu0 %v5321
    %5477 = vmatmul.bf16.gmra.mxu0 %v5455
    %v5478 = vpop.f32.mrf.mxu0
    %v5479 = vadd.f32 0.0, %v5478
    %v5480 = vpop.f32.mrf.mxu0
    %5481 = vdwg.mxu0
    %5482 = vmatpush.bf16.msra.mxu0 %v5343
    %5483 = vmatpush.bf16.msra.mxu0 %v5340
    %5484 = vmatpush.bf16.msra.mxu0 %v5337
    %5485 = vmatpush.bf16.msra.mxu0 %v5334
    %5486 = vmatpush.bf16.msra.mxu0 %v5331
    %5487 = vmatpush.bf16.msra.mxu0 %v5328
    %5488 = vmatpush.bf16.msra.mxu0 %v5325
    %5489 = vmatpush.bf16.msra.mxu0 %v5322
    %5490 = vmatmul.bf16.gmra.mxu0 %v5455
    %v5491 = vpop.f32.mrf.mxu0
    %v5492 = vadd.f32 0.0, %v5491
    %v5493 = vpop.f32.mrf.mxu0
    %5494 = vdwg.mxu0
    %v5495 = vadd.f32 %v5127, %v5466
    %v5496 = vxor.u32 %v5495, 2147483648
    %v5497 = vmul.f32 %v5496, 1.442695
    %v5498 = vpow.pop %v5497
    %v5499 = vadd.f32 %v5498, 1.0
    %v5500 = vrcp.pop %v5499
    %v5501 = vmul.f32 %v5499, %v5500
    %v5502 = vsub.f32 1.0, %v5501
    %v5503 = vmul.f32 %v5500, %v5502
    %v5504 = vadd.f32 %v5500, %v5503
    %vm5505 = vweird.f32 %v5499
    %vm5506 = vweird.f32 %v5500
    %vm5507 = vmor %vm5505, %vm5506
    %v5508 = vsel %vm5507, %v5500, %v5504
    %v5509 = vand.u32 2147483647, %v5499
    %vm5510 = vcmp.eq.f32.partialorder %v5509, 8.507059e+37
    %v5511 = vand.u32 %v5499, 2147483648
    %v5512 = vor.u32 1.1754944e-38, %v5511
    %v5513 = vsel %vm5510, %v5512, %v5508
    %v5514 = vmul.f32 1.0, %v5513
    %v5515 = vadd.f32 %v5156, %v5479
    %v5516 = vxor.u32 %v5515, 2147483648
    %v5517 = vmul.f32 %v5516, 1.442695
    %v5518 = vpow.pop %v5517
    %v5519 = vadd.f32 %v5518, 1.0
    %v5520 = vrcp.pop %v5519
    %v5521 = vmul.f32 %v5519, %v5520
    %v5522 = vsub.f32 1.0, %v5521
    %v5523 = vmul.f32 %v5520, %v5522
    %v5524 = vadd.f32 %v5520, %v5523
    %vm5525 = vweird.f32 %v5519
    %vm5526 = vweird.f32 %v5520
    %vm5527 = vmor %vm5525, %vm5526
    %v5528 = vsel %vm5527, %v5520, %v5524
    %v5529 = vand.u32 2147483647, %v5519
    %vm5530 = vcmp.eq.f32.partialorder %v5529, 8.507059e+37
    %v5531 = vand.u32 %v5519, 2147483648
    %v5532 = vor.u32 1.1754944e-38, %v5531
    %v5533 = vsel %vm5530, %v5532, %v5528
    %v5534 = vmul.f32 1.0, %v5533
    %v5535 = vadd.f32 %v5492, %v5238
    %v5536 = vmul.f32 %v5514, %v5535
    %v5537 = vadd.f32 %v5185, %v5536
    %v5538 = vtanh.pop %v5537
    %v5539 = vsub.f32 1.0, %v5534
    %v5540 = vmul.f32 %v5539, %v5538
    %v5541 = vmul.f32 %v5534, %v5454
    %v5542 = vadd.f32 %v5540, %v5541
    %v5543 = vpack.c.bf16 %v5542, %v5542
    %5544 = vmatpush.bf16.msra.mxu0 %v5341
    %5545 = vmatpush.bf16.msra.mxu0 %v5338
    %5546 = vmatpush.bf16.msra.mxu0 %v5335
    %5547 = vmatpush.bf16.msra.mxu0 %v5332
    %5548 = vmatpush.bf16.msra.mxu0 %v5329
    %5549 = vmatpush.bf16.msra.mxu0 %v5326
    %5550 = vmatpush.bf16.msra.mxu0 %v5323
    %5551 = vmatpush.bf16.msra.mxu0 %v5320
    %5552 = vmatmul.bf16.gmra.mxu0 %v5543
    %v5553 = vpop.f32.mrf.mxu0
    %v5554 = vadd.f32 0.0, %v5553
    %v5555 = vpop.f32.mrf.mxu0
    %5556 = vdwg.mxu0
    %5557 = vmatpush.bf16.msra.mxu0 %v5342
    %5558 = vmatpush.bf16.msra.mxu0 %v5339
    %5559 = vmatpush.bf16.msra.mxu0 %v5336
    %5560 = vmatpush.bf16.msra.mxu0 %v5333
    %5561 = vmatpush.bf16.msra.mxu0 %v5330
    %5562 = vmatpush.bf16.msra.mxu0 %v5327
    %5563 = vmatpush.bf16.msra.mxu0 %v5324
    %5564 = vmatpush.bf16.msra.mxu0 %v5321
    %5565 = vmatmul.bf16.gmra.mxu0 %v5543
    %v5566 = vpop.f32.mrf.mxu0
    %v5567 = vadd.f32 0.0, %v5566
    %v5568 = vpop.f32.mrf.mxu0
    %5569 = vdwg.mxu0
    %5570 = vmatpush.bf16.msra.mxu0 %v5343
    %5571 = vmatpush.bf16.msra.mxu0 %v5340
    %5572 = vmatpush.bf16.msra.mxu0 %v5337
    %5573 = vmatpush.bf16.msra.mxu0 %v5334
    %5574 = vmatpush.bf16.msra.mxu0 %v5331
    %5575 = vmatpush.bf16.msra.mxu0 %v5328
    %5576 = vmatpush.bf16.msra.mxu0 %v5325
    %5577 = vmatpush.bf16.msra.mxu0 %v5322
    %5578 = vmatmul.bf16.gmra.mxu0 %v5543
    %v5579 = vpop.f32.mrf.mxu0
    %v5580 = vadd.f32 0.0, %v5579
    %v5581 = vpop.f32.mrf.mxu0
    %5582 = vdwg.mxu0
    %v5583 = vadd.f32 %v5130, %v5554
    %v5584 = vxor.u32 %v5583, 2147483648
    %v5585 = vmul.f32 %v5584, 1.442695
    %v5586 = vpow.pop %v5585
    %v5587 = vadd.f32 %v5586, 1.0
    %v5588 = vrcp.pop %v5587
    %v5589 = vmul.f32 %v5587, %v5588
    %v5590 = vsub.f32 1.0, %v5589
    %v5591 = vmul.f32 %v5588, %v5590
    %v5592 = vadd.f32 %v5588, %v5591
    %vm5593 = vweird.f32 %v5587
    %vm5594 = vweird.f32 %v5588
    %vm5595 = vmor %vm5593, %vm5594
    %v5596 = vsel %vm5595, %v5588, %v5592
    %v5597 = vand.u32 2147483647, %v5587
    %vm5598 = vcmp.eq.f32.partialorder %v5597, 8.507059e+37
    %v5599 = vand.u32 %v5587, 2147483648
    %v5600 = vor.u32 1.1754944e-38, %v5599
    %v5601 = vsel %vm5598, %v5600, %v5596
    %v5602 = vmul.f32 1.0, %v5601
    %v5603 = vadd.f32 %v5159, %v5567
    %v5604 = vxor.u32 %v5603, 2147483648
    %v5605 = vmul.f32 %v5604, 1.442695
    %v5606 = vpow.pop %v5605
    %v5607 = vadd.f32 %v5606, 1.0
    %v5608 = vrcp.pop %v5607
    %v5609 = vmul.f32 %v5607, %v5608
    %v5610 = vsub.f32 1.0, %v5609
    %v5611 = vmul.f32 %v5608, %v5610
    %v5612 = vadd.f32 %v5608, %v5611
    %vm5613 = vweird.f32 %v5607
    %vm5614 = vweird.f32 %v5608
    %vm5615 = vmor %vm5613, %vm5614
    %v5616 = vsel %vm5615, %v5608, %v5612
    %v5617 = vand.u32 2147483647, %v5607
    %vm5618 = vcmp.eq.f32.partialorder %v5617, 8.507059e+37
    %v5619 = vand.u32 %v5607, 2147483648
    %v5620 = vor.u32 1.1754944e-38, %v5619
    %v5621 = vsel %vm5618, %v5620, %v5616
    %v5622 = vmul.f32 1.0, %v5621
    %v5623 = vadd.f32 %v5580, %v5238
    %v5624 = vmul.f32 %v5602, %v5623
    %v5625 = vadd.f32 %v5188, %v5624
    %v5626 = vtanh.pop %v5625
    %v5627 = vsub.f32 1.0, %v5622
    %v5628 = vmul.f32 %v5627, %v5626
    %v5629 = vmul.f32 %v5622, %v5542
    %v5630 = vadd.f32 %v5628, %v5629
    %v5631 = vpack.c.bf16 %v5630, %v5630
    %5632 = vmatpush.bf16.msra.mxu0 %v5341
    %5633 = vmatpush.bf16.msra.mxu0 %v5338
    %5634 = vmatpush.bf16.msra.mxu0 %v5335
    %5635 = vmatpush.bf16.msra.mxu0 %v5332
    %5636 = vmatpush.bf16.msra.mxu0 %v5329
    %5637 = vmatpush.bf16.msra.mxu0 %v5326
    %5638 = vmatpush.bf16.msra.mxu0 %v5323
    %5639 = vmatpush.bf16.msra.mxu0 %v5320
    %5640 = vmatmul.bf16.gmra.mxu0 %v5631
    %v5641 = vpop.f32.mrf.mxu0
    %v5642 = vadd.f32 0.0, %v5641
    %v5643 = vpop.f32.mrf.mxu0
    %5644 = vdwg.mxu0
    %5645 = vmatpush.bf16.msra.mxu0 %v5342
    %5646 = vmatpush.bf16.msra.mxu0 %v5339
    %5647 = vmatpush.bf16.msra.mxu0 %v5336
    %5648 = vmatpush.bf16.msra.mxu0 %v5333
    %5649 = vmatpush.bf16.msra.mxu0 %v5330
    %5650 = vmatpush.bf16.msra.mxu0 %v5327
    %5651 = vmatpush.bf16.msra.mxu0 %v5324
    %5652 = vmatpush.bf16.msra.mxu0 %v5321
    %5653 = vmatmul.bf16.gmra.mxu0 %v5631
    %v5654 = vpop.f32.mrf.mxu0
    %v5655 = vadd.f32 0.0, %v5654
    %v5656 = vpop.f32.mrf.mxu0
    %5657 = vdwg.mxu0
    %5658 = vmatpush.bf16.msra.mxu0 %v5343
    %5659 = vmatpush.bf16.msra.mxu0 %v5340
    %5660 = vmatpush.bf16.msra.mxu0 %v5337
    %5661 = vmatpush.bf16.msra.mxu0 %v5334
    %5662 = vmatpush.bf16.msra.mxu0 %v5331
    %5663 = vmatpush.bf16.msra.mxu0 %v5328
    %5664 = vmatpush.bf16.msra.mxu0 %v5325
    %5665 = vmatpush.bf16.msra.mxu0 %v5322
    %5666 = vmatmul.bf16.gmra.mxu0 %v5631
    %v5667 = vpop.f32.mrf.mxu0
    %v5668 = vadd.f32 0.0, %v5667
    %v5669 = vpop.f32.mrf.mxu0
    %5670 = vdwg.mxu0
    %v5671 = vadd.f32 %v5132, %v5642
    %v5672 = vxor.u32 %v5671, 2147483648
    %v5673 = vmul.f32 %v5672, 1.442695
    %v5674 = vpow.pop %v5673
    %v5675 = vadd.f32 %v5674, 1.0
    %v5676 = vrcp.pop %v5675
    %v5677 = vmul.f32 %v5675, %v5676
    %v5678 = vsub.f32 1.0, %v5677
    %v5679 = vmul.f32 %v5676, %v5678
    %v5680 = vadd.f32 %v5676, %v5679
    %vm5681 = vweird.f32 %v5675
    %vm5682 = vweird.f32 %v5676
    %vm5683 = vmor %vm5681, %vm5682
    %v5684 = vsel %vm5683, %v5676, %v5680
    %v5685 = vand.u32 2147483647, %v5675
    %vm5686 = vcmp.eq.f32.partialorder %v5685, 8.507059e+37
    %v5687 = vand.u32 %v5675, 2147483648
    %v5688 = vor.u32 1.1754944e-38, %v5687
    %v5689 = vsel %vm5686, %v5688, %v5684
    %v5690 = vmul.f32 1.0, %v5689
    %v5691 = vadd.f32 %v5161, %v5655
    %v5692 = vxor.u32 %v5691, 2147483648
    %v5693 = vmul.f32 %v5692, 1.442695
    %v5694 = vpow.pop %v5693
    %v5695 = vadd.f32 %v5694, 1.0
    %v5696 = vrcp.pop %v5695
    %v5697 = vmul.f32 %v5695, %v5696
    %v5698 = vsub.f32 1.0, %v5697
    %v5699 = vmul.f32 %v5696, %v5698
    %v5700 = vadd.f32 %v5696, %v5699
    %vm5701 = vweird.f32 %v5695
    %vm5702 = vweird.f32 %v5696
    %vm5703 = vmor %vm5701, %vm5702
    %v5704 = vsel %vm5703, %v5696, %v5700
    %v5705 = vand.u32 2147483647, %v5695
    %vm5706 = vcmp.eq.f32.partialorder %v5705, 8.507059e+37
    %v5707 = vand.u32 %v5695, 2147483648
    %v5708 = vor.u32 1.1754944e-38, %v5707
    %v5709 = vsel %vm5706, %v5708, %v5704
    %v5710 = vmul.f32 1.0, %v5709
    %v5711 = vadd.f32 %v5668, %v5238
    %v5712 = vmul.f32 %v5690, %v5711
    %v5713 = vadd.f32 %v5190, %v5712
    %v5714 = vtanh.pop %v5713
    %v5715 = vsub.f32 1.0, %v5710
    %v5716 = vmul.f32 %v5715, %v5714
    %v5717 = vmul.f32 %v5710, %v5630
    %v5718 = vadd.f32 %v5716, %v5717
    %v5719 = vpack.c.bf16 %v5718, %v5718
    %5720 = vmatpush.bf16.msra.mxu0 %v5341
    %5721 = vmatpush.bf16.msra.mxu0 %v5338
    %5722 = vmatpush.bf16.msra.mxu0 %v5335
    %5723 = vmatpush.bf16.msra.mxu0 %v5332
    %5724 = vmatpush.bf16.msra.mxu0 %v5329
    %5725 = vmatpush.bf16.msra.mxu0 %v5326
    %5726 = vmatpush.bf16.msra.mxu0 %v5323
    %5727 = vmatpush.bf16.msra.mxu0 %v5320
    %5728 = vmatmul.bf16.gmra.mxu0 %v5719
    %v5729 = vpop.f32.mrf.mxu0
    %v5730 = vadd.f32 0.0, %v5729
    %v5731 = vpop.f32.mrf.mxu0
    %5732 = vdwg.mxu0
    %5733 = vmatpush.bf16.msra.mxu0 %v5342
    %5734 = vmatpush.bf16.msra.mxu0 %v5339
    %5735 = vmatpush.bf16.msra.mxu0 %v5336
    %5736 = vmatpush.bf16.msra.mxu0 %v5333
    %5737 = vmatpush.bf16.msra.mxu0 %v5330
    %5738 = vmatpush.bf16.msra.mxu0 %v5327
    %5739 = vmatpush.bf16.msra.mxu0 %v5324
    %5740 = vmatpush.bf16.msra.mxu0 %v5321
    %5741 = vmatmul.bf16.gmra.mxu0 %v5719
    %v5742 = vpop.f32.mrf.mxu0
    %v5743 = vadd.f32 0.0, %v5742
    %v5744 = vpop.f32.mrf.mxu0
    %5745 = vdwg.mxu0
    %5746 = vmatpush.bf16.msra.mxu0 %v5343
    %5747 = vmatpush.bf16.msra.mxu0 %v5340
    %5748 = vmatpush.bf16.msra.mxu0 %v5337
    %5749 = vmatpush.bf16.msra.mxu0 %v5334
    %5750 = vmatpush.bf16.msra.mxu0 %v5331
    %5751 = vmatpush.bf16.msra.mxu0 %v5328
    %5752 = vmatpush.bf16.msra.mxu0 %v5325
    %5753 = vmatpush.bf16.msra.mxu0 %v5322
    %5754 = vmatmul.bf16.gmra.mxu0 %v5719
    %v5755 = vpop.f32.mrf.mxu0
    %v5756 = vadd.f32 0.0, %v5755
    %v5757 = vpop.f32.mrf.mxu0
    %5758 = vdwg.mxu0
    %v5759 = vadd.f32 %v5135, %v5730
    %v5760 = vxor.u32 %v5759, 2147483648
    %v5761 = vmul.f32 %v5760, 1.442695
    %v5762 = vpow.pop %v5761
    %v5763 = vadd.f32 %v5762, 1.0
    %v5764 = vrcp.pop %v5763
    %v5765 = vmul.f32 %v5763, %v5764
    %v5766 = vsub.f32 1.0, %v5765
    %v5767 = vmul.f32 %v5764, %v5766
    %v5768 = vadd.f32 %v5764, %v5767
    %vm5769 = vweird.f32 %v5763
    %vm5770 = vweird.f32 %v5764
    %vm5771 = vmor %vm5769, %vm5770
    %v5772 = vsel %vm5771, %v5764, %v5768
    %v5773 = vand.u32 2147483647, %v5763
    %vm5774 = vcmp.eq.f32.partialorder %v5773, 8.507059e+37
    %v5775 = vand.u32 %v5763, 2147483648
    %v5776 = vor.u32 1.1754944e-38, %v5775
    %v5777 = vsel %vm5774, %v5776, %v5772
    %v5778 = vmul.f32 1.0, %v5777
    %v5779 = vadd.f32 %v5164, %v5743
    %v5780 = vxor.u32 %v5779, 2147483648
    %v5781 = vmul.f32 %v5780, 1.442695
    %v5782 = vpow.pop %v5781
    %v5783 = vadd.f32 %v5782, 1.0
    %v5784 = vrcp.pop %v5783
    %v5785 = vmul.f32 %v5783, %v5784
    %v5786 = vsub.f32 1.0, %v5785
    %v5787 = vmul.f32 %v5784, %v5786
    %v5788 = vadd.f32 %v5784, %v5787
    %vm5789 = vweird.f32 %v5783
    %vm5790 = vweird.f32 %v5784
    %vm5791 = vmor %vm5789, %vm5790
    %v5792 = vsel %vm5791, %v5784, %v5788
    %v5793 = vand.u32 2147483647, %v5783
    %vm5794 = vcmp.eq.f32.partialorder %v5793, 8.507059e+37
    %v5795 = vand.u32 %v5783, 2147483648
    %v5796 = vor.u32 1.1754944e-38, %v5795
    %v5797 = vsel %vm5794, %v5796, %v5792
    %v5798 = vmul.f32 1.0, %v5797
    %v5799 = vadd.f32 %v5756, %v5238
    %v5800 = vmul.f32 %v5778, %v5799
    %v5801 = vadd.f32 %v5193, %v5800
    %v5802 = vtanh.pop %v5801
    %v5803 = vsub.f32 1.0, %v5798
    %v5804 = vmul.f32 %v5803, %v5802
    %v5805 = vmul.f32 %v5798, %v5718
    %v5806 = vadd.f32 %v5804, %v5805
    %v5807 = vpack.c.bf16 %v5806, %v5806
    %5808 = vmatpush.bf16.msra.mxu0 %v5341
    %5809 = vmatpush.bf16.msra.mxu0 %v5338
    %5810 = vmatpush.bf16.msra.mxu0 %v5335
    %5811 = vmatpush.bf16.msra.mxu0 %v5332
    %5812 = vmatpush.bf16.msra.mxu0 %v5329
    %5813 = vmatpush.bf16.msra.mxu0 %v5326
    %5814 = vmatpush.bf16.msra.mxu0 %v5323
    %5815 = vmatpush.bf16.msra.mxu0 %v5320
    %5816 = vmatmul.bf16.gmra.mxu0 %v5807
    %v5817 = vpop.f32.mrf.mxu0
    %v5818 = vadd.f32 0.0, %v5817
    %v5819 = vpop.f32.mrf.mxu0
    %5820 = vdwg.mxu0
    %5821 = vmatpush.bf16.msra.mxu0 %v5342
    %5822 = vmatpush.bf16.msra.mxu0 %v5339
    %5823 = vmatpush.bf16.msra.mxu0 %v5336
    %5824 = vmatpush.bf16.msra.mxu0 %v5333
    %5825 = vmatpush.bf16.msra.mxu0 %v5330
    %5826 = vmatpush.bf16.msra.mxu0 %v5327
    %5827 = vmatpush.bf16.msra.mxu0 %v5324
    %5828 = vmatpush.bf16.msra.mxu0 %v5321
    %5829 = vmatmul.bf16.gmra.mxu0 %v5807
    %v5830 = vpop.f32.mrf.mxu0
    %v5831 = vadd.f32 0.0, %v5830
    %v5832 = vpop.f32.mrf.mxu0
    %5833 = vdwg.mxu0
    %5834 = vmatpush.bf16.msra.mxu0 %v5343
    %5835 = vmatpush.bf16.msra.mxu0 %v5340
    %5836 = vmatpush.bf16.msra.mxu0 %v5337
    %5837 = vmatpush.bf16.msra.mxu0 %v5334
    %5838 = vmatpush.bf16.msra.mxu0 %v5331
    %5839 = vmatpush.bf16.msra.mxu0 %v5328
    %5840 = vmatpush.bf16.msra.mxu0 %v5325
    %5841 = vmatpush.bf16.msra.mxu0 %v5322
    %5842 = vmatmul.bf16.gmra.mxu0 %v5807
    %v5843 = vpop.f32.mrf.mxu0
    %v5844 = vadd.f32 0.0, %v5843
    %v5845 = vpop.f32.mrf.mxu0
    %5846 = vdwg.mxu0
    %v5847 = vadd.f32 %v5137, %v5818
    %v5848 = vxor.u32 %v5847, 2147483648
    %v5849 = vmul.f32 %v5848, 1.442695
    %v5850 = vpow.pop %v5849
    %v5851 = vadd.f32 %v5850, 1.0
    %v5852 = vrcp.pop %v5851
    %v5853 = vmul.f32 %v5851, %v5852
    %v5854 = vsub.f32 1.0, %v5853
    %v5855 = vmul.f32 %v5852, %v5854
    %v5856 = vadd.f32 %v5852, %v5855
    %vm5857 = vweird.f32 %v5851
    %vm5858 = vweird.f32 %v5852
    %vm5859 = vmor %vm5857, %vm5858
    %v5860 = vsel %vm5859, %v5852, %v5856
    %v5861 = vand.u32 2147483647, %v5851
    %vm5862 = vcmp.eq.f32.partialorder %v5861, 8.507059e+37
    %v5863 = vand.u32 %v5851, 2147483648
    %v5864 = vor.u32 1.1754944e-38, %v5863
    %v5865 = vsel %vm5862, %v5864, %v5860
    %v5866 = vmul.f32 1.0, %v5865
    %v5867 = vadd.f32 %v5166, %v5831
    %v5868 = vxor.u32 %v5867, 2147483648
    %v5869 = vmul.f32 %v5868, 1.442695
    %v5870 = vpow.pop %v5869
    %v5871 = vadd.f32 %v5870, 1.0
    %v5872 = vrcp.pop %v5871
    %v5873 = vmul.f32 %v5871, %v5872
    %v5874 = vsub.f32 1.0, %v5873
    %v5875 = vmul.f32 %v5872, %v5874
    %v5876 = vadd.f32 %v5872, %v5875
    %vm5877 = vweird.f32 %v5871
    %vm5878 = vweird.f32 %v5872
    %vm5879 = vmor %vm5877, %vm5878
    %v5880 = vsel %vm5879, %v5872, %v5876
    %v5881 = vand.u32 2147483647, %v5871
    %vm5882 = vcmp.eq.f32.partialorder %v5881, 8.507059e+37
    %v5883 = vand.u32 %v5871, 2147483648
    %v5884 = vor.u32 1.1754944e-38, %v5883
    %v5885 = vsel %vm5882, %v5884, %v5880
    %v5886 = vmul.f32 1.0, %v5885
    %v5887 = vadd.f32 %v5844, %v5238
    %v5888 = vmul.f32 %v5866, %v5887
    %v5889 = vadd.f32 %v5195, %v5888
    %v5890 = vtanh.pop %v5889
    %v5891 = vsub.f32 1.0, %v5886
    %v5892 = vmul.f32 %v5891, %v5890
    %v5893 = vmul.f32 %v5886, %v5806
    %v5894 = vadd.f32 %v5892, %v5893
    %v5895 = vpack.c.bf16 %v5894, %v5894
    %5896 = vmatpush.bf16.msra.mxu0 %v5341
    %5897 = vmatpush.bf16.msra.mxu0 %v5338
    %5898 = vmatpush.bf16.msra.mxu0 %v5335
    %5899 = vmatpush.bf16.msra.mxu0 %v5332
    %5900 = vmatpush.bf16.msra.mxu0 %v5329
    %5901 = vmatpush.bf16.msra.mxu0 %v5326
    %5902 = vmatpush.bf16.msra.mxu0 %v5323
    %5903 = vmatpush.bf16.msra.mxu0 %v5320
    %5904 = vmatmul.bf16.gmra.mxu0 %v5895
    %v5905 = vpop.f32.mrf.mxu0
    %v5906 = vadd.f32 0.0, %v5905
    %v5907 = vpop.f32.mrf.mxu0
    %5908 = vdwg.mxu0
    %5909 = vmatpush.bf16.msra.mxu0 %v5342
    %5910 = vmatpush.bf16.msra.mxu0 %v5339
    %5911 = vmatpush.bf16.msra.mxu0 %v5336
    %5912 = vmatpush.bf16.msra.mxu0 %v5333
    %5913 = vmatpush.bf16.msra.mxu0 %v5330
    %5914 = vmatpush.bf16.msra.mxu0 %v5327
    %5915 = vmatpush.bf16.msra.mxu0 %v5324
    %5916 = vmatpush.bf16.msra.mxu0 %v5321
    %5917 = vmatmul.bf16.gmra.mxu0 %v5895
    %v5918 = vpop.f32.mrf.mxu0
    %v5919 = vadd.f32 0.0, %v5918
    %v5920 = vpop.f32.mrf.mxu0
    %5921 = vdwg.mxu0
    %5922 = vmatpush.bf16.msra.mxu0 %v5343
    %5923 = vmatpush.bf16.msra.mxu0 %v5340
    %5924 = vmatpush.bf16.msra.mxu0 %v5337
    %5925 = vmatpush.bf16.msra.mxu0 %v5334
    %5926 = vmatpush.bf16.msra.mxu0 %v5331
    %5927 = vmatpush.bf16.msra.mxu0 %v5328
    %5928 = vmatpush.bf16.msra.mxu0 %v5325
    %5929 = vmatpush.bf16.msra.mxu0 %v5322
    %5930 = vmatmul.bf16.gmra.mxu0 %v5895
    %v5931 = vpop.f32.mrf.mxu0
    %v5932 = vadd.f32 0.0, %v5931
    %v5933 = vpop.f32.mrf.mxu0
    %5934 = vdwg.mxu0
    %v5935 = vadd.f32 %v5140, %v5906
    %v5936 = vxor.u32 %v5935, 2147483648
    %v5937 = vmul.f32 %v5936, 1.442695
    %v5938 = vpow.pop %v5937
    %v5939 = vadd.f32 %v5938, 1.0
    %v5940 = vrcp.pop %v5939
    %v5941 = vmul.f32 %v5939, %v5940
    %v5942 = vsub.f32 1.0, %v5941
    %v5943 = vmul.f32 %v5940, %v5942
    %v5944 = vadd.f32 %v5940, %v5943
    %vm5945 = vweird.f32 %v5939
    %vm5946 = vweird.f32 %v5940
    %vm5947 = vmor %vm5945, %vm5946
    %v5948 = vsel %vm5947, %v5940, %v5944
    %v5949 = vand.u32 2147483647, %v5939
    %vm5950 = vcmp.eq.f32.partialorder %v5949, 8.507059e+37
    %v5951 = vand.u32 %v5939, 2147483648
    %v5952 = vor.u32 1.1754944e-38, %v5951
    %v5953 = vsel %vm5950, %v5952, %v5948
    %v5954 = vmul.f32 1.0, %v5953
    %v5955 = vadd.f32 %v5169, %v5919
    %v5956 = vxor.u32 %v5955, 2147483648
    %v5957 = vmul.f32 %v5956, 1.442695
    %v5958 = vpow.pop %v5957
    %v5959 = vadd.f32 %v5958, 1.0
    %v5960 = vrcp.pop %v5959
    %v5961 = vmul.f32 %v5959, %v5960
    %v5962 = vsub.f32 1.0, %v5961
    %v5963 = vmul.f32 %v5960, %v5962
    %v5964 = vadd.f32 %v5960, %v5963
    %vm5965 = vweird.f32 %v5959
    %vm5966 = vweird.f32 %v5960
    %vm5967 = vmor %vm5965, %vm5966
    %v5968 = vsel %vm5967, %v5960, %v5964
    %v5969 = vand.u32 2147483647, %v5959
    %vm5970 = vcmp.eq.f32.partialorder %v5969, 8.507059e+37
    %v5971 = vand.u32 %v5959, 2147483648
    %v5972 = vor.u32 1.1754944e-38, %v5971
    %v5973 = vsel %vm5970, %v5972, %v5968
    %v5974 = vmul.f32 1.0, %v5973
    %v5975 = vadd.f32 %v5932, %v5238
    %v5976 = vmul.f32 %v5954, %v5975
    %v5977 = vadd.f32 %v5198, %v5976
    %v5978 = vtanh.pop %v5977
    %v5979 = vsub.f32 1.0, %v5974
    %v5980 = vmul.f32 %v5979, %v5978
    %v5981 = vmul.f32 %v5974, %v5894
    %v5982 = vadd.f32 %v5980, %v5981
    %v5983 = vpack.c.bf16 %v5982, %v5982
    %5984 = vmatpush.bf16.msra.mxu0 %v5341
    %5985 = vmatpush.bf16.msra.mxu0 %v5338
    %5986 = vmatpush.bf16.msra.mxu0 %v5335
    %5987 = vmatpush.bf16.msra.mxu0 %v5332
    %5988 = vmatpush.bf16.msra.mxu0 %v5329
    %5989 = vmatpush.bf16.msra.mxu0 %v5326
    %5990 = vmatpush.bf16.msra.mxu0 %v5323
    %5991 = vmatpush.bf16.msra.mxu0 %v5320
    %5992 = vmatmul.bf16.gmra.mxu0 %v5983
    %v5993 = vpop.f32.mrf.mxu0
    %v5994 = vadd.f32 0.0, %v5993
    %v5995 = vpop.f32.mrf.mxu0
    %5996 = vdwg.mxu0
    %5997 = vmatpush.bf16.msra.mxu0 %v5342
    %5998 = vmatpush.bf16.msra.mxu0 %v5339
    %5999 = vmatpush.bf16.msra.mxu0 %v5336
    %6000 = vmatpush.bf16.msra.mxu0 %v5333
    %6001 = vmatpush.bf16.msra.mxu0 %v5330
    %6002 = vmatpush.bf16.msra.mxu0 %v5327
    %6003 = vmatpush.bf16.msra.mxu0 %v5324
    %6004 = vmatpush.bf16.msra.mxu0 %v5321
    %6005 = vmatmul.bf16.gmra.mxu0 %v5983
    %v6006 = vpop.f32.mrf.mxu0
    %v6007 = vadd.f32 0.0, %v6006
    %v6008 = vpop.f32.mrf.mxu0
    %6009 = vdwg.mxu0
    %6010 = vmatpush.bf16.msra.mxu0 %v5343
    %6011 = vmatpush.bf16.msra.mxu0 %v5340
    %6012 = vmatpush.bf16.msra.mxu0 %v5337
    %6013 = vmatpush.bf16.msra.mxu0 %v5334
    %6014 = vmatpush.bf16.msra.mxu0 %v5331
    %6015 = vmatpush.bf16.msra.mxu0 %v5328
    %6016 = vmatpush.bf16.msra.mxu0 %v5325
    %6017 = vmatpush.bf16.msra.mxu0 %v5322
    %6018 = vmatmul.bf16.gmra.mxu0 %v5983
    %v6019 = vpop.f32.mrf.mxu0
    %v6020 = vadd.f32 0.0, %v6019
    %v6021 = vpop.f32.mrf.mxu0
    %6022 = vdwg.mxu0
    %v6023 = vadd.f32 %v5142, %v5994
    %v6024 = vxor.u32 %v6023, 2147483648
    %v6025 = vmul.f32 %v6024, 1.442695
    %v6026 = vpow.pop %v6025
    %v6027 = vadd.f32 %v6026, 1.0
    %v6028 = vrcp.pop %v6027
    %v6029 = vmul.f32 %v6027, %v6028
    %v6030 = vsub.f32 1.0, %v6029
    %v6031 = vmul.f32 %v6028, %v6030
    %v6032 = vadd.f32 %v6028, %v6031
    %vm6033 = vweird.f32 %v6027
    %vm6034 = vweird.f32 %v6028
    %vm6035 = vmor %vm6033, %vm6034
    %v6036 = vsel %vm6035, %v6028, %v6032
    %v6037 = vand.u32 2147483647, %v6027
    %vm6038 = vcmp.eq.f32.partialorder %v6037, 8.507059e+37
    %v6039 = vand.u32 %v6027, 2147483648
    %v6040 = vor.u32 1.1754944e-38, %v6039
    %v6041 = vsel %vm6038, %v6040, %v6036
    %v6042 = vmul.f32 1.0, %v6041
    %v6043 = vadd.f32 %v5171, %v6007
    %v6044 = vxor.u32 %v6043, 2147483648
    %v6045 = vmul.f32 %v6044, 1.442695
    %v6046 = vpow.pop %v6045
    %v6047 = vadd.f32 %v6046, 1.0
    %v6048 = vrcp.pop %v6047
    %v6049 = vmul.f32 %v6047, %v6048
    %v6050 = vsub.f32 1.0, %v6049
    %v6051 = vmul.f32 %v6048, %v6050
    %v6052 = vadd.f32 %v6048, %v6051
    %vm6053 = vweird.f32 %v6047
    %vm6054 = vweird.f32 %v6048
    %vm6055 = vmor %vm6053, %vm6054
    %v6056 = vsel %vm6055, %v6048, %v6052
    %v6057 = vand.u32 2147483647, %v6047
    %vm6058 = vcmp.eq.f32.partialorder %v6057, 8.507059e+37
    %v6059 = vand.u32 %v6047, 2147483648
    %v6060 = vor.u32 1.1754944e-38, %v6059
    %v6061 = vsel %vm6058, %v6060, %v6056
    %v6062 = vmul.f32 1.0, %v6061
    %v6063 = vadd.f32 %v6020, %v5238
    %v6064 = vmul.f32 %v6042, %v6063
    %v6065 = vadd.f32 %v5200, %v6064
    %v6066 = vtanh.pop %v6065
    %v6067 = vsub.f32 1.0, %v6062
    %v6068 = vmul.f32 %v6067, %v6066
    %v6069 = vmul.f32 %v6062, %v5982
    %v6070 = vadd.f32 %v6068, %v6069
    %v6071 = vpack.c.bf16 %v5542, %v5454
    %v6072 = vpack.c.bf16 %v5718, %v5630
    %v6073 = vpack.c.bf16 %v5894, %v5806
    %v6074 = vpack.c.bf16 %v6070, %v5982
    %s6075 = scalar_lea.vmem [#allocation10], 576
    %v6076 = vld [vmem:[%s6075] sm:$0xff]
    %v6077 = vld [vmem:[%s6075 + $0x8] sm:$0xf]
    %v6078 = vld [vmem:[%s6075 + $0xc] sm:$0xff]
    %v6079 = vld [vmem:[%s6075 + $0x14] sm:$0xf]
    %v6080 = vld [vmem:[%s6075 + $0x18] sm:$0xff]
    %v6081 = vld [vmem:[%s6075 + $0x20] sm:$0xf]
    %v6082 = vld [vmem:[%s6075 + $0x24] sm:$0xff]
    %v6083 = vld [vmem:[%s6075 + $0x2c] sm:$0xf]
    %v6084 = vld [vmem:[%s6075 + $0x30] sm:$0xff]
    %v6085 = vld [vmem:[%s6075 + $0x38] sm:$0xf]
    %v6086 = vld [vmem:[%s6075 + $0x3c] sm:$0xff]
    %v6087 = vld [vmem:[%s6075 + $0x44] sm:$0xf]
    %v6088 = vld [vmem:[%s6075 + $0x48] sm:$0xff]
    %v6089 = vld [vmem:[%s6075 + $0x50] sm:$0xf]
    %v6090 = vld [vmem:[%s6075 + $0x54] sm:$0xff]
    %v6091 = vld [vmem:[%s6075 + $0x5c] sm:$0xf]
    %v6092 = vld [vmem:[%s6075 + $0x60] sm:$0xff]
    %v6093 = vld [vmem:[%s6075 + $0x68] sm:$0xf]
    %v6094 = vld [vmem:[%s6075 + $0x6c] sm:$0xff]
    %v6095 = vld [vmem:[%s6075 + $0x74] sm:$0xf]
    %v6096 = vld [vmem:[%s6075 + $0x78] sm:$0xff]
    %v6097 = vld [vmem:[%s6075 + $0x80] sm:$0xf]
    %v6098 = vld [vmem:[%s6075 + $0x84] sm:$0xff]
    %v6099 = vld [vmem:[%s6075 + $0x8c] sm:$0xf]
    %v6100 = vld [vmem:[%s6075 + $0x90] sm:$0xff]
    %v6101 = vld [vmem:[%s6075 + $0x98] sm:$0xf]
    %v6102 = vld [vmem:[%s6075 + $0x9c] sm:$0xff]
    %v6103 = vld [vmem:[%s6075 + $0xa4] sm:$0xf]
    %v6104 = vld [vmem:[%s6075 + $0xa8] sm:$0xff]
    %v6105 = vld [vmem:[%s6075 + $0xb0] sm:$0xf]
    %v6106 = vld [vmem:[%s6075 + $0xb4] sm:$0xff]
    %v6107 = vld [vmem:[%s6075 + $0xbc] sm:$0xf]
    %s6108 = scalar_lea.vmem [#allocation11], 9
    %v6109 = vld [vmem:[%s6108] sm:$0x7]
    %v6111 = vperm.slane %v6109, 0
    %v6112 = vperm.slane %v6109, 1
    %v6113 = vperm.slane %v6109, 2
    %v6149 = vunpack.c.l.b16 %v6076
    %v6150 = vunpack.c.h.b16 %v6076
    %v6151 = vunpack.c.l.b16 %v6077
    %v6152 = vunpack.c.l.b16 %v6078
    %v6153 = vunpack.c.h.b16 %v6078
    %v6154 = vunpack.c.l.b16 %v6079
    %v6155 = vunpack.c.l.b16 %v6080
    %v6156 = vunpack.c.h.b16 %v6080
    %v6157 = vunpack.c.l.b16 %v6081
    %v6158 = vunpack.c.l.b16 %v6082
    %v6159 = vunpack.c.h.b16 %v6082
    %v6160 = vunpack.c.l.b16 %v6083
    %v6161 = vunpack.c.l.b16 %v6084
    %v6162 = vunpack.c.h.b16 %v6084
    %v6163 = vunpack.c.l.b16 %v6085
    %v6164 = vunpack.c.l.b16 %v6086
    %v6165 = vunpack.c.h.b16 %v6086
    %v6166 = vunpack.c.l.b16 %v6087
    %v6167 = vunpack.c.l.b16 %v6088
    %v6168 = vunpack.c.h.b16 %v6088
    %v6169 = vunpack.c.l.b16 %v6089
    %v6170 = vunpack.c.l.b16 %v6090
    %v6171 = vunpack.c.h.b16 %v6090
    %v6172 = vunpack.c.l.b16 %v6091
    %v6173 = vunpack.c.l.b16 %v6092
    %v6174 = vunpack.c.h.b16 %v6092
    %v6175 = vunpack.c.l.b16 %v6093
    %v6176 = vunpack.c.l.b16 %v6094
    %v6177 = vunpack.c.h.b16 %v6094
    %v6178 = vunpack.c.l.b16 %v6095
    %v6179 = vunpack.c.l.b16 %v6096
    %v6180 = vunpack.c.h.b16 %v6096
    %v6181 = vunpack.c.l.b16 %v6097
    %v6182 = vunpack.c.l.b16 %v6098
    %v6183 = vunpack.c.h.b16 %v6098
    %v6184 = vunpack.c.l.b16 %v6099
    %v6185 = vunpack.c.l.b16 %v6100
    %v6186 = vunpack.c.h.b16 %v6100
    %v6187 = vunpack.c.l.b16 %v6101
    %v6188 = vunpack.c.l.b16 %v6102
    %v6189 = vunpack.c.h.b16 %v6102
    %v6190 = vunpack.c.l.b16 %v6103
    %v6191 = vunpack.c.l.b16 %v6104
    %v6192 = vunpack.c.h.b16 %v6104
    %v6193 = vunpack.c.l.b16 %v6105
    %v6194 = vunpack.c.l.b16 %v6106
    %v6195 = vunpack.c.h.b16 %v6106
    %v6196 = vunpack.c.l.b16 %v6107
    %v6197 = vpack.c.b16 %v6152, %v6149
    %v6198 = vpack.c.b16 %v6153, %v6150
    %v6199 = vpack.c.b16 %v6154, %v6151
    %v6200 = vpack.c.b16 %v6158, %v6155
    %v6201 = vpack.c.b16 %v6159, %v6156
    %v6202 = vpack.c.b16 %v6160, %v6157
    %v6203 = vpack.c.b16 %v6164, %v6161
    %v6204 = vpack.c.b16 %v6165, %v6162
    %v6205 = vpack.c.b16 %v6166, %v6163
    %v6206 = vpack.c.b16 %v6170, %v6167
    %v6207 = vpack.c.b16 %v6171, %v6168
    %v6208 = vpack.c.b16 %v6172, %v6169
    %v6209 = vpack.c.b16 %v6176, %v6173
    %v6210 = vpack.c.b16 %v6177, %v6174
    %v6211 = vpack.c.b16 %v6178, %v6175
    %v6212 = vpack.c.b16 %v6182, %v6179
    %v6213 = vpack.c.b16 %v6183, %v6180
    %v6214 = vpack.c.b16 %v6184, %v6181
    %v6215 = vpack.c.b16 %v6188, %v6185
    %v6216 = vpack.c.b16 %v6189, %v6186
    %v6217 = vpack.c.b16 %v6190, %v6187
    %v6218 = vpack.c.b16 %v6194, %v6191
    %v6219 = vpack.c.b16 %v6195, %v6192
    %v6220 = vpack.c.b16 %v6196, %v6193
    %6245 = vmatpush.bf16.msra.mxu0 %v6218
    %6246 = vmatpush.bf16.msra.mxu0 %v6215
    %6247 = vmatpush.bf16.msra.mxu0 %v6212
    %6248 = vmatpush.bf16.msra.mxu0 %v6209
    %6249 = vmatpush.bf16.msra.mxu0 %v6206
    %6250 = vmatpush.bf16.msra.mxu0 %v6203
    %6251 = vmatpush.bf16.msra.mxu0 %v6200
    %6252 = vmatpush.bf16.msra.mxu0 %v6197
    %6253 = vmatmul.bf16.gmra.mxu0 %v6071
    %v6254 = vpop.f32.mrf.mxu0
    %v6255 = vadd.f32 %v6111, %v6254
    %v6256 = vpop.f32.mrf.mxu0
    %v6257 = vadd.f32 %v6111, %v6256
    %6258 = vmatmul.bf16.gmra.mxu0 %v6072
    %v6259 = vpop.f32.mrf.mxu0
    %v6260 = vadd.f32 %v6111, %v6259
    %v6261 = vpop.f32.mrf.mxu0
    %v6262 = vadd.f32 %v6111, %v6261
    %6263 = vmatmul.bf16.gmra.mxu0 %v6073
    %v6264 = vpop.f32.mrf.mxu0
    %v6265 = vadd.f32 %v6111, %v6264
    %v6266 = vpop.f32.mrf.mxu0
    %v6267 = vadd.f32 %v6111, %v6266
    %6268 = vmatmul.bf16.gmra.mxu0 %v6074
    %v6269 = vpop.f32.mrf.mxu0
    %v6270 = vadd.f32 %v6111, %v6269
    %v6271 = vpop.f32.mrf.mxu0
    %v6272 = vadd.f32 %v6111, %v6271
    %6273 = vdwg.mxu0
    %6274 = vmatpush.bf16.msra.mxu0 %v6219
    %6275 = vmatpush.bf16.msra.mxu0 %v6216
    %6276 = vmatpush.bf16.msra.mxu0 %v6213
    %6277 = vmatpush.bf16.msra.mxu0 %v6210
    %6278 = vmatpush.bf16.msra.mxu0 %v6207
    %6279 = vmatpush.bf16.msra.mxu0 %v6204
    %6280 = vmatpush.bf16.msra.mxu0 %v6201
    %6281 = vmatpush.bf16.msra.mxu0 %v6198
    %6282 = vmatmul.bf16.gmra.mxu0 %v6071
    %v6283 = vpop.f32.mrf.mxu0
    %v6284 = vadd.f32 %v6112, %v6283
    %v6285 = vpop.f32.mrf.mxu0
    %v6286 = vadd.f32 %v6112, %v6285
    %6287 = vmatmul.bf16.gmra.mxu0 %v6072
    %v6288 = vpop.f32.mrf.mxu0
    %v6289 = vadd.f32 %v6112, %v6288
    %v6290 = vpop.f32.mrf.mxu0
    %v6291 = vadd.f32 %v6112, %v6290
    %6292 = vmatmul.bf16.gmra.mxu0 %v6073
    %v6293 = vpop.f32.mrf.mxu0
    %v6294 = vadd.f32 %v6112, %v6293
    %v6295 = vpop.f32.mrf.mxu0
    %v6296 = vadd.f32 %v6112, %v6295
    %6297 = vmatmul.bf16.gmra.mxu0 %v6074
    %v6298 = vpop.f32.mrf.mxu0
    %v6299 = vadd.f32 %v6112, %v6298
    %v6300 = vpop.f32.mrf.mxu0
    %v6301 = vadd.f32 %v6112, %v6300
    %6302 = vdwg.mxu0
    %6303 = vmatpush.bf16.msra.mxu0 %v6220
    %6304 = vmatpush.bf16.msra.mxu0 %v6217
    %6305 = vmatpush.bf16.msra.mxu0 %v6214
    %6306 = vmatpush.bf16.msra.mxu0 %v6211
    %6307 = vmatpush.bf16.msra.mxu0 %v6208
    %6308 = vmatpush.bf16.msra.mxu0 %v6205
    %6309 = vmatpush.bf16.msra.mxu0 %v6202
    %6310 = vmatpush.bf16.msra.mxu0 %v6199
    %6311 = vmatmul.bf16.gmra.mxu0 %v6071
    %v6312 = vpop.f32.mrf.mxu0
    %v6313 = vadd.f32 %v6113, %v6312
    %v6314 = vpop.f32.mrf.mxu0
    %v6315 = vadd.f32 %v6113, %v6314
    %6316 = vmatmul.bf16.gmra.mxu0 %v6072
    %v6317 = vpop.f32.mrf.mxu0
    %v6318 = vadd.f32 %v6113, %v6317
    %v6319 = vpop.f32.mrf.mxu0
    %v6320 = vadd.f32 %v6113, %v6319
    %6321 = vmatmul.bf16.gmra.mxu0 %v6073
    %v6322 = vpop.f32.mrf.mxu0
    %v6323 = vadd.f32 %v6113, %v6322
    %v6324 = vpop.f32.mrf.mxu0
    %v6325 = vadd.f32 %v6113, %v6324
    %6326 = vmatmul.bf16.gmra.mxu0 %v6074
    %v6327 = vpop.f32.mrf.mxu0
    %v6328 = vadd.f32 %v6113, %v6327
    %v6329 = vpop.f32.mrf.mxu0
    %v6330 = vadd.f32 %v6113, %v6329
    %6331 = vdwg.mxu0
    %s6332 = scalar_lea.vmem [#allocation13], 576
    %v6333 = vld [vmem:[%s6332] sm:$0xff]
    %v6334 = vld [vmem:[%s6332 + $0x8] sm:$0xf]
    %v6335 = vld [vmem:[%s6332 + $0xc] sm:$0xff]
    %v6336 = vld [vmem:[%s6332 + $0x14] sm:$0xf]
    %v6337 = vld [vmem:[%s6332 + $0x18] sm:$0xff]
    %v6338 = vld [vmem:[%s6332 + $0x20] sm:$0xf]
    %v6339 = vld [vmem:[%s6332 + $0x24] sm:$0xff]
    %v6340 = vld [vmem:[%s6332 + $0x2c] sm:$0xf]
    %v6341 = vld [vmem:[%s6332 + $0x30] sm:$0xff]
    %v6342 = vld [vmem:[%s6332 + $0x38] sm:$0xf]
    %v6343 = vld [vmem:[%s6332 + $0x3c] sm:$0xff]
    %v6344 = vld [vmem:[%s6332 + $0x44] sm:$0xf]
    %v6345 = vld [vmem:[%s6332 + $0x48] sm:$0xff]
    %v6346 = vld [vmem:[%s6332 + $0x50] sm:$0xf]
    %v6347 = vld [vmem:[%s6332 + $0x54] sm:$0xff]
    %v6348 = vld [vmem:[%s6332 + $0x5c] sm:$0xf]
    %v6349 = vld [vmem:[%s6332 + $0x60] sm:$0xff]
    %v6350 = vld [vmem:[%s6332 + $0x68] sm:$0xf]
    %v6351 = vld [vmem:[%s6332 + $0x6c] sm:$0xff]
    %v6352 = vld [vmem:[%s6332 + $0x74] sm:$0xf]
    %v6353 = vld [vmem:[%s6332 + $0x78] sm:$0xff]
    %v6354 = vld [vmem:[%s6332 + $0x80] sm:$0xf]
    %v6355 = vld [vmem:[%s6332 + $0x84] sm:$0xff]
    %v6356 = vld [vmem:[%s6332 + $0x8c] sm:$0xf]
    %v6357 = vld [vmem:[%s6332 + $0x90] sm:$0xff]
    %v6358 = vld [vmem:[%s6332 + $0x98] sm:$0xf]
    %v6359 = vld [vmem:[%s6332 + $0x9c] sm:$0xff]
    %v6360 = vld [vmem:[%s6332 + $0xa4] sm:$0xf]
    %v6361 = vld [vmem:[%s6332 + $0xa8] sm:$0xff]
    %v6362 = vld [vmem:[%s6332 + $0xb0] sm:$0xf]
    %v6363 = vld [vmem:[%s6332 + $0xb4] sm:$0xff]
    %v6364 = vld [vmem:[%s6332 + $0xbc] sm:$0xf]
    %s6365 = scalar_lea.vmem %s8, 3
    %v6366 = vld [vmem:[%s6365] sm:$0x1]
    %v6368 = vperm.slane %v6366, 0
    %v6402 = vunpack.c.l.b16 %v6333
    %v6403 = vunpack.c.h.b16 %v6333
    %v6404 = vunpack.c.l.b16 %v6334
    %v6405 = vunpack.c.l.b16 %v6335
    %v6406 = vunpack.c.h.b16 %v6335
    %v6407 = vunpack.c.l.b16 %v6336
    %v6408 = vunpack.c.l.b16 %v6337
    %v6409 = vunpack.c.h.b16 %v6337
    %v6410 = vunpack.c.l.b16 %v6338
    %v6411 = vunpack.c.l.b16 %v6339
    %v6412 = vunpack.c.h.b16 %v6339
    %v6413 = vunpack.c.l.b16 %v6340
    %v6414 = vunpack.c.l.b16 %v6341
    %v6415 = vunpack.c.h.b16 %v6341
    %v6416 = vunpack.c.l.b16 %v6342
    %v6417 = vunpack.c.l.b16 %v6343
    %v6418 = vunpack.c.h.b16 %v6343
    %v6419 = vunpack.c.l.b16 %v6344
    %v6420 = vunpack.c.l.b16 %v6345
    %v6421 = vunpack.c.h.b16 %v6345
    %v6422 = vunpack.c.l.b16 %v6346
    %v6423 = vunpack.c.l.b16 %v6347
    %v6424 = vunpack.c.h.b16 %v6347
    %v6425 = vunpack.c.l.b16 %v6348
    %v6426 = vunpack.c.l.b16 %v6349
    %v6427 = vunpack.c.h.b16 %v6349
    %v6428 = vunpack.c.l.b16 %v6350
    %v6429 = vunpack.c.l.b16 %v6351
    %v6430 = vunpack.c.h.b16 %v6351
    %v6431 = vunpack.c.l.b16 %v6352
    %v6432 = vunpack.c.l.b16 %v6353
    %v6433 = vunpack.c.h.b16 %v6353
    %v6434 = vunpack.c.l.b16 %v6354
    %v6435 = vunpack.c.l.b16 %v6355
    %v6436 = vunpack.c.h.b16 %v6355
    %v6437 = vunpack.c.l.b16 %v6356
    %v6438 = vunpack.c.l.b16 %v6357
    %v6439 = vunpack.c.h.b16 %v6357
    %v6440 = vunpack.c.l.b16 %v6358
    %v6441 = vunpack.c.l.b16 %v6359
    %v6442 = vunpack.c.h.b16 %v6359
    %v6443 = vunpack.c.l.b16 %v6360
    %v6444 = vunpack.c.l.b16 %v6361
    %v6445 = vunpack.c.h.b16 %v6361
    %v6446 = vunpack.c.l.b16 %v6362
    %v6447 = vunpack.c.l.b16 %v6363
    %v6448 = vunpack.c.h.b16 %v6363
    %v6449 = vunpack.c.l.b16 %v6364
    %v6450 = vpack.c.b16 %v6405, %v6402
    %v6451 = vpack.c.b16 %v6406, %v6403
    %v6452 = vpack.c.b16 %v6407, %v6404
    %v6453 = vpack.c.b16 %v6411, %v6408
    %v6454 = vpack.c.b16 %v6412, %v6409
    %v6455 = vpack.c.b16 %v6413, %v6410
    %v6456 = vpack.c.b16 %v6417, %v6414
    %v6457 = vpack.c.b16 %v6418, %v6415
    %v6458 = vpack.c.b16 %v6419, %v6416
    %v6459 = vpack.c.b16 %v6423, %v6420
    %v6460 = vpack.c.b16 %v6424, %v6421
    %v6461 = vpack.c.b16 %v6425, %v6422
    %v6462 = vpack.c.b16 %v6429, %v6426
    %v6463 = vpack.c.b16 %v6430, %v6427
    %v6464 = vpack.c.b16 %v6431, %v6428
    %v6465 = vpack.c.b16 %v6435, %v6432
    %v6466 = vpack.c.b16 %v6436, %v6433
    %v6467 = vpack.c.b16 %v6437, %v6434
    %v6468 = vpack.c.b16 %v6441, %v6438
    %v6469 = vpack.c.b16 %v6442, %v6439
    %v6470 = vpack.c.b16 %v6443, %v6440
    %v6471 = vpack.c.b16 %v6447, %v6444
    %v6472 = vpack.c.b16 %v6448, %v6445
    %v6473 = vpack.c.b16 %v6449, %v6446
    %6498 = vmatpush.bf16.msra.mxu0 %v6471
    %6499 = vmatpush.bf16.msra.mxu0 %v6468
    %6500 = vmatpush.bf16.msra.mxu0 %v6465
    %6501 = vmatpush.bf16.msra.mxu0 %v6462
    %6502 = vmatpush.bf16.msra.mxu0 %v6459
    %6503 = vmatpush.bf16.msra.mxu0 %v6456
    %6504 = vmatpush.bf16.msra.mxu0 %v6453
    %6505 = vmatpush.bf16.msra.mxu0 %v6450
    %6506 = vmatmul.bf16.gmra.mxu0 0
    %v6507 = vpop.f32.mrf.mxu0
    %v6508 = vadd.f32 0.0, %v6507
    %v6509 = vpop.f32.mrf.mxu0
    %6510 = vdwg.mxu0
    %6511 = vmatpush.bf16.msra.mxu0 %v6472
    %6512 = vmatpush.bf16.msra.mxu0 %v6469
    %6513 = vmatpush.bf16.msra.mxu0 %v6466
    %6514 = vmatpush.bf16.msra.mxu0 %v6463
    %6515 = vmatpush.bf16.msra.mxu0 %v6460
    %6516 = vmatpush.bf16.msra.mxu0 %v6457
    %6517 = vmatpush.bf16.msra.mxu0 %v6454
    %6518 = vmatpush.bf16.msra.mxu0 %v6451
    %6519 = vmatmul.bf16.gmra.mxu0 0
    %v6520 = vpop.f32.mrf.mxu0
    %v6521 = vadd.f32 0.0, %v6520
    %v6522 = vpop.f32.mrf.mxu0
    %6523 = vdwg.mxu0
    %6524 = vmatpush.bf16.msra.mxu0 %v6473
    %6525 = vmatpush.bf16.msra.mxu0 %v6470
    %6526 = vmatpush.bf16.msra.mxu0 %v6467
    %6527 = vmatpush.bf16.msra.mxu0 %v6464
    %6528 = vmatpush.bf16.msra.mxu0 %v6461
    %6529 = vmatpush.bf16.msra.mxu0 %v6458
    %6530 = vmatpush.bf16.msra.mxu0 %v6455
    %6531 = vmatpush.bf16.msra.mxu0 %v6452
    %6532 = vmatmul.bf16.gmra.mxu0 0
    %v6533 = vpop.f32.mrf.mxu0
    %v6534 = vadd.f32 0.0, %v6533
    %v6535 = vpop.f32.mrf.mxu0
    %6536 = vdwg.mxu0
    %v6537 = vadd.f32 %v6255, %v6508
    %v6538 = vxor.u32 %v6537, 2147483648
    %v6539 = vmul.f32 %v6538, 1.442695
    %v6540 = vpow.pop %v6539
    %v6541 = vadd.f32 %v6540, 1.0
    %v6542 = vrcp.pop %v6541
    %v6543 = vmul.f32 %v6541, %v6542
    %v6544 = vsub.f32 1.0, %v6543
    %v6545 = vmul.f32 %v6542, %v6544
    %v6546 = vadd.f32 %v6542, %v6545
    %vm6547 = vweird.f32 %v6541
    %vm6548 = vweird.f32 %v6542
    %vm6549 = vmor %vm6547, %vm6548
    %v6550 = vsel %vm6549, %v6542, %v6546
    %v6551 = vand.u32 2147483647, %v6541
    %vm6552 = vcmp.eq.f32.partialorder %v6551, 8.507059e+37
    %v6553 = vand.u32 %v6541, 2147483648
    %v6554 = vor.u32 1.1754944e-38, %v6553
    %v6555 = vsel %vm6552, %v6554, %v6550
    %v6556 = vmul.f32 1.0, %v6555
    %v6557 = vadd.f32 %v6284, %v6521
    %v6558 = vxor.u32 %v6557, 2147483648
    %v6559 = vmul.f32 %v6558, 1.442695
    %v6560 = vpow.pop %v6559
    %v6561 = vadd.f32 %v6560, 1.0
    %v6562 = vrcp.pop %v6561
    %v6563 = vmul.f32 %v6561, %v6562
    %v6564 = vsub.f32 1.0, %v6563
    %v6565 = vmul.f32 %v6562, %v6564
    %v6566 = vadd.f32 %v6562, %v6565
    %vm6567 = vweird.f32 %v6561
    %vm6568 = vweird.f32 %v6562
    %vm6569 = vmor %vm6567, %vm6568
    %v6570 = vsel %vm6569, %v6562, %v6566
    %v6571 = vand.u32 2147483647, %v6561
    %vm6572 = vcmp.eq.f32.partialorder %v6571, 8.507059e+37
    %v6573 = vand.u32 %v6561, 2147483648
    %v6574 = vor.u32 1.1754944e-38, %v6573
    %v6575 = vsel %vm6572, %v6574, %v6570
    %v6576 = vmul.f32 1.0, %v6575
    %v6577 = vadd.f32 %v6534, %v6368
    %v6578 = vmul.f32 %v6556, %v6577
    %v6579 = vadd.f32 %v6313, %v6578
    %v6580 = vtanh.pop %v6579
    %v6581 = vsub.f32 1.0, %v6576
    %v6582 = vmul.f32 %v6581, %v6580
    %v6583 = vmul.f32 %v6576, 0.0
    %v6584 = vadd.f32 %v6582, %v6583
    %v6585 = vpack.c.bf16 %v6584, %v6584
    %6586 = vmatpush.bf16.msra.mxu0 %v6471
    %6587 = vmatpush.bf16.msra.mxu0 %v6468
    %6588 = vmatpush.bf16.msra.mxu0 %v6465
    %6589 = vmatpush.bf16.msra.mxu0 %v6462
    %6590 = vmatpush.bf16.msra.mxu0 %v6459
    %6591 = vmatpush.bf16.msra.mxu0 %v6456
    %6592 = vmatpush.bf16.msra.mxu0 %v6453
    %6593 = vmatpush.bf16.msra.mxu0 %v6450
    %6594 = vmatmul.bf16.gmra.mxu0 %v6585
    %v6595 = vpop.f32.mrf.mxu0
    %v6596 = vadd.f32 0.0, %v6595
    %v6597 = vpop.f32.mrf.mxu0
    %6598 = vdwg.mxu0
    %6599 = vmatpush.bf16.msra.mxu0 %v6472
    %6600 = vmatpush.bf16.msra.mxu0 %v6469
    %6601 = vmatpush.bf16.msra.mxu0 %v6466
    %6602 = vmatpush.bf16.msra.mxu0 %v6463
    %6603 = vmatpush.bf16.msra.mxu0 %v6460
    %6604 = vmatpush.bf16.msra.mxu0 %v6457
    %6605 = vmatpush.bf16.msra.mxu0 %v6454
    %6606 = vmatpush.bf16.msra.mxu0 %v6451
    %6607 = vmatmul.bf16.gmra.mxu0 %v6585
    %v6608 = vpop.f32.mrf.mxu0
    %v6609 = vadd.f32 0.0, %v6608
    %v6610 = vpop.f32.mrf.mxu0
    %6611 = vdwg.mxu0
    %6612 = vmatpush.bf16.msra.mxu0 %v6473
    %6613 = vmatpush.bf16.msra.mxu0 %v6470
    %6614 = vmatpush.bf16.msra.mxu0 %v6467
    %6615 = vmatpush.bf16.msra.mxu0 %v6464
    %6616 = vmatpush.bf16.msra.mxu0 %v6461
    %6617 = vmatpush.bf16.msra.mxu0 %v6458
    %6618 = vmatpush.bf16.msra.mxu0 %v6455
    %6619 = vmatpush.bf16.msra.mxu0 %v6452
    %6620 = vmatmul.bf16.gmra.mxu0 %v6585
    %v6621 = vpop.f32.mrf.mxu0
    %v6622 = vadd.f32 0.0, %v6621
    %v6623 = vpop.f32.mrf.mxu0
    %6624 = vdwg.mxu0
    %v6625 = vadd.f32 %v6257, %v6596
    %v6626 = vxor.u32 %v6625, 2147483648
    %v6627 = vmul.f32 %v6626, 1.442695
    %v6628 = vpow.pop %v6627
    %v6629 = vadd.f32 %v6628, 1.0
    %v6630 = vrcp.pop %v6629
    %v6631 = vmul.f32 %v6629, %v6630
    %v6632 = vsub.f32 1.0, %v6631
    %v6633 = vmul.f32 %v6630, %v6632
    %v6634 = vadd.f32 %v6630, %v6633
    %vm6635 = vweird.f32 %v6629
    %vm6636 = vweird.f32 %v6630
    %vm6637 = vmor %vm6635, %vm6636
    %v6638 = vsel %vm6637, %v6630, %v6634
    %v6639 = vand.u32 2147483647, %v6629
    %vm6640 = vcmp.eq.f32.partialorder %v6639, 8.507059e+37
    %v6641 = vand.u32 %v6629, 2147483648
    %v6642 = vor.u32 1.1754944e-38, %v6641
    %v6643 = vsel %vm6640, %v6642, %v6638
    %v6644 = vmul.f32 1.0, %v6643
    %v6645 = vadd.f32 %v6286, %v6609
    %v6646 = vxor.u32 %v6645, 2147483648
    %v6647 = vmul.f32 %v6646, 1.442695
    %v6648 = vpow.pop %v6647
    %v6649 = vadd.f32 %v6648, 1.0
    %v6650 = vrcp.pop %v6649
    %v6651 = vmul.f32 %v6649, %v6650
    %v6652 = vsub.f32 1.0, %v6651
    %v6653 = vmul.f32 %v6650, %v6652
    %v6654 = vadd.f32 %v6650, %v6653
    %vm6655 = vweird.f32 %v6649
    %vm6656 = vweird.f32 %v6650
    %vm6657 = vmor %vm6655, %vm6656
    %v6658 = vsel %vm6657, %v6650, %v6654
    %v6659 = vand.u32 2147483647, %v6649
    %vm6660 = vcmp.eq.f32.partialorder %v6659, 8.507059e+37
    %v6661 = vand.u32 %v6649, 2147483648
    %v6662 = vor.u32 1.1754944e-38, %v6661
    %v6663 = vsel %vm6660, %v6662, %v6658
    %v6664 = vmul.f32 1.0, %v6663
    %v6665 = vadd.f32 %v6622, %v6368
    %v6666 = vmul.f32 %v6644, %v6665
    %v6667 = vadd.f32 %v6315, %v6666
    %v6668 = vtanh.pop %v6667
    %v6669 = vsub.f32 1.0, %v6664
    %v6670 = vmul.f32 %v6669, %v6668
    %v6671 = vmul.f32 %v6664, %v6584
    %v6672 = vadd.f32 %v6670, %v6671
    %v6673 = vpack.c.bf16 %v6672, %v6672
    %6674 = vmatpush.bf16.msra.mxu0 %v6471
    %6675 = vmatpush.bf16.msra.mxu0 %v6468
    %6676 = vmatpush.bf16.msra.mxu0 %v6465
    %6677 = vmatpush.bf16.msra.mxu0 %v6462
    %6678 = vmatpush.bf16.msra.mxu0 %v6459
    %6679 = vmatpush.bf16.msra.mxu0 %v6456
    %6680 = vmatpush.bf16.msra.mxu0 %v6453
    %6681 = vmatpush.bf16.msra.mxu0 %v6450
    %6682 = vmatmul.bf16.gmra.mxu0 %v6673
    %v6683 = vpop.f32.mrf.mxu0
    %v6684 = vadd.f32 0.0, %v6683
    %v6685 = vpop.f32.mrf.mxu0
    %6686 = vdwg.mxu0
    %6687 = vmatpush.bf16.msra.mxu0 %v6472
    %6688 = vmatpush.bf16.msra.mxu0 %v6469
    %6689 = vmatpush.bf16.msra.mxu0 %v6466
    %6690 = vmatpush.bf16.msra.mxu0 %v6463
    %6691 = vmatpush.bf16.msra.mxu0 %v6460
    %6692 = vmatpush.bf16.msra.mxu0 %v6457
    %6693 = vmatpush.bf16.msra.mxu0 %v6454
    %6694 = vmatpush.bf16.msra.mxu0 %v6451
    %6695 = vmatmul.bf16.gmra.mxu0 %v6673
    %v6696 = vpop.f32.mrf.mxu0
    %v6697 = vadd.f32 0.0, %v6696
    %v6698 = vpop.f32.mrf.mxu0
    %6699 = vdwg.mxu0
    %6700 = vmatpush.bf16.msra.mxu0 %v6473
    %6701 = vmatpush.bf16.msra.mxu0 %v6470
    %6702 = vmatpush.bf16.msra.mxu0 %v6467
    %6703 = vmatpush.bf16.msra.mxu0 %v6464
    %6704 = vmatpush.bf16.msra.mxu0 %v6461
    %6705 = vmatpush.bf16.msra.mxu0 %v6458
    %6706 = vmatpush.bf16.msra.mxu0 %v6455
    %6707 = vmatpush.bf16.msra.mxu0 %v6452
    %6708 = vmatmul.bf16.gmra.mxu0 %v6673
    %v6709 = vpop.f32.mrf.mxu0
    %v6710 = vadd.f32 0.0, %v6709
    %v6711 = vpop.f32.mrf.mxu0
    %6712 = vdwg.mxu0
    %v6713 = vadd.f32 %v6260, %v6684
    %v6714 = vxor.u32 %v6713, 2147483648
    %v6715 = vmul.f32 %v6714, 1.442695
    %v6716 = vpow.pop %v6715
    %v6717 = vadd.f32 %v6716, 1.0
    %v6718 = vrcp.pop %v6717
    %v6719 = vmul.f32 %v6717, %v6718
    %v6720 = vsub.f32 1.0, %v6719
    %v6721 = vmul.f32 %v6718, %v6720
    %v6722 = vadd.f32 %v6718, %v6721
    %vm6723 = vweird.f32 %v6717
    %vm6724 = vweird.f32 %v6718
    %vm6725 = vmor %vm6723, %vm6724
    %v6726 = vsel %vm6725, %v6718, %v6722
    %v6727 = vand.u32 2147483647, %v6717
    %vm6728 = vcmp.eq.f32.partialorder %v6727, 8.507059e+37
    %v6729 = vand.u32 %v6717, 2147483648
    %v6730 = vor.u32 1.1754944e-38, %v6729
    %v6731 = vsel %vm6728, %v6730, %v6726
    %v6732 = vmul.f32 1.0, %v6731
    %v6733 = vadd.f32 %v6289, %v6697
    %v6734 = vxor.u32 %v6733, 2147483648
    %v6735 = vmul.f32 %v6734, 1.442695
    %v6736 = vpow.pop %v6735
    %v6737 = vadd.f32 %v6736, 1.0
    %v6738 = vrcp.pop %v6737
    %v6739 = vmul.f32 %v6737, %v6738
    %v6740 = vsub.f32 1.0, %v6739
    %v6741 = vmul.f32 %v6738, %v6740
    %v6742 = vadd.f32 %v6738, %v6741
    %vm6743 = vweird.f32 %v6737
    %vm6744 = vweird.f32 %v6738
    %vm6745 = vmor %vm6743, %vm6744
    %v6746 = vsel %vm6745, %v6738, %v6742
    %v6747 = vand.u32 2147483647, %v6737
    %vm6748 = vcmp.eq.f32.partialorder %v6747, 8.507059e+37
    %v6749 = vand.u32 %v6737, 2147483648
    %v6750 = vor.u32 1.1754944e-38, %v6749
    %v6751 = vsel %vm6748, %v6750, %v6746
    %v6752 = vmul.f32 1.0, %v6751
    %v6753 = vadd.f32 %v6710, %v6368
    %v6754 = vmul.f32 %v6732, %v6753
    %v6755 = vadd.f32 %v6318, %v6754
    %v6756 = vtanh.pop %v6755
    %v6757 = vsub.f32 1.0, %v6752
    %v6758 = vmul.f32 %v6757, %v6756
    %v6759 = vmul.f32 %v6752, %v6672
    %v6760 = vadd.f32 %v6758, %v6759
    %v6761 = vpack.c.bf16 %v6760, %v6760
    %6762 = vmatpush.bf16.msra.mxu0 %v6471
    %6763 = vmatpush.bf16.msra.mxu0 %v6468
    %6764 = vmatpush.bf16.msra.mxu0 %v6465
    %6765 = vmatpush.bf16.msra.mxu0 %v6462
    %6766 = vmatpush.bf16.msra.mxu0 %v6459
    %6767 = vmatpush.bf16.msra.mxu0 %v6456
    %6768 = vmatpush.bf16.msra.mxu0 %v6453
    %6769 = vmatpush.bf16.msra.mxu0 %v6450
    %6770 = vmatmul.bf16.gmra.mxu0 %v6761
    %v6771 = vpop.f32.mrf.mxu0
    %v6772 = vadd.f32 0.0, %v6771
    %v6773 = vpop.f32.mrf.mxu0
    %6774 = vdwg.mxu0
    %6775 = vmatpush.bf16.msra.mxu0 %v6472
    %6776 = vmatpush.bf16.msra.mxu0 %v6469
    %6777 = vmatpush.bf16.msra.mxu0 %v6466
    %6778 = vmatpush.bf16.msra.mxu0 %v6463
    %6779 = vmatpush.bf16.msra.mxu0 %v6460
    %6780 = vmatpush.bf16.msra.mxu0 %v6457
    %6781 = vmatpush.bf16.msra.mxu0 %v6454
    %6782 = vmatpush.bf16.msra.mxu0 %v6451
    %6783 = vmatmul.bf16.gmra.mxu0 %v6761
    %v6784 = vpop.f32.mrf.mxu0
    %v6785 = vadd.f32 0.0, %v6784
    %v6786 = vpop.f32.mrf.mxu0
    %6787 = vdwg.mxu0
    %6788 = vmatpush.bf16.msra.mxu0 %v6473
    %6789 = vmatpush.bf16.msra.mxu0 %v6470
    %6790 = vmatpush.bf16.msra.mxu0 %v6467
    %6791 = vmatpush.bf16.msra.mxu0 %v6464
    %6792 = vmatpush.bf16.msra.mxu0 %v6461
    %6793 = vmatpush.bf16.msra.mxu0 %v6458
    %6794 = vmatpush.bf16.msra.mxu0 %v6455
    %6795 = vmatpush.bf16.msra.mxu0 %v6452
    %6796 = vmatmul.bf16.gmra.mxu0 %v6761
    %v6797 = vpop.f32.mrf.mxu0
    %v6798 = vadd.f32 0.0, %v6797
    %v6799 = vpop.f32.mrf.mxu0
    %6800 = vdwg.mxu0
    %v6801 = vadd.f32 %v6262, %v6772
    %v6802 = vxor.u32 %v6801, 2147483648
    %v6803 = vmul.f32 %v6802, 1.442695
    %v6804 = vpow.pop %v6803
    %v6805 = vadd.f32 %v6804, 1.0
    %v6806 = vrcp.pop %v6805
    %v6807 = vmul.f32 %v6805, %v6806
    %v6808 = vsub.f32 1.0, %v6807
    %v6809 = vmul.f32 %v6806, %v6808
    %v6810 = vadd.f32 %v6806, %v6809
    %vm6811 = vweird.f32 %v6805
    %vm6812 = vweird.f32 %v6806
    %vm6813 = vmor %vm6811, %vm6812
    %v6814 = vsel %vm6813, %v6806, %v6810
    %v6815 = vand.u32 2147483647, %v6805
    %vm6816 = vcmp.eq.f32.partialorder %v6815, 8.507059e+37
    %v6817 = vand.u32 %v6805, 2147483648
    %v6818 = vor.u32 1.1754944e-38, %v6817
    %v6819 = vsel %vm6816, %v6818, %v6814
    %v6820 = vmul.f32 1.0, %v6819
    %v6821 = vadd.f32 %v6291, %v6785
    %v6822 = vxor.u32 %v6821, 2147483648
    %v6823 = vmul.f32 %v6822, 1.442695
    %v6824 = vpow.pop %v6823
    %v6825 = vadd.f32 %v6824, 1.0
    %v6826 = vrcp.pop %v6825
    %v6827 = vmul.f32 %v6825, %v6826
    %v6828 = vsub.f32 1.0, %v6827
    %v6829 = vmul.f32 %v6826, %v6828
    %v6830 = vadd.f32 %v6826, %v6829
    %vm6831 = vweird.f32 %v6825
    %vm6832 = vweird.f32 %v6826
    %vm6833 = vmor %vm6831, %vm6832
    %v6834 = vsel %vm6833, %v6826, %v6830
    %v6835 = vand.u32 2147483647, %v6825
    %vm6836 = vcmp.eq.f32.partialorder %v6835, 8.507059e+37
    %v6837 = vand.u32 %v6825, 2147483648
    %v6838 = vor.u32 1.1754944e-38, %v6837
    %v6839 = vsel %vm6836, %v6838, %v6834
    %v6840 = vmul.f32 1.0, %v6839
    %v6841 = vadd.f32 %v6798, %v6368
    %v6842 = vmul.f32 %v6820, %v6841
    %v6843 = vadd.f32 %v6320, %v6842
    %v6844 = vtanh.pop %v6843
    %v6845 = vsub.f32 1.0, %v6840
    %v6846 = vmul.f32 %v6845, %v6844
    %v6847 = vmul.f32 %v6840, %v6760
    %v6848 = vadd.f32 %v6846, %v6847
    %v6849 = vpack.c.bf16 %v6848, %v6848
    %6850 = vmatpush.bf16.msra.mxu0 %v6471
    %6851 = vmatpush.bf16.msra.mxu0 %v6468
    %6852 = vmatpush.bf16.msra.mxu0 %v6465
    %6853 = vmatpush.bf16.msra.mxu0 %v6462
    %6854 = vmatpush.bf16.msra.mxu0 %v6459
    %6855 = vmatpush.bf16.msra.mxu0 %v6456
    %6856 = vmatpush.bf16.msra.mxu0 %v6453
    %6857 = vmatpush.bf16.msra.mxu0 %v6450
    %6858 = vmatmul.bf16.gmra.mxu0 %v6849
    %v6859 = vpop.f32.mrf.mxu0
    %v6860 = vadd.f32 0.0, %v6859
    %v6861 = vpop.f32.mrf.mxu0
    %6862 = vdwg.mxu0
    %6863 = vmatpush.bf16.msra.mxu0 %v6472
    %6864 = vmatpush.bf16.msra.mxu0 %v6469
    %6865 = vmatpush.bf16.msra.mxu0 %v6466
    %6866 = vmatpush.bf16.msra.mxu0 %v6463
    %6867 = vmatpush.bf16.msra.mxu0 %v6460
    %6868 = vmatpush.bf16.msra.mxu0 %v6457
    %6869 = vmatpush.bf16.msra.mxu0 %v6454
    %6870 = vmatpush.bf16.msra.mxu0 %v6451
    %6871 = vmatmul.bf16.gmra.mxu0 %v6849
    %v6872 = vpop.f32.mrf.mxu0
    %v6873 = vadd.f32 0.0, %v6872
    %v6874 = vpop.f32.mrf.mxu0
    %6875 = vdwg.mxu0
    %6876 = vmatpush.bf16.msra.mxu0 %v6473
    %6877 = vmatpush.bf16.msra.mxu0 %v6470
    %6878 = vmatpush.bf16.msra.mxu0 %v6467
    %6879 = vmatpush.bf16.msra.mxu0 %v6464
    %6880 = vmatpush.bf16.msra.mxu0 %v6461
    %6881 = vmatpush.bf16.msra.mxu0 %v6458
    %6882 = vmatpush.bf16.msra.mxu0 %v6455
    %6883 = vmatpush.bf16.msra.mxu0 %v6452
    %6884 = vmatmul.bf16.gmra.mxu0 %v6849
    %v6885 = vpop.f32.mrf.mxu0
    %v6886 = vadd.f32 0.0, %v6885
    %v6887 = vpop.f32.mrf.mxu0
    %6888 = vdwg.mxu0
    %v6889 = vadd.f32 %v6265, %v6860
    %v6890 = vxor.u32 %v6889, 2147483648
    %v6891 = vmul.f32 %v6890, 1.442695
    %v6892 = vpow.pop %v6891
    %v6893 = vadd.f32 %v6892, 1.0
    %v6894 = vrcp.pop %v6893
    %v6895 = vmul.f32 %v6893, %v6894
    %v6896 = vsub.f32 1.0, %v6895
    %v6897 = vmul.f32 %v6894, %v6896
    %v6898 = vadd.f32 %v6894, %v6897
    %vm6899 = vweird.f32 %v6893
    %vm6900 = vweird.f32 %v6894
    %vm6901 = vmor %vm6899, %vm6900
    %v6902 = vsel %vm6901, %v6894, %v6898
    %v6903 = vand.u32 2147483647, %v6893
    %vm6904 = vcmp.eq.f32.partialorder %v6903, 8.507059e+37
    %v6905 = vand.u32 %v6893, 2147483648
    %v6906 = vor.u32 1.1754944e-38, %v6905
    %v6907 = vsel %vm6904, %v6906, %v6902
    %v6908 = vmul.f32 1.0, %v6907
    %v6909 = vadd.f32 %v6294, %v6873
    %v6910 = vxor.u32 %v6909, 2147483648
    %v6911 = vmul.f32 %v6910, 1.442695
    %v6912 = vpow.pop %v6911
    %v6913 = vadd.f32 %v6912, 1.0
    %v6914 = vrcp.pop %v6913
    %v6915 = vmul.f32 %v6913, %v6914
    %v6916 = vsub.f32 1.0, %v6915
    %v6917 = vmul.f32 %v6914, %v6916
    %v6918 = vadd.f32 %v6914, %v6917
    %vm6919 = vweird.f32 %v6913
    %vm6920 = vweird.f32 %v6914
    %vm6921 = vmor %vm6919, %vm6920
    %v6922 = vsel %vm6921, %v6914, %v6918
    %v6923 = vand.u32 2147483647, %v6913
    %vm6924 = vcmp.eq.f32.partialorder %v6923, 8.507059e+37
    %v6925 = vand.u32 %v6913, 2147483648
    %v6926 = vor.u32 1.1754944e-38, %v6925
    %v6927 = vsel %vm6924, %v6926, %v6922
    %v6928 = vmul.f32 1.0, %v6927
    %v6929 = vadd.f32 %v6886, %v6368
    %v6930 = vmul.f32 %v6908, %v6929
    %v6931 = vadd.f32 %v6323, %v6930
    %v6932 = vtanh.pop %v6931
    %v6933 = vsub.f32 1.0, %v6928
    %v6934 = vmul.f32 %v6933, %v6932
    %v6935 = vmul.f32 %v6928, %v6848
    %v6936 = vadd.f32 %v6934, %v6935
    %v6937 = vpack.c.bf16 %v6936, %v6936
    %6938 = vmatpush.bf16.msra.mxu0 %v6471
    %6939 = vmatpush.bf16.msra.mxu0 %v6468
    %6940 = vmatpush.bf16.msra.mxu0 %v6465
    %6941 = vmatpush.bf16.msra.mxu0 %v6462
    %6942 = vmatpush.bf16.msra.mxu0 %v6459
    %6943 = vmatpush.bf16.msra.mxu0 %v6456
    %6944 = vmatpush.bf16.msra.mxu0 %v6453
    %6945 = vmatpush.bf16.msra.mxu0 %v6450
    %6946 = vmatmul.bf16.gmra.mxu0 %v6937
    %v6947 = vpop.f32.mrf.mxu0
    %v6948 = vadd.f32 0.0, %v6947
    %v6949 = vpop.f32.mrf.mxu0
    %6950 = vdwg.mxu0
    %6951 = vmatpush.bf16.msra.mxu0 %v6472
    %6952 = vmatpush.bf16.msra.mxu0 %v6469
    %6953 = vmatpush.bf16.msra.mxu0 %v6466
    %6954 = vmatpush.bf16.msra.mxu0 %v6463
    %6955 = vmatpush.bf16.msra.mxu0 %v6460
    %6956 = vmatpush.bf16.msra.mxu0 %v6457
    %6957 = vmatpush.bf16.msra.mxu0 %v6454
    %6958 = vmatpush.bf16.msra.mxu0 %v6451
    %6959 = vmatmul.bf16.gmra.mxu0 %v6937
    %v6960 = vpop.f32.mrf.mxu0
    %v6961 = vadd.f32 0.0, %v6960
    %v6962 = vpop.f32.mrf.mxu0
    %6963 = vdwg.mxu0
    %6964 = vmatpush.bf16.msra.mxu0 %v6473
    %6965 = vmatpush.bf16.msra.mxu0 %v6470
    %6966 = vmatpush.bf16.msra.mxu0 %v6467
    %6967 = vmatpush.bf16.msra.mxu0 %v6464
    %6968 = vmatpush.bf16.msra.mxu0 %v6461
    %6969 = vmatpush.bf16.msra.mxu0 %v6458
    %6970 = vmatpush.bf16.msra.mxu0 %v6455
    %6971 = vmatpush.bf16.msra.mxu0 %v6452
    %6972 = vmatmul.bf16.gmra.mxu0 %v6937
    %v6973 = vpop.f32.mrf.mxu0
    %v6974 = vadd.f32 0.0, %v6973
    %v6975 = vpop.f32.mrf.mxu0
    %6976 = vdwg.mxu0
    %v6977 = vadd.f32 %v6267, %v6948
    %v6978 = vxor.u32 %v6977, 2147483648
    %v6979 = vmul.f32 %v6978, 1.442695
    %v6980 = vpow.pop %v6979
    %v6981 = vadd.f32 %v6980, 1.0
    %v6982 = vrcp.pop %v6981
    %v6983 = vmul.f32 %v6981, %v6982
    %v6984 = vsub.f32 1.0, %v6983
    %v6985 = vmul.f32 %v6982, %v6984
    %v6986 = vadd.f32 %v6982, %v6985
    %vm6987 = vweird.f32 %v6981
    %vm6988 = vweird.f32 %v6982
    %vm6989 = vmor %vm6987, %vm6988
    %v6990 = vsel %vm6989, %v6982, %v6986
    %v6991 = vand.u32 2147483647, %v6981
    %vm6992 = vcmp.eq.f32.partialorder %v6991, 8.507059e+37
    %v6993 = vand.u32 %v6981, 2147483648
    %v6994 = vor.u32 1.1754944e-38, %v6993
    %v6995 = vsel %vm6992, %v6994, %v6990
    %v6996 = vmul.f32 1.0, %v6995
    %v6997 = vadd.f32 %v6296, %v6961
    %v6998 = vxor.u32 %v6997, 2147483648
    %v6999 = vmul.f32 %v6998, 1.442695
    %v7000 = vpow.pop %v6999
    %v7001 = vadd.f32 %v7000, 1.0
    %v7002 = vrcp.pop %v7001
    %v7003 = vmul.f32 %v7001, %v7002
    %v7004 = vsub.f32 1.0, %v7003
    %v7005 = vmul.f32 %v7002, %v7004
    %v7006 = vadd.f32 %v7002, %v7005
    %vm7007 = vweird.f32 %v7001
    %vm7008 = vweird.f32 %v7002
    %vm7009 = vmor %vm7007, %vm7008
    %v7010 = vsel %vm7009, %v7002, %v7006
    %v7011 = vand.u32 2147483647, %v7001
    %vm7012 = vcmp.eq.f32.partialorder %v7011, 8.507059e+37
    %v7013 = vand.u32 %v7001, 2147483648
    %v7014 = vor.u32 1.1754944e-38, %v7013
    %v7015 = vsel %vm7012, %v7014, %v7010
    %v7016 = vmul.f32 1.0, %v7015
    %v7017 = vadd.f32 %v6974, %v6368
    %v7018 = vmul.f32 %v6996, %v7017
    %v7019 = vadd.f32 %v6325, %v7018
    %v7020 = vtanh.pop %v7019
    %v7021 = vsub.f32 1.0, %v7016
    %v7022 = vmul.f32 %v7021, %v7020
    %v7023 = vmul.f32 %v7016, %v6936
    %v7024 = vadd.f32 %v7022, %v7023
    %v7025 = vpack.c.bf16 %v7024, %v7024
    %7026 = vmatpush.bf16.msra.mxu0 %v6471
    %7027 = vmatpush.bf16.msra.mxu0 %v6468
    %7028 = vmatpush.bf16.msra.mxu0 %v6465
    %7029 = vmatpush.bf16.msra.mxu0 %v6462
    %7030 = vmatpush.bf16.msra.mxu0 %v6459
    %7031 = vmatpush.bf16.msra.mxu0 %v6456
    %7032 = vmatpush.bf16.msra.mxu0 %v6453
    %7033 = vmatpush.bf16.msra.mxu0 %v6450
    %7034 = vmatmul.bf16.gmra.mxu0 %v7025
    %v7035 = vpop.f32.mrf.mxu0
    %v7036 = vadd.f32 0.0, %v7035
    %v7037 = vpop.f32.mrf.mxu0
    %7038 = vdwg.mxu0
    %7039 = vmatpush.bf16.msra.mxu0 %v6472
    %7040 = vmatpush.bf16.msra.mxu0 %v6469
    %7041 = vmatpush.bf16.msra.mxu0 %v6466
    %7042 = vmatpush.bf16.msra.mxu0 %v6463
    %7043 = vmatpush.bf16.msra.mxu0 %v6460
    %7044 = vmatpush.bf16.msra.mxu0 %v6457
    %7045 = vmatpush.bf16.msra.mxu0 %v6454
    %7046 = vmatpush.bf16.msra.mxu0 %v6451
    %7047 = vmatmul.bf16.gmra.mxu0 %v7025
    %v7048 = vpop.f32.mrf.mxu0
    %v7049 = vadd.f32 0.0, %v7048
    %v7050 = vpop.f32.mrf.mxu0
    %7051 = vdwg.mxu0
    %7052 = vmatpush.bf16.msra.mxu0 %v6473
    %7053 = vmatpush.bf16.msra.mxu0 %v6470
    %7054 = vmatpush.bf16.msra.mxu0 %v6467
    %7055 = vmatpush.bf16.msra.mxu0 %v6464
    %7056 = vmatpush.bf16.msra.mxu0 %v6461
    %7057 = vmatpush.bf16.msra.mxu0 %v6458
    %7058 = vmatpush.bf16.msra.mxu0 %v6455
    %7059 = vmatpush.bf16.msra.mxu0 %v6452
    %7060 = vmatmul.bf16.gmra.mxu0 %v7025
    %v7061 = vpop.f32.mrf.mxu0
    %v7062 = vadd.f32 0.0, %v7061
    %v7063 = vpop.f32.mrf.mxu0
    %7064 = vdwg.mxu0
    %v7065 = vadd.f32 %v6270, %v7036
    %v7066 = vxor.u32 %v7065, 2147483648
    %v7067 = vmul.f32 %v7066, 1.442695
    %v7068 = vpow.pop %v7067
    %v7069 = vadd.f32 %v7068, 1.0
    %v7070 = vrcp.pop %v7069
    %v7071 = vmul.f32 %v7069, %v7070
    %v7072 = vsub.f32 1.0, %v7071
    %v7073 = vmul.f32 %v7070, %v7072
    %v7074 = vadd.f32 %v7070, %v7073
    %vm7075 = vweird.f32 %v7069
    %vm7076 = vweird.f32 %v7070
    %vm7077 = vmor %vm7075, %vm7076
    %v7078 = vsel %vm7077, %v7070, %v7074
    %v7079 = vand.u32 2147483647, %v7069
    %vm7080 = vcmp.eq.f32.partialorder %v7079, 8.507059e+37
    %v7081 = vand.u32 %v7069, 2147483648
    %v7082 = vor.u32 1.1754944e-38, %v7081
    %v7083 = vsel %vm7080, %v7082, %v7078
    %v7084 = vmul.f32 1.0, %v7083
    %v7085 = vadd.f32 %v6299, %v7049
    %v7086 = vxor.u32 %v7085, 2147483648
    %v7087 = vmul.f32 %v7086, 1.442695
    %v7088 = vpow.pop %v7087
    %v7089 = vadd.f32 %v7088, 1.0
    %v7090 = vrcp.pop %v7089
    %v7091 = vmul.f32 %v7089, %v7090
    %v7092 = vsub.f32 1.0, %v7091
    %v7093 = vmul.f32 %v7090, %v7092
    %v7094 = vadd.f32 %v7090, %v7093
    %vm7095 = vweird.f32 %v7089
    %vm7096 = vweird.f32 %v7090
    %vm7097 = vmor %vm7095, %vm7096
    %v7098 = vsel %vm7097, %v7090, %v7094
    %v7099 = vand.u32 2147483647, %v7089
    %vm7100 = vcmp.eq.f32.partialorder %v7099, 8.507059e+37
    %v7101 = vand.u32 %v7089, 2147483648
    %v7102 = vor.u32 1.1754944e-38, %v7101
    %v7103 = vsel %vm7100, %v7102, %v7098
    %v7104 = vmul.f32 1.0, %v7103
    %v7105 = vadd.f32 %v7062, %v6368
    %v7106 = vmul.f32 %v7084, %v7105
    %v7107 = vadd.f32 %v6328, %v7106
    %v7108 = vtanh.pop %v7107
    %v7109 = vsub.f32 1.0, %v7104
    %v7110 = vmul.f32 %v7109, %v7108
    %v7111 = vmul.f32 %v7104, %v7024
    %v7112 = vadd.f32 %v7110, %v7111
    %v7113 = vpack.c.bf16 %v7112, %v7112
    %7114 = vmatpush.bf16.msra.mxu0 %v6471
    %7115 = vmatpush.bf16.msra.mxu0 %v6468
    %7116 = vmatpush.bf16.msra.mxu0 %v6465
    %7117 = vmatpush.bf16.msra.mxu0 %v6462
    %7118 = vmatpush.bf16.msra.mxu0 %v6459
    %7119 = vmatpush.bf16.msra.mxu0 %v6456
    %7120 = vmatpush.bf16.msra.mxu0 %v6453
    %7121 = vmatpush.bf16.msra.mxu0 %v6450
    %7122 = vmatmul.bf16.gmra.mxu0 %v7113
    %v7123 = vpop.f32.mrf.mxu0
    %v7124 = vadd.f32 0.0, %v7123
    %v7125 = vpop.f32.mrf.mxu0
    %7126 = vdwg.mxu0
    %7127 = vmatpush.bf16.msra.mxu0 %v6472
    %7128 = vmatpush.bf16.msra.mxu0 %v6469
    %7129 = vmatpush.bf16.msra.mxu0 %v6466
    %7130 = vmatpush.bf16.msra.mxu0 %v6463
    %7131 = vmatpush.bf16.msra.mxu0 %v6460
    %7132 = vmatpush.bf16.msra.mxu0 %v6457
    %7133 = vmatpush.bf16.msra.mxu0 %v6454
    %7134 = vmatpush.bf16.msra.mxu0 %v6451
    %7135 = vmatmul.bf16.gmra.mxu0 %v7113
    %v7136 = vpop.f32.mrf.mxu0
    %v7137 = vadd.f32 0.0, %v7136
    %v7138 = vpop.f32.mrf.mxu0
    %7139 = vdwg.mxu0
    %7140 = vmatpush.bf16.msra.mxu0 %v6473
    %7141 = vmatpush.bf16.msra.mxu0 %v6470
    %7142 = vmatpush.bf16.msra.mxu0 %v6467
    %7143 = vmatpush.bf16.msra.mxu0 %v6464
    %7144 = vmatpush.bf16.msra.mxu0 %v6461
    %7145 = vmatpush.bf16.msra.mxu0 %v6458
    %7146 = vmatpush.bf16.msra.mxu0 %v6455
    %7147 = vmatpush.bf16.msra.mxu0 %v6452
    %7148 = vmatmul.bf16.gmra.mxu0 %v7113
    %v7149 = vpop.f32.mrf.mxu0
    %v7150 = vadd.f32 0.0, %v7149
    %v7151 = vpop.f32.mrf.mxu0
    %7152 = vdwg.mxu0
    %v7153 = vadd.f32 %v6272, %v7124
    %v7154 = vxor.u32 %v7153, 2147483648
    %v7155 = vmul.f32 %v7154, 1.442695
    %v7156 = vpow.pop %v7155
    %v7157 = vadd.f32 %v7156, 1.0
    %v7158 = vrcp.pop %v7157
    %v7159 = vmul.f32 %v7157, %v7158
    %v7160 = vsub.f32 1.0, %v7159
    %v7161 = vmul.f32 %v7158, %v7160
    %v7162 = vadd.f32 %v7158, %v7161
    %vm7163 = vweird.f32 %v7157
    %vm7164 = vweird.f32 %v7158
    %vm7165 = vmor %vm7163, %vm7164
    %v7166 = vsel %vm7165, %v7158, %v7162
    %v7167 = vand.u32 2147483647, %v7157
    %vm7168 = vcmp.eq.f32.partialorder %v7167, 8.507059e+37
    %v7169 = vand.u32 %v7157, 2147483648
    %v7170 = vor.u32 1.1754944e-38, %v7169
    %v7171 = vsel %vm7168, %v7170, %v7166
    %v7172 = vmul.f32 1.0, %v7171
    %v7173 = vadd.f32 %v6301, %v7137
    %v7174 = vxor.u32 %v7173, 2147483648
    %v7175 = vmul.f32 %v7174, 1.442695
    %v7176 = vpow.pop %v7175
    %v7177 = vadd.f32 %v7176, 1.0
    %v7178 = vrcp.pop %v7177
    %v7179 = vmul.f32 %v7177, %v7178
    %v7180 = vsub.f32 1.0, %v7179
    %v7181 = vmul.f32 %v7178, %v7180
    %v7182 = vadd.f32 %v7178, %v7181
    %vm7183 = vweird.f32 %v7177
    %vm7184 = vweird.f32 %v7178
    %vm7185 = vmor %vm7183, %vm7184
    %v7186 = vsel %vm7185, %v7178, %v7182
    %v7187 = vand.u32 2147483647, %v7177
    %vm7188 = vcmp.eq.f32.partialorder %v7187, 8.507059e+37
    %v7189 = vand.u32 %v7177, 2147483648
    %v7190 = vor.u32 1.1754944e-38, %v7189
    %v7191 = vsel %vm7188, %v7190, %v7186
    %v7192 = vmul.f32 1.0, %v7191
    %v7193 = vadd.f32 %v7150, %v6368
    %v7194 = vmul.f32 %v7172, %v7193
    %v7195 = vadd.f32 %v6330, %v7194
    %v7196 = vtanh.pop %v7195
    %v7197 = vsub.f32 1.0, %v7192
    %v7198 = vmul.f32 %v7197, %v7196
    %v7199 = vmul.f32 %v7192, %v7112
    %v7200 = vadd.f32 %v7198, %v7199
    %v7201 = vpack.c.bf16 %v6672, %v6584
    %v7202 = vpack.c.bf16 %v6848, %v6760
    %v7203 = vpack.c.bf16 %v7024, %v6936
    %v7204 = vpack.c.bf16 %v7200, %v7112
    %s7205 = scalar_lea.vmem [#allocation10], 768
    %v7206 = vld [vmem:[%s7205] sm:$0xff]
    %v7207 = vld [vmem:[%s7205 + $0x8] sm:$0xf]
    %v7208 = vld [vmem:[%s7205 + $0xc] sm:$0xff]
    %v7209 = vld [vmem:[%s7205 + $0x14] sm:$0xf]
    %v7210 = vld [vmem:[%s7205 + $0x18] sm:$0xff]
    %v7211 = vld [vmem:[%s7205 + $0x20] sm:$0xf]
    %v7212 = vld [vmem:[%s7205 + $0x24] sm:$0xff]
    %v7213 = vld [vmem:[%s7205 + $0x2c] sm:$0xf]
    %v7214 = vld [vmem:[%s7205 + $0x30] sm:$0xff]
    %v7215 = vld [vmem:[%s7205 + $0x38] sm:$0xf]
    %v7216 = vld [vmem:[%s7205 + $0x3c] sm:$0xff]
    %v7217 = vld [vmem:[%s7205 + $0x44] sm:$0xf]
    %v7218 = vld [vmem:[%s7205 + $0x48] sm:$0xff]
    %v7219 = vld [vmem:[%s7205 + $0x50] sm:$0xf]
    %v7220 = vld [vmem:[%s7205 + $0x54] sm:$0xff]
    %v7221 = vld [vmem:[%s7205 + $0x5c] sm:$0xf]
    %v7222 = vld [vmem:[%s7205 + $0x60] sm:$0xff]
    %v7223 = vld [vmem:[%s7205 + $0x68] sm:$0xf]
    %v7224 = vld [vmem:[%s7205 + $0x6c] sm:$0xff]
    %v7225 = vld [vmem:[%s7205 + $0x74] sm:$0xf]
    %v7226 = vld [vmem:[%s7205 + $0x78] sm:$0xff]
    %v7227 = vld [vmem:[%s7205 + $0x80] sm:$0xf]
    %v7228 = vld [vmem:[%s7205 + $0x84] sm:$0xff]
    %v7229 = vld [vmem:[%s7205 + $0x8c] sm:$0xf]
    %v7230 = vld [vmem:[%s7205 + $0x90] sm:$0xff]
    %v7231 = vld [vmem:[%s7205 + $0x98] sm:$0xf]
    %v7232 = vld [vmem:[%s7205 + $0x9c] sm:$0xff]
    %v7233 = vld [vmem:[%s7205 + $0xa4] sm:$0xf]
    %v7234 = vld [vmem:[%s7205 + $0xa8] sm:$0xff]
    %v7235 = vld [vmem:[%s7205 + $0xb0] sm:$0xf]
    %v7236 = vld [vmem:[%s7205 + $0xb4] sm:$0xff]
    %v7237 = vld [vmem:[%s7205 + $0xbc] sm:$0xf]
    %s7238 = scalar_lea.vmem [#allocation11], 12
    %v7239 = vld [vmem:[%s7238] sm:$0x7]
    %v7241 = vperm.slane %v7239, 0
    %v7242 = vperm.slane %v7239, 1
    %v7243 = vperm.slane %v7239, 2
    %v7279 = vunpack.c.l.b16 %v7206
    %v7280 = vunpack.c.h.b16 %v7206
    %v7281 = vunpack.c.l.b16 %v7207
    %v7282 = vunpack.c.l.b16 %v7208
    %v7283 = vunpack.c.h.b16 %v7208
    %v7284 = vunpack.c.l.b16 %v7209
    %v7285 = vunpack.c.l.b16 %v7210
    %v7286 = vunpack.c.h.b16 %v7210
    %v7287 = vunpack.c.l.b16 %v7211
    %v7288 = vunpack.c.l.b16 %v7212
    %v7289 = vunpack.c.h.b16 %v7212
    %v7290 = vunpack.c.l.b16 %v7213
    %v7291 = vunpack.c.l.b16 %v7214
    %v7292 = vunpack.c.h.b16 %v7214
    %v7293 = vunpack.c.l.b16 %v7215
    %v7294 = vunpack.c.l.b16 %v7216
    %v7295 = vunpack.c.h.b16 %v7216
    %v7296 = vunpack.c.l.b16 %v7217
    %v7297 = vunpack.c.l.b16 %v7218
    %v7298 = vunpack.c.h.b16 %v7218
    %v7299 = vunpack.c.l.b16 %v7219
    %v7300 = vunpack.c.l.b16 %v7220
    %v7301 = vunpack.c.h.b16 %v7220
    %v7302 = vunpack.c.l.b16 %v7221
    %v7303 = vunpack.c.l.b16 %v7222
    %v7304 = vunpack.c.h.b16 %v7222
    %v7305 = vunpack.c.l.b16 %v7223
    %v7306 = vunpack.c.l.b16 %v7224
    %v7307 = vunpack.c.h.b16 %v7224
    %v7308 = vunpack.c.l.b16 %v7225
    %v7309 = vunpack.c.l.b16 %v7226
    %v7310 = vunpack.c.h.b16 %v7226
    %v7311 = vunpack.c.l.b16 %v7227
    %v7312 = vunpack.c.l.b16 %v7228
    %v7313 = vunpack.c.h.b16 %v7228
    %v7314 = vunpack.c.l.b16 %v7229
    %v7315 = vunpack.c.l.b16 %v7230
    %v7316 = vunpack.c.h.b16 %v7230
    %v7317 = vunpack.c.l.b16 %v7231
    %v7318 = vunpack.c.l.b16 %v7232
    %v7319 = vunpack.c.h.b16 %v7232
    %v7320 = vunpack.c.l.b16 %v7233
    %v7321 = vunpack.c.l.b16 %v7234
    %v7322 = vunpack.c.h.b16 %v7234
    %v7323 = vunpack.c.l.b16 %v7235
    %v7324 = vunpack.c.l.b16 %v7236
    %v7325 = vunpack.c.h.b16 %v7236
    %v7326 = vunpack.c.l.b16 %v7237
    %v7327 = vpack.c.b16 %v7282, %v7279
    %v7328 = vpack.c.b16 %v7283, %v7280
    %v7329 = vpack.c.b16 %v7284, %v7281
    %v7330 = vpack.c.b16 %v7288, %v7285
    %v7331 = vpack.c.b16 %v7289, %v7286
    %v7332 = vpack.c.b16 %v7290, %v7287
    %v7333 = vpack.c.b16 %v7294, %v7291
    %v7334 = vpack.c.b16 %v7295, %v7292
    %v7335 = vpack.c.b16 %v7296, %v7293
    %v7336 = vpack.c.b16 %v7300, %v7297
    %v7337 = vpack.c.b16 %v7301, %v7298
    %v7338 = vpack.c.b16 %v7302, %v7299
    %v7339 = vpack.c.b16 %v7306, %v7303
    %v7340 = vpack.c.b16 %v7307, %v7304
    %v7341 = vpack.c.b16 %v7308, %v7305
    %v7342 = vpack.c.b16 %v7312, %v7309
    %v7343 = vpack.c.b16 %v7313, %v7310
    %v7344 = vpack.c.b16 %v7314, %v7311
    %v7345 = vpack.c.b16 %v7318, %v7315
    %v7346 = vpack.c.b16 %v7319, %v7316
    %v7347 = vpack.c.b16 %v7320, %v7317
    %v7348 = vpack.c.b16 %v7324, %v7321
    %v7349 = vpack.c.b16 %v7325, %v7322
    %v7350 = vpack.c.b16 %v7326, %v7323
    %7375 = vmatpush.bf16.msra.mxu0 %v7348
    %7376 = vmatpush.bf16.msra.mxu0 %v7345
    %7377 = vmatpush.bf16.msra.mxu0 %v7342
    %7378 = vmatpush.bf16.msra.mxu0 %v7339
    %7379 = vmatpush.bf16.msra.mxu0 %v7336
    %7380 = vmatpush.bf16.msra.mxu0 %v7333
    %7381 = vmatpush.bf16.msra.mxu0 %v7330
    %7382 = vmatpush.bf16.msra.mxu0 %v7327
    %7383 = vmatmul.bf16.gmra.mxu0 %v7201
    %v7384 = vpop.f32.mrf.mxu0
    %v7385 = vadd.f32 %v7241, %v7384
    %v7386 = vpop.f32.mrf.mxu0
    %v7387 = vadd.f32 %v7241, %v7386
    %7388 = vmatmul.bf16.gmra.mxu0 %v7202
    %v7389 = vpop.f32.mrf.mxu0
    %v7390 = vadd.f32 %v7241, %v7389
    %v7391 = vpop.f32.mrf.mxu0
    %v7392 = vadd.f32 %v7241, %v7391
    %7393 = vmatmul.bf16.gmra.mxu0 %v7203
    %v7394 = vpop.f32.mrf.mxu0
    %v7395 = vadd.f32 %v7241, %v7394
    %v7396 = vpop.f32.mrf.mxu0
    %v7397 = vadd.f32 %v7241, %v7396
    %7398 = vmatmul.bf16.gmra.mxu0 %v7204
    %v7399 = vpop.f32.mrf.mxu0
    %v7400 = vadd.f32 %v7241, %v7399
    %v7401 = vpop.f32.mrf.mxu0
    %v7402 = vadd.f32 %v7241, %v7401
    %7403 = vdwg.mxu0
    %7404 = vmatpush.bf16.msra.mxu0 %v7349
    %7405 = vmatpush.bf16.msra.mxu0 %v7346
    %7406 = vmatpush.bf16.msra.mxu0 %v7343
    %7407 = vmatpush.bf16.msra.mxu0 %v7340
    %7408 = vmatpush.bf16.msra.mxu0 %v7337
    %7409 = vmatpush.bf16.msra.mxu0 %v7334
    %7410 = vmatpush.bf16.msra.mxu0 %v7331
    %7411 = vmatpush.bf16.msra.mxu0 %v7328
    %7412 = vmatmul.bf16.gmra.mxu0 %v7201
    %v7413 = vpop.f32.mrf.mxu0
    %v7414 = vadd.f32 %v7242, %v7413
    %v7415 = vpop.f32.mrf.mxu0
    %v7416 = vadd.f32 %v7242, %v7415
    %7417 = vmatmul.bf16.gmra.mxu0 %v7202
    %v7418 = vpop.f32.mrf.mxu0
    %v7419 = vadd.f32 %v7242, %v7418
    %v7420 = vpop.f32.mrf.mxu0
    %v7421 = vadd.f32 %v7242, %v7420
    %7422 = vmatmul.bf16.gmra.mxu0 %v7203
    %v7423 = vpop.f32.mrf.mxu0
    %v7424 = vadd.f32 %v7242, %v7423
    %v7425 = vpop.f32.mrf.mxu0
    %v7426 = vadd.f32 %v7242, %v7425
    %7427 = vmatmul.bf16.gmra.mxu0 %v7204
    %v7428 = vpop.f32.mrf.mxu0
    %v7429 = vadd.f32 %v7242, %v7428
    %v7430 = vpop.f32.mrf.mxu0
    %v7431 = vadd.f32 %v7242, %v7430
    %7432 = vdwg.mxu0
    %7433 = vmatpush.bf16.msra.mxu0 %v7350
    %7434 = vmatpush.bf16.msra.mxu0 %v7347
    %7435 = vmatpush.bf16.msra.mxu0 %v7344
    %7436 = vmatpush.bf16.msra.mxu0 %v7341
    %7437 = vmatpush.bf16.msra.mxu0 %v7338
    %7438 = vmatpush.bf16.msra.mxu0 %v7335
    %7439 = vmatpush.bf16.msra.mxu0 %v7332
    %7440 = vmatpush.bf16.msra.mxu0 %v7329
    %7441 = vmatmul.bf16.gmra.mxu0 %v7201
    %v7442 = vpop.f32.mrf.mxu0
    %v7443 = vadd.f32 %v7243, %v7442
    %v7444 = vpop.f32.mrf.mxu0
    %v7445 = vadd.f32 %v7243, %v7444
    %7446 = vmatmul.bf16.gmra.mxu0 %v7202
    %v7447 = vpop.f32.mrf.mxu0
    %v7448 = vadd.f32 %v7243, %v7447
    %v7449 = vpop.f32.mrf.mxu0
    %v7450 = vadd.f32 %v7243, %v7449
    %7451 = vmatmul.bf16.gmra.mxu0 %v7203
    %v7452 = vpop.f32.mrf.mxu0
    %v7453 = vadd.f32 %v7243, %v7452
    %v7454 = vpop.f32.mrf.mxu0
    %v7455 = vadd.f32 %v7243, %v7454
    %7456 = vmatmul.bf16.gmra.mxu0 %v7204
    %v7457 = vpop.f32.mrf.mxu0
    %v7458 = vadd.f32 %v7243, %v7457
    %v7459 = vpop.f32.mrf.mxu0
    %v7460 = vadd.f32 %v7243, %v7459
    %7461 = vdwg.mxu0
    %s7462 = scalar_lea.vmem [#allocation13], 768
    %v7463 = vld [vmem:[%s7462] sm:$0xff]
    %v7464 = vld [vmem:[%s7462 + $0x8] sm:$0xf]
    %v7465 = vld [vmem:[%s7462 + $0xc] sm:$0xff]
    %v7466 = vld [vmem:[%s7462 + $0x14] sm:$0xf]
    %v7467 = vld [vmem:[%s7462 + $0x18] sm:$0xff]
    %v7468 = vld [vmem:[%s7462 + $0x20] sm:$0xf]
    %v7469 = vld [vmem:[%s7462 + $0x24] sm:$0xff]
    %v7470 = vld [vmem:[%s7462 + $0x2c] sm:$0xf]
    %v7471 = vld [vmem:[%s7462 + $0x30] sm:$0xff]
    %v7472 = vld [vmem:[%s7462 + $0x38] sm:$0xf]
    %v7473 = vld [vmem:[%s7462 + $0x3c] sm:$0xff]
    %v7474 = vld [vmem:[%s7462 + $0x44] sm:$0xf]
    %v7475 = vld [vmem:[%s7462 + $0x48] sm:$0xff]
    %v7476 = vld [vmem:[%s7462 + $0x50] sm:$0xf]
    %v7477 = vld [vmem:[%s7462 + $0x54] sm:$0xff]
    %v7478 = vld [vmem:[%s7462 + $0x5c] sm:$0xf]
    %v7479 = vld [vmem:[%s7462 + $0x60] sm:$0xff]
    %v7480 = vld [vmem:[%s7462 + $0x68] sm:$0xf]
    %v7481 = vld [vmem:[%s7462 + $0x6c] sm:$0xff]
    %v7482 = vld [vmem:[%s7462 + $0x74] sm:$0xf]
    %v7483 = vld [vmem:[%s7462 + $0x78] sm:$0xff]
    %v7484 = vld [vmem:[%s7462 + $0x80] sm:$0xf]
    %v7485 = vld [vmem:[%s7462 + $0x84] sm:$0xff]
    %v7486 = vld [vmem:[%s7462 + $0x8c] sm:$0xf]
    %v7487 = vld [vmem:[%s7462 + $0x90] sm:$0xff]
    %v7488 = vld [vmem:[%s7462 + $0x98] sm:$0xf]
    %v7489 = vld [vmem:[%s7462 + $0x9c] sm:$0xff]
    %v7490 = vld [vmem:[%s7462 + $0xa4] sm:$0xf]
    %v7491 = vld [vmem:[%s7462 + $0xa8] sm:$0xff]
    %v7492 = vld [vmem:[%s7462 + $0xb0] sm:$0xf]
    %v7493 = vld [vmem:[%s7462 + $0xb4] sm:$0xff]
    %v7494 = vld [vmem:[%s7462 + $0xbc] sm:$0xf]
    %s7495 = scalar_lea.vmem %s8, 4
    %v7496 = vld [vmem:[%s7495] sm:$0x1]
    %v7498 = vperm.slane %v7496, 0
    %v7532 = vunpack.c.l.b16 %v7463
    %v7533 = vunpack.c.h.b16 %v7463
    %v7534 = vunpack.c.l.b16 %v7464
    %v7535 = vunpack.c.l.b16 %v7465
    %v7536 = vunpack.c.h.b16 %v7465
    %v7537 = vunpack.c.l.b16 %v7466
    %v7538 = vunpack.c.l.b16 %v7467
    %v7539 = vunpack.c.h.b16 %v7467
    %v7540 = vunpack.c.l.b16 %v7468
    %v7541 = vunpack.c.l.b16 %v7469
    %v7542 = vunpack.c.h.b16 %v7469
    %v7543 = vunpack.c.l.b16 %v7470
    %v7544 = vunpack.c.l.b16 %v7471
    %v7545 = vunpack.c.h.b16 %v7471
    %v7546 = vunpack.c.l.b16 %v7472
    %v7547 = vunpack.c.l.b16 %v7473
    %v7548 = vunpack.c.h.b16 %v7473
    %v7549 = vunpack.c.l.b16 %v7474
    %v7550 = vunpack.c.l.b16 %v7475
    %v7551 = vunpack.c.h.b16 %v7475
    %v7552 = vunpack.c.l.b16 %v7476
    %v7553 = vunpack.c.l.b16 %v7477
    %v7554 = vunpack.c.h.b16 %v7477
    %v7555 = vunpack.c.l.b16 %v7478
    %v7556 = vunpack.c.l.b16 %v7479
    %v7557 = vunpack.c.h.b16 %v7479
    %v7558 = vunpack.c.l.b16 %v7480
    %v7559 = vunpack.c.l.b16 %v7481
    %v7560 = vunpack.c.h.b16 %v7481
    %v7561 = vunpack.c.l.b16 %v7482
    %v7562 = vunpack.c.l.b16 %v7483
    %v7563 = vunpack.c.h.b16 %v7483
    %v7564 = vunpack.c.l.b16 %v7484
    %v7565 = vunpack.c.l.b16 %v7485
    %v7566 = vunpack.c.h.b16 %v7485
    %v7567 = vunpack.c.l.b16 %v7486
    %v7568 = vunpack.c.l.b16 %v7487
    %v7569 = vunpack.c.h.b16 %v7487
    %v7570 = vunpack.c.l.b16 %v7488
    %v7571 = vunpack.c.l.b16 %v7489
    %v7572 = vunpack.c.h.b16 %v7489
    %v7573 = vunpack.c.l.b16 %v7490
    %v7574 = vunpack.c.l.b16 %v7491
    %v7575 = vunpack.c.h.b16 %v7491
    %v7576 = vunpack.c.l.b16 %v7492
    %v7577 = vunpack.c.l.b16 %v7493
    %v7578 = vunpack.c.h.b16 %v7493
    %v7579 = vunpack.c.l.b16 %v7494
    %v7580 = vpack.c.b16 %v7535, %v7532
    %v7581 = vpack.c.b16 %v7536, %v7533
    %v7582 = vpack.c.b16 %v7537, %v7534
    %v7583 = vpack.c.b16 %v7541, %v7538
    %v7584 = vpack.c.b16 %v7542, %v7539
    %v7585 = vpack.c.b16 %v7543, %v7540
    %v7586 = vpack.c.b16 %v7547, %v7544
    %v7587 = vpack.c.b16 %v7548, %v7545
    %v7588 = vpack.c.b16 %v7549, %v7546
    %v7589 = vpack.c.b16 %v7553, %v7550
    %v7590 = vpack.c.b16 %v7554, %v7551
    %v7591 = vpack.c.b16 %v7555, %v7552
    %v7592 = vpack.c.b16 %v7559, %v7556
    %v7593 = vpack.c.b16 %v7560, %v7557
    %v7594 = vpack.c.b16 %v7561, %v7558
    %v7595 = vpack.c.b16 %v7565, %v7562
    %v7596 = vpack.c.b16 %v7566, %v7563
    %v7597 = vpack.c.b16 %v7567, %v7564
    %v7598 = vpack.c.b16 %v7571, %v7568
    %v7599 = vpack.c.b16 %v7572, %v7569
    %v7600 = vpack.c.b16 %v7573, %v7570
    %v7601 = vpack.c.b16 %v7577, %v7574
    %v7602 = vpack.c.b16 %v7578, %v7575
    %v7603 = vpack.c.b16 %v7579, %v7576
    %7628 = vmatpush.bf16.msra.mxu0 %v7601
    %7629 = vmatpush.bf16.msra.mxu0 %v7598
    %7630 = vmatpush.bf16.msra.mxu0 %v7595
    %7631 = vmatpush.bf16.msra.mxu0 %v7592
    %7632 = vmatpush.bf16.msra.mxu0 %v7589
    %7633 = vmatpush.bf16.msra.mxu0 %v7586
    %7634 = vmatpush.bf16.msra.mxu0 %v7583
    %7635 = vmatpush.bf16.msra.mxu0 %v7580
    %7636 = vmatmul.bf16.gmra.mxu0 0
    %v7637 = vpop.f32.mrf.mxu0
    %v7638 = vadd.f32 0.0, %v7637
    %v7639 = vpop.f32.mrf.mxu0
    %7640 = vdwg.mxu0
    %7641 = vmatpush.bf16.msra.mxu0 %v7602
    %7642 = vmatpush.bf16.msra.mxu0 %v7599
    %7643 = vmatpush.bf16.msra.mxu0 %v7596
    %7644 = vmatpush.bf16.msra.mxu0 %v7593
    %7645 = vmatpush.bf16.msra.mxu0 %v7590
    %7646 = vmatpush.bf16.msra.mxu0 %v7587
    %7647 = vmatpush.bf16.msra.mxu0 %v7584
    %7648 = vmatpush.bf16.msra.mxu0 %v7581
    %7649 = vmatmul.bf16.gmra.mxu0 0
    %v7650 = vpop.f32.mrf.mxu0
    %v7651 = vadd.f32 0.0, %v7650
    %v7652 = vpop.f32.mrf.mxu0
    %7653 = vdwg.mxu0
    %7654 = vmatpush.bf16.msra.mxu0 %v7603
    %7655 = vmatpush.bf16.msra.mxu0 %v7600
    %7656 = vmatpush.bf16.msra.mxu0 %v7597
    %7657 = vmatpush.bf16.msra.mxu0 %v7594
    %7658 = vmatpush.bf16.msra.mxu0 %v7591
    %7659 = vmatpush.bf16.msra.mxu0 %v7588
    %7660 = vmatpush.bf16.msra.mxu0 %v7585
    %7661 = vmatpush.bf16.msra.mxu0 %v7582
    %7662 = vmatmul.bf16.gmra.mxu0 0
    %v7663 = vpop.f32.mrf.mxu0
    %v7664 = vadd.f32 0.0, %v7663
    %v7665 = vpop.f32.mrf.mxu0
    %7666 = vdwg.mxu0
    %v7667 = vadd.f32 %v7385, %v7638
    %v7668 = vxor.u32 %v7667, 2147483648
    %v7669 = vmul.f32 %v7668, 1.442695
    %v7670 = vpow.pop %v7669
    %v7671 = vadd.f32 %v7670, 1.0
    %v7672 = vrcp.pop %v7671
    %v7673 = vmul.f32 %v7671, %v7672
    %v7674 = vsub.f32 1.0, %v7673
    %v7675 = vmul.f32 %v7672, %v7674
    %v7676 = vadd.f32 %v7672, %v7675
    %vm7677 = vweird.f32 %v7671
    %vm7678 = vweird.f32 %v7672
    %vm7679 = vmor %vm7677, %vm7678
    %v7680 = vsel %vm7679, %v7672, %v7676
    %v7681 = vand.u32 2147483647, %v7671
    %vm7682 = vcmp.eq.f32.partialorder %v7681, 8.507059e+37
    %v7683 = vand.u32 %v7671, 2147483648
    %v7684 = vor.u32 1.1754944e-38, %v7683
    %v7685 = vsel %vm7682, %v7684, %v7680
    %v7686 = vmul.f32 1.0, %v7685
    %v7687 = vadd.f32 %v7414, %v7651
    %v7688 = vxor.u32 %v7687, 2147483648
    %v7689 = vmul.f32 %v7688, 1.442695
    %v7690 = vpow.pop %v7689
    %v7691 = vadd.f32 %v7690, 1.0
    %v7692 = vrcp.pop %v7691
    %v7693 = vmul.f32 %v7691, %v7692
    %v7694 = vsub.f32 1.0, %v7693
    %v7695 = vmul.f32 %v7692, %v7694
    %v7696 = vadd.f32 %v7692, %v7695
    %vm7697 = vweird.f32 %v7691
    %vm7698 = vweird.f32 %v7692
    %vm7699 = vmor %vm7697, %vm7698
    %v7700 = vsel %vm7699, %v7692, %v7696
    %v7701 = vand.u32 2147483647, %v7691
    %vm7702 = vcmp.eq.f32.partialorder %v7701, 8.507059e+37
    %v7703 = vand.u32 %v7691, 2147483648
    %v7704 = vor.u32 1.1754944e-38, %v7703
    %v7705 = vsel %vm7702, %v7704, %v7700
    %v7706 = vmul.f32 1.0, %v7705
    %v7707 = vadd.f32 %v7664, %v7498
    %v7708 = vmul.f32 %v7686, %v7707
    %v7709 = vadd.f32 %v7443, %v7708
    %v7710 = vtanh.pop %v7709
    %v7711 = vsub.f32 1.0, %v7706
    %v7712 = vmul.f32 %v7711, %v7710
    %v7713 = vmul.f32 %v7706, 0.0
    %v7714 = vadd.f32 %v7712, %v7713
    %v7715 = vpack.c.bf16 %v7714, %v7714
    %7716 = vmatpush.bf16.msra.mxu0 %v7601
    %7717 = vmatpush.bf16.msra.mxu0 %v7598
    %7718 = vmatpush.bf16.msra.mxu0 %v7595
    %7719 = vmatpush.bf16.msra.mxu0 %v7592
    %7720 = vmatpush.bf16.msra.mxu0 %v7589
    %7721 = vmatpush.bf16.msra.mxu0 %v7586
    %7722 = vmatpush.bf16.msra.mxu0 %v7583
    %7723 = vmatpush.bf16.msra.mxu0 %v7580
    %7724 = vmatmul.bf16.gmra.mxu0 %v7715
    %v7725 = vpop.f32.mrf.mxu0
    %v7726 = vadd.f32 0.0, %v7725
    %v7727 = vpop.f32.mrf.mxu0
    %7728 = vdwg.mxu0
    %7729 = vmatpush.bf16.msra.mxu0 %v7602
    %7730 = vmatpush.bf16.msra.mxu0 %v7599
    %7731 = vmatpush.bf16.msra.mxu0 %v7596
    %7732 = vmatpush.bf16.msra.mxu0 %v7593
    %7733 = vmatpush.bf16.msra.mxu0 %v7590
    %7734 = vmatpush.bf16.msra.mxu0 %v7587
    %7735 = vmatpush.bf16.msra.mxu0 %v7584
    %7736 = vmatpush.bf16.msra.mxu0 %v7581
    %7737 = vmatmul.bf16.gmra.mxu0 %v7715
    %v7738 = vpop.f32.mrf.mxu0
    %v7739 = vadd.f32 0.0, %v7738
    %v7740 = vpop.f32.mrf.mxu0
    %7741 = vdwg.mxu0
    %7742 = vmatpush.bf16.msra.mxu0 %v7603
    %7743 = vmatpush.bf16.msra.mxu0 %v7600
    %7744 = vmatpush.bf16.msra.mxu0 %v7597
    %7745 = vmatpush.bf16.msra.mxu0 %v7594
    %7746 = vmatpush.bf16.msra.mxu0 %v7591
    %7747 = vmatpush.bf16.msra.mxu0 %v7588
    %7748 = vmatpush.bf16.msra.mxu0 %v7585
    %7749 = vmatpush.bf16.msra.mxu0 %v7582
    %7750 = vmatmul.bf16.gmra.mxu0 %v7715
    %v7751 = vpop.f32.mrf.mxu0
    %v7752 = vadd.f32 0.0, %v7751
    %v7753 = vpop.f32.mrf.mxu0
    %7754 = vdwg.mxu0
    %v7755 = vadd.f32 %v7387, %v7726
    %v7756 = vxor.u32 %v7755, 2147483648
    %v7757 = vmul.f32 %v7756, 1.442695
    %v7758 = vpow.pop %v7757
    %v7759 = vadd.f32 %v7758, 1.0
    %v7760 = vrcp.pop %v7759
    %v7761 = vmul.f32 %v7759, %v7760
    %v7762 = vsub.f32 1.0, %v7761
    %v7763 = vmul.f32 %v7760, %v7762
    %v7764 = vadd.f32 %v7760, %v7763
    %vm7765 = vweird.f32 %v7759
    %vm7766 = vweird.f32 %v7760
    %vm7767 = vmor %vm7765, %vm7766
    %v7768 = vsel %vm7767, %v7760, %v7764
    %v7769 = vand.u32 2147483647, %v7759
    %vm7770 = vcmp.eq.f32.partialorder %v7769, 8.507059e+37
    %v7771 = vand.u32 %v7759, 2147483648
    %v7772 = vor.u32 1.1754944e-38, %v7771
    %v7773 = vsel %vm7770, %v7772, %v7768
    %v7774 = vmul.f32 1.0, %v7773
    %v7775 = vadd.f32 %v7416, %v7739
    %v7776 = vxor.u32 %v7775, 2147483648
    %v7777 = vmul.f32 %v7776, 1.442695
    %v7778 = vpow.pop %v7777
    %v7779 = vadd.f32 %v7778, 1.0
    %v7780 = vrcp.pop %v7779
    %v7781 = vmul.f32 %v7779, %v7780
    %v7782 = vsub.f32 1.0, %v7781
    %v7783 = vmul.f32 %v7780, %v7782
    %v7784 = vadd.f32 %v7780, %v7783
    %vm7785 = vweird.f32 %v7779
    %vm7786 = vweird.f32 %v7780
    %vm7787 = vmor %vm7785, %vm7786
    %v7788 = vsel %vm7787, %v7780, %v7784
    %v7789 = vand.u32 2147483647, %v7779
    %vm7790 = vcmp.eq.f32.partialorder %v7789, 8.507059e+37
    %v7791 = vand.u32 %v7779, 2147483648
    %v7792 = vor.u32 1.1754944e-38, %v7791
    %v7793 = vsel %vm7790, %v7792, %v7788
    %v7794 = vmul.f32 1.0, %v7793
    %v7795 = vadd.f32 %v7752, %v7498
    %v7796 = vmul.f32 %v7774, %v7795
    %v7797 = vadd.f32 %v7445, %v7796
    %v7798 = vtanh.pop %v7797
    %v7799 = vsub.f32 1.0, %v7794
    %v7800 = vmul.f32 %v7799, %v7798
    %v7801 = vmul.f32 %v7794, %v7714
    %v7802 = vadd.f32 %v7800, %v7801
    %v7803 = vpack.c.bf16 %v7802, %v7802
    %7804 = vmatpush.bf16.msra.mxu0 %v7601
    %7805 = vmatpush.bf16.msra.mxu0 %v7598
    %7806 = vmatpush.bf16.msra.mxu0 %v7595
    %7807 = vmatpush.bf16.msra.mxu0 %v7592
    %7808 = vmatpush.bf16.msra.mxu0 %v7589
    %7809 = vmatpush.bf16.msra.mxu0 %v7586
    %7810 = vmatpush.bf16.msra.mxu0 %v7583
    %7811 = vmatpush.bf16.msra.mxu0 %v7580
    %7812 = vmatmul.bf16.gmra.mxu0 %v7803
    %v7813 = vpop.f32.mrf.mxu0
    %v7814 = vadd.f32 0.0, %v7813
    %v7815 = vpop.f32.mrf.mxu0
    %7816 = vdwg.mxu0
    %7817 = vmatpush.bf16.msra.mxu0 %v7602
    %7818 = vmatpush.bf16.msra.mxu0 %v7599
    %7819 = vmatpush.bf16.msra.mxu0 %v7596
    %7820 = vmatpush.bf16.msra.mxu0 %v7593
    %7821 = vmatpush.bf16.msra.mxu0 %v7590
    %7822 = vmatpush.bf16.msra.mxu0 %v7587
    %7823 = vmatpush.bf16.msra.mxu0 %v7584
    %7824 = vmatpush.bf16.msra.mxu0 %v7581
    %7825 = vmatmul.bf16.gmra.mxu0 %v7803
    %v7826 = vpop.f32.mrf.mxu0
    %v7827 = vadd.f32 0.0, %v7826
    %v7828 = vpop.f32.mrf.mxu0
    %7829 = vdwg.mxu0
    %7830 = vmatpush.bf16.msra.mxu0 %v7603
    %7831 = vmatpush.bf16.msra.mxu0 %v7600
    %7832 = vmatpush.bf16.msra.mxu0 %v7597
    %7833 = vmatpush.bf16.msra.mxu0 %v7594
    %7834 = vmatpush.bf16.msra.mxu0 %v7591
    %7835 = vmatpush.bf16.msra.mxu0 %v7588
    %7836 = vmatpush.bf16.msra.mxu0 %v7585
    %7837 = vmatpush.bf16.msra.mxu0 %v7582
    %7838 = vmatmul.bf16.gmra.mxu0 %v7803
    %v7839 = vpop.f32.mrf.mxu0
    %v7840 = vadd.f32 0.0, %v7839
    %v7841 = vpop.f32.mrf.mxu0
    %7842 = vdwg.mxu0
    %v7843 = vadd.f32 %v7390, %v7814
    %v7844 = vxor.u32 %v7843, 2147483648
    %v7845 = vmul.f32 %v7844, 1.442695
    %v7846 = vpow.pop %v7845
    %v7847 = vadd.f32 %v7846, 1.0
    %v7848 = vrcp.pop %v7847
    %v7849 = vmul.f32 %v7847, %v7848
    %v7850 = vsub.f32 1.0, %v7849
    %v7851 = vmul.f32 %v7848, %v7850
    %v7852 = vadd.f32 %v7848, %v7851
    %vm7853 = vweird.f32 %v7847
    %vm7854 = vweird.f32 %v7848
    %vm7855 = vmor %vm7853, %vm7854
    %v7856 = vsel %vm7855, %v7848, %v7852
    %v7857 = vand.u32 2147483647, %v7847
    %vm7858 = vcmp.eq.f32.partialorder %v7857, 8.507059e+37
    %v7859 = vand.u32 %v7847, 2147483648
    %v7860 = vor.u32 1.1754944e-38, %v7859
    %v7861 = vsel %vm7858, %v7860, %v7856
    %v7862 = vmul.f32 1.0, %v7861
    %v7863 = vadd.f32 %v7419, %v7827
    %v7864 = vxor.u32 %v7863, 2147483648
    %v7865 = vmul.f32 %v7864, 1.442695
    %v7866 = vpow.pop %v7865
    %v7867 = vadd.f32 %v7866, 1.0
    %v7868 = vrcp.pop %v7867
    %v7869 = vmul.f32 %v7867, %v7868
    %v7870 = vsub.f32 1.0, %v7869
    %v7871 = vmul.f32 %v7868, %v7870
    %v7872 = vadd.f32 %v7868, %v7871
    %vm7873 = vweird.f32 %v7867
    %vm7874 = vweird.f32 %v7868
    %vm7875 = vmor %vm7873, %vm7874
    %v7876 = vsel %vm7875, %v7868, %v7872
    %v7877 = vand.u32 2147483647, %v7867
    %vm7878 = vcmp.eq.f32.partialorder %v7877, 8.507059e+37
    %v7879 = vand.u32 %v7867, 2147483648
    %v7880 = vor.u32 1.1754944e-38, %v7879
    %v7881 = vsel %vm7878, %v7880, %v7876
    %v7882 = vmul.f32 1.0, %v7881
    %v7883 = vadd.f32 %v7840, %v7498
    %v7884 = vmul.f32 %v7862, %v7883
    %v7885 = vadd.f32 %v7448, %v7884
    %v7886 = vtanh.pop %v7885
    %v7887 = vsub.f32 1.0, %v7882
    %v7888 = vmul.f32 %v7887, %v7886
    %v7889 = vmul.f32 %v7882, %v7802
    %v7890 = vadd.f32 %v7888, %v7889
    %v7891 = vpack.c.bf16 %v7890, %v7890
    %7892 = vmatpush.bf16.msra.mxu0 %v7601
    %7893 = vmatpush.bf16.msra.mxu0 %v7598
    %7894 = vmatpush.bf16.msra.mxu0 %v7595
    %7895 = vmatpush.bf16.msra.mxu0 %v7592
    %7896 = vmatpush.bf16.msra.mxu0 %v7589
    %7897 = vmatpush.bf16.msra.mxu0 %v7586
    %7898 = vmatpush.bf16.msra.mxu0 %v7583
    %7899 = vmatpush.bf16.msra.mxu0 %v7580
    %7900 = vmatmul.bf16.gmra.mxu0 %v7891
    %v7901 = vpop.f32.mrf.mxu0
    %v7902 = vadd.f32 0.0, %v7901
    %v7903 = vpop.f32.mrf.mxu0
    %7904 = vdwg.mxu0
    %7905 = vmatpush.bf16.msra.mxu0 %v7602
    %7906 = vmatpush.bf16.msra.mxu0 %v7599
    %7907 = vmatpush.bf16.msra.mxu0 %v7596
    %7908 = vmatpush.bf16.msra.mxu0 %v7593
    %7909 = vmatpush.bf16.msra.mxu0 %v7590
    %7910 = vmatpush.bf16.msra.mxu0 %v7587
    %7911 = vmatpush.bf16.msra.mxu0 %v7584
    %7912 = vmatpush.bf16.msra.mxu0 %v7581
    %7913 = vmatmul.bf16.gmra.mxu0 %v7891
    %v7914 = vpop.f32.mrf.mxu0
    %v7915 = vadd.f32 0.0, %v7914
    %v7916 = vpop.f32.mrf.mxu0
    %7917 = vdwg.mxu0
    %7918 = vmatpush.bf16.msra.mxu0 %v7603
    %7919 = vmatpush.bf16.msra.mxu0 %v7600
    %7920 = vmatpush.bf16.msra.mxu0 %v7597
    %7921 = vmatpush.bf16.msra.mxu0 %v7594
    %7922 = vmatpush.bf16.msra.mxu0 %v7591
    %7923 = vmatpush.bf16.msra.mxu0 %v7588
    %7924 = vmatpush.bf16.msra.mxu0 %v7585
    %7925 = vmatpush.bf16.msra.mxu0 %v7582
    %7926 = vmatmul.bf16.gmra.mxu0 %v7891
    %v7927 = vpop.f32.mrf.mxu0
    %v7928 = vadd.f32 0.0, %v7927
    %v7929 = vpop.f32.mrf.mxu0
    %7930 = vdwg.mxu0
    %v7931 = vadd.f32 %v7392, %v7902
    %v7932 = vxor.u32 %v7931, 2147483648
    %v7933 = vmul.f32 %v7932, 1.442695
    %v7934 = vpow.pop %v7933
    %v7935 = vadd.f32 %v7934, 1.0
    %v7936 = vrcp.pop %v7935
    %v7937 = vmul.f32 %v7935, %v7936
    %v7938 = vsub.f32 1.0, %v7937
    %v7939 = vmul.f32 %v7936, %v7938
    %v7940 = vadd.f32 %v7936, %v7939
    %vm7941 = vweird.f32 %v7935
    %vm7942 = vweird.f32 %v7936
    %vm7943 = vmor %vm7941, %vm7942
    %v7944 = vsel %vm7943, %v7936, %v7940
    %v7945 = vand.u32 2147483647, %v7935
    %vm7946 = vcmp.eq.f32.partialorder %v7945, 8.507059e+37
    %v7947 = vand.u32 %v7935, 2147483648
    %v7948 = vor.u32 1.1754944e-38, %v7947
    %v7949 = vsel %vm7946, %v7948, %v7944
    %v7950 = vmul.f32 1.0, %v7949
    %v7951 = vadd.f32 %v7421, %v7915
    %v7952 = vxor.u32 %v7951, 2147483648
    %v7953 = vmul.f32 %v7952, 1.442695
    %v7954 = vpow.pop %v7953
    %v7955 = vadd.f32 %v7954, 1.0
    %v7956 = vrcp.pop %v7955
    %v7957 = vmul.f32 %v7955, %v7956
    %v7958 = vsub.f32 1.0, %v7957
    %v7959 = vmul.f32 %v7956, %v7958
    %v7960 = vadd.f32 %v7956, %v7959
    %vm7961 = vweird.f32 %v7955
    %vm7962 = vweird.f32 %v7956
    %vm7963 = vmor %vm7961, %vm7962
    %v7964 = vsel %vm7963, %v7956, %v7960
    %v7965 = vand.u32 2147483647, %v7955
    %vm7966 = vcmp.eq.f32.partialorder %v7965, 8.507059e+37
    %v7967 = vand.u32 %v7955, 2147483648
    %v7968 = vor.u32 1.1754944e-38, %v7967
    %v7969 = vsel %vm7966, %v7968, %v7964
    %v7970 = vmul.f32 1.0, %v7969
    %v7971 = vadd.f32 %v7928, %v7498
    %v7972 = vmul.f32 %v7950, %v7971
    %v7973 = vadd.f32 %v7450, %v7972
    %v7974 = vtanh.pop %v7973
    %v7975 = vsub.f32 1.0, %v7970
    %v7976 = vmul.f32 %v7975, %v7974
    %v7977 = vmul.f32 %v7970, %v7890
    %v7978 = vadd.f32 %v7976, %v7977
    %v7979 = vpack.c.bf16 %v7978, %v7978
    %7980 = vmatpush.bf16.msra.mxu0 %v7601
    %7981 = vmatpush.bf16.msra.mxu0 %v7598
    %7982 = vmatpush.bf16.msra.mxu0 %v7595
    %7983 = vmatpush.bf16.msra.mxu0 %v7592
    %7984 = vmatpush.bf16.msra.mxu0 %v7589
    %7985 = vmatpush.bf16.msra.mxu0 %v7586
    %7986 = vmatpush.bf16.msra.mxu0 %v7583
    %7987 = vmatpush.bf16.msra.mxu0 %v7580
    %7988 = vmatmul.bf16.gmra.mxu0 %v7979
    %v7989 = vpop.f32.mrf.mxu0
    %v7990 = vadd.f32 0.0, %v7989
    %v7991 = vpop.f32.mrf.mxu0
    %7992 = vdwg.mxu0
    %7993 = vmatpush.bf16.msra.mxu0 %v7602
    %7994 = vmatpush.bf16.msra.mxu0 %v7599
    %7995 = vmatpush.bf16.msra.mxu0 %v7596
    %7996 = vmatpush.bf16.msra.mxu0 %v7593
    %7997 = vmatpush.bf16.msra.mxu0 %v7590
    %7998 = vmatpush.bf16.msra.mxu0 %v7587
    %7999 = vmatpush.bf16.msra.mxu0 %v7584
    %8000 = vmatpush.bf16.msra.mxu0 %v7581
    %8001 = vmatmul.bf16.gmra.mxu0 %v7979
    %v8002 = vpop.f32.mrf.mxu0
    %v8003 = vadd.f32 0.0, %v8002
    %v8004 = vpop.f32.mrf.mxu0
    %8005 = vdwg.mxu0
    %8006 = vmatpush.bf16.msra.mxu0 %v7603
    %8007 = vmatpush.bf16.msra.mxu0 %v7600
    %8008 = vmatpush.bf16.msra.mxu0 %v7597
    %8009 = vmatpush.bf16.msra.mxu0 %v7594
    %8010 = vmatpush.bf16.msra.mxu0 %v7591
    %8011 = vmatpush.bf16.msra.mxu0 %v7588
    %8012 = vmatpush.bf16.msra.mxu0 %v7585
    %8013 = vmatpush.bf16.msra.mxu0 %v7582
    %8014 = vmatmul.bf16.gmra.mxu0 %v7979
    %v8015 = vpop.f32.mrf.mxu0
    %v8016 = vadd.f32 0.0, %v8015
    %v8017 = vpop.f32.mrf.mxu0
    %8018 = vdwg.mxu0
    %v8019 = vadd.f32 %v7395, %v7990
    %v8020 = vxor.u32 %v8019, 2147483648
    %v8021 = vmul.f32 %v8020, 1.442695
    %v8022 = vpow.pop %v8021
    %v8023 = vadd.f32 %v8022, 1.0
    %v8024 = vrcp.pop %v8023
    %v8025 = vmul.f32 %v8023, %v8024
    %v8026 = vsub.f32 1.0, %v8025
    %v8027 = vmul.f32 %v8024, %v8026
    %v8028 = vadd.f32 %v8024, %v8027
    %vm8029 = vweird.f32 %v8023
    %vm8030 = vweird.f32 %v8024
    %vm8031 = vmor %vm8029, %vm8030
    %v8032 = vsel %vm8031, %v8024, %v8028
    %v8033 = vand.u32 2147483647, %v8023
    %vm8034 = vcmp.eq.f32.partialorder %v8033, 8.507059e+37
    %v8035 = vand.u32 %v8023, 2147483648
    %v8036 = vor.u32 1.1754944e-38, %v8035
    %v8037 = vsel %vm8034, %v8036, %v8032
    %v8038 = vmul.f32 1.0, %v8037
    %v8039 = vadd.f32 %v7424, %v8003
    %v8040 = vxor.u32 %v8039, 2147483648
    %v8041 = vmul.f32 %v8040, 1.442695
    %v8042 = vpow.pop %v8041
    %v8043 = vadd.f32 %v8042, 1.0
    %v8044 = vrcp.pop %v8043
    %v8045 = vmul.f32 %v8043, %v8044
    %v8046 = vsub.f32 1.0, %v8045
    %v8047 = vmul.f32 %v8044, %v8046
    %v8048 = vadd.f32 %v8044, %v8047
    %vm8049 = vweird.f32 %v8043
    %vm8050 = vweird.f32 %v8044
    %vm8051 = vmor %vm8049, %vm8050
    %v8052 = vsel %vm8051, %v8044, %v8048
    %v8053 = vand.u32 2147483647, %v8043
    %vm8054 = vcmp.eq.f32.partialorder %v8053, 8.507059e+37
    %v8055 = vand.u32 %v8043, 2147483648
    %v8056 = vor.u32 1.1754944e-38, %v8055
    %v8057 = vsel %vm8054, %v8056, %v8052
    %v8058 = vmul.f32 1.0, %v8057
    %v8059 = vadd.f32 %v8016, %v7498
    %v8060 = vmul.f32 %v8038, %v8059
    %v8061 = vadd.f32 %v7453, %v8060
    %v8062 = vtanh.pop %v8061
    %v8063 = vsub.f32 1.0, %v8058
    %v8064 = vmul.f32 %v8063, %v8062
    %v8065 = vmul.f32 %v8058, %v7978
    %v8066 = vadd.f32 %v8064, %v8065
    %v8067 = vpack.c.bf16 %v8066, %v8066
    %8068 = vmatpush.bf16.msra.mxu0 %v7601
    %8069 = vmatpush.bf16.msra.mxu0 %v7598
    %8070 = vmatpush.bf16.msra.mxu0 %v7595
    %8071 = vmatpush.bf16.msra.mxu0 %v7592
    %8072 = vmatpush.bf16.msra.mxu0 %v7589
    %8073 = vmatpush.bf16.msra.mxu0 %v7586
    %8074 = vmatpush.bf16.msra.mxu0 %v7583
    %8075 = vmatpush.bf16.msra.mxu0 %v7580
    %8076 = vmatmul.bf16.gmra.mxu0 %v8067
    %v8077 = vpop.f32.mrf.mxu0
    %v8078 = vadd.f32 0.0, %v8077
    %v8079 = vpop.f32.mrf.mxu0
    %8080 = vdwg.mxu0
    %8081 = vmatpush.bf16.msra.mxu0 %v7602
    %8082 = vmatpush.bf16.msra.mxu0 %v7599
    %8083 = vmatpush.bf16.msra.mxu0 %v7596
    %8084 = vmatpush.bf16.msra.mxu0 %v7593
    %8085 = vmatpush.bf16.msra.mxu0 %v7590
    %8086 = vmatpush.bf16.msra.mxu0 %v7587
    %8087 = vmatpush.bf16.msra.mxu0 %v7584
    %8088 = vmatpush.bf16.msra.mxu0 %v7581
    %8089 = vmatmul.bf16.gmra.mxu0 %v8067
    %v8090 = vpop.f32.mrf.mxu0
    %v8091 = vadd.f32 0.0, %v8090
    %v8092 = vpop.f32.mrf.mxu0
    %8093 = vdwg.mxu0
    %8094 = vmatpush.bf16.msra.mxu0 %v7603
    %8095 = vmatpush.bf16.msra.mxu0 %v7600
    %8096 = vmatpush.bf16.msra.mxu0 %v7597
    %8097 = vmatpush.bf16.msra.mxu0 %v7594
    %8098 = vmatpush.bf16.msra.mxu0 %v7591
    %8099 = vmatpush.bf16.msra.mxu0 %v7588
    %8100 = vmatpush.bf16.msra.mxu0 %v7585
    %8101 = vmatpush.bf16.msra.mxu0 %v7582
    %8102 = vmatmul.bf16.gmra.mxu0 %v8067
    %v8103 = vpop.f32.mrf.mxu0
    %v8104 = vadd.f32 0.0, %v8103
    %v8105 = vpop.f32.mrf.mxu0
    %8106 = vdwg.mxu0
    %v8107 = vadd.f32 %v7397, %v8078
    %v8108 = vxor.u32 %v8107, 2147483648
    %v8109 = vmul.f32 %v8108, 1.442695
    %v8110 = vpow.pop %v8109
    %v8111 = vadd.f32 %v8110, 1.0
    %v8112 = vrcp.pop %v8111
    %v8113 = vmul.f32 %v8111, %v8112
    %v8114 = vsub.f32 1.0, %v8113
    %v8115 = vmul.f32 %v8112, %v8114
    %v8116 = vadd.f32 %v8112, %v8115
    %vm8117 = vweird.f32 %v8111
    %vm8118 = vweird.f32 %v8112
    %vm8119 = vmor %vm8117, %vm8118
    %v8120 = vsel %vm8119, %v8112, %v8116
    %v8121 = vand.u32 2147483647, %v8111
    %vm8122 = vcmp.eq.f32.partialorder %v8121, 8.507059e+37
    %v8123 = vand.u32 %v8111, 2147483648
    %v8124 = vor.u32 1.1754944e-38, %v8123
    %v8125 = vsel %vm8122, %v8124, %v8120
    %v8126 = vmul.f32 1.0, %v8125
    %v8127 = vadd.f32 %v7426, %v8091
    %v8128 = vxor.u32 %v8127, 2147483648
    %v8129 = vmul.f32 %v8128, 1.442695
    %v8130 = vpow.pop %v8129
    %v8131 = vadd.f32 %v8130, 1.0
    %v8132 = vrcp.pop %v8131
    %v8133 = vmul.f32 %v8131, %v8132
    %v8134 = vsub.f32 1.0, %v8133
    %v8135 = vmul.f32 %v8132, %v8134
    %v8136 = vadd.f32 %v8132, %v8135
    %vm8137 = vweird.f32 %v8131
    %vm8138 = vweird.f32 %v8132
    %vm8139 = vmor %vm8137, %vm8138
    %v8140 = vsel %vm8139, %v8132, %v8136
    %v8141 = vand.u32 2147483647, %v8131
    %vm8142 = vcmp.eq.f32.partialorder %v8141, 8.507059e+37
    %v8143 = vand.u32 %v8131, 2147483648
    %v8144 = vor.u32 1.1754944e-38, %v8143
    %v8145 = vsel %vm8142, %v8144, %v8140
    %v8146 = vmul.f32 1.0, %v8145
    %v8147 = vadd.f32 %v8104, %v7498
    %v8148 = vmul.f32 %v8126, %v8147
    %v8149 = vadd.f32 %v7455, %v8148
    %v8150 = vtanh.pop %v8149
    %v8151 = vsub.f32 1.0, %v8146
    %v8152 = vmul.f32 %v8151, %v8150
    %v8153 = vmul.f32 %v8146, %v8066
    %v8154 = vadd.f32 %v8152, %v8153
    %v8155 = vpack.c.bf16 %v8154, %v8154
    %8156 = vmatpush.bf16.msra.mxu0 %v7601
    %8157 = vmatpush.bf16.msra.mxu0 %v7598
    %8158 = vmatpush.bf16.msra.mxu0 %v7595
    %8159 = vmatpush.bf16.msra.mxu0 %v7592
    %8160 = vmatpush.bf16.msra.mxu0 %v7589
    %8161 = vmatpush.bf16.msra.mxu0 %v7586
    %8162 = vmatpush.bf16.msra.mxu0 %v7583
    %8163 = vmatpush.bf16.msra.mxu0 %v7580
    %8164 = vmatmul.bf16.gmra.mxu0 %v8155
    %v8165 = vpop.f32.mrf.mxu0
    %v8166 = vadd.f32 0.0, %v8165
    %v8167 = vpop.f32.mrf.mxu0
    %8168 = vdwg.mxu0
    %8169 = vmatpush.bf16.msra.mxu0 %v7602
    %8170 = vmatpush.bf16.msra.mxu0 %v7599
    %8171 = vmatpush.bf16.msra.mxu0 %v7596
    %8172 = vmatpush.bf16.msra.mxu0 %v7593
    %8173 = vmatpush.bf16.msra.mxu0 %v7590
    %8174 = vmatpush.bf16.msra.mxu0 %v7587
    %8175 = vmatpush.bf16.msra.mxu0 %v7584
    %8176 = vmatpush.bf16.msra.mxu0 %v7581
    %8177 = vmatmul.bf16.gmra.mxu0 %v8155
    %v8178 = vpop.f32.mrf.mxu0
    %v8179 = vadd.f32 0.0, %v8178
    %v8180 = vpop.f32.mrf.mxu0
    %8181 = vdwg.mxu0
    %8182 = vmatpush.bf16.msra.mxu0 %v7603
    %8183 = vmatpush.bf16.msra.mxu0 %v7600
    %8184 = vmatpush.bf16.msra.mxu0 %v7597
    %8185 = vmatpush.bf16.msra.mxu0 %v7594
    %8186 = vmatpush.bf16.msra.mxu0 %v7591
    %8187 = vmatpush.bf16.msra.mxu0 %v7588
    %8188 = vmatpush.bf16.msra.mxu0 %v7585
    %8189 = vmatpush.bf16.msra.mxu0 %v7582
    %8190 = vmatmul.bf16.gmra.mxu0 %v8155
    %v8191 = vpop.f32.mrf.mxu0
    %v8192 = vadd.f32 0.0, %v8191
    %v8193 = vpop.f32.mrf.mxu0
    %8194 = vdwg.mxu0
    %v8195 = vadd.f32 %v7400, %v8166
    %v8196 = vxor.u32 %v8195, 2147483648
    %v8197 = vmul.f32 %v8196, 1.442695
    %v8198 = vpow.pop %v8197
    %v8199 = vadd.f32 %v8198, 1.0
    %v8200 = vrcp.pop %v8199
    %v8201 = vmul.f32 %v8199, %v8200
    %v8202 = vsub.f32 1.0, %v8201
    %v8203 = vmul.f32 %v8200, %v8202
    %v8204 = vadd.f32 %v8200, %v8203
    %vm8205 = vweird.f32 %v8199
    %vm8206 = vweird.f32 %v8200
    %vm8207 = vmor %vm8205, %vm8206
    %v8208 = vsel %vm8207, %v8200, %v8204
    %v8209 = vand.u32 2147483647, %v8199
    %vm8210 = vcmp.eq.f32.partialorder %v8209, 8.507059e+37
    %v8211 = vand.u32 %v8199, 2147483648
    %v8212 = vor.u32 1.1754944e-38, %v8211
    %v8213 = vsel %vm8210, %v8212, %v8208
    %v8214 = vmul.f32 1.0, %v8213
    %v8215 = vadd.f32 %v7429, %v8179
    %v8216 = vxor.u32 %v8215, 2147483648
    %v8217 = vmul.f32 %v8216, 1.442695
    %v8218 = vpow.pop %v8217
    %v8219 = vadd.f32 %v8218, 1.0
    %v8220 = vrcp.pop %v8219
    %v8221 = vmul.f32 %v8219, %v8220
    %v8222 = vsub.f32 1.0, %v8221
    %v8223 = vmul.f32 %v8220, %v8222
    %v8224 = vadd.f32 %v8220, %v8223
    %vm8225 = vweird.f32 %v8219
    %vm8226 = vweird.f32 %v8220
    %vm8227 = vmor %vm8225, %vm8226
    %v8228 = vsel %vm8227, %v8220, %v8224
    %v8229 = vand.u32 2147483647, %v8219
    %vm8230 = vcmp.eq.f32.partialorder %v8229, 8.507059e+37
    %v8231 = vand.u32 %v8219, 2147483648
    %v8232 = vor.u32 1.1754944e-38, %v8231
    %v8233 = vsel %vm8230, %v8232, %v8228
    %v8234 = vmul.f32 1.0, %v8233
    %v8235 = vadd.f32 %v8192, %v7498
    %v8236 = vmul.f32 %v8214, %v8235
    %v8237 = vadd.f32 %v7458, %v8236
    %v8238 = vtanh.pop %v8237
    %v8239 = vsub.f32 1.0, %v8234
    %v8240 = vmul.f32 %v8239, %v8238
    %v8241 = vmul.f32 %v8234, %v8154
    %v8242 = vadd.f32 %v8240, %v8241
    %v8243 = vpack.c.bf16 %v8242, %v8242
    %8244 = vmatpush.bf16.msra.mxu0 %v7601
    %8245 = vmatpush.bf16.msra.mxu0 %v7598
    %8246 = vmatpush.bf16.msra.mxu0 %v7595
    %8247 = vmatpush.bf16.msra.mxu0 %v7592
    %8248 = vmatpush.bf16.msra.mxu0 %v7589
    %8249 = vmatpush.bf16.msra.mxu0 %v7586
    %8250 = vmatpush.bf16.msra.mxu0 %v7583
    %8251 = vmatpush.bf16.msra.mxu0 %v7580
    %8252 = vmatmul.bf16.gmra.mxu0 %v8243
    %v8253 = vpop.f32.mrf.mxu0
    %v8254 = vadd.f32 0.0, %v8253
    %v8255 = vpop.f32.mrf.mxu0
    %8256 = vdwg.mxu0
    %8257 = vmatpush.bf16.msra.mxu0 %v7602
    %8258 = vmatpush.bf16.msra.mxu0 %v7599
    %8259 = vmatpush.bf16.msra.mxu0 %v7596
    %8260 = vmatpush.bf16.msra.mxu0 %v7593
    %8261 = vmatpush.bf16.msra.mxu0 %v7590
    %8262 = vmatpush.bf16.msra.mxu0 %v7587
    %8263 = vmatpush.bf16.msra.mxu0 %v7584
    %8264 = vmatpush.bf16.msra.mxu0 %v7581
    %8265 = vmatmul.bf16.gmra.mxu0 %v8243
    %v8266 = vpop.f32.mrf.mxu0
    %v8267 = vadd.f32 0.0, %v8266
    %v8268 = vpop.f32.mrf.mxu0
    %8269 = vdwg.mxu0
    %8270 = vmatpush.bf16.msra.mxu0 %v7603
    %8271 = vmatpush.bf16.msra.mxu0 %v7600
    %8272 = vmatpush.bf16.msra.mxu0 %v7597
    %8273 = vmatpush.bf16.msra.mxu0 %v7594
    %8274 = vmatpush.bf16.msra.mxu0 %v7591
    %8275 = vmatpush.bf16.msra.mxu0 %v7588
    %8276 = vmatpush.bf16.msra.mxu0 %v7585
    %8277 = vmatpush.bf16.msra.mxu0 %v7582
    %8278 = vmatmul.bf16.gmra.mxu0 %v8243
    %v8279 = vpop.f32.mrf.mxu0
    %v8280 = vadd.f32 0.0, %v8279
    %v8281 = vpop.f32.mrf.mxu0
    %8282 = vdwg.mxu0
    %v8283 = vadd.f32 %v7402, %v8254
    %v8284 = vxor.u32 %v8283, 2147483648
    %v8285 = vmul.f32 %v8284, 1.442695
    %v8286 = vpow.pop %v8285
    %v8287 = vadd.f32 %v8286, 1.0
    %v8288 = vrcp.pop %v8287
    %v8289 = vmul.f32 %v8287, %v8288
    %v8290 = vsub.f32 1.0, %v8289
    %v8291 = vmul.f32 %v8288, %v8290
    %v8292 = vadd.f32 %v8288, %v8291
    %vm8293 = vweird.f32 %v8287
    %vm8294 = vweird.f32 %v8288
    %vm8295 = vmor %vm8293, %vm8294
    %v8296 = vsel %vm8295, %v8288, %v8292
    %v8297 = vand.u32 2147483647, %v8287
    %vm8298 = vcmp.eq.f32.partialorder %v8297, 8.507059e+37
    %v8299 = vand.u32 %v8287, 2147483648
    %v8300 = vor.u32 1.1754944e-38, %v8299
    %v8301 = vsel %vm8298, %v8300, %v8296
    %v8302 = vmul.f32 1.0, %v8301
    %v8303 = vadd.f32 %v7431, %v8267
    %v8304 = vxor.u32 %v8303, 2147483648
    %v8305 = vmul.f32 %v8304, 1.442695
    %v8306 = vpow.pop %v8305
    %v8307 = vadd.f32 %v8306, 1.0
    %v8308 = vrcp.pop %v8307
    %v8309 = vmul.f32 %v8307, %v8308
    %v8310 = vsub.f32 1.0, %v8309
    %v8311 = vmul.f32 %v8308, %v8310
    %v8312 = vadd.f32 %v8308, %v8311
    %vm8313 = vweird.f32 %v8307
    %vm8314 = vweird.f32 %v8308
    %vm8315 = vmor %vm8313, %vm8314
    %v8316 = vsel %vm8315, %v8308, %v8312
    %v8317 = vand.u32 2147483647, %v8307
    %vm8318 = vcmp.eq.f32.partialorder %v8317, 8.507059e+37
    %v8319 = vand.u32 %v8307, 2147483648
    %v8320 = vor.u32 1.1754944e-38, %v8319
    %v8321 = vsel %vm8318, %v8320, %v8316
    %v8322 = vmul.f32 1.0, %v8321
    %v8323 = vadd.f32 %v8280, %v7498
    %v8324 = vmul.f32 %v8302, %v8323
    %v8325 = vadd.f32 %v7460, %v8324
    %v8326 = vtanh.pop %v8325
    %v8327 = vsub.f32 1.0, %v8322
    %v8328 = vmul.f32 %v8327, %v8326
    %v8329 = vmul.f32 %v8322, %v8242
    %v8330 = vadd.f32 %v8328, %v8329
    %v8331 = vpack.c.bf16 %v8330, %v8330
    %v8332 = vld [vmem:[#allocation14] sm:$0xf]
    %v8333 = vld [vmem:[#allocation14 + $0x4] sm:$0xf]
    %v8334 = vld [vmem:[#allocation14 + $0x8] sm:$0xf]
    %v8335 = vld [vmem:[#allocation14 + $0xc] sm:$0xf]
    %v8336 = vld [vmem:[#allocation14 + $0x10] sm:$0xf]
    %v8337 = vld [vmem:[#allocation14 + $0x14] sm:$0xf]
    %v8338 = vld [vmem:[#allocation14 + $0x18] sm:$0xf]
    %v8339 = vld [vmem:[#allocation14 + $0x1c] sm:$0xf]
    %v8340 = vld [vmem:[#allocation14 + $0x20] sm:$0xf]
    %v8341 = vld [vmem:[#allocation14 + $0x24] sm:$0xf]
    %v8342 = vld [vmem:[#allocation14 + $0x28] sm:$0xf]
    %v8343 = vld [vmem:[#allocation14 + $0x2c] sm:$0xf]
    %v8344 = vld [vmem:[#allocation14 + $0x30] sm:$0xf]
    %v8345 = vld [vmem:[#allocation14 + $0x34] sm:$0xf]
    %v8346 = vld [vmem:[#allocation14 + $0x38] sm:$0xf]
    %v8347 = vld [vmem:[#allocation14 + $0x3c] sm:$0xf]
    %v8348 = vld [vmem:[%s10] sm:$0x1]
    %v8350 = vperm.slane %v8348, 0
    %v8368 = vunpack.c.l.b16 %v8332
    %v8369 = vunpack.c.l.b16 %v8333
    %v8370 = vunpack.c.l.b16 %v8334
    %v8371 = vunpack.c.l.b16 %v8335
    %v8372 = vunpack.c.l.b16 %v8336
    %v8373 = vunpack.c.l.b16 %v8337
    %v8374 = vunpack.c.l.b16 %v8338
    %v8375 = vunpack.c.l.b16 %v8339
    %v8376 = vunpack.c.l.b16 %v8340
    %v8377 = vunpack.c.l.b16 %v8341
    %v8378 = vunpack.c.l.b16 %v8342
    %v8379 = vunpack.c.l.b16 %v8343
    %v8380 = vunpack.c.l.b16 %v8344
    %v8381 = vunpack.c.l.b16 %v8345
    %v8382 = vunpack.c.l.b16 %v8346
    %v8383 = vunpack.c.l.b16 %v8347
    %v8384 = vpack.c.b16 %v8369, %v8368
    %v8385 = vpack.c.b16 %v8371, %v8370
    %v8386 = vpack.c.b16 %v8373, %v8372
    %v8387 = vpack.c.b16 %v8375, %v8374
    %v8388 = vpack.c.b16 %v8377, %v8376
    %v8389 = vpack.c.b16 %v8379, %v8378
    %v8390 = vpack.c.b16 %v8381, %v8380
    %v8391 = vpack.c.b16 %v8383, %v8382
    %8400 = vmatpush.bf16.msra.mxu0 %v8391
    %8401 = vmatpush.bf16.msra.mxu0 %v8390
    %8402 = vmatpush.bf16.msra.mxu0 %v8389
    %8403 = vmatpush.bf16.msra.mxu0 %v8388
    %8404 = vmatpush.bf16.msra.mxu0 %v8387
    %8405 = vmatpush.bf16.msra.mxu0 %v8386
    %8406 = vmatpush.bf16.msra.mxu0 %v8385
    %8407 = vmatpush.bf16.msra.mxu0 %v8384
    %8408 = vmatmul.bf16.gmra.mxu0 %v8331
    %v8409 = vpop.f32.mrf.mxu0
    %v8410 = vadd.f32 %v8350, %v8409
    %v8411 = vpop.f32.mrf.mxu0
    %8412 = vdwg.mxu0
    %v8413 = vmax.f32 %v8410, 0.0
    %v8414 = vpack.c.bf16 %v8413, %v8413
    %v8415 = vld [vmem:[#allocation16] sm:$0xf]
    %v8416 = vld [vmem:[#allocation16 + $0x4] sm:$0xf]
    %v8417 = vld [vmem:[#allocation16 + $0x8] sm:$0xf]
    %v8418 = vld [vmem:[#allocation16 + $0xc] sm:$0xf]
    %v8419 = vld [vmem:[#allocation16 + $0x10] sm:$0xf]
    %v8420 = vld [vmem:[#allocation16 + $0x14] sm:$0xf]
    %v8421 = vld [vmem:[#allocation16 + $0x18] sm:$0xf]
    %v8422 = vld [vmem:[#allocation16 + $0x1c] sm:$0xf]
    %v8423 = vld [vmem:[#allocation16 + $0x20] sm:$0xf]
    %v8424 = vld [vmem:[#allocation16 + $0x24] sm:$0xf]
    %v8425 = vld [vmem:[#allocation16 + $0x28] sm:$0xf]
    %v8426 = vld [vmem:[#allocation16 + $0x2c] sm:$0xf]
    %v8427 = vld [vmem:[#allocation16 + $0x30] sm:$0xf]
    %v8428 = vld [vmem:[#allocation16 + $0x34] sm:$0xf]
    %v8429 = vld [vmem:[#allocation16 + $0x38] sm:$0xf]
    %v8430 = vld [vmem:[#allocation16 + $0x3c] sm:$0xf]
    %v8431 = vld [vmem:[%s12] sm:$0x1]
    %v8433 = vperm.slane %v8431, 0
    %v8451 = vunpack.c.l.b16 %v8415
    %v8452 = vunpack.c.l.b16 %v8416
    %v8453 = vunpack.c.l.b16 %v8417
    %v8454 = vunpack.c.l.b16 %v8418
    %v8455 = vunpack.c.l.b16 %v8419
    %v8456 = vunpack.c.l.b16 %v8420
    %v8457 = vunpack.c.l.b16 %v8421
    %v8458 = vunpack.c.l.b16 %v8422
    %v8459 = vunpack.c.l.b16 %v8423
    %v8460 = vunpack.c.l.b16 %v8424
    %v8461 = vunpack.c.l.b16 %v8425
    %v8462 = vunpack.c.l.b16 %v8426
    %v8463 = vunpack.c.l.b16 %v8427
    %v8464 = vunpack.c.l.b16 %v8428
    %v8465 = vunpack.c.l.b16 %v8429
    %v8466 = vunpack.c.l.b16 %v8430
    %v8467 = vpack.c.b16 %v8452, %v8451
    %v8468 = vpack.c.b16 %v8454, %v8453
    %v8469 = vpack.c.b16 %v8456, %v8455
    %v8470 = vpack.c.b16 %v8458, %v8457
    %v8471 = vpack.c.b16 %v8460, %v8459
    %v8472 = vpack.c.b16 %v8462, %v8461
    %v8473 = vpack.c.b16 %v8464, %v8463
    %v8474 = vpack.c.b16 %v8466, %v8465
    %8483 = vmatpush.bf16.msra.mxu0 %v8474
    %8484 = vmatpush.bf16.msra.mxu0 %v8473
    %8485 = vmatpush.bf16.msra.mxu0 %v8472
    %8486 = vmatpush.bf16.msra.mxu0 %v8471
    %8487 = vmatpush.bf16.msra.mxu0 %v8470
    %8488 = vmatpush.bf16.msra.mxu0 %v8469
    %8489 = vmatpush.bf16.msra.mxu0 %v8468
    %8490 = vmatpush.bf16.msra.mxu0 %v8467
    %8491 = vmatmul.bf16.gmra.mxu0 %v8414
    %v8492 = vpop.f32.mrf.mxu0
    %v8493 = vadd.f32 %v8433, %v8492
    %v8494 = vpop.f32.mrf.mxu0
    %8495 = vdwg.mxu0
    %8496 = vst [vmem:[#allocation17] sm:$0xff] %v8493
    // Predicated region
    $region90: #{tpu_custom_call.1} parent=1 // pred_check
      _
    $region91: #{tpu_custom_call.1} parent=1 // pred_check_branch
      %8498 = sbr.rel (0) target = $region93
    $region92: #{tpu_custom_call.1} parent=1 // pred_region
      %8500 = vsyncadd [#allocation4], 0
      %s8502 = sshll.u32 [#allocation17], 4
      %s8503 = int_to_ptr.vmem [resolvable:$true] %s8502
      %s8504 = sshll.u32 %s13, 4
      %s8505 = int_to_ptr.hbm [resolvable:$true] %s8504
      %8507 = dma.vmem_to_hbm [thread:$0]  %s8503, 128, %s8505, [#allocation4]
    $region93: #{tpu_custom_call.1} parent=1 // pred_fallthru
      _
    // Predicated region
    $region94: #{tpu_custom_call.1} parent=1 // pred_check
      _
    $region95: #{tpu_custom_call.1} parent=1 // pred_check_branch
      %8509 = sbr.rel (0) target = $region97
    $region96: #{tpu_custom_call.1} parent=1 // pred_region
      %8511 = dma.done [#allocation4], 128
    $region97: #{tpu_custom_call.1} parent=1 // pred_fallthru
      _
    %8512 = vsyncpa [#allocation3], 1
    %8513 = vsyncpa [#allocation6], 1
    %8514 = vsyncpa [#allocation9], 1
    %8515 = vsyncpa [#allocation12], 1
    %8516 = vsyncpa [#allocation15], 1
    %8517 = vsyncpa [#allocation4], 1

</llo_original>
